<compile_context>
chip_gen: v5e
topology: v5e:2x2
jax: 0.10.0
libtpu: 0.0.40
codegen_flags: <defaults>
</compile_context>

<pallas_src>
import jax
import jax.numpy as jnp
from jax.experimental import pallas as pl
from jax.experimental.pallas import tpu as pltpu

BN_EPS = 1e-5


# ----------------------------- Pallas kernel ------------------------------- #

def fused_encoder_pool_kernel(x_ref, w1_ref, b1_ref, w2_ref, b2_ref,
                              w3_ref, b3_ref, ov_ref, oi_ref,
                              x_pad, act_pad, patch1, patch23):
    """One batch element: 3x (conv3x3 + folded-BN + ReLU) + fused 2x2 maxpool.

    x_ref   : (1, H, W, Cin) f32     un-padded input block
    wX_ref  : (9*CinX, Cout) bf16    folded weights, rows tap-major (k=ky*3+kx) then channel
    bX_ref  : (1, Cout) f32          folded bias (conv bias + BN shift)
    ov_ref  : (1, Ho*Wo, Cout) f32   pooled values
    oi_ref  : (1, Ho*Wo, Cout) i32   PyTorch-style flat argmax indices (h*W + w)
    x_pad   : VMEM (H+2, W+2, Cin)  f32  zero border, interior rewritten per step
    act_pad : VMEM (H+2, W+2, Cout) f32  shared by layer-1 and layer-2 outputs
    patch1  : VMEM (H*W, 9*Cin)  bf16    im2col patch, layer 1
    patch23 : VMEM (H*W, 9*Cout) bf16    im2col patch, layers 2 & 3
    """
    _, h, w, cin = x_ref.shape
    cout = ov_ref.shape[2]
    hw = h * w
    ho, wo = h // 2, w // 2
    hp2, wp2 = h + 2, w + 2

    # --- zero ONLY the 1-px halo border (interior is fully overwritten each
    # --- grid step, so no full-buffer zero-fill is ever issued).
    def zero_border(buf, c):
        buf[0:1, :, :] = jnp.zeros((1, wp2, c), buf.dtype)
        buf[hp2 - 1:hp2, :, :] = jnp.zeros((1, wp2, c), buf.dtype)
        buf[:, 0:1, :] = jnp.zeros((hp2, 1, c), buf.dtype)
        buf[:, wp2 - 1:wp2, :] = jnp.zeros((hp2, 1, c), buf.dtype)

    zero_border(x_pad, cin)
    zero_border(act_pad, cout)

    # un-padded input block -> interior of the halo buffer (no wrapper jnp.pad)
    x_pad[1:h + 1, 1:w + 1, :] = x_ref[0]

    def im2col(src_pad, patch, c):
        # Build the (HW, 9*C) patch once; column order k*C + channel matches the
        # folded weight row order, so ONE K=9*C matmul does the whole conv.
        for k in range(9):
            ky, kx = divmod(k, 3)
            patch[:, k * c:(k + 1) * c] = (
                src_pad[ky:ky + h, kx:kx + w, :]
                .reshape(hw, c).astype(patch.dtype))

    def conv_bn_relu(patch, w_ref, b_ref):
        # Single bf16 MXU matmul, f32 accumulate, folded-BN bias + ReLU epilogue.
        y = jnp.dot(patch[...], w_ref[...], preferred_element_type=jnp.float32)
        return jnp.maximum(y + b_ref[...], 0.0)            # (HW, Cout) f32

    # layer 1
    im2col(x_pad, patch1, cin)
    y = conv_bn_relu(patch1, w1_ref, b1_ref)
    act_pad[1:h + 1, 1:w + 1, :] = y.reshape(h, w, cout)

    # layer 2 (act_pad is fully consumed into patch23 before being overwritten)
    im2col(act_pad, patch23, cout)
    y = conv_bn_relu(patch23, w2_ref, b2_ref)
    act_pad[1:h + 1, 1:w + 1, :] = y.reshape(h, w, cout)

    # layer 3
    im2col(act_pad, patch23, cout)
    y3 = conv_bn_relu(patch23, w3_ref, b3_ref)             # (HW, Cout) f32

    # ---- fused 2x2 maxpool + argmax epilogue (pre-pool map never hits HBM) ----
    yw = y3.reshape(ho, 2, wo, 2, cout)
    v00 = yw[:, 0, :, 0, :]
    v01 = yw[:, 0, :, 1, :]
    v10 = yw[:, 1, :, 0, :]
    v11 = yw[:, 1, :, 1, :]

    row = jax.lax.broadcasted_iota(jnp.int32, (ho, wo, cout), 0) * 2
    col = jax.lax.broadcasted_iota(jnp.int32, (ho, wo, cout), 1) * 2

    best_v = v00
    best_i = row * w + col
    # strict '>' keeps the first (row-major) maximum on ties, matching PyTorch.
    for v, idx in ((v01, row * w + col + 1),
                   (v10, (row + 1) * w + col),
                   (v11, (row + 1) * w + col + 1)):
        upd = v > best_v
        best_v = jnp.where(upd, v, best_v)
        best_i = jnp.where(upd, idx, best_i)

    ov_ref[0] = best_v.reshape(ho * wo, cout).astype(ov_ref.dtype)
    oi_ref[0] = best_i.reshape(ho * wo, cout)


# ------------------------------- JAX wrappers ------------------------------ #

def _fold_bn(w, b, gamma, beta, mean, var, compute_dtype):
    """Fold inference BatchNorm into the conv.

    Returns (9*Cin, Cout) weights in compute_dtype (rows tap-major then channel)
    and a (1, Cout) f32 bias.
    """
    cout, cin = w.shape[0], w.shape[1]
    scale = gamma / jnp.sqrt(var + BN_EPS)
    w_taps = jnp.transpose(w, (2, 3, 1, 0)).reshape(9 * cin, cout)   # (ky,kx,cin,cout)
    w_folded = (w_taps * scale).astype(compute_dtype)
    bias = ((b - mean) * scale + beta).reshape(1, cout).astype(jnp.float32)
    return w_folded, bias


def _vmem_limit_bytes():
    # ~75% of physical VMEM: ~96 MiB on v5e/v6e (128 MiB parts), ~48 MiB on v7x
    # (64 MiB per TensorCore).  Conservative fallback if the query fails.
    try:
        cap = int(pltpu.get_tpu_info().vmem_capacity_bytes)
        return max(16 * 1024 * 1024, min(cap * 3 // 4, 110 * 1024 * 1024))
    except Exception:
        return 48 * 1024 * 1024


def segnet3_encoder_block(x_nchw, p1, p2, p3, compute_dtype=jnp.bfloat16):
    """(N, Cin, H, W) -> (pooled (N, Cout, H/2, W/2) f32, indices int32 same shape)."""
    n, cin, h, w = x_nchw.shape
    cout = p1[0].shape[0]
    ho, wo = h // 2, w // 2

    x = jnp.transpose(x_nchw, (0, 2, 3, 1))                 # NHWC for the kernel

    w1, b1 = _fold_bn(*p1, compute_dtype)
    w2, b2 = _fold_bn(*p2, compute_dtype)
    w3, b3 = _fold_bn(*p3, compute_dtype)

    vals, idxs = pl.pallas_call(
        fused_encoder_pool_kernel,
        out_shape=(jax.ShapeDtypeStruct((n, ho * wo, cout), jnp.float32),
                   jax.ShapeDtypeStruct((n, ho * wo, cout), jnp.int32)),
        grid=(n,),
        in_specs=[
            pl.BlockSpec((1, h, w, cin), lambda i: (i, 0, 0, 0)),
            # Constant-index weight/bias blocks: fetched once, stay VMEM-resident.
            # TODO(synk): at production weight sizes use pipeline_mode=pl.Buffered(1)
            # so the (never re-fetched) weights are not double-buffered.
            pl.BlockSpec((9 * cin, cout), lambda i: (0, 0)),
            pl.BlockSpec((1, cout), lambda i: (0, 0)),
            pl.BlockSpec((9 * cout, cout), lambda i: (0, 0)),
            pl.BlockSpec((1, cout), lambda i: (0, 0)),
            pl.BlockSpec((9 * cout, cout), lambda i: (0, 0)),
            pl.BlockSpec((1, cout), lambda i: (0, 0)),
        ],
        out_specs=(pl.BlockSpec((1, ho * wo, cout), lambda i: (i, 0, 0)),
                   pl.BlockSpec((1, ho * wo, cout), lambda i: (i, 0, 0))),
        scratch_shapes=[
            pltpu.VMEM((h + 2, w + 2, cin), jnp.float32),    # padded input halo
            pltpu.VMEM((h + 2, w + 2, cout), jnp.float32),   # padded act (reused L1/L2)
            pltpu.VMEM((h * w, 9 * cin), compute_dtype),     # im2col patch, layer 1
            pltpu.VMEM((h * w, 9 * cout), compute_dtype),    # im2col patch, layers 2/3
        ],
        compiler_params=pltpu.CompilerParams(
            dimension_semantics=("parallel",),
            vmem_limit_bytes=_vmem_limit_bytes()),
    )(x, w1, b1, w2, b2, w3, b3)

    vals = jnp.transpose(vals.reshape(n, ho, wo, cout), (0, 3, 1, 2))
    idxs = jnp.transpose(idxs.reshape(n, ho, wo, cout), (0, 3, 1, 2))
    return vals, idxs


# -------------------------------- reference -------------------------------- #

def _ref_forward(x_nchw, params_list):
    x = jnp.transpose(x_nchw, (0, 2, 3, 1))
    for (w, b, gamma, beta, mean, var) in params_list:
        w_hwio = jnp.transpose(w, (2, 3, 1, 0))
        y = jax.lax.conv_general_dilated(
            x, w_hwio, window_strides=(1, 1), padding=((1, 1), (1, 1)),
            dimension_numbers=('NHWC', 'HWIO', 'NHWC'),
            precision=jax.lax.Precision.HIGHEST)
        y = y + b
        scale = gamma / jnp.sqrt(var + BN_EPS)
        y = (y - mean) * scale + beta
        x = jnp.maximum(y, 0.0)
    n, h, wd, c = x.shape
    pooled = x.reshape(n, h // 2, 2, wd // 2, 2, c).max(axis=(2, 4))
    x3_nchw = jnp.transpose(x, (0, 3, 1, 2))
    return jnp.transpose(pooled, (0, 3, 1, 2)), x3_nchw


# ---------------------------------- main ----------------------------------- #

if __name__ == "__main__":
    key = jax.random.PRNGKey(0)
    keys = jax.random.split(key, 4)

    N, Cin, H, W = 2, 4, 16, 16
    Cout = 8

    x_nchw = jax.random.normal(keys[0], (N, Cin, H, W), jnp.float32)

    def make_block_params(k, cin, cout):
        ks = jax.random.split(k, 6)
        w = 0.1 * jax.random.normal(ks[0], (cout, cin, 3, 3), jnp.float32)
        b = 0.1 * jax.random.normal(ks[1], (cout,), jnp.float32)
        gamma = 1.0 + 0.1 * jax.random.normal(ks[2], (cout,), jnp.float32)
        beta = 0.1 * jax.random.normal(ks[3], (cout,), jnp.float32)
        mean = 0.1 * jax.random.normal(ks[4], (cout,), jnp.float32)
        var = jax.random.uniform(ks[5], (cout,), jnp.float32, 0.5, 1.5)
        return (w, b, gamma, beta, mean, var)

    p1 = make_block_params(keys[1], Cin, Cout)
    p2 = make_block_params(keys[2], Cout, Cout)
    p3 = make_block_params(keys[3], Cout, Cout)

    fwd = jax.jit(segnet3_encoder_block)
    outputs, indices = fwd(x_nchw, p1, p2, p3)
    outputs = jax.block_until_ready(outputs)
    indices = jax.block_until_ready(indices)

    # ---- correctness check vs pure-JAX f32 reference ----
    ref_out, x3_nchw = _ref_forward(x_nchw, [p1, p2, p3])
    assert outputs.shape == (N, Cout, H // 2, W // 2)
    assert indices.shape == (N, Cout, H // 2, W // 2)
    assert indices.dtype == jnp.int32
    # bf16 MXU operands through 3 stacked convs => looser tolerance than pure f32.
    assert jnp.allclose(outputs, ref_out, atol=5e-2, rtol=5e-2), (
        "max abs err = %f" % float(jnp.max(jnp.abs(outputs - ref_out))))

    # indices must point at (approximately) the pooled maxima of the pre-pool map;
    # comparison is against the f32 reference map, so use the same bf16 tolerance.
    flat = x3_nchw.reshape(N, Cout, H * W)
    gathered = jnp.take_along_axis(
        flat, indices.reshape(N, Cout, -1), axis=2).reshape(outputs.shape)
    assert jnp.allclose(gathered, outputs, atol=5e-2, rtol=5e-2)
    assert bool(jnp.all((indices >= 0) & (indices < H * W)))

    print("KERNEL_OK")
</pallas_src>

<mosaic_0001>
module attributes {stable_mosaic.version = 11 : i64} {
  func.func @fused_encoder_pool_kernel(%arg0: i32, %arg1: memref<1x16x16x4xf32, #tpu.memory_space<vmem>>, %arg2: memref<36x8xbf16, #tpu.memory_space<vmem>>, %arg3: memref<1x8xf32, #tpu.memory_space<vmem>>, %arg4: memref<72x8xbf16, #tpu.memory_space<vmem>>, %arg5: memref<1x8xf32, #tpu.memory_space<vmem>>, %arg6: memref<72x8xbf16, #tpu.memory_space<vmem>>, %arg7: memref<1x8xf32, #tpu.memory_space<vmem>>, %arg8: memref<1x64x8xf32, #tpu.memory_space<vmem>>, %arg9: memref<1x64x8xi32, #tpu.memory_space<vmem>>, %arg10: memref<18x18x4xf32, #tpu.memory_space<vmem>>, %arg11: memref<18x18x8xf32, #tpu.memory_space<vmem>>, %arg12: memref<256x36xbf16, #tpu.memory_space<vmem>>, %arg13: memref<256x72xbf16, #tpu.memory_space<vmem>>) attributes {dimension_semantics = [#tpu.dimension_semantics<parallel>], iteration_bounds = array<i64: 2>, scalar_prefetch = 0 : i64, scratch_operands = 4 : i64, tpu.core_type = #tpu.core_type<tc>, window_params = [{transform_indices = @transform_0, window_bounds = array<i64: 1, 16, 16, 4>}, {pipeline_mode = #tpu.pipeline_mode<synchronous>, transform_indices = @transform_1, window_bounds = array<i64: 36, 8>}, {pipeline_mode = #tpu.pipeline_mode<synchronous>, transform_indices = @transform_2, window_bounds = array<i64: 1, 8>}, {pipeline_mode = #tpu.pipeline_mode<synchronous>, transform_indices = @transform_3, window_bounds = array<i64: 72, 8>}, {pipeline_mode = #tpu.pipeline_mode<synchronous>, transform_indices = @transform_4, window_bounds = array<i64: 1, 8>}, {pipeline_mode = #tpu.pipeline_mode<synchronous>, transform_indices = @transform_5, window_bounds = array<i64: 72, 8>}, {pipeline_mode = #tpu.pipeline_mode<synchronous>, transform_indices = @transform_6, window_bounds = array<i64: 1, 8>}, {transform_indices = @transform_7, window_bounds = array<i64: 1, 64, 8>}, {transform_indices = @transform_8, window_bounds = array<i64: 1, 64, 8>}]} {
    %cst = arith.constant 0.000000e+00 : f32
    %0 = vector.broadcast %cst : f32 to vector<1x18x4xf32>
    %c0 = arith.constant 0 : index
    %c0_0 = arith.constant 0 : index
    %c0_1 = arith.constant 0 : index
    %1 = vector.load %arg10[%c0, %c0_0, %c0_1] : memref<18x18x4xf32, #tpu.memory_space<vmem>>, vector<1x18x4xf32>
    tpu.vector_store %arg10[%c0, %c0_0, %c0_1], %0 {strides = array<i32>} : memref<18x18x4xf32, #tpu.memory_space<vmem>>, vector<1x18x4xf32>,
    %cst_2 = arith.constant 0.000000e+00 : f32
    %2 = vector.broadcast %cst_2 : f32 to vector<1x18x4xf32>
    %c17 = arith.constant 17 : index
    %c0_3 = arith.constant 0 : index
    %c0_4 = arith.constant 0 : index
    %3 = vector.load %arg10[%c17, %c0_3, %c0_4] : memref<18x18x4xf32, #tpu.memory_space<vmem>>, vector<1x18x4xf32>
    tpu.vector_store %arg10[%c17, %c0_3, %c0_4], %2 {strides = array<i32>} : memref<18x18x4xf32, #tpu.memory_space<vmem>>, vector<1x18x4xf32>,
    %cst_5 = arith.constant 0.000000e+00 : f32
    %4 = vector.broadcast %cst_5 : f32 to vector<18x1x4xf32>
    %c0_6 = arith.constant 0 : index
    %c0_7 = arith.constant 0 : index
    %c0_8 = arith.constant 0 : index
    %5 = vector.load %arg10[%c0_6, %c0_7, %c0_8] : memref<18x18x4xf32, #tpu.memory_space<vmem>>, vector<18x1x4xf32>
    tpu.vector_store %arg10[%c0_6, %c0_7, %c0_8], %4 {strides = array<i32>} : memref<18x18x4xf32, #tpu.memory_space<vmem>>, vector<18x1x4xf32>,
    %cst_9 = arith.constant 0.000000e+00 : f32
    %6 = vector.broadcast %cst_9 : f32 to vector<18x1x4xf32>
    %c0_10 = arith.constant 0 : index
    %c17_11 = arith.constant 17 : index
    %c0_12 = arith.constant 0 : index
    %7 = vector.load %arg10[%c0_10, %c17_11, %c0_12] : memref<18x18x4xf32, #tpu.memory_space<vmem>>, vector<18x1x4xf32>
    tpu.vector_store %arg10[%c0_10, %c17_11, %c0_12], %6 {strides = array<i32>} : memref<18x18x4xf32, #tpu.memory_space<vmem>>, vector<18x1x4xf32>,
    %cst_13 = arith.constant 0.000000e+00 : f32
    %8 = vector.broadcast %cst_13 : f32 to vector<1x18x8xf32>
    %c0_14 = arith.constant 0 : index
    %c0_15 = arith.constant 0 : index
    %c0_16 = arith.constant 0 : index
    %9 = vector.load %arg11[%c0_14, %c0_15, %c0_16] : memref<18x18x8xf32, #tpu.memory_space<vmem>>, vector<1x18x8xf32>
    tpu.vector_store %arg11[%c0_14, %c0_15, %c0_16], %8 {strides = array<i32>} : memref<18x18x8xf32, #tpu.memory_space<vmem>>, vector<1x18x8xf32>,
    %cst_17 = arith.constant 0.000000e+00 : f32
    %10 = vector.broadcast %cst_17 : f32 to vector<1x18x8xf32>
    %c17_18 = arith.constant 17 : index
    %c0_19 = arith.constant 0 : index
    %c0_20 = arith.constant 0 : index
    %11 = vector.load %arg11[%c17_18, %c0_19, %c0_20] : memref<18x18x8xf32, #tpu.memory_space<vmem>>, vector<1x18x8xf32>
    tpu.vector_store %arg11[%c17_18, %c0_19, %c0_20], %10 {strides = array<i32>} : memref<18x18x8xf32, #tpu.memory_space<vmem>>, vector<1x18x8xf32>,
    %cst_21 = arith.constant 0.000000e+00 : f32
    %12 = vector.broadcast %cst_21 : f32 to vector<18x1x8xf32>
    %c0_22 = arith.constant 0 : index
    %c0_23 = arith.constant 0 : index
    %c0_24 = arith.constant 0 : index
    %13 = vector.load %arg11[%c0_22, %c0_23, %c0_24] : memref<18x18x8xf32, #tpu.memory_space<vmem>>, vector<18x1x8xf32>
    tpu.vector_store %arg11[%c0_22, %c0_23, %c0_24], %12 {strides = array<i32>} : memref<18x18x8xf32, #tpu.memory_space<vmem>>, vector<18x1x8xf32>,
    %cst_25 = arith.constant 0.000000e+00 : f32
    %14 = vector.broadcast %cst_25 : f32 to vector<18x1x8xf32>
    %c0_26 = arith.constant 0 : index
    %c17_27 = arith.constant 17 : index
    %c0_28 = arith.constant 0 : index
    %15 = vector.load %arg11[%c0_26, %c17_27, %c0_28] : memref<18x18x8xf32, #tpu.memory_space<vmem>>, vector<18x1x8xf32>
    tpu.vector_store %arg11[%c0_26, %c17_27, %c0_28], %14 {strides = array<i32>} : memref<18x18x8xf32, #tpu.memory_space<vmem>>, vector<18x1x8xf32>,
    %c0_29 = arith.constant 0 : index
    %c0_30 = arith.constant 0 : index
    %c0_31 = arith.constant 0 : index
    %c0_32 = arith.constant 0 : index
    %16 = vector.load %arg1[%c0_29, %c0_30, %c0_31, %c0_32] : memref<1x16x16x4xf32, #tpu.memory_space<vmem>>, vector<1x16x16x4xf32>
    %17 = vector.shape_cast %16 : vector<1x16x16x4xf32> to vector<16x16x4xf32>
    %c1 = arith.constant 1 : index
    %c1_33 = arith.constant 1 : index
    %c0_34 = arith.constant 0 : index
    %18 = vector.load %arg10[%c1, %c1_33, %c0_34] : memref<18x18x4xf32, #tpu.memory_space<vmem>>, vector<16x16x4xf32>
    tpu.vector_store %arg10[%c1, %c1_33, %c0_34], %17 {strides = array<i32>} : memref<18x18x4xf32, #tpu.memory_space<vmem>>, vector<16x16x4xf32>,
    %c0_35 = arith.constant 0 : index
    %c0_36 = arith.constant 0 : index
    %c0_37 = arith.constant 0 : index
    %19 = vector.load %arg10[%c0_35, %c0_36, %c0_37] : memref<18x18x4xf32, #tpu.memory_space<vmem>>, vector<16x16x4xf32>
    %20 = vector.shape_cast %19 : vector<16x16x4xf32> to vector<256x4xf32>
    %21 = arith.truncf %20 : vector<256x4xf32> to vector<256x4xbf16>
    %c0_38 = arith.constant 0 : index
    %c0_39 = arith.constant 0 : index
    %22 = vector.load %arg12[%c0_38, %c0_39] : memref<256x36xbf16, #tpu.memory_space<vmem>>, vector<256x4xbf16>
    tpu.vector_store %arg12[%c0_38, %c0_39], %21 {strides = array<i32>} : memref<256x36xbf16, #tpu.memory_space<vmem>>, vector<256x4xbf16>,
    %c0_40 = arith.constant 0 : index
    %c1_41 = arith.constant 1 : index
    %c0_42 = arith.constant 0 : index
    %23 = vector.load %arg10[%c0_40, %c1_41, %c0_42] : memref<18x18x4xf32, #tpu.memory_space<vmem>>, vector<16x16x4xf32>
    %24 = vector.shape_cast %23 : vector<16x16x4xf32> to vector<256x4xf32>
    %25 = arith.truncf %24 : vector<256x4xf32> to vector<256x4xbf16>
    %c0_43 = arith.constant 0 : index
    %c4 = arith.constant 4 : index
    %26 = vector.load %arg12[%c0_43, %c4] : memref<256x36xbf16, #tpu.memory_space<vmem>>, vector<256x4xbf16>
    tpu.vector_store %arg12[%c0_43, %c4], %25 {strides = array<i32>} : memref<256x36xbf16, #tpu.memory_space<vmem>>, vector<256x4xbf16>,
    %c0_44 = arith.constant 0 : index
    %c2 = arith.constant 2 : index
    %c0_45 = arith.constant 0 : index
    %27 = vector.load %arg10[%c0_44, %c2, %c0_45] : memref<18x18x4xf32, #tpu.memory_space<vmem>>, vector<16x16x4xf32>
    %28 = vector.shape_cast %27 : vector<16x16x4xf32> to vector<256x4xf32>
    %29 = arith.truncf %28 : vector<256x4xf32> to vector<256x4xbf16>
    %c0_46 = arith.constant 0 : index
    %c8 = arith.constant 8 : index
    %30 = vector.load %arg12[%c0_46, %c8] : memref<256x36xbf16, #tpu.memory_space<vmem>>, vector<256x4xbf16>
    tpu.vector_store %arg12[%c0_46, %c8], %29 {strides = array<i32>} : memref<256x36xbf16, #tpu.memory_space<vmem>>, vector<256x4xbf16>,
    %c1_47 = arith.constant 1 : index
    %c0_48 = arith.constant 0 : index
    %c0_49 = arith.constant 0 : index
    %31 = vector.load %arg10[%c1_47, %c0_48, %c0_49] : memref<18x18x4xf32, #tpu.memory_space<vmem>>, vector<16x16x4xf32>
    %32 = vector.shape_cast %31 : vector<16x16x4xf32> to vector<256x4xf32>
    %33 = arith.truncf %32 : vector<256x4xf32> to vector<256x4xbf16>
    %c0_50 = arith.constant 0 : index
    %c12 = arith.constant 12 : index
    %34 = vector.load %arg12[%c0_50, %c12] : memref<256x36xbf16, #tpu.memory_space<vmem>>, vector<256x4xbf16>
    tpu.vector_store %arg12[%c0_50, %c12], %33 {strides = array<i32>} : memref<256x36xbf16, #tpu.memory_space<vmem>>, vector<256x4xbf16>,
    %c1_51 = arith.constant 1 : index
    %c1_52 = arith.constant 1 : index
    %c0_53 = arith.constant 0 : index
    %35 = vector.load %arg10[%c1_51, %c1_52, %c0_53] : memref<18x18x4xf32, #tpu.memory_space<vmem>>, vector<16x16x4xf32>
    %36 = vector.shape_cast %35 : vector<16x16x4xf32> to vector<256x4xf32>
    %37 = arith.truncf %36 : vector<256x4xf32> to vector<256x4xbf16>
    %c0_54 = arith.constant 0 : index
    %c16 = arith.constant 16 : index
    %38 = vector.load %arg12[%c0_54, %c16] : memref<256x36xbf16, #tpu.memory_space<vmem>>, vector<256x4xbf16>
    tpu.vector_store %arg12[%c0_54, %c16], %37 {strides = array<i32>} : memref<256x36xbf16, #tpu.memory_space<vmem>>, vector<256x4xbf16>,
    %c1_55 = arith.constant 1 : index
    %c2_56 = arith.constant 2 : index
    %c0_57 = arith.constant 0 : index
    %39 = vector.load %arg10[%c1_55, %c2_56, %c0_57] : memref<18x18x4xf32, #tpu.memory_space<vmem>>, vector<16x16x4xf32>
    %40 = vector.shape_cast %39 : vector<16x16x4xf32> to vector<256x4xf32>
    %41 = arith.truncf %40 : vector<256x4xf32> to vector<256x4xbf16>
    %c0_58 = arith.constant 0 : index
    %c20 = arith.constant 20 : index
    %42 = vector.load %arg12[%c0_58, %c20] : memref<256x36xbf16, #tpu.memory_space<vmem>>, vector<256x4xbf16>
    tpu.vector_store %arg12[%c0_58, %c20], %41 {strides = array<i32>} : memref<256x36xbf16, #tpu.memory_space<vmem>>, vector<256x4xbf16>,
    %c2_59 = arith.constant 2 : index
    %c0_60 = arith.constant 0 : index
    %c0_61 = arith.constant 0 : index
    %43 = vector.load %arg10[%c2_59, %c0_60, %c0_61] : memref<18x18x4xf32, #tpu.memory_space<vmem>>, vector<16x16x4xf32>
    %44 = vector.shape_cast %43 : vector<16x16x4xf32> to vector<256x4xf32>
    %45 = arith.truncf %44 : vector<256x4xf32> to vector<256x4xbf16>
    %c0_62 = arith.constant 0 : index
    %c24 = arith.constant 24 : index
    %46 = vector.load %arg12[%c0_62, %c24] : memref<256x36xbf16, #tpu.memory_space<vmem>>, vector<256x4xbf16>
    tpu.vector_store %arg12[%c0_62, %c24], %45 {strides = array<i32>} : memref<256x36xbf16, #tpu.memory_space<vmem>>, vector<256x4xbf16>,
    %c2_63 = arith.constant 2 : index
    %c1_64 = arith.constant 1 : index
    %c0_65 = arith.constant 0 : index
    %47 = vector.load %arg10[%c2_63, %c1_64, %c0_65] : memref<18x18x4xf32, #tpu.memory_space<vmem>>, vector<16x16x4xf32>
    %48 = vector.shape_cast %47 : vector<16x16x4xf32> to vector<256x4xf32>
    %49 = arith.truncf %48 : vector<256x4xf32> to vector<256x4xbf16>
    %c0_66 = arith.constant 0 : index
    %c28 = arith.constant 28 : index
    %50 = vector.load %arg12[%c0_66, %c28] : memref<256x36xbf16, #tpu.memory_space<vmem>>, vector<256x4xbf16>
    tpu.vector_store %arg12[%c0_66, %c28], %49 {strides = array<i32>} : memref<256x36xbf16, #tpu.memory_space<vmem>>, vector<256x4xbf16>,
    %c2_67 = arith.constant 2 : index
    %c2_68 = arith.constant 2 : index
    %c0_69 = arith.constant 0 : index
    %51 = vector.load %arg10[%c2_67, %c2_68, %c0_69] : memref<18x18x4xf32, #tpu.memory_space<vmem>>, vector<16x16x4xf32>
    %52 = vector.shape_cast %51 : vector<16x16x4xf32> to vector<256x4xf32>
    %53 = arith.truncf %52 : vector<256x4xf32> to vector<256x4xbf16>
    %c0_70 = arith.constant 0 : index
    %c32 = arith.constant 32 : index
    %54 = vector.load %arg12[%c0_70, %c32] : memref<256x36xbf16, #tpu.memory_space<vmem>>, vector<256x4xbf16>
    tpu.vector_store %arg12[%c0_70, %c32], %53 {strides = array<i32>} : memref<256x36xbf16, #tpu.memory_space<vmem>>, vector<256x4xbf16>,
    %c0_71 = arith.constant 0 : index
    %c0_72 = arith.constant 0 : index
    %55 = vector.load %arg12[%c0_71, %c0_72] : memref<256x36xbf16, #tpu.memory_space<vmem>>, vector<256x36xbf16>
    %c0_73 = arith.constant 0 : index
    %c0_74 = arith.constant 0 : index
    %56 = vector.load %arg2[%c0_73, %c0_74] : memref<36x8xbf16, #tpu.memory_space<vmem>>, vector<36x8xbf16>
    %cst_75 = arith.constant dense<0.000000e+00> : vector<256x8xf32>
    %57 = tpu.matmul %55, %56, %cst_75 {dimension_numbers = #tpu.dot_dimension_numbers<[1], [0], [0], [1], [0, 0, 1, 1], [], []>} : vector<256x36xbf16>, vector<36x8xbf16>, vector<256x8xf32> -> vector<256x8xf32>
    %c0_76 = arith.constant 0 : index
    %c0_77 = arith.constant 0 : index
    %58 = vector.load %arg3[%c0_76, %c0_77] : memref<1x8xf32, #tpu.memory_space<vmem>>, vector<1x8xf32>
    %59 = vector.broadcast %58 : vector<1x8xf32> to vector<256x8xf32>
    %60 = arith.addf %57, %59 : vector<256x8xf32>
    %cst_78 = arith.constant 0.000000e+00 : f32
    %61 = vector.broadcast %cst_78 : f32 to vector<256x8xf32>
    %62 = arith.maximumf %60, %61 : vector<256x8xf32>
    %63 = vector.shape_cast %62 : vector<256x8xf32> to vector<16x16x8xf32>
    %c1_79 = arith.constant 1 : index
    %c1_80 = arith.constant 1 : index
    %c0_81 = arith.constant 0 : index
    %64 = vector.load %arg11[%c1_79, %c1_80, %c0_81] : memref<18x18x8xf32, #tpu.memory_space<vmem>>, vector<16x16x8xf32>
    tpu.vector_store %arg11[%c1_79, %c1_80, %c0_81], %63 {strides = array<i32>} : memref<18x18x8xf32, #tpu.memory_space<vmem>>, vector<16x16x8xf32>,
    %c0_82 = arith.constant 0 : index
    %c0_83 = arith.constant 0 : index
    %c0_84 = arith.constant 0 : index
    %65 = vector.load %arg11[%c0_82, %c0_83, %c0_84] : memref<18x18x8xf32, #tpu.memory_space<vmem>>, vector<16x16x8xf32>
    %66 = vector.shape_cast %65 : vector<16x16x8xf32> to vector<256x8xf32>
    %67 = arith.truncf %66 : vector<256x8xf32> to vector<256x8xbf16>
    %c0_85 = arith.constant 0 : index
    %c0_86 = arith.constant 0 : index
    %68 = vector.load %arg13[%c0_85, %c0_86] : memref<256x72xbf16, #tpu.memory_space<vmem>>, vector<256x8xbf16>
    tpu.vector_store %arg13[%c0_85, %c0_86], %67 {strides = array<i32>} : memref<256x72xbf16, #tpu.memory_space<vmem>>, vector<256x8xbf16>,
    %c0_87 = arith.constant 0 : index
    %c1_88 = arith.constant 1 : index
    %c0_89 = arith.constant 0 : index
    %69 = vector.load %arg11[%c0_87, %c1_88, %c0_89] : memref<18x18x8xf32, #tpu.memory_space<vmem>>, vector<16x16x8xf32>
    %70 = vector.shape_cast %69 : vector<16x16x8xf32> to vector<256x8xf32>
    %71 = arith.truncf %70 : vector<256x8xf32> to vector<256x8xbf16>
    %c0_90 = arith.constant 0 : index
    %c8_91 = arith.constant 8 : index
    %72 = vector.load %arg13[%c0_90, %c8_91] : memref<256x72xbf16, #tpu.memory_space<vmem>>, vector<256x8xbf16>
    tpu.vector_store %arg13[%c0_90, %c8_91], %71 {strides = array<i32>} : memref<256x72xbf16, #tpu.memory_space<vmem>>, vector<256x8xbf16>,
    %c0_92 = arith.constant 0 : index
    %c2_93 = arith.constant 2 : index
    %c0_94 = arith.constant 0 : index
    %73 = vector.load %arg11[%c0_92, %c2_93, %c0_94] : memref<18x18x8xf32, #tpu.memory_space<vmem>>, vector<16x16x8xf32>
    %74 = vector.shape_cast %73 : vector<16x16x8xf32> to vector<256x8xf32>
    %75 = arith.truncf %74 : vector<256x8xf32> to vector<256x8xbf16>
    %c0_95 = arith.constant 0 : index
    %c16_96 = arith.constant 16 : index
    %76 = vector.load %arg13[%c0_95, %c16_96] : memref<256x72xbf16, #tpu.memory_space<vmem>>, vector<256x8xbf16>
    tpu.vector_store %arg13[%c0_95, %c16_96], %75 {strides = array<i32>} : memref<256x72xbf16, #tpu.memory_space<vmem>>, vector<256x8xbf16>,
    %c1_97 = arith.constant 1 : index
    %c0_98 = arith.constant 0 : index
    %c0_99 = arith.constant 0 : index
    %77 = vector.load %arg11[%c1_97, %c0_98, %c0_99] : memref<18x18x8xf32, #tpu.memory_space<vmem>>, vector<16x16x8xf32>
    %78 = vector.shape_cast %77 : vector<16x16x8xf32> to vector<256x8xf32>
    %79 = arith.truncf %78 : vector<256x8xf32> to vector<256x8xbf16>
    %c0_100 = arith.constant 0 : index
    %c24_101 = arith.constant 24 : index
    %80 = vector.load %arg13[%c0_100, %c24_101] : memref<256x72xbf16, #tpu.memory_space<vmem>>, vector<256x8xbf16>
    tpu.vector_store %arg13[%c0_100, %c24_101], %79 {strides = array<i32>} : memref<256x72xbf16, #tpu.memory_space<vmem>>, vector<256x8xbf16>,
    %c1_102 = arith.constant 1 : index
    %c1_103 = arith.constant 1 : index
    %c0_104 = arith.constant 0 : index
    %81 = vector.load %arg11[%c1_102, %c1_103, %c0_104] : memref<18x18x8xf32, #tpu.memory_space<vmem>>, vector<16x16x8xf32>
    %82 = vector.shape_cast %81 : vector<16x16x8xf32> to vector<256x8xf32>
    %83 = arith.truncf %82 : vector<256x8xf32> to vector<256x8xbf16>
    %c0_105 = arith.constant 0 : index
    %c32_106 = arith.constant 32 : index
    %84 = vector.load %arg13[%c0_105, %c32_106] : memref<256x72xbf16, #tpu.memory_space<vmem>>, vector<256x8xbf16>
    tpu.vector_store %arg13[%c0_105, %c32_106], %83 {strides = array<i32>} : memref<256x72xbf16, #tpu.memory_space<vmem>>, vector<256x8xbf16>,
    %c1_107 = arith.constant 1 : index
    %c2_108 = arith.constant 2 : index
    %c0_109 = arith.constant 0 : index
    %85 = vector.load %arg11[%c1_107, %c2_108, %c0_109] : memref<18x18x8xf32, #tpu.memory_space<vmem>>, vector<16x16x8xf32>
    %86 = vector.shape_cast %85 : vector<16x16x8xf32> to vector<256x8xf32>
    %87 = arith.truncf %86 : vector<256x8xf32> to vector<256x8xbf16>
    %c0_110 = arith.constant 0 : index
    %c40 = arith.constant 40 : index
    %88 = vector.load %arg13[%c0_110, %c40] : memref<256x72xbf16, #tpu.memory_space<vmem>>, vector<256x8xbf16>
    tpu.vector_store %arg13[%c0_110, %c40], %87 {strides = array<i32>} : memref<256x72xbf16, #tpu.memory_space<vmem>>, vector<256x8xbf16>,
    %c2_111 = arith.constant 2 : index
    %c0_112 = arith.constant 0 : index
    %c0_113 = arith.constant 0 : index
    %89 = vector.load %arg11[%c2_111, %c0_112, %c0_113] : memref<18x18x8xf32, #tpu.memory_space<vmem>>, vector<16x16x8xf32>
    %90 = vector.shape_cast %89 : vector<16x16x8xf32> to vector<256x8xf32>
    %91 = arith.truncf %90 : vector<256x8xf32> to vector<256x8xbf16>
    %c0_114 = arith.constant 0 : index
    %c48 = arith.constant 48 : index
    %92 = vector.load %arg13[%c0_114, %c48] : memref<256x72xbf16, #tpu.memory_space<vmem>>, vector<256x8xbf16>
    tpu.vector_store %arg13[%c0_114, %c48], %91 {strides = array<i32>} : memref<256x72xbf16, #tpu.memory_space<vmem>>, vector<256x8xbf16>,
    %c2_115 = arith.constant 2 : index
    %c1_116 = arith.constant 1 : index
    %c0_117 = arith.constant 0 : index
    %93 = vector.load %arg11[%c2_115, %c1_116, %c0_117] : memref<18x18x8xf32, #tpu.memory_space<vmem>>, vector<16x16x8xf32>
    %94 = vector.shape_cast %93 : vector<16x16x8xf32> to vector<256x8xf32>
    %95 = arith.truncf %94 : vector<256x8xf32> to vector<256x8xbf16>
    %c0_118 = arith.constant 0 : index
    %c56 = arith.constant 56 : index
    %96 = vector.load %arg13[%c0_118, %c56] : memref<256x72xbf16, #tpu.memory_space<vmem>>, vector<256x8xbf16>
    tpu.vector_store %arg13[%c0_118, %c56], %95 {strides = array<i32>} : memref<256x72xbf16, #tpu.memory_space<vmem>>, vector<256x8xbf16>,
    %c2_119 = arith.constant 2 : index
    %c2_120 = arith.constant 2 : index
    %c0_121 = arith.constant 0 : index
    %97 = vector.load %arg11[%c2_119, %c2_120, %c0_121] : memref<18x18x8xf32, #tpu.memory_space<vmem>>, vector<16x16x8xf32>
    %98 = vector.shape_cast %97 : vector<16x16x8xf32> to vector<256x8xf32>
    %99 = arith.truncf %98 : vector<256x8xf32> to vector<256x8xbf16>
    %c0_122 = arith.constant 0 : index
    %c64 = arith.constant 64 : index
    %100 = vector.load %arg13[%c0_122, %c64] : memref<256x72xbf16, #tpu.memory_space<vmem>>, vector<256x8xbf16>
    tpu.vector_store %arg13[%c0_122, %c64], %99 {strides = array<i32>} : memref<256x72xbf16, #tpu.memory_space<vmem>>, vector<256x8xbf16>,
    %c0_123 = arith.constant 0 : index
    %c0_124 = arith.constant 0 : index
    %101 = vector.load %arg13[%c0_123, %c0_124] : memref<256x72xbf16, #tpu.memory_space<vmem>>, vector<256x72xbf16>
    %c0_125 = arith.constant 0 : index
    %c0_126 = arith.constant 0 : index
    %102 = vector.load %arg4[%c0_125, %c0_126] : memref<72x8xbf16, #tpu.memory_space<vmem>>, vector<72x8xbf16>
    %cst_127 = arith.constant dense<0.000000e+00> : vector<256x8xf32>
    %103 = tpu.matmul %101, %102, %cst_127 {dimension_numbers = #tpu.dot_dimension_numbers<[1], [0], [0], [1], [0, 0, 1, 1], [], []>} : vector<256x72xbf16>, vector<72x8xbf16>, vector<256x8xf32> -> vector<256x8xf32>
    %c0_128 = arith.constant 0 : index
    %c0_129 = arith.constant 0 : index
    %104 = vector.load %arg5[%c0_128, %c0_129] : memref<1x8xf32, #tpu.memory_space<vmem>>, vector<1x8xf32>
    %105 = vector.broadcast %104 : vector<1x8xf32> to vector<256x8xf32>
    %106 = arith.addf %103, %105 : vector<256x8xf32>
    %cst_130 = arith.constant 0.000000e+00 : f32
    %107 = vector.broadcast %cst_130 : f32 to vector<256x8xf32>
    %108 = arith.maximumf %106, %107 : vector<256x8xf32>
    %109 = vector.shape_cast %108 : vector<256x8xf32> to vector<16x16x8xf32>
    %c1_131 = arith.constant 1 : index
    %c1_132 = arith.constant 1 : index
    %c0_133 = arith.constant 0 : index
    %110 = vector.load %arg11[%c1_131, %c1_132, %c0_133] : memref<18x18x8xf32, #tpu.memory_space<vmem>>, vector<16x16x8xf32>
    tpu.vector_store %arg11[%c1_131, %c1_132, %c0_133], %109 {strides = array<i32>} : memref<18x18x8xf32, #tpu.memory_space<vmem>>, vector<16x16x8xf32>,
    %c0_134 = arith.constant 0 : index
    %c0_135 = arith.constant 0 : index
    %c0_136 = arith.constant 0 : index
    %111 = vector.load %arg11[%c0_134, %c0_135, %c0_136] : memref<18x18x8xf32, #tpu.memory_space<vmem>>, vector<16x16x8xf32>
    %112 = vector.shape_cast %111 : vector<16x16x8xf32> to vector<256x8xf32>
    %113 = arith.truncf %112 : vector<256x8xf32> to vector<256x8xbf16>
    %c0_137 = arith.constant 0 : index
    %c0_138 = arith.constant 0 : index
    %114 = vector.load %arg13[%c0_137, %c0_138] : memref<256x72xbf16, #tpu.memory_space<vmem>>, vector<256x8xbf16>
    tpu.vector_store %arg13[%c0_137, %c0_138], %113 {strides = array<i32>} : memref<256x72xbf16, #tpu.memory_space<vmem>>, vector<256x8xbf16>,
    %c0_139 = arith.constant 0 : index
    %c1_140 = arith.constant 1 : index
    %c0_141 = arith.constant 0 : index
    %115 = vector.load %arg11[%c0_139, %c1_140, %c0_141] : memref<18x18x8xf32, #tpu.memory_space<vmem>>, vector<16x16x8xf32>
    %116 = vector.shape_cast %115 : vector<16x16x8xf32> to vector<256x8xf32>
    %117 = arith.truncf %116 : vector<256x8xf32> to vector<256x8xbf16>
    %c0_142 = arith.constant 0 : index
    %c8_143 = arith.constant 8 : index
    %118 = vector.load %arg13[%c0_142, %c8_143] : memref<256x72xbf16, #tpu.memory_space<vmem>>, vector<256x8xbf16>
    tpu.vector_store %arg13[%c0_142, %c8_143], %117 {strides = array<i32>} : memref<256x72xbf16, #tpu.memory_space<vmem>>, vector<256x8xbf16>,
    %c0_144 = arith.constant 0 : index
    %c2_145 = arith.constant 2 : index
    %c0_146 = arith.constant 0 : index
    %119 = vector.load %arg11[%c0_144, %c2_145, %c0_146] : memref<18x18x8xf32, #tpu.memory_space<vmem>>, vector<16x16x8xf32>
    %120 = vector.shape_cast %119 : vector<16x16x8xf32> to vector<256x8xf32>
    %121 = arith.truncf %120 : vector<256x8xf32> to vector<256x8xbf16>
    %c0_147 = arith.constant 0 : index
    %c16_148 = arith.constant 16 : index
    %122 = vector.load %arg13[%c0_147, %c16_148] : memref<256x72xbf16, #tpu.memory_space<vmem>>, vector<256x8xbf16>
    tpu.vector_store %arg13[%c0_147, %c16_148], %121 {strides = array<i32>} : memref<256x72xbf16, #tpu.memory_space<vmem>>, vector<256x8xbf16>,
    %c1_149 = arith.constant 1 : index
    %c0_150 = arith.constant 0 : index
    %c0_151 = arith.constant 0 : index
    %123 = vector.load %arg11[%c1_149, %c0_150, %c0_151] : memref<18x18x8xf32, #tpu.memory_space<vmem>>, vector<16x16x8xf32>
    %124 = vector.shape_cast %123 : vector<16x16x8xf32> to vector<256x8xf32>
    %125 = arith.truncf %124 : vector<256x8xf32> to vector<256x8xbf16>
    %c0_152 = arith.constant 0 : index
    %c24_153 = arith.constant 24 : index
    %126 = vector.load %arg13[%c0_152, %c24_153] : memref<256x72xbf16, #tpu.memory_space<vmem>>, vector<256x8xbf16>
    tpu.vector_store %arg13[%c0_152, %c24_153], %125 {strides = array<i32>} : memref<256x72xbf16, #tpu.memory_space<vmem>>, vector<256x8xbf16>,
    %c1_154 = arith.constant 1 : index
    %c1_155 = arith.constant 1 : index
    %c0_156 = arith.constant 0 : index
    %127 = vector.load %arg11[%c1_154, %c1_155, %c0_156] : memref<18x18x8xf32, #tpu.memory_space<vmem>>, vector<16x16x8xf32>
    %128 = vector.shape_cast %127 : vector<16x16x8xf32> to vector<256x8xf32>
    %129 = arith.truncf %128 : vector<256x8xf32> to vector<256x8xbf16>
    %c0_157 = arith.constant 0 : index
    %c32_158 = arith.constant 32 : index
    %130 = vector.load %arg13[%c0_157, %c32_158] : memref<256x72xbf16, #tpu.memory_space<vmem>>, vector<256x8xbf16>
    tpu.vector_store %arg13[%c0_157, %c32_158], %129 {strides = array<i32>} : memref<256x72xbf16, #tpu.memory_space<vmem>>, vector<256x8xbf16>,
    %c1_159 = arith.constant 1 : index
    %c2_160 = arith.constant 2 : index
    %c0_161 = arith.constant 0 : index
    %131 = vector.load %arg11[%c1_159, %c2_160, %c0_161] : memref<18x18x8xf32, #tpu.memory_space<vmem>>, vector<16x16x8xf32>
    %132 = vector.shape_cast %131 : vector<16x16x8xf32> to vector<256x8xf32>
    %133 = arith.truncf %132 : vector<256x8xf32> to vector<256x8xbf16>
    %c0_162 = arith.constant 0 : index
    %c40_163 = arith.constant 40 : index
    %134 = vector.load %arg13[%c0_162, %c40_163] : memref<256x72xbf16, #tpu.memory_space<vmem>>, vector<256x8xbf16>
    tpu.vector_store %arg13[%c0_162, %c40_163], %133 {strides = array<i32>} : memref<256x72xbf16, #tpu.memory_space<vmem>>, vector<256x8xbf16>,
    %c2_164 = arith.constant 2 : index
    %c0_165 = arith.constant 0 : index
    %c0_166 = arith.constant 0 : index
    %135 = vector.load %arg11[%c2_164, %c0_165, %c0_166] : memref<18x18x8xf32, #tpu.memory_space<vmem>>, vector<16x16x8xf32>
    %136 = vector.shape_cast %135 : vector<16x16x8xf32> to vector<256x8xf32>
    %137 = arith.truncf %136 : vector<256x8xf32> to vector<256x8xbf16>
    %c0_167 = arith.constant 0 : index
    %c48_168 = arith.constant 48 : index
    %138 = vector.load %arg13[%c0_167, %c48_168] : memref<256x72xbf16, #tpu.memory_space<vmem>>, vector<256x8xbf16>
    tpu.vector_store %arg13[%c0_167, %c48_168], %137 {strides = array<i32>} : memref<256x72xbf16, #tpu.memory_space<vmem>>, vector<256x8xbf16>,
    %c2_169 = arith.constant 2 : index
    %c1_170 = arith.constant 1 : index
    %c0_171 = arith.constant 0 : index
    %139 = vector.load %arg11[%c2_169, %c1_170, %c0_171] : memref<18x18x8xf32, #tpu.memory_space<vmem>>, vector<16x16x8xf32>
    %140 = vector.shape_cast %139 : vector<16x16x8xf32> to vector<256x8xf32>
    %141 = arith.truncf %140 : vector<256x8xf32> to vector<256x8xbf16>
    %c0_172 = arith.constant 0 : index
    %c56_173 = arith.constant 56 : index
    %142 = vector.load %arg13[%c0_172, %c56_173] : memref<256x72xbf16, #tpu.memory_space<vmem>>, vector<256x8xbf16>
    tpu.vector_store %arg13[%c0_172, %c56_173], %141 {strides = array<i32>} : memref<256x72xbf16, #tpu.memory_space<vmem>>, vector<256x8xbf16>,
    %c2_174 = arith.constant 2 : index
    %c2_175 = arith.constant 2 : index
    %c0_176 = arith.constant 0 : index
    %143 = vector.load %arg11[%c2_174, %c2_175, %c0_176] : memref<18x18x8xf32, #tpu.memory_space<vmem>>, vector<16x16x8xf32>
    %144 = vector.shape_cast %143 : vector<16x16x8xf32> to vector<256x8xf32>
    %145 = arith.truncf %144 : vector<256x8xf32> to vector<256x8xbf16>
    %c0_177 = arith.constant 0 : index
    %c64_178 = arith.constant 64 : index
    %146 = vector.load %arg13[%c0_177, %c64_178] : memref<256x72xbf16, #tpu.memory_space<vmem>>, vector<256x8xbf16>
    tpu.vector_store %arg13[%c0_177, %c64_178], %145 {strides = array<i32>} : memref<256x72xbf16, #tpu.memory_space<vmem>>, vector<256x8xbf16>,
    %c0_179 = arith.constant 0 : index
    %c0_180 = arith.constant 0 : index
    %147 = vector.load %arg13[%c0_179, %c0_180] : memref<256x72xbf16, #tpu.memory_space<vmem>>, vector<256x72xbf16>
    %c0_181 = arith.constant 0 : index
    %c0_182 = arith.constant 0 : index
    %148 = vector.load %arg6[%c0_181, %c0_182] : memref<72x8xbf16, #tpu.memory_space<vmem>>, vector<72x8xbf16>
    %cst_183 = arith.constant dense<0.000000e+00> : vector<256x8xf32>
    %149 = tpu.matmul %147, %148, %cst_183 {dimension_numbers = #tpu.dot_dimension_numbers<[1], [0], [0], [1], [0, 0, 1, 1], [], []>} : vector<256x72xbf16>, vector<72x8xbf16>, vector<256x8xf32> -> vector<256x8xf32>
    %c0_184 = arith.constant 0 : index
    %c0_185 = arith.constant 0 : index
    %150 = vector.load %arg7[%c0_184, %c0_185] : memref<1x8xf32, #tpu.memory_space<vmem>>, vector<1x8xf32>
    %151 = vector.broadcast %150 : vector<1x8xf32> to vector<256x8xf32>
    %152 = arith.addf %149, %151 : vector<256x8xf32>
    %cst_186 = arith.constant 0.000000e+00 : f32
    %153 = vector.broadcast %cst_186 : f32 to vector<256x8xf32>
    %154 = arith.maximumf %152, %153 : vector<256x8xf32>
    %155 = vector.shape_cast %154 : vector<256x8xf32> to vector<8x2x8x2x8xf32>
    %156 = vector.extract_strided_slice %155 {offsets = [0, 0, 0, 0, 0], sizes = [8, 1, 8, 1, 8], strides = [1, 1, 1, 1, 1]} : vector<8x2x8x2x8xf32> to vector<8x1x8x1x8xf32>
    %157 = vector.shape_cast %156 : vector<8x1x8x1x8xf32> to vector<8x8x8xf32>
    %158 = vector.extract_strided_slice %155 {offsets = [0, 0, 0, 1, 0], sizes = [8, 1, 8, 1, 8], strides = [1, 1, 1, 1, 1]} : vector<8x2x8x2x8xf32> to vector<8x1x8x1x8xf32>
    %159 = vector.shape_cast %158 : vector<8x1x8x1x8xf32> to vector<8x8x8xf32>
    %160 = vector.extract_strided_slice %155 {offsets = [0, 1, 0, 0, 0], sizes = [8, 1, 8, 1, 8], strides = [1, 1, 1, 1, 1]} : vector<8x2x8x2x8xf32> to vector<8x1x8x1x8xf32>
    %161 = vector.shape_cast %160 : vector<8x1x8x1x8xf32> to vector<8x8x8xf32>
    %162 = vector.extract_strided_slice %155 {offsets = [0, 1, 0, 1, 0], sizes = [8, 1, 8, 1, 8], strides = [1, 1, 1, 1, 1]} : vector<8x2x8x2x8xf32> to vector<8x1x8x1x8xf32>
    %163 = vector.shape_cast %162 : vector<8x1x8x1x8xf32> to vector<8x8x8xf32>
    %164 = tpu.iota {dimensions = array<i32: 0>} : vector<8x8x8xi32>
    %c2_i32 = arith.constant 2 : i32
    %165 = vector.broadcast %c2_i32 : i32 to vector<8x8x8xi32>
    %166 = arith.muli %164, %165 : vector<8x8x8xi32>
    %167 = tpu.iota {dimensions = array<i32: 1>} : vector<8x8x8xi32>
    %c2_i32_187 = arith.constant 2 : i32
    %168 = vector.broadcast %c2_i32_187 : i32 to vector<8x8x8xi32>
    %169 = arith.muli %167, %168 : vector<8x8x8xi32>
    %c16_i32 = arith.constant 16 : i32
    %170 = vector.broadcast %c16_i32 : i32 to vector<8x8x8xi32>
    %171 = arith.muli %166, %170 : vector<8x8x8xi32>
    %172 = arith.addi %171, %169 : vector<8x8x8xi32>
    %c16_i32_188 = arith.constant 16 : i32
    %173 = vector.broadcast %c16_i32_188 : i32 to vector<8x8x8xi32>
    %174 = arith.muli %166, %173 : vector<8x8x8xi32>
    %175 = arith.addi %174, %169 : vector<8x8x8xi32>
    %c1_i32 = arith.constant 1 : i32
    %176 = vector.broadcast %c1_i32 : i32 to vector<8x8x8xi32>
    %177 = arith.addi %175, %176 : vector<8x8x8xi32>
    %c1_i32_189 = arith.constant 1 : i32
    %178 = vector.broadcast %c1_i32_189 : i32 to vector<8x8x8xi32>
    %179 = arith.addi %166, %178 : vector<8x8x8xi32>
    %c16_i32_190 = arith.constant 16 : i32
    %180 = vector.broadcast %c16_i32_190 : i32 to vector<8x8x8xi32>
    %181 = arith.muli %179, %180 : vector<8x8x8xi32>
    %182 = arith.addi %181, %169 : vector<8x8x8xi32>
    %c1_i32_191 = arith.constant 1 : i32
    %183 = vector.broadcast %c1_i32_191 : i32 to vector<8x8x8xi32>
    %184 = arith.addi %166, %183 : vector<8x8x8xi32>
    %c16_i32_192 = arith.constant 16 : i32
    %185 = vector.broadcast %c16_i32_192 : i32 to vector<8x8x8xi32>
    %186 = arith.muli %184, %185 : vector<8x8x8xi32>
    %187 = arith.addi %186, %169 : vector<8x8x8xi32>
    %c1_i32_193 = arith.constant 1 : i32
    %188 = vector.broadcast %c1_i32_193 : i32 to vector<8x8x8xi32>
    %189 = arith.addi %187, %188 : vector<8x8x8xi32>
    %190 = arith.cmpf ogt, %159, %157 : vector<8x8x8xf32>
    %191 = arith.select %190, %159, %157 : vector<8x8x8xi1>, vector<8x8x8xf32>
    %192 = arith.select %190, %177, %172 : vector<8x8x8xi1>, vector<8x8x8xi32>
    %193 = arith.cmpf ogt, %161, %191 : vector<8x8x8xf32>
    %194 = arith.select %193, %161, %191 : vector<8x8x8xi1>, vector<8x8x8xf32>
    %195 = arith.select %193, %182, %192 : vector<8x8x8xi1>, vector<8x8x8xi32>
    %196 = arith.cmpf ogt, %163, %194 : vector<8x8x8xf32>
    %197 = arith.select %196, %163, %194 : vector<8x8x8xi1>, vector<8x8x8xf32>
    %198 = arith.select %196, %189, %195 : vector<8x8x8xi1>, vector<8x8x8xi32>
    %199 = vector.shape_cast %197 : vector<8x8x8xf32> to vector<64x8xf32>
    %c0_194 = arith.constant 0 : index
    %c0_195 = arith.constant 0 : index
    %c0_196 = arith.constant 0 : index
    %200 = vector.load %arg8[%c0_194, %c0_195, %c0_196] : memref<1x64x8xf32, #tpu.memory_space<vmem>>, vector<1x64x8xf32>
    %201 = vector.shape_cast %200 : vector<1x64x8xf32> to vector<64x8xf32>
    %202 = vector.shape_cast %199 : vector<64x8xf32> to vector<1x64x8xf32>
    tpu.vector_store %arg8[%c0_194, %c0_195, %c0_196], %202 {strides = array<i32>} : memref<1x64x8xf32, #tpu.memory_space<vmem>>, vector<1x64x8xf32>,
    %203 = vector.shape_cast %198 : vector<8x8x8xi32> to vector<64x8xi32>
    %c0_197 = arith.constant 0 : index
    %c0_198 = arith.constant 0 : index
    %c0_199 = arith.constant 0 : index
    %204 = vector.load %arg9[%c0_197, %c0_198, %c0_199] : memref<1x64x8xi32, #tpu.memory_space<vmem>>, vector<1x64x8xi32>
    %205 = vector.shape_cast %204 : vector<1x64x8xi32> to vector<64x8xi32>
    %206 = vector.shape_cast %203 : vector<64x8xi32> to vector<1x64x8xi32>
    tpu.vector_store %arg9[%c0_197, %c0_198, %c0_199], %206 {strides = array<i32>} : memref<1x64x8xi32, #tpu.memory_space<vmem>>, vector<1x64x8xi32>,
    return
  }
  func.func @transform_0(%arg0: i32) -> (i32, i32, i32, i32) {
    %c0_i32 = arith.constant 0 : i32
    %c0_i32_0 = arith.constant 0 : i32
    %c0_i32_1 = arith.constant 0 : i32
    %c0_i32_2 = arith.constant 0 : i32
    return %arg0, %c0_i32, %c0_i32_0, %c0_i32_1 : i32, i32, i32, i32
  }
  func.func @transform_1(%arg0: i32) -> (i32, i32) {
    %c0_i32 = arith.constant 0 : i32
    %c0_i32_0 = arith.constant 0 : i32
    %c0_i32_1 = arith.constant 0 : i32
    return %c0_i32, %c0_i32_0 : i32, i32
  }
  func.func @transform_2(%arg0: i32) -> (i32, i32) {
    %c0_i32 = arith.constant 0 : i32
    %c0_i32_0 = arith.constant 0 : i32
    %c0_i32_1 = arith.constant 0 : i32
    return %c0_i32, %c0_i32_0 : i32, i32
  }
  func.func @transform_3(%arg0: i32) -> (i32, i32) {
    %c0_i32 = arith.constant 0 : i32
    %c0_i32_0 = arith.constant 0 : i32
    %c0_i32_1 = arith.constant 0 : i32
    return %c0_i32, %c0_i32_0 : i32, i32
  }
  func.func @transform_4(%arg0: i32) -> (i32, i32) {
    %c0_i32 = arith.constant 0 : i32
    %c0_i32_0 = arith.constant 0 : i32
    %c0_i32_1 = arith.constant 0 : i32
    return %c0_i32, %c0_i32_0 : i32, i32
  }
  func.func @transform_5(%arg0: i32) -> (i32, i32) {
    %c0_i32 = arith.constant 0 : i32
    %c0_i32_0 = arith.constant 0 : i32
    %c0_i32_1 = arith.constant 0 : i32
    return %c0_i32, %c0_i32_0 : i32, i32
  }
  func.func @transform_6(%arg0: i32) -> (i32, i32) {
    %c0_i32 = arith.constant 0 : i32
    %c0_i32_0 = arith.constant 0 : i32
    %c0_i32_1 = arith.constant 0 : i32
    return %c0_i32, %c0_i32_0 : i32, i32
  }
  func.func @transform_7(%arg0: i32) -> (i32, i32, i32) {
    %c0_i32 = arith.constant 0 : i32
    %c0_i32_0 = arith.constant 0 : i32
    %c0_i32_1 = arith.constant 0 : i32
    return %arg0, %c0_i32, %c0_i32_0 : i32, i32, i32
  }
  func.func @transform_8(%arg0: i32) -> (i32, i32, i32) {
    %c0_i32 = arith.constant 0 : i32
    %c0_i32_0 = arith.constant 0 : i32
    %c0_i32_1 = arith.constant 0 : i32
    return %arg0, %c0_i32, %c0_i32_0 : i32, i32, i32
  }
}

</mosaic_0001>

<llo_original>
// kernel: segnet3_encoder_block.1
$region0: #{segnet3_encoder_block.1}
  #allocation0 [shape = 'u32[]', space=smem, size = 0x4, offset = 0x4, fixed_abs, tag = 'smem constant byte address 0x4 - core index']
  #allocation1 [shape = 'u32[72,128]{1,0:T(1,128)}', space=vmem, size = 0x9000, scoped, tag = 'internal scratch']
  #allocation2 [shape = 'f32[18,18,4]{2,1,0:T(8,128)}', space=vmem, size = 0x36000, scoped, tag = 'scratch operand']
  #allocation3 [shape = 'f32[18,18,8]{2,1,0:T(8,128)}', space=vmem, size = 0x36000, scoped, tag = 'scratch operand']
  #allocation4 [shape = 'bf16[256,36]{1,0:T(8,128)(2,1)}', space=vmem, size = 0x10000, scoped, tag = 'scratch operand']
  #allocation5 [shape = 'bf16[256,72]{1,0:T(8,128)(2,1)}', space=vmem, size = 0x10000, scoped, tag = 'scratch operand']
  %s0 = inlined_call_operand.vmem [shape: f32[2,16,16,4], index: 0, kind: input, shape index: {}]
  %s1 = inlined_call_operand.vmem [shape: bf16[36,8], index: 1, kind: input, shape index: {}]
  %s2 = inlined_call_operand.vmem [shape: f32[1,8], index: 2, kind: input, shape index: {}]
  %s3 = inlined_call_operand.vmem [shape: bf16[72,8], index: 3, kind: input, shape index: {}]
  %s4 = inlined_call_operand.vmem [shape: f32[1,8], index: 4, kind: input, shape index: {}]
  %s5 = inlined_call_operand.vmem [shape: bf16[72,8], index: 5, kind: input, shape index: {}]
  %s6 = inlined_call_operand.vmem [shape: f32[1,8], index: 6, kind: input, shape index: {}]
  %s7 = inlined_call_operand.vmem [shape: f32[2,64,8], index: 7, kind: output, shape index: {0}]
  %s8 = inlined_call_operand.vmem [shape: s32[2,64,8], index: 8, kind: output, shape index: {1}]
  %9 = xla_tuple %s7, %s8
  %s10 = sld [smem:[#allocation0]]
  $region69: #{segnet3_encoder_block.1} parent=0
    _
  %s12 = ssub.s32 1, %s10
  %s13 = scalar_select 0, %s12, %s10
  loop: start=0, step=1, limit=4
  $region2: #{segnet3_encoder_block.1} parent=0 // loop_pre_header
    _
  $region3: #{segnet3_encoder_block.1} parent=0 // loop_header
    %s15 = sphi 0, %s19
    %p16 = scmp.ge.s32.totalorder %s15, 4
    %s25 = sphi 0, %s27
    %s28 = sphi 0, %s25
    %s29 = sphi 0, %s28
    %s45 = sphi 0, %s29
    %s49 = sphi 0, %s49
    %s51 = sphi 0, %s49
    %s52 = sphi 0, %s51
    %s66 = sphi 0, %s52
    %s70 = sphi 0, %s70
    %s72 = sphi 0, %s70
    %s73 = sphi 0, %s72
    %s87 = sphi 0, %s73
    %s91 = sphi 0, %s91
    %s93 = sphi 0, %s91
    %s94 = sphi 0, %s93
    %s108 = sphi 0, %s94
    %s112 = sphi 0, %s112
    %s114 = sphi 0, %s112
    %s115 = sphi 0, %s114
    %s129 = sphi 0, %s115
    %s133 = sphi 0, %s133
    %s135 = sphi 0, %s133
    %s136 = sphi 0, %s135
    %s150 = sphi 0, %s136
    %s154 = sphi 0, %s154
    %s156 = sphi 0, %s154
    %s157 = sphi 0, %s156
    %s171 = sphi 0, %s157
    %s177 = sphi 0, %s179
    %s180 = sphi 0, %s177
    %s181 = sphi 0, %s180
    %s197 = sphi 0, %s181
    %s203 = sphi 0, %s205
    %s206 = sphi 0, %s203
    %s207 = sphi 0, %s206
    %s223 = sphi 0, %s207
  $region4: #{segnet3_encoder_block.1} parent=0 // loop_header_branch
    %18 = sbr.rel (%p16) target = $region8
  $region5: #{segnet3_encoder_block.1} parent=0 // loop_body
    %s20 = ssub.s32 %s15, 1
    %s21 = ssub.s32 %s15, 2
    %s22 = sadd.s32 %s15, 1
    %s23 = ssub.s32 %s15, %s22
    %p24 = scmp.eq.s32.totalorder %s23, 0
    %s26 = sadd.s32 %s25, 1
    %s27 = scalar_select %p24, %s25, %s26
    %p30 = pneg %p24
    %p31 = scmp.eq.s32.totalorder %s15, 1
    %p32 = por %p30, %p31
    %p33 = scmp.ne.s32.totalorder %s25, %s28
    %p34 = scmp.eq.s32.totalorder %s15, 0
    %p35 = por %p33, %p34
    %p36 = scmp.ne.s32.totalorder %s25, %s28
    %p37 = scmp.eq.s32.totalorder %s20, 1
    %p38 = por %p36, %p37
    %p39 = scmp.ne.s32.totalorder %s28, %s29
    %p40 = scmp.eq.s32.totalorder %s20, 0
    %p41 = por %p39, %p40
    %p42 = scmp.ne.s32.totalorder %s28, %s29
    %p43 = scmp.eq.s32.totalorder %s21, 1
    %p44 = por %p42, %p43
    %p46 = scmp.ne.s32.totalorder %s29, %s45
    %p47 = scmp.eq.s32.totalorder %s21, 0
    %p48 = por %p46, %p47
    %s50 = sadd.s32 %s49, 1
    %p53 = scmp.eq.s32.totalorder %s15, 1
    %p54 = scmp.ne.s32.totalorder %s49, %s51
    %p55 = scmp.eq.s32.totalorder %s15, 0
    %p56 = por %p54, %p55
    %p57 = scmp.ne.s32.totalorder %s49, %s51
    %p58 = scmp.eq.s32.totalorder %s20, 1
    %p59 = por %p57, %p58
    %p60 = scmp.ne.s32.totalorder %s51, %s52
    %p61 = scmp.eq.s32.totalorder %s20, 0
    %p62 = por %p60, %p61
    %p63 = scmp.ne.s32.totalorder %s51, %s52
    %p64 = scmp.eq.s32.totalorder %s21, 1
    %p65 = por %p63, %p64
    %p67 = scmp.ne.s32.totalorder %s52, %s66
    %p68 = scmp.eq.s32.totalorder %s21, 0
    %p69 = por %p67, %p68
    %s71 = sadd.s32 %s70, 1
    %p74 = scmp.eq.s32.totalorder %s15, 1
    %p75 = scmp.ne.s32.totalorder %s70, %s72
    %p76 = scmp.eq.s32.totalorder %s15, 0
    %p77 = por %p75, %p76
    %p78 = scmp.ne.s32.totalorder %s70, %s72
    %p79 = scmp.eq.s32.totalorder %s20, 1
    %p80 = por %p78, %p79
    %p81 = scmp.ne.s32.totalorder %s72, %s73
    %p82 = scmp.eq.s32.totalorder %s20, 0
    %p83 = por %p81, %p82
    %p84 = scmp.ne.s32.totalorder %s72, %s73
    %p85 = scmp.eq.s32.totalorder %s21, 1
    %p86 = por %p84, %p85
    %p88 = scmp.ne.s32.totalorder %s73, %s87
    %p89 = scmp.eq.s32.totalorder %s21, 0
    %p90 = por %p88, %p89
    %s92 = sadd.s32 %s91, 1
    %p95 = scmp.eq.s32.totalorder %s15, 1
    %p96 = scmp.ne.s32.totalorder %s91, %s93
    %p97 = scmp.eq.s32.totalorder %s15, 0
    %p98 = por %p96, %p97
    %p99 = scmp.ne.s32.totalorder %s91, %s93
    %p100 = scmp.eq.s32.totalorder %s20, 1
    %p101 = por %p99, %p100
    %p102 = scmp.ne.s32.totalorder %s93, %s94
    %p103 = scmp.eq.s32.totalorder %s20, 0
    %p104 = por %p102, %p103
    %p105 = scmp.ne.s32.totalorder %s93, %s94
    %p106 = scmp.eq.s32.totalorder %s21, 1
    %p107 = por %p105, %p106
    %p109 = scmp.ne.s32.totalorder %s94, %s108
    %p110 = scmp.eq.s32.totalorder %s21, 0
    %p111 = por %p109, %p110
    %s113 = sadd.s32 %s112, 1
    %p116 = scmp.eq.s32.totalorder %s15, 1
    %p117 = scmp.ne.s32.totalorder %s112, %s114
    %p118 = scmp.eq.s32.totalorder %s15, 0
    %p119 = por %p117, %p118
    %p120 = scmp.ne.s32.totalorder %s112, %s114
    %p121 = scmp.eq.s32.totalorder %s20, 1
    %p122 = por %p120, %p121
    %p123 = scmp.ne.s32.totalorder %s114, %s115
    %p124 = scmp.eq.s32.totalorder %s20, 0
    %p125 = por %p123, %p124
    %p126 = scmp.ne.s32.totalorder %s114, %s115
    %p127 = scmp.eq.s32.totalorder %s21, 1
    %p128 = por %p126, %p127
    %p130 = scmp.ne.s32.totalorder %s115, %s129
    %p131 = scmp.eq.s32.totalorder %s21, 0
    %p132 = por %p130, %p131
    %s134 = sadd.s32 %s133, 1
    %p137 = scmp.eq.s32.totalorder %s15, 1
    %p138 = scmp.ne.s32.totalorder %s133, %s135
    %p139 = scmp.eq.s32.totalorder %s15, 0
    %p140 = por %p138, %p139
    %p141 = scmp.ne.s32.totalorder %s133, %s135
    %p142 = scmp.eq.s32.totalorder %s20, 1
    %p143 = por %p141, %p142
    %p144 = scmp.ne.s32.totalorder %s135, %s136
    %p145 = scmp.eq.s32.totalorder %s20, 0
    %p146 = por %p144, %p145
    %p147 = scmp.ne.s32.totalorder %s135, %s136
    %p148 = scmp.eq.s32.totalorder %s21, 1
    %p149 = por %p147, %p148
    %p151 = scmp.ne.s32.totalorder %s136, %s150
    %p152 = scmp.eq.s32.totalorder %s21, 0
    %p153 = por %p151, %p152
    %s155 = sadd.s32 %s154, 1
    %p158 = scmp.eq.s32.totalorder %s15, 1
    %p159 = scmp.ne.s32.totalorder %s154, %s156
    %p160 = scmp.eq.s32.totalorder %s15, 0
    %p161 = por %p159, %p160
    %p162 = scmp.ne.s32.totalorder %s154, %s156
    %p163 = scmp.eq.s32.totalorder %s20, 1
    %p164 = por %p162, %p163
    %p165 = scmp.ne.s32.totalorder %s156, %s157
    %p166 = scmp.eq.s32.totalorder %s20, 0
    %p167 = por %p165, %p166
    %p168 = scmp.ne.s32.totalorder %s156, %s157
    %p169 = scmp.eq.s32.totalorder %s21, 1
    %p170 = por %p168, %p169
    %p172 = scmp.ne.s32.totalorder %s157, %s171
    %p173 = scmp.eq.s32.totalorder %s21, 0
    %p174 = por %p172, %p173
    %s175 = ssub.s32 %s15, %s22
    %p176 = scmp.eq.s32.totalorder %s175, 0
    %s178 = sadd.s32 %s177, 1
    %s179 = scalar_select %p176, %s177, %s178
    %p182 = pneg %p176
    %p183 = scmp.eq.s32.totalorder %s15, 1
    %p184 = por %p182, %p183
    %p185 = scmp.ne.s32.totalorder %s177, %s180
    %p186 = scmp.eq.s32.totalorder %s15, 0
    %p187 = por %p185, %p186
    %p188 = scmp.ne.s32.totalorder %s177, %s180
    %p189 = scmp.eq.s32.totalorder %s20, 1
    %p190 = por %p188, %p189
    %p191 = scmp.ne.s32.totalorder %s180, %s181
    %p192 = scmp.eq.s32.totalorder %s20, 0
    %p193 = por %p191, %p192
    %p194 = scmp.ne.s32.totalorder %s180, %s181
    %p195 = scmp.eq.s32.totalorder %s21, 1
    %p196 = por %p194, %p195
    %p198 = scmp.ne.s32.totalorder %s181, %s197
    %p199 = scmp.eq.s32.totalorder %s21, 0
    %p200 = por %p198, %p199
    %s201 = ssub.s32 %s15, %s22
    %p202 = scmp.eq.s32.totalorder %s201, 0
    %s204 = sadd.s32 %s203, 1
    %s205 = scalar_select %p202, %s203, %s204
    %p208 = pneg %p202
    %p209 = scmp.eq.s32.totalorder %s15, 1
    %p210 = por %p208, %p209
    %p211 = scmp.ne.s32.totalorder %s203, %s206
    %p212 = scmp.eq.s32.totalorder %s15, 0
    %p213 = por %p211, %p212
    %p214 = scmp.ne.s32.totalorder %s203, %s206
    %p215 = scmp.eq.s32.totalorder %s20, 1
    %p216 = por %p214, %p215
    %p217 = scmp.ne.s32.totalorder %s206, %s207
    %p218 = scmp.eq.s32.totalorder %s20, 0
    %p219 = por %p217, %p218
    %p220 = scmp.ne.s32.totalorder %s206, %s207
    %p221 = scmp.eq.s32.totalorder %s21, 1
    %p222 = por %p220, %p221
    %p224 = scmp.ne.s32.totalorder %s207, %s223
    %p225 = scmp.eq.s32.totalorder %s21, 0
    %p226 = por %p224, %p225
    %p227 = scmp.le.s32.totalorder 1, %s15
    %p228 = scmp.lt.s32.totalorder %s15, 3
    %p229 = pnand %p227, %p228
    %p230 = pneg %p229
    // Predicated region
    $region9: #{segnet3_encoder_block.1} parent=5 // pred_check
      _
    $region10: #{segnet3_encoder_block.1} parent=5 // pred_check_branch
      %232 = sbr.rel (%p229) target = $region12
    $region11: #{segnet3_encoder_block.1} parent=5 // pred_region
      %s233 = ssub.s32 %s15, 1
      // Predicated region
      $region13: #{segnet3_encoder_block.1} parent=11 // pred_check
        %p234 = pneg %p62
      $region14: #{segnet3_encoder_block.1} parent=11 // pred_check_branch
        %236 = sbr.rel (%p234) target = $region16
      $region15: #{segnet3_encoder_block.1} parent=11 // pred_region
        _
      $region16: #{segnet3_encoder_block.1} parent=11 // pred_fallthru
        _
      // Predicated region
      $region17: #{segnet3_encoder_block.1} parent=11 // pred_check
        %p237 = pneg %p83
      $region18: #{segnet3_encoder_block.1} parent=11 // pred_check_branch
        %239 = sbr.rel (%p237) target = $region20
      $region19: #{segnet3_encoder_block.1} parent=11 // pred_region
        _
      $region20: #{segnet3_encoder_block.1} parent=11 // pred_fallthru
        _
      // Predicated region
      $region21: #{segnet3_encoder_block.1} parent=11 // pred_check
        %p240 = pneg %p104
      $region22: #{segnet3_encoder_block.1} parent=11 // pred_check_branch
        %242 = sbr.rel (%p240) target = $region24
      $region23: #{segnet3_encoder_block.1} parent=11 // pred_region
        _
      $region24: #{segnet3_encoder_block.1} parent=11 // pred_fallthru
        _
      // Predicated region
      $region25: #{segnet3_encoder_block.1} parent=11 // pred_check
        %p243 = pneg %p125
      $region26: #{segnet3_encoder_block.1} parent=11 // pred_check_branch
        %245 = sbr.rel (%p243) target = $region28
      $region27: #{segnet3_encoder_block.1} parent=11 // pred_region
        _
      $region28: #{segnet3_encoder_block.1} parent=11 // pred_fallthru
        _
      // Predicated region
      $region29: #{segnet3_encoder_block.1} parent=11 // pred_check
        %p246 = pneg %p146
      $region30: #{segnet3_encoder_block.1} parent=11 // pred_check_branch
        %248 = sbr.rel (%p246) target = $region32
      $region31: #{segnet3_encoder_block.1} parent=11 // pred_region
        _
      $region32: #{segnet3_encoder_block.1} parent=11 // pred_fallthru
        _
      // Predicated region
      $region33: #{segnet3_encoder_block.1} parent=11 // pred_check
        %p249 = pneg %p167
      $region34: #{segnet3_encoder_block.1} parent=11 // pred_check_branch
        %251 = sbr.rel (%p249) target = $region36
      $region35: #{segnet3_encoder_block.1} parent=11 // pred_region
        _
      $region36: #{segnet3_encoder_block.1} parent=11 // pred_fallthru
        _
    $region12: #{segnet3_encoder_block.1} parent=5 // pred_fallthru
      _
    %p252 = scmp.lt.s32.totalorder %s15, 2
    // Predicated region
    $region37: #{segnet3_encoder_block.1} parent=5 // pred_check
      %p253 = pneg %p252
    $region38: #{segnet3_encoder_block.1} parent=5 // pred_check_branch
      %255 = sbr.rel (%p253) target = $region40
    $region39: #{segnet3_encoder_block.1} parent=5 // pred_region
      // Predicated region
      $region41: #{segnet3_encoder_block.1} parent=39 // pred_check
        %p256 = pneg %p35
      $region42: #{segnet3_encoder_block.1} parent=39 // pred_check_branch
        %258 = sbr.rel (%p256) target = $region44
      $region43: #{segnet3_encoder_block.1} parent=39 // pred_region
        %p259 = scmp.lt.s32.totalorder %s15, 1
        %s260 = scalar_select %p259, %s15, 1
        %s261 = smul.addr %s260, 32
        %s262 = smul.addr %s261, 8
        %s263 = scalar_lea.vmem %s0, %s262
      $region44: #{segnet3_encoder_block.1} parent=39 // pred_fallthru
        _
    $region40: #{segnet3_encoder_block.1} parent=5 // pred_fallthru
      _
    %p264 = scmp.le.s32.totalorder 1, %s15
    %p265 = scmp.lt.s32.totalorder %s15, 3
    %p266 = pnand %p264, %p265
    %p267 = pneg %p266
    // Predicated region
    $region45: #{segnet3_encoder_block.1} parent=5 // pred_check
      _
    $region46: #{segnet3_encoder_block.1} parent=5 // pred_check_branch
      %269 = sbr.rel (%p266) target = $region48
    $region47: #{segnet3_encoder_block.1} parent=5 // pred_region
      %s270 = ssub.s32 %s15, 1
      %p271 = scmp.lt.s32.totalorder %s20, 1
      %s272 = scalar_select %p271, %s20, 1
      %s273 = smul.addr %s272, 32
      %s274 = smul.addr %s273, 8
      %s275 = scalar_lea.vmem %s0, %s274
      %p276 = pneg %p41
      %p277 = pneg %p38
      %p278 = pneg %p62
      %p279 = pneg %p59
      %p280 = pneg %p83
      %p281 = pneg %p80
      %p282 = pneg %p104
      %p283 = pneg %p101
      %p284 = pneg %p125
      %p285 = pneg %p122
      %p286 = pneg %p146
      %p287 = pneg %p143
      %p288 = pneg %p167
      %p289 = pneg %p164
      %p290 = pneg %p193
      %p291 = pneg %p190
      %p292 = scmp.lt.s32.totalorder %s20, 1
      %s293 = scalar_select %p292, %s20, 1
      %s294 = smul.addr %s293, 8
      %s295 = smul.addr %s294, 8
      %s296 = scalar_lea.vmem %s7, %s295
      %p297 = pneg %p219
      %p298 = pneg %p216
      %p299 = scmp.lt.s32.totalorder %s20, 1
      %s300 = scalar_select %p299, %s20, 1
      %s301 = smul.addr %s300, 8
      %s302 = smul.addr %s301, 8
      %s303 = scalar_lea.vmem %s8, %s302
      %p304 = scmp.lt.s32.totalorder %s20, 1
      %s305 = scalar_select %p304, %s20, 1
      %s306 = smul.addr %s305, 32
      %s307 = smul.addr %s306, 8
      %s308 = scalar_lea.vmem %s0, %s307
      %p309 = scmp.lt.s32.totalorder %s20, 1
      %s310 = scalar_select %p309, %s20, 1
      %s311 = smul.addr %s310, 8
      %s312 = smul.addr %s311, 8
      %s313 = scalar_lea.vmem %s7, %s312
      %p314 = scmp.lt.s32.totalorder %s20, 1
      %s315 = scalar_select %p314, %s20, 1
      %s316 = smul.addr %s315, 8
      %s317 = smul.addr %s316, 8
      %s318 = scalar_lea.vmem %s8, %s317
      %vm320 = vcmask 31744
      %321 = vst.msk [vmem:[#allocation2] sm:$0xff] %vm320, 0.0
      %322 = vst.msk [vmem:[#allocation2 + $0x8] sm:$0xff] %vm320, 0.0
      %vm323 = vcmask 25600
      %324 = vst.msk [vmem:[#allocation2 + $0x10] sm:$0x3] %vm323, 0.0
      %s325 = scalar_lea.vmem [#allocation2], 408
      %326 = vst.msk [vmem:[%s325] sm:$0xff] %vm320, 0.0
      %327 = vst.msk [vmem:[%s325 + $0x8] sm:$0xff] %vm320, 0.0
      %328 = vst.msk [vmem:[%s325 + $0x10] sm:$0x3] %vm323, 0.0
      %vm329 = vcmask 24576
      %330 = vst.msk [vmem:[#allocation2] sm:$0x1] %vm329, 0.0
      %331 = vst.msk [vmem:[#allocation2 + $0x18] sm:$0x1] %vm329, 0.0
      %332 = vst.msk [vmem:[#allocation2 + $0x30] sm:$0x1] %vm329, 0.0
      %333 = vst.msk [vmem:[#allocation2 + $0x48] sm:$0x1] %vm329, 0.0
      %334 = vst.msk [vmem:[#allocation2 + $0x60] sm:$0x1] %vm329, 0.0
      %335 = vst.msk [vmem:[#allocation2 + $0x78] sm:$0x1] %vm329, 0.0
      %336 = vst.msk [vmem:[#allocation2 + $0x90] sm:$0x1] %vm329, 0.0
      %337 = vst.msk [vmem:[#allocation2 + $0xa8] sm:$0x1] %vm329, 0.0
      %338 = vst.msk [vmem:[#allocation2 + $0xc0] sm:$0x1] %vm329, 0.0
      %339 = vst.msk [vmem:[#allocation2 + $0xd8] sm:$0x1] %vm329, 0.0
      %340 = vst.msk [vmem:[#allocation2 + $0xf0] sm:$0x1] %vm329, 0.0
      %341 = vst.msk [vmem:[#allocation2 + $0x108] sm:$0x1] %vm329, 0.0
      %342 = vst.msk [vmem:[#allocation2 + $0x120] sm:$0x1] %vm329, 0.0
      %343 = vst.msk [vmem:[#allocation2 + $0x138] sm:$0x1] %vm329, 0.0
      %344 = vst.msk [vmem:[#allocation2 + $0x150] sm:$0x1] %vm329, 0.0
      %345 = vst.msk [vmem:[#allocation2 + $0x168] sm:$0x1] %vm329, 0.0
      %346 = vst.msk [vmem:[#allocation2 + $0x180] sm:$0x1] %vm329, 0.0
      %347 = vst.msk [vmem:[#allocation2 + $0x198] sm:$0x1] %vm329, 0.0
      %348 = vst.msk [vmem:[#allocation2 + $0x11] sm:$0x1] %vm329, 0.0
      %349 = vst.msk [vmem:[#allocation2 + $0x29] sm:$0x1] %vm329, 0.0
      %350 = vst.msk [vmem:[#allocation2 + $0x41] sm:$0x1] %vm329, 0.0
      %351 = vst.msk [vmem:[#allocation2 + $0x59] sm:$0x1] %vm329, 0.0
      %352 = vst.msk [vmem:[#allocation2 + $0x71] sm:$0x1] %vm329, 0.0
      %353 = vst.msk [vmem:[#allocation2 + $0x89] sm:$0x1] %vm329, 0.0
      %354 = vst.msk [vmem:[#allocation2 + $0xa1] sm:$0x1] %vm329, 0.0
      %355 = vst.msk [vmem:[#allocation2 + $0xb9] sm:$0x1] %vm329, 0.0
      %356 = vst.msk [vmem:[#allocation2 + $0xd1] sm:$0x1] %vm329, 0.0
      %357 = vst.msk [vmem:[#allocation2 + $0xe9] sm:$0x1] %vm329, 0.0
      %358 = vst.msk [vmem:[#allocation2 + $0x101] sm:$0x1] %vm329, 0.0
      %359 = vst.msk [vmem:[#allocation2 + $0x119] sm:$0x1] %vm329, 0.0
      %360 = vst.msk [vmem:[#allocation2 + $0x131] sm:$0x1] %vm329, 0.0
      %361 = vst.msk [vmem:[#allocation2 + $0x149] sm:$0x1] %vm329, 0.0
      %362 = vst.msk [vmem:[#allocation2 + $0x161] sm:$0x1] %vm329, 0.0
      %363 = vst.msk [vmem:[#allocation2 + $0x179] sm:$0x1] %vm329, 0.0
      %364 = vst.msk [vmem:[#allocation2 + $0x191] sm:$0x1] %vm329, 0.0
      %365 = vst.msk [vmem:[#allocation2 + $0x1a9] sm:$0x1] %vm329, 0.0
      %vm366 = vcmask 64512
      %367 = vst.msk [vmem:[#allocation3] sm:$0xff] %vm366, 0.0
      %368 = vst.msk [vmem:[#allocation3 + $0x8] sm:$0xff] %vm366, 0.0
      %vm369 = vcmask 58368
      %370 = vst.msk [vmem:[#allocation3 + $0x10] sm:$0x3] %vm369, 0.0
      %s371 = scalar_lea.vmem [#allocation3], 408
      %372 = vst.msk [vmem:[%s371] sm:$0xff] %vm366, 0.0
      %373 = vst.msk [vmem:[%s371 + $0x8] sm:$0xff] %vm366, 0.0
      %374 = vst.msk [vmem:[%s371 + $0x10] sm:$0x3] %vm369, 0.0
      %vm375 = vcmask 57344
      %376 = vst.msk [vmem:[#allocation3] sm:$0x1] %vm375, 0.0
      %377 = vst.msk [vmem:[#allocation3 + $0x18] sm:$0x1] %vm375, 0.0
      %378 = vst.msk [vmem:[#allocation3 + $0x30] sm:$0x1] %vm375, 0.0
      %379 = vst.msk [vmem:[#allocation3 + $0x48] sm:$0x1] %vm375, 0.0
      %380 = vst.msk [vmem:[#allocation3 + $0x60] sm:$0x1] %vm375, 0.0
      %381 = vst.msk [vmem:[#allocation3 + $0x78] sm:$0x1] %vm375, 0.0
      %382 = vst.msk [vmem:[#allocation3 + $0x90] sm:$0x1] %vm375, 0.0
      %383 = vst.msk [vmem:[#allocation3 + $0xa8] sm:$0x1] %vm375, 0.0
      %384 = vst.msk [vmem:[#allocation3 + $0xc0] sm:$0x1] %vm375, 0.0
      %385 = vst.msk [vmem:[#allocation3 + $0xd8] sm:$0x1] %vm375, 0.0
      %386 = vst.msk [vmem:[#allocation3 + $0xf0] sm:$0x1] %vm375, 0.0
      %387 = vst.msk [vmem:[#allocation3 + $0x108] sm:$0x1] %vm375, 0.0
      %388 = vst.msk [vmem:[#allocation3 + $0x120] sm:$0x1] %vm375, 0.0
      %389 = vst.msk [vmem:[#allocation3 + $0x138] sm:$0x1] %vm375, 0.0
      %390 = vst.msk [vmem:[#allocation3 + $0x150] sm:$0x1] %vm375, 0.0
      %391 = vst.msk [vmem:[#allocation3 + $0x168] sm:$0x1] %vm375, 0.0
      %392 = vst.msk [vmem:[#allocation3 + $0x180] sm:$0x1] %vm375, 0.0
      %393 = vst.msk [vmem:[#allocation3 + $0x198] sm:$0x1] %vm375, 0.0
      %394 = vst.msk [vmem:[#allocation3 + $0x11] sm:$0x1] %vm375, 0.0
      %395 = vst.msk [vmem:[#allocation3 + $0x29] sm:$0x1] %vm375, 0.0
      %396 = vst.msk [vmem:[#allocation3 + $0x41] sm:$0x1] %vm375, 0.0
      %397 = vst.msk [vmem:[#allocation3 + $0x59] sm:$0x1] %vm375, 0.0
      %398 = vst.msk [vmem:[#allocation3 + $0x71] sm:$0x1] %vm375, 0.0
      %399 = vst.msk [vmem:[#allocation3 + $0x89] sm:$0x1] %vm375, 0.0
      %400 = vst.msk [vmem:[#allocation3 + $0xa1] sm:$0x1] %vm375, 0.0
      %401 = vst.msk [vmem:[#allocation3 + $0xb9] sm:$0x1] %vm375, 0.0
      %402 = vst.msk [vmem:[#allocation3 + $0xd1] sm:$0x1] %vm375, 0.0
      %403 = vst.msk [vmem:[#allocation3 + $0xe9] sm:$0x1] %vm375, 0.0
      %404 = vst.msk [vmem:[#allocation3 + $0x101] sm:$0x1] %vm375, 0.0
      %405 = vst.msk [vmem:[#allocation3 + $0x119] sm:$0x1] %vm375, 0.0
      %406 = vst.msk [vmem:[#allocation3 + $0x131] sm:$0x1] %vm375, 0.0
      %407 = vst.msk [vmem:[#allocation3 + $0x149] sm:$0x1] %vm375, 0.0
      %408 = vst.msk [vmem:[#allocation3 + $0x161] sm:$0x1] %vm375, 0.0
      %409 = vst.msk [vmem:[#allocation3 + $0x179] sm:$0x1] %vm375, 0.0
      %410 = vst.msk [vmem:[#allocation3 + $0x191] sm:$0x1] %vm375, 0.0
      %411 = vst.msk [vmem:[#allocation3 + $0x1a9] sm:$0x1] %vm375, 0.0
      %v412 = vld [vmem:[%s308] sm:$0xff]
      %v413 = vld [vmem:[%s308 + $0x8] sm:$0xff]
      %v414 = vld [vmem:[%s308 + $0x10] sm:$0xff]
      %v415 = vld [vmem:[%s308 + $0x18] sm:$0xff]
      %v416 = vld [vmem:[%s308 + $0x20] sm:$0xff]
      %v417 = vld [vmem:[%s308 + $0x28] sm:$0xff]
      %v418 = vld [vmem:[%s308 + $0x30] sm:$0xff]
      %v419 = vld [vmem:[%s308 + $0x38] sm:$0xff]
      %v420 = vld [vmem:[%s308 + $0x40] sm:$0xff]
      %v421 = vld [vmem:[%s308 + $0x48] sm:$0xff]
      %v422 = vld [vmem:[%s308 + $0x50] sm:$0xff]
      %v423 = vld [vmem:[%s308 + $0x58] sm:$0xff]
      %v424 = vld [vmem:[%s308 + $0x60] sm:$0xff]
      %v425 = vld [vmem:[%s308 + $0x68] sm:$0xff]
      %v426 = vld [vmem:[%s308 + $0x70] sm:$0xff]
      %v427 = vld [vmem:[%s308 + $0x78] sm:$0xff]
      %v428 = vld [vmem:[%s308 + $0x80] sm:$0xff]
      %v429 = vld [vmem:[%s308 + $0x88] sm:$0xff]
      %v430 = vld [vmem:[%s308 + $0x90] sm:$0xff]
      %v431 = vld [vmem:[%s308 + $0x98] sm:$0xff]
      %v432 = vld [vmem:[%s308 + $0xa0] sm:$0xff]
      %v433 = vld [vmem:[%s308 + $0xa8] sm:$0xff]
      %v434 = vld [vmem:[%s308 + $0xb0] sm:$0xff]
      %v435 = vld [vmem:[%s308 + $0xb8] sm:$0xff]
      %v436 = vld [vmem:[%s308 + $0xc0] sm:$0xff]
      %v437 = vld [vmem:[%s308 + $0xc8] sm:$0xff]
      %v438 = vld [vmem:[%s308 + $0xd0] sm:$0xff]
      %v439 = vld [vmem:[%s308 + $0xd8] sm:$0xff]
      %v440 = vld [vmem:[%s308 + $0xe0] sm:$0xff]
      %v441 = vld [vmem:[%s308 + $0xe8] sm:$0xff]
      %v442 = vld [vmem:[%s308 + $0xf0] sm:$0xff]
      %v443 = vld [vmem:[%s308 + $0xf8] sm:$0xff]
      %s444 = scalar_lea.vmem [#allocation2], 24
      %445 = vst.msk [vmem:[%s444 + $0x1] sm:$0xff] %vm320, %v412
      %446 = vst.msk [vmem:[%s444 + $0x9] sm:$0xff] %vm320, %v413
      %447 = vst.msk [vmem:[%s444 + $0x19] sm:$0xff] %vm320, %v414
      %448 = vst.msk [vmem:[%s444 + $0x21] sm:$0xff] %vm320, %v415
      %449 = vst.msk [vmem:[%s444 + $0x31] sm:$0xff] %vm320, %v416
      %450 = vst.msk [vmem:[%s444 + $0x39] sm:$0xff] %vm320, %v417
      %451 = vst.msk [vmem:[%s444 + $0x49] sm:$0xff] %vm320, %v418
      %452 = vst.msk [vmem:[%s444 + $0x51] sm:$0xff] %vm320, %v419
      %453 = vst.msk [vmem:[%s444 + $0x61] sm:$0xff] %vm320, %v420
      %454 = vst.msk [vmem:[%s444 + $0x69] sm:$0xff] %vm320, %v421
      %455 = vst.msk [vmem:[%s444 + $0x79] sm:$0xff] %vm320, %v422
      %456 = vst.msk [vmem:[%s444 + $0x81] sm:$0xff] %vm320, %v423
      %457 = vst.msk [vmem:[%s444 + $0x91] sm:$0xff] %vm320, %v424
      %458 = vst.msk [vmem:[%s444 + $0x99] sm:$0xff] %vm320, %v425
      %459 = vst.msk [vmem:[%s444 + $0xa9] sm:$0xff] %vm320, %v426
      %460 = vst.msk [vmem:[%s444 + $0xb1] sm:$0xff] %vm320, %v427
      %461 = vst.msk [vmem:[%s444 + $0xc1] sm:$0xff] %vm320, %v428
      %462 = vst.msk [vmem:[%s444 + $0xc9] sm:$0xff] %vm320, %v429
      %463 = vst.msk [vmem:[%s444 + $0xd9] sm:$0xff] %vm320, %v430
      %464 = vst.msk [vmem:[%s444 + $0xe1] sm:$0xff] %vm320, %v431
      %465 = vst.msk [vmem:[%s444 + $0xf1] sm:$0xff] %vm320, %v432
      %466 = vst.msk [vmem:[%s444 + $0xf9] sm:$0xff] %vm320, %v433
      %467 = vst.msk [vmem:[%s444 + $0x109] sm:$0xff] %vm320, %v434
      %468 = vst.msk [vmem:[%s444 + $0x111] sm:$0xff] %vm320, %v435
      %469 = vst.msk [vmem:[%s444 + $0x121] sm:$0xff] %vm320, %v436
      %470 = vst.msk [vmem:[%s444 + $0x129] sm:$0xff] %vm320, %v437
      %471 = vst.msk [vmem:[%s444 + $0x139] sm:$0xff] %vm320, %v438
      %472 = vst.msk [vmem:[%s444 + $0x141] sm:$0xff] %vm320, %v439
      %473 = vst.msk [vmem:[%s444 + $0x151] sm:$0xff] %vm320, %v440
      %474 = vst.msk [vmem:[%s444 + $0x159] sm:$0xff] %vm320, %v441
      %475 = vst.msk [vmem:[%s444 + $0x169] sm:$0xff] %vm320, %v442
      %476 = vst.msk [vmem:[%s444 + $0x171] sm:$0xff] %vm320, %v443
      %v477 = vld [vmem:[#allocation2] sm:$0xff]
      %v478 = vld [vmem:[#allocation2 + $0x8] sm:$0xff]
      %v479 = vld [vmem:[#allocation2 + $0x18] sm:$0xff]
      %v480 = vld [vmem:[#allocation2 + $0x20] sm:$0xff]
      %v481 = vld [vmem:[#allocation2 + $0x30] sm:$0xff]
      %v482 = vld [vmem:[#allocation2 + $0x38] sm:$0xff]
      %v483 = vld [vmem:[#allocation2 + $0x48] sm:$0xff]
      %v484 = vld [vmem:[#allocation2 + $0x50] sm:$0xff]
      %v485 = vld [vmem:[#allocation2 + $0x60] sm:$0xff]
      %v486 = vld [vmem:[#allocation2 + $0x68] sm:$0xff]
      %v487 = vld [vmem:[#allocation2 + $0x78] sm:$0xff]
      %v488 = vld [vmem:[#allocation2 + $0x80] sm:$0xff]
      %v489 = vld [vmem:[#allocation2 + $0x90] sm:$0xff]
      %v490 = vld [vmem:[#allocation2 + $0x98] sm:$0xff]
      %v491 = vld [vmem:[#allocation2 + $0xa8] sm:$0xff]
      %v492 = vld [vmem:[#allocation2 + $0xb0] sm:$0xff]
      %v493 = vld [vmem:[#allocation2 + $0xc0] sm:$0xff]
      %v494 = vld [vmem:[#allocation2 + $0xc8] sm:$0xff]
      %v495 = vld [vmem:[#allocation2 + $0xd8] sm:$0xff]
      %v496 = vld [vmem:[#allocation2 + $0xe0] sm:$0xff]
      %v497 = vld [vmem:[#allocation2 + $0xf0] sm:$0xff]
      %v498 = vld [vmem:[#allocation2 + $0xf8] sm:$0xff]
      %v499 = vld [vmem:[#allocation2 + $0x108] sm:$0xff]
      %v500 = vld [vmem:[#allocation2 + $0x110] sm:$0xff]
      %v501 = vld [vmem:[#allocation2 + $0x120] sm:$0xff]
      %v502 = vld [vmem:[#allocation2 + $0x128] sm:$0xff]
      %v503 = vld [vmem:[#allocation2 + $0x138] sm:$0xff]
      %v504 = vld [vmem:[#allocation2 + $0x140] sm:$0xff]
      %v505 = vld [vmem:[#allocation2 + $0x150] sm:$0xff]
      %v506 = vld [vmem:[#allocation2 + $0x158] sm:$0xff]
      %v507 = vld [vmem:[#allocation2 + $0x168] sm:$0xff]
      %v508 = vld [vmem:[#allocation2 + $0x170] sm:$0xff]
      %v509 = vpack.c.bf16 %v477, %v477
      %v510 = vpack.c.bf16 %v478, %v478
      %v511 = vpack.c.bf16 %v479, %v479
      %v512 = vpack.c.bf16 %v480, %v480
      %v513 = vpack.c.bf16 %v481, %v481
      %v514 = vpack.c.bf16 %v482, %v482
      %v515 = vpack.c.bf16 %v483, %v483
      %v516 = vpack.c.bf16 %v484, %v484
      %v517 = vpack.c.bf16 %v485, %v485
      %v518 = vpack.c.bf16 %v486, %v486
      %v519 = vpack.c.bf16 %v487, %v487
      %v520 = vpack.c.bf16 %v488, %v488
      %v521 = vpack.c.bf16 %v489, %v489
      %v522 = vpack.c.bf16 %v490, %v490
      %v523 = vpack.c.bf16 %v491, %v491
      %v524 = vpack.c.bf16 %v492, %v492
      %v525 = vpack.c.bf16 %v493, %v493
      %v526 = vpack.c.bf16 %v494, %v494
      %v527 = vpack.c.bf16 %v495, %v495
      %v528 = vpack.c.bf16 %v496, %v496
      %v529 = vpack.c.bf16 %v497, %v497
      %v530 = vpack.c.bf16 %v498, %v498
      %v531 = vpack.c.bf16 %v499, %v499
      %v532 = vpack.c.bf16 %v500, %v500
      %v533 = vpack.c.bf16 %v501, %v501
      %v534 = vpack.c.bf16 %v502, %v502
      %v535 = vpack.c.bf16 %v503, %v503
      %v536 = vpack.c.bf16 %v504, %v504
      %v537 = vpack.c.bf16 %v505, %v505
      %v538 = vpack.c.bf16 %v506, %v506
      %v539 = vpack.c.bf16 %v507, %v507
      %v540 = vpack.c.bf16 %v508, %v508
      %vm541 = vcmask 27648
      %542 = vst.msk [vmem:[#allocation4] sm:$0xf] %vm541, %v509
      %543 = vst.msk [vmem:[#allocation4 + $0x4] sm:$0xf] %vm541, %v510
      %544 = vst.msk [vmem:[#allocation4 + $0x8] sm:$0xf] %vm541, %v511
      %545 = vst.msk [vmem:[#allocation4 + $0xc] sm:$0xf] %vm541, %v512
      %546 = vst.msk [vmem:[#allocation4 + $0x10] sm:$0xf] %vm541, %v513
      %547 = vst.msk [vmem:[#allocation4 + $0x14] sm:$0xf] %vm541, %v514
      %548 = vst.msk [vmem:[#allocation4 + $0x18] sm:$0xf] %vm541, %v515
      %549 = vst.msk [vmem:[#allocation4 + $0x1c] sm:$0xf] %vm541, %v516
      %550 = vst.msk [vmem:[#allocation4 + $0x20] sm:$0xf] %vm541, %v517
      %551 = vst.msk [vmem:[#allocation4 + $0x24] sm:$0xf] %vm541, %v518
      %552 = vst.msk [vmem:[#allocation4 + $0x28] sm:$0xf] %vm541, %v519
      %553 = vst.msk [vmem:[#allocation4 + $0x2c] sm:$0xf] %vm541, %v520
      %554 = vst.msk [vmem:[#allocation4 + $0x30] sm:$0xf] %vm541, %v521
      %555 = vst.msk [vmem:[#allocation4 + $0x34] sm:$0xf] %vm541, %v522
      %556 = vst.msk [vmem:[#allocation4 + $0x38] sm:$0xf] %vm541, %v523
      %557 = vst.msk [vmem:[#allocation4 + $0x3c] sm:$0xf] %vm541, %v524
      %558 = vst.msk [vmem:[#allocation4 + $0x40] sm:$0xf] %vm541, %v525
      %559 = vst.msk [vmem:[#allocation4 + $0x44] sm:$0xf] %vm541, %v526
      %560 = vst.msk [vmem:[#allocation4 + $0x48] sm:$0xf] %vm541, %v527
      %561 = vst.msk [vmem:[#allocation4 + $0x4c] sm:$0xf] %vm541, %v528
      %562 = vst.msk [vmem:[#allocation4 + $0x50] sm:$0xf] %vm541, %v529
      %563 = vst.msk [vmem:[#allocation4 + $0x54] sm:$0xf] %vm541, %v530
      %564 = vst.msk [vmem:[#allocation4 + $0x58] sm:$0xf] %vm541, %v531
      %565 = vst.msk [vmem:[#allocation4 + $0x5c] sm:$0xf] %vm541, %v532
      %566 = vst.msk [vmem:[#allocation4 + $0x60] sm:$0xf] %vm541, %v533
      %567 = vst.msk [vmem:[#allocation4 + $0x64] sm:$0xf] %vm541, %v534
      %568 = vst.msk [vmem:[#allocation4 + $0x68] sm:$0xf] %vm541, %v535
      %569 = vst.msk [vmem:[#allocation4 + $0x6c] sm:$0xf] %vm541, %v536
      %570 = vst.msk [vmem:[#allocation4 + $0x70] sm:$0xf] %vm541, %v537
      %571 = vst.msk [vmem:[#allocation4 + $0x74] sm:$0xf] %vm541, %v538
      %572 = vst.msk [vmem:[#allocation4 + $0x78] sm:$0xf] %vm541, %v539
      %573 = vst.msk [vmem:[#allocation4 + $0x7c] sm:$0xf] %vm541, %v540
      %v574 = vld [vmem:[#allocation2 + $0x1] sm:$0xff]
      %v575 = vld [vmem:[#allocation2 + $0x9] sm:$0xff]
      %v576 = vld [vmem:[#allocation2 + $0x19] sm:$0xff]
      %v577 = vld [vmem:[#allocation2 + $0x21] sm:$0xff]
      %v578 = vld [vmem:[#allocation2 + $0x31] sm:$0xff]
      %v579 = vld [vmem:[#allocation2 + $0x39] sm:$0xff]
      %v580 = vld [vmem:[#allocation2 + $0x49] sm:$0xff]
      %v581 = vld [vmem:[#allocation2 + $0x51] sm:$0xff]
      %v582 = vld [vmem:[#allocation2 + $0x61] sm:$0xff]
      %v583 = vld [vmem:[#allocation2 + $0x69] sm:$0xff]
      %v584 = vld [vmem:[#allocation2 + $0x79] sm:$0xff]
      %v585 = vld [vmem:[#allocation2 + $0x81] sm:$0xff]
      %v586 = vld [vmem:[#allocation2 + $0x91] sm:$0xff]
      %v587 = vld [vmem:[#allocation2 + $0x99] sm:$0xff]
      %v588 = vld [vmem:[#allocation2 + $0xa9] sm:$0xff]
      %v589 = vld [vmem:[#allocation2 + $0xb1] sm:$0xff]
      %v590 = vld [vmem:[#allocation2 + $0xc1] sm:$0xff]
      %v591 = vld [vmem:[#allocation2 + $0xc9] sm:$0xff]
      %v592 = vld [vmem:[#allocation2 + $0xd9] sm:$0xff]
      %v593 = vld [vmem:[#allocation2 + $0xe1] sm:$0xff]
      %v594 = vld [vmem:[#allocation2 + $0xf1] sm:$0xff]
      %v595 = vld [vmem:[#allocation2 + $0xf9] sm:$0xff]
      %v596 = vld [vmem:[#allocation2 + $0x109] sm:$0xff]
      %v597 = vld [vmem:[#allocation2 + $0x111] sm:$0xff]
      %v598 = vld [vmem:[#allocation2 + $0x121] sm:$0xff]
      %v599 = vld [vmem:[#allocation2 + $0x129] sm:$0xff]
      %v600 = vld [vmem:[#allocation2 + $0x139] sm:$0xff]
      %v601 = vld [vmem:[#allocation2 + $0x141] sm:$0xff]
      %v602 = vld [vmem:[#allocation2 + $0x151] sm:$0xff]
      %v603 = vld [vmem:[#allocation2 + $0x159] sm:$0xff]
      %v604 = vld [vmem:[#allocation2 + $0x169] sm:$0xff]
      %v605 = vld [vmem:[#allocation2 + $0x171] sm:$0xff]
      %v606 = vpack.c.bf16 %v574, %v574
      %v607 = vpack.c.bf16 %v575, %v575
      %v608 = vpack.c.bf16 %v576, %v576
      %v609 = vpack.c.bf16 %v577, %v577
      %v610 = vpack.c.bf16 %v578, %v578
      %v611 = vpack.c.bf16 %v579, %v579
      %v612 = vpack.c.bf16 %v580, %v580
      %v613 = vpack.c.bf16 %v581, %v581
      %v614 = vpack.c.bf16 %v582, %v582
      %v615 = vpack.c.bf16 %v583, %v583
      %v616 = vpack.c.bf16 %v584, %v584
      %v617 = vpack.c.bf16 %v585, %v585
      %v618 = vpack.c.bf16 %v586, %v586
      %v619 = vpack.c.bf16 %v587, %v587
      %v620 = vpack.c.bf16 %v588, %v588
      %v621 = vpack.c.bf16 %v589, %v589
      %v622 = vpack.c.bf16 %v590, %v590
      %v623 = vpack.c.bf16 %v591, %v591
      %v624 = vpack.c.bf16 %v592, %v592
      %v625 = vpack.c.bf16 %v593, %v593
      %v626 = vpack.c.bf16 %v594, %v594
      %v627 = vpack.c.bf16 %v595, %v595
      %v628 = vpack.c.bf16 %v596, %v596
      %v629 = vpack.c.bf16 %v597, %v597
      %v630 = vpack.c.bf16 %v598, %v598
      %v631 = vpack.c.bf16 %v599, %v599
      %v632 = vpack.c.bf16 %v600, %v600
      %v633 = vpack.c.bf16 %v601, %v601
      %v634 = vpack.c.bf16 %v602, %v602
      %v635 = vpack.c.bf16 %v603, %v603
      %v636 = vpack.c.bf16 %v604, %v604
      %v637 = vpack.c.bf16 %v605, %v605
      %670 = vrot.lane.b32.xlu0 %v606, 4
      %v671 = vpop.permute.xlu0 %670
      %672 = vrot.lane.b32.xlu0 %v607, 4
      %v673 = vpop.permute.xlu0 %672
      %674 = vrot.lane.b32.xlu0 %v608, 4
      %v675 = vpop.permute.xlu0 %674
      %676 = vrot.lane.b32.xlu0 %v609, 4
      %v677 = vpop.permute.xlu0 %676
      %678 = vrot.lane.b32.xlu0 %v610, 4
      %v679 = vpop.permute.xlu0 %678
      %680 = vrot.lane.b32.xlu0 %v611, 4
      %v681 = vpop.permute.xlu0 %680
      %682 = vrot.lane.b32.xlu0 %v612, 4
      %v683 = vpop.permute.xlu0 %682
      %684 = vrot.lane.b32.xlu0 %v613, 4
      %v685 = vpop.permute.xlu0 %684
      %686 = vrot.lane.b32.xlu0 %v614, 4
      %v687 = vpop.permute.xlu0 %686
      %688 = vrot.lane.b32.xlu0 %v615, 4
      %v689 = vpop.permute.xlu0 %688
      %690 = vrot.lane.b32.xlu0 %v616, 4
      %v691 = vpop.permute.xlu0 %690
      %692 = vrot.lane.b32.xlu0 %v617, 4
      %v693 = vpop.permute.xlu0 %692
      %694 = vrot.lane.b32.xlu0 %v618, 4
      %v695 = vpop.permute.xlu0 %694
      %696 = vrot.lane.b32.xlu0 %v619, 4
      %v697 = vpop.permute.xlu0 %696
      %698 = vrot.lane.b32.xlu0 %v620, 4
      %v699 = vpop.permute.xlu0 %698
      %700 = vrot.lane.b32.xlu0 %v621, 4
      %v701 = vpop.permute.xlu0 %700
      %702 = vrot.lane.b32.xlu0 %v622, 4
      %v703 = vpop.permute.xlu0 %702
      %704 = vrot.lane.b32.xlu0 %v623, 4
      %v705 = vpop.permute.xlu0 %704
      %706 = vrot.lane.b32.xlu0 %v624, 4
      %v707 = vpop.permute.xlu0 %706
      %708 = vrot.lane.b32.xlu0 %v625, 4
      %v709 = vpop.permute.xlu0 %708
      %710 = vrot.lane.b32.xlu0 %v626, 4
      %v711 = vpop.permute.xlu0 %710
      %712 = vrot.lane.b32.xlu0 %v627, 4
      %v713 = vpop.permute.xlu0 %712
      %714 = vrot.lane.b32.xlu0 %v628, 4
      %v715 = vpop.permute.xlu0 %714
      %716 = vrot.lane.b32.xlu0 %v629, 4
      %v717 = vpop.permute.xlu0 %716
      %718 = vrot.lane.b32.xlu0 %v630, 4
      %v719 = vpop.permute.xlu0 %718
      %720 = vrot.lane.b32.xlu0 %v631, 4
      %v721 = vpop.permute.xlu0 %720
      %722 = vrot.lane.b32.xlu0 %v632, 4
      %v723 = vpop.permute.xlu0 %722
      %724 = vrot.lane.b32.xlu0 %v633, 4
      %v725 = vpop.permute.xlu0 %724
      %726 = vrot.lane.b32.xlu0 %v634, 4
      %v727 = vpop.permute.xlu0 %726
      %728 = vrot.lane.b32.xlu0 %v635, 4
      %v729 = vpop.permute.xlu0 %728
      %730 = vrot.lane.b32.xlu0 %v636, 4
      %v731 = vpop.permute.xlu0 %730
      %732 = vrot.lane.b32.xlu0 %v637, 4
      %v733 = vpop.permute.xlu0 %732
      %vm766 = vcmask 60448
      %767 = vst.msk [vmem:[#allocation4] sm:$0xf] %vm766, %v671
      %768 = vst.msk [vmem:[#allocation4 + $0x4] sm:$0xf] %vm766, %v673
      %769 = vst.msk [vmem:[#allocation4 + $0x8] sm:$0xf] %vm766, %v675
      %770 = vst.msk [vmem:[#allocation4 + $0xc] sm:$0xf] %vm766, %v677
      %771 = vst.msk [vmem:[#allocation4 + $0x10] sm:$0xf] %vm766, %v679
      %772 = vst.msk [vmem:[#allocation4 + $0x14] sm:$0xf] %vm766, %v681
      %773 = vst.msk [vmem:[#allocation4 + $0x18] sm:$0xf] %vm766, %v683
      %774 = vst.msk [vmem:[#allocation4 + $0x1c] sm:$0xf] %vm766, %v685
      %775 = vst.msk [vmem:[#allocation4 + $0x20] sm:$0xf] %vm766, %v687
      %776 = vst.msk [vmem:[#allocation4 + $0x24] sm:$0xf] %vm766, %v689
      %777 = vst.msk [vmem:[#allocation4 + $0x28] sm:$0xf] %vm766, %v691
      %778 = vst.msk [vmem:[#allocation4 + $0x2c] sm:$0xf] %vm766, %v693
      %779 = vst.msk [vmem:[#allocation4 + $0x30] sm:$0xf] %vm766, %v695
      %780 = vst.msk [vmem:[#allocation4 + $0x34] sm:$0xf] %vm766, %v697
      %781 = vst.msk [vmem:[#allocation4 + $0x38] sm:$0xf] %vm766, %v699
      %782 = vst.msk [vmem:[#allocation4 + $0x3c] sm:$0xf] %vm766, %v701
      %783 = vst.msk [vmem:[#allocation4 + $0x40] sm:$0xf] %vm766, %v703
      %784 = vst.msk [vmem:[#allocation4 + $0x44] sm:$0xf] %vm766, %v705
      %785 = vst.msk [vmem:[#allocation4 + $0x48] sm:$0xf] %vm766, %v707
      %786 = vst.msk [vmem:[#allocation4 + $0x4c] sm:$0xf] %vm766, %v709
      %787 = vst.msk [vmem:[#allocation4 + $0x50] sm:$0xf] %vm766, %v711
      %788 = vst.msk [vmem:[#allocation4 + $0x54] sm:$0xf] %vm766, %v713
      %789 = vst.msk [vmem:[#allocation4 + $0x58] sm:$0xf] %vm766, %v715
      %790 = vst.msk [vmem:[#allocation4 + $0x5c] sm:$0xf] %vm766, %v717
      %791 = vst.msk [vmem:[#allocation4 + $0x60] sm:$0xf] %vm766, %v719
      %792 = vst.msk [vmem:[#allocation4 + $0x64] sm:$0xf] %vm766, %v721
      %793 = vst.msk [vmem:[#allocation4 + $0x68] sm:$0xf] %vm766, %v723
      %794 = vst.msk [vmem:[#allocation4 + $0x6c] sm:$0xf] %vm766, %v725
      %795 = vst.msk [vmem:[#allocation4 + $0x70] sm:$0xf] %vm766, %v727
      %796 = vst.msk [vmem:[#allocation4 + $0x74] sm:$0xf] %vm766, %v729
      %797 = vst.msk [vmem:[#allocation4 + $0x78] sm:$0xf] %vm766, %v731
      %798 = vst.msk [vmem:[#allocation4 + $0x7c] sm:$0xf] %vm766, %v733
      %v799 = vld [vmem:[#allocation2 + $0x2] sm:$0xff]
      %v800 = vld [vmem:[#allocation2 + $0xa] sm:$0xff]
      %v801 = vld [vmem:[#allocation2 + $0x1a] sm:$0xff]
      %v802 = vld [vmem:[#allocation2 + $0x22] sm:$0xff]
      %v803 = vld [vmem:[#allocation2 + $0x32] sm:$0xff]
      %v804 = vld [vmem:[#allocation2 + $0x3a] sm:$0xff]
      %v805 = vld [vmem:[#allocation2 + $0x4a] sm:$0xff]
      %v806 = vld [vmem:[#allocation2 + $0x52] sm:$0xff]
      %v807 = vld [vmem:[#allocation2 + $0x62] sm:$0xff]
      %v808 = vld [vmem:[#allocation2 + $0x6a] sm:$0xff]
      %v809 = vld [vmem:[#allocation2 + $0x7a] sm:$0xff]
      %v810 = vld [vmem:[#allocation2 + $0x82] sm:$0xff]
      %v811 = vld [vmem:[#allocation2 + $0x92] sm:$0xff]
      %v812 = vld [vmem:[#allocation2 + $0x9a] sm:$0xff]
      %v813 = vld [vmem:[#allocation2 + $0xaa] sm:$0xff]
      %v814 = vld [vmem:[#allocation2 + $0xb2] sm:$0xff]
      %v815 = vld [vmem:[#allocation2 + $0xc2] sm:$0xff]
      %v816 = vld [vmem:[#allocation2 + $0xca] sm:$0xff]
      %v817 = vld [vmem:[#allocation2 + $0xda] sm:$0xff]
      %v818 = vld [vmem:[#allocation2 + $0xe2] sm:$0xff]
      %v819 = vld [vmem:[#allocation2 + $0xf2] sm:$0xff]
      %v820 = vld [vmem:[#allocation2 + $0xfa] sm:$0xff]
      %v821 = vld [vmem:[#allocation2 + $0x10a] sm:$0xff]
      %v822 = vld [vmem:[#allocation2 + $0x112] sm:$0xff]
      %v823 = vld [vmem:[#allocation2 + $0x122] sm:$0xff]
      %v824 = vld [vmem:[#allocation2 + $0x12a] sm:$0xff]
      %v825 = vld [vmem:[#allocation2 + $0x13a] sm:$0xff]
      %v826 = vld [vmem:[#allocation2 + $0x142] sm:$0xff]
      %v827 = vld [vmem:[#allocation2 + $0x152] sm:$0xff]
      %v828 = vld [vmem:[#allocation2 + $0x15a] sm:$0xff]
      %v829 = vld [vmem:[#allocation2 + $0x16a] sm:$0xff]
      %v830 = vld [vmem:[#allocation2 + $0x172] sm:$0xff]
      %v831 = vpack.c.bf16 %v799, %v799
      %v832 = vpack.c.bf16 %v800, %v800
      %v833 = vpack.c.bf16 %v801, %v801
      %v834 = vpack.c.bf16 %v802, %v802
      %v835 = vpack.c.bf16 %v803, %v803
      %v836 = vpack.c.bf16 %v804, %v804
      %v837 = vpack.c.bf16 %v805, %v805
      %v838 = vpack.c.bf16 %v806, %v806
      %v839 = vpack.c.bf16 %v807, %v807
      %v840 = vpack.c.bf16 %v808, %v808
      %v841 = vpack.c.bf16 %v809, %v809
      %v842 = vpack.c.bf16 %v810, %v810
      %v843 = vpack.c.bf16 %v811, %v811
      %v844 = vpack.c.bf16 %v812, %v812
      %v845 = vpack.c.bf16 %v813, %v813
      %v846 = vpack.c.bf16 %v814, %v814
      %v847 = vpack.c.bf16 %v815, %v815
      %v848 = vpack.c.bf16 %v816, %v816
      %v849 = vpack.c.bf16 %v817, %v817
      %v850 = vpack.c.bf16 %v818, %v818
      %v851 = vpack.c.bf16 %v819, %v819
      %v852 = vpack.c.bf16 %v820, %v820
      %v853 = vpack.c.bf16 %v821, %v821
      %v854 = vpack.c.bf16 %v822, %v822
      %v855 = vpack.c.bf16 %v823, %v823
      %v856 = vpack.c.bf16 %v824, %v824
      %v857 = vpack.c.bf16 %v825, %v825
      %v858 = vpack.c.bf16 %v826, %v826
      %v859 = vpack.c.bf16 %v827, %v827
      %v860 = vpack.c.bf16 %v828, %v828
      %v861 = vpack.c.bf16 %v829, %v829
      %v862 = vpack.c.bf16 %v830, %v830
      %895 = vrot.lane.b32.xlu0 %v831, 8
      %v896 = vpop.permute.xlu0 %895
      %897 = vrot.lane.b32.xlu0 %v832, 8
      %v898 = vpop.permute.xlu0 %897
      %899 = vrot.lane.b32.xlu0 %v833, 8
      %v900 = vpop.permute.xlu0 %899
      %901 = vrot.lane.b32.xlu0 %v834, 8
      %v902 = vpop.permute.xlu0 %901
      %903 = vrot.lane.b32.xlu0 %v835, 8
      %v904 = vpop.permute.xlu0 %903
      %905 = vrot.lane.b32.xlu0 %v836, 8
      %v906 = vpop.permute.xlu0 %905
      %907 = vrot.lane.b32.xlu0 %v837, 8
      %v908 = vpop.permute.xlu0 %907
      %909 = vrot.lane.b32.xlu0 %v838, 8
      %v910 = vpop.permute.xlu0 %909
      %911 = vrot.lane.b32.xlu0 %v839, 8
      %v912 = vpop.permute.xlu0 %911
      %913 = vrot.lane.b32.xlu0 %v840, 8
      %v914 = vpop.permute.xlu0 %913
      %915 = vrot.lane.b32.xlu0 %v841, 8
      %v916 = vpop.permute.xlu0 %915
      %917 = vrot.lane.b32.xlu0 %v842, 8
      %v918 = vpop.permute.xlu0 %917
      %919 = vrot.lane.b32.xlu0 %v843, 8
      %v920 = vpop.permute.xlu0 %919
      %921 = vrot.lane.b32.xlu0 %v844, 8
      %v922 = vpop.permute.xlu0 %921
      %923 = vrot.lane.b32.xlu0 %v845, 8
      %v924 = vpop.permute.xlu0 %923
      %925 = vrot.lane.b32.xlu0 %v846, 8
      %v926 = vpop.permute.xlu0 %925
      %927 = vrot.lane.b32.xlu0 %v847, 8
      %v928 = vpop.permute.xlu0 %927
      %929 = vrot.lane.b32.xlu0 %v848, 8
      %v930 = vpop.permute.xlu0 %929
      %931 = vrot.lane.b32.xlu0 %v849, 8
      %v932 = vpop.permute.xlu0 %931
      %933 = vrot.lane.b32.xlu0 %v850, 8
      %v934 = vpop.permute.xlu0 %933
      %935 = vrot.lane.b32.xlu0 %v851, 8
      %v936 = vpop.permute.xlu0 %935
      %937 = vrot.lane.b32.xlu0 %v852, 8
      %v938 = vpop.permute.xlu0 %937
      %939 = vrot.lane.b32.xlu0 %v853, 8
      %v940 = vpop.permute.xlu0 %939
      %941 = vrot.lane.b32.xlu0 %v854, 8
      %v942 = vpop.permute.xlu0 %941
      %943 = vrot.lane.b32.xlu0 %v855, 8
      %v944 = vpop.permute.xlu0 %943
      %945 = vrot.lane.b32.xlu0 %v856, 8
      %v946 = vpop.permute.xlu0 %945
      %947 = vrot.lane.b32.xlu0 %v857, 8
      %v948 = vpop.permute.xlu0 %947
      %949 = vrot.lane.b32.xlu0 %v858, 8
      %v950 = vpop.permute.xlu0 %949
      %951 = vrot.lane.b32.xlu0 %v859, 8
      %v952 = vpop.permute.xlu0 %951
      %953 = vrot.lane.b32.xlu0 %v860, 8
      %v954 = vpop.permute.xlu0 %953
      %955 = vrot.lane.b32.xlu0 %v861, 8
      %v956 = vpop.permute.xlu0 %955
      %957 = vrot.lane.b32.xlu0 %v862, 8
      %v958 = vpop.permute.xlu0 %957
      %vm991 = vcmask 93248
      %992 = vst.msk [vmem:[#allocation4] sm:$0xf] %vm991, %v896
      %993 = vst.msk [vmem:[#allocation4 + $0x4] sm:$0xf] %vm991, %v898
      %994 = vst.msk [vmem:[#allocation4 + $0x8] sm:$0xf] %vm991, %v900
      %995 = vst.msk [vmem:[#allocation4 + $0xc] sm:$0xf] %vm991, %v902
      %996 = vst.msk [vmem:[#allocation4 + $0x10] sm:$0xf] %vm991, %v904
      %997 = vst.msk [vmem:[#allocation4 + $0x14] sm:$0xf] %vm991, %v906
      %998 = vst.msk [vmem:[#allocation4 + $0x18] sm:$0xf] %vm991, %v908
      %999 = vst.msk [vmem:[#allocation4 + $0x1c] sm:$0xf] %vm991, %v910
      %1000 = vst.msk [vmem:[#allocation4 + $0x20] sm:$0xf] %vm991, %v912
      %1001 = vst.msk [vmem:[#allocation4 + $0x24] sm:$0xf] %vm991, %v914
      %1002 = vst.msk [vmem:[#allocation4 + $0x28] sm:$0xf] %vm991, %v916
      %1003 = vst.msk [vmem:[#allocation4 + $0x2c] sm:$0xf] %vm991, %v918
      %1004 = vst.msk [vmem:[#allocation4 + $0x30] sm:$0xf] %vm991, %v920
      %1005 = vst.msk [vmem:[#allocation4 + $0x34] sm:$0xf] %vm991, %v922
      %1006 = vst.msk [vmem:[#allocation4 + $0x38] sm:$0xf] %vm991, %v924
      %1007 = vst.msk [vmem:[#allocation4 + $0x3c] sm:$0xf] %vm991, %v926
      %1008 = vst.msk [vmem:[#allocation4 + $0x40] sm:$0xf] %vm991, %v928
      %1009 = vst.msk [vmem:[#allocation4 + $0x44] sm:$0xf] %vm991, %v930
      %1010 = vst.msk [vmem:[#allocation4 + $0x48] sm:$0xf] %vm991, %v932
      %1011 = vst.msk [vmem:[#allocation4 + $0x4c] sm:$0xf] %vm991, %v934
      %1012 = vst.msk [vmem:[#allocation4 + $0x50] sm:$0xf] %vm991, %v936
      %1013 = vst.msk [vmem:[#allocation4 + $0x54] sm:$0xf] %vm991, %v938
      %1014 = vst.msk [vmem:[#allocation4 + $0x58] sm:$0xf] %vm991, %v940
      %1015 = vst.msk [vmem:[#allocation4 + $0x5c] sm:$0xf] %vm991, %v942
      %1016 = vst.msk [vmem:[#allocation4 + $0x60] sm:$0xf] %vm991, %v944
      %1017 = vst.msk [vmem:[#allocation4 + $0x64] sm:$0xf] %vm991, %v946
      %1018 = vst.msk [vmem:[#allocation4 + $0x68] sm:$0xf] %vm991, %v948
      %1019 = vst.msk [vmem:[#allocation4 + $0x6c] sm:$0xf] %vm991, %v950
      %1020 = vst.msk [vmem:[#allocation4 + $0x70] sm:$0xf] %vm991, %v952
      %1021 = vst.msk [vmem:[#allocation4 + $0x74] sm:$0xf] %vm991, %v954
      %1022 = vst.msk [vmem:[#allocation4 + $0x78] sm:$0xf] %vm991, %v956
      %1023 = vst.msk [vmem:[#allocation4 + $0x7c] sm:$0xf] %vm991, %v958
      %v1024 = vld [vmem:[%s444] sm:$0xff]
      %v1025 = vld [vmem:[%s444 + $0x8] sm:$0xff]
      %v1026 = vld [vmem:[%s444 + $0x18] sm:$0xff]
      %v1027 = vld [vmem:[%s444 + $0x20] sm:$0xff]
      %v1028 = vld [vmem:[%s444 + $0x30] sm:$0xff]
      %v1029 = vld [vmem:[%s444 + $0x38] sm:$0xff]
      %v1030 = vld [vmem:[%s444 + $0x48] sm:$0xff]
      %v1031 = vld [vmem:[%s444 + $0x50] sm:$0xff]
      %v1032 = vld [vmem:[%s444 + $0x60] sm:$0xff]
      %v1033 = vld [vmem:[%s444 + $0x68] sm:$0xff]
      %v1034 = vld [vmem:[%s444 + $0x78] sm:$0xff]
      %v1035 = vld [vmem:[%s444 + $0x80] sm:$0xff]
      %v1036 = vld [vmem:[%s444 + $0x90] sm:$0xff]
      %v1037 = vld [vmem:[%s444 + $0x98] sm:$0xff]
      %v1038 = vld [vmem:[%s444 + $0xa8] sm:$0xff]
      %v1039 = vld [vmem:[%s444 + $0xb0] sm:$0xff]
      %v1040 = vld [vmem:[%s444 + $0xc0] sm:$0xff]
      %v1041 = vld [vmem:[%s444 + $0xc8] sm:$0xff]
      %v1042 = vld [vmem:[%s444 + $0xd8] sm:$0xff]
      %v1043 = vld [vmem:[%s444 + $0xe0] sm:$0xff]
      %v1044 = vld [vmem:[%s444 + $0xf0] sm:$0xff]
      %v1045 = vld [vmem:[%s444 + $0xf8] sm:$0xff]
      %v1046 = vld [vmem:[%s444 + $0x108] sm:$0xff]
      %v1047 = vld [vmem:[%s444 + $0x110] sm:$0xff]
      %v1048 = vld [vmem:[%s444 + $0x120] sm:$0xff]
      %v1049 = vld [vmem:[%s444 + $0x128] sm:$0xff]
      %v1050 = vld [vmem:[%s444 + $0x138] sm:$0xff]
      %v1051 = vld [vmem:[%s444 + $0x140] sm:$0xff]
      %v1052 = vld [vmem:[%s444 + $0x150] sm:$0xff]
      %v1053 = vld [vmem:[%s444 + $0x158] sm:$0xff]
      %v1054 = vld [vmem:[%s444 + $0x168] sm:$0xff]
      %v1055 = vld [vmem:[%s444 + $0x170] sm:$0xff]
      %v1056 = vpack.c.bf16 %v1024, %v1024
      %v1057 = vpack.c.bf16 %v1025, %v1025
      %v1058 = vpack.c.bf16 %v1026, %v1026
      %v1059 = vpack.c.bf16 %v1027, %v1027
      %v1060 = vpack.c.bf16 %v1028, %v1028
      %v1061 = vpack.c.bf16 %v1029, %v1029
      %v1062 = vpack.c.bf16 %v1030, %v1030
      %v1063 = vpack.c.bf16 %v1031, %v1031
      %v1064 = vpack.c.bf16 %v1032, %v1032
      %v1065 = vpack.c.bf16 %v1033, %v1033
      %v1066 = vpack.c.bf16 %v1034, %v1034
      %v1067 = vpack.c.bf16 %v1035, %v1035
      %v1068 = vpack.c.bf16 %v1036, %v1036
      %v1069 = vpack.c.bf16 %v1037, %v1037
      %v1070 = vpack.c.bf16 %v1038, %v1038
      %v1071 = vpack.c.bf16 %v1039, %v1039
      %v1072 = vpack.c.bf16 %v1040, %v1040
      %v1073 = vpack.c.bf16 %v1041, %v1041
      %v1074 = vpack.c.bf16 %v1042, %v1042
      %v1075 = vpack.c.bf16 %v1043, %v1043
      %v1076 = vpack.c.bf16 %v1044, %v1044
      %v1077 = vpack.c.bf16 %v1045, %v1045
      %v1078 = vpack.c.bf16 %v1046, %v1046
      %v1079 = vpack.c.bf16 %v1047, %v1047
      %v1080 = vpack.c.bf16 %v1048, %v1048
      %v1081 = vpack.c.bf16 %v1049, %v1049
      %v1082 = vpack.c.bf16 %v1050, %v1050
      %v1083 = vpack.c.bf16 %v1051, %v1051
      %v1084 = vpack.c.bf16 %v1052, %v1052
      %v1085 = vpack.c.bf16 %v1053, %v1053
      %v1086 = vpack.c.bf16 %v1054, %v1054
      %v1087 = vpack.c.bf16 %v1055, %v1055
      %1120 = vrot.lane.b32.xlu0 %v1056, 12
      %v1121 = vpop.permute.xlu0 %1120
      %1122 = vrot.lane.b32.xlu0 %v1057, 12
      %v1123 = vpop.permute.xlu0 %1122
      %1124 = vrot.lane.b32.xlu0 %v1058, 12
      %v1125 = vpop.permute.xlu0 %1124
      %1126 = vrot.lane.b32.xlu0 %v1059, 12
      %v1127 = vpop.permute.xlu0 %1126
      %1128 = vrot.lane.b32.xlu0 %v1060, 12
      %v1129 = vpop.permute.xlu0 %1128
      %1130 = vrot.lane.b32.xlu0 %v1061, 12
      %v1131 = vpop.permute.xlu0 %1130
      %1132 = vrot.lane.b32.xlu0 %v1062, 12
      %v1133 = vpop.permute.xlu0 %1132
      %1134 = vrot.lane.b32.xlu0 %v1063, 12
      %v1135 = vpop.permute.xlu0 %1134
      %1136 = vrot.lane.b32.xlu0 %v1064, 12
      %v1137 = vpop.permute.xlu0 %1136
      %1138 = vrot.lane.b32.xlu0 %v1065, 12
      %v1139 = vpop.permute.xlu0 %1138
      %1140 = vrot.lane.b32.xlu0 %v1066, 12
      %v1141 = vpop.permute.xlu0 %1140
      %1142 = vrot.lane.b32.xlu0 %v1067, 12
      %v1143 = vpop.permute.xlu0 %1142
      %1144 = vrot.lane.b32.xlu0 %v1068, 12
      %v1145 = vpop.permute.xlu0 %1144
      %1146 = vrot.lane.b32.xlu0 %v1069, 12
      %v1147 = vpop.permute.xlu0 %1146
      %1148 = vrot.lane.b32.xlu0 %v1070, 12
      %v1149 = vpop.permute.xlu0 %1148
      %1150 = vrot.lane.b32.xlu0 %v1071, 12
      %v1151 = vpop.permute.xlu0 %1150
      %1152 = vrot.lane.b32.xlu0 %v1072, 12
      %v1153 = vpop.permute.xlu0 %1152
      %1154 = vrot.lane.b32.xlu0 %v1073, 12
      %v1155 = vpop.permute.xlu0 %1154
      %1156 = vrot.lane.b32.xlu0 %v1074, 12
      %v1157 = vpop.permute.xlu0 %1156
      %1158 = vrot.lane.b32.xlu0 %v1075, 12
      %v1159 = vpop.permute.xlu0 %1158
      %1160 = vrot.lane.b32.xlu0 %v1076, 12
      %v1161 = vpop.permute.xlu0 %1160
      %1162 = vrot.lane.b32.xlu0 %v1077, 12
      %v1163 = vpop.permute.xlu0 %1162
      %1164 = vrot.lane.b32.xlu0 %v1078, 12
      %v1165 = vpop.permute.xlu0 %1164
      %1166 = vrot.lane.b32.xlu0 %v1079, 12
      %v1167 = vpop.permute.xlu0 %1166
      %1168 = vrot.lane.b32.xlu0 %v1080, 12
      %v1169 = vpop.permute.xlu0 %1168
      %1170 = vrot.lane.b32.xlu0 %v1081, 12
      %v1171 = vpop.permute.xlu0 %1170
      %1172 = vrot.lane.b32.xlu0 %v1082, 12
      %v1173 = vpop.permute.xlu0 %1172
      %1174 = vrot.lane.b32.xlu0 %v1083, 12
      %v1175 = vpop.permute.xlu0 %1174
      %1176 = vrot.lane.b32.xlu0 %v1084, 12
      %v1177 = vpop.permute.xlu0 %1176
      %1178 = vrot.lane.b32.xlu0 %v1085, 12
      %v1179 = vpop.permute.xlu0 %1178
      %1180 = vrot.lane.b32.xlu0 %v1086, 12
      %v1181 = vpop.permute.xlu0 %1180
      %1182 = vrot.lane.b32.xlu0 %v1087, 12
      %v1183 = vpop.permute.xlu0 %1182
      %vm1216 = vcmask 126048
      %1217 = vst.msk [vmem:[#allocation4] sm:$0xf] %vm1216, %v1121
      %1218 = vst.msk [vmem:[#allocation4 + $0x4] sm:$0xf] %vm1216, %v1123
      %1219 = vst.msk [vmem:[#allocation4 + $0x8] sm:$0xf] %vm1216, %v1125
      %1220 = vst.msk [vmem:[#allocation4 + $0xc] sm:$0xf] %vm1216, %v1127
      %1221 = vst.msk [vmem:[#allocation4 + $0x10] sm:$0xf] %vm1216, %v1129
      %1222 = vst.msk [vmem:[#allocation4 + $0x14] sm:$0xf] %vm1216, %v1131
      %1223 = vst.msk [vmem:[#allocation4 + $0x18] sm:$0xf] %vm1216, %v1133
      %1224 = vst.msk [vmem:[#allocation4 + $0x1c] sm:$0xf] %vm1216, %v1135
      %1225 = vst.msk [vmem:[#allocation4 + $0x20] sm:$0xf] %vm1216, %v1137
      %1226 = vst.msk [vmem:[#allocation4 + $0x24] sm:$0xf] %vm1216, %v1139
      %1227 = vst.msk [vmem:[#allocation4 + $0x28] sm:$0xf] %vm1216, %v1141
      %1228 = vst.msk [vmem:[#allocation4 + $0x2c] sm:$0xf] %vm1216, %v1143
      %1229 = vst.msk [vmem:[#allocation4 + $0x30] sm:$0xf] %vm1216, %v1145
      %1230 = vst.msk [vmem:[#allocation4 + $0x34] sm:$0xf] %vm1216, %v1147
      %1231 = vst.msk [vmem:[#allocation4 + $0x38] sm:$0xf] %vm1216, %v1149
      %1232 = vst.msk [vmem:[#allocation4 + $0x3c] sm:$0xf] %vm1216, %v1151
      %1233 = vst.msk [vmem:[#allocation4 + $0x40] sm:$0xf] %vm1216, %v1153
      %1234 = vst.msk [vmem:[#allocation4 + $0x44] sm:$0xf] %vm1216, %v1155
      %1235 = vst.msk [vmem:[#allocation4 + $0x48] sm:$0xf] %vm1216, %v1157
      %1236 = vst.msk [vmem:[#allocation4 + $0x4c] sm:$0xf] %vm1216, %v1159
      %1237 = vst.msk [vmem:[#allocation4 + $0x50] sm:$0xf] %vm1216, %v1161
      %1238 = vst.msk [vmem:[#allocation4 + $0x54] sm:$0xf] %vm1216, %v1163
      %1239 = vst.msk [vmem:[#allocation4 + $0x58] sm:$0xf] %vm1216, %v1165
      %1240 = vst.msk [vmem:[#allocation4 + $0x5c] sm:$0xf] %vm1216, %v1167
      %1241 = vst.msk [vmem:[#allocation4 + $0x60] sm:$0xf] %vm1216, %v1169
      %1242 = vst.msk [vmem:[#allocation4 + $0x64] sm:$0xf] %vm1216, %v1171
      %1243 = vst.msk [vmem:[#allocation4 + $0x68] sm:$0xf] %vm1216, %v1173
      %1244 = vst.msk [vmem:[#allocation4 + $0x6c] sm:$0xf] %vm1216, %v1175
      %1245 = vst.msk [vmem:[#allocation4 + $0x70] sm:$0xf] %vm1216, %v1177
      %1246 = vst.msk [vmem:[#allocation4 + $0x74] sm:$0xf] %vm1216, %v1179
      %1247 = vst.msk [vmem:[#allocation4 + $0x78] sm:$0xf] %vm1216, %v1181
      %1248 = vst.msk [vmem:[#allocation4 + $0x7c] sm:$0xf] %vm1216, %v1183
      %v1249 = vld [vmem:[%s444 + $0x1] sm:$0xff]
      %v1250 = vld [vmem:[%s444 + $0x9] sm:$0xff]
      %v1251 = vld [vmem:[%s444 + $0x19] sm:$0xff]
      %v1252 = vld [vmem:[%s444 + $0x21] sm:$0xff]
      %v1253 = vld [vmem:[%s444 + $0x31] sm:$0xff]
      %v1254 = vld [vmem:[%s444 + $0x39] sm:$0xff]
      %v1255 = vld [vmem:[%s444 + $0x49] sm:$0xff]
      %v1256 = vld [vmem:[%s444 + $0x51] sm:$0xff]
      %v1257 = vld [vmem:[%s444 + $0x61] sm:$0xff]
      %v1258 = vld [vmem:[%s444 + $0x69] sm:$0xff]
      %v1259 = vld [vmem:[%s444 + $0x79] sm:$0xff]
      %v1260 = vld [vmem:[%s444 + $0x81] sm:$0xff]
      %v1261 = vld [vmem:[%s444 + $0x91] sm:$0xff]
      %v1262 = vld [vmem:[%s444 + $0x99] sm:$0xff]
      %v1263 = vld [vmem:[%s444 + $0xa9] sm:$0xff]
      %v1264 = vld [vmem:[%s444 + $0xb1] sm:$0xff]
      %v1265 = vld [vmem:[%s444 + $0xc1] sm:$0xff]
      %v1266 = vld [vmem:[%s444 + $0xc9] sm:$0xff]
      %v1267 = vld [vmem:[%s444 + $0xd9] sm:$0xff]
      %v1268 = vld [vmem:[%s444 + $0xe1] sm:$0xff]
      %v1269 = vld [vmem:[%s444 + $0xf1] sm:$0xff]
      %v1270 = vld [vmem:[%s444 + $0xf9] sm:$0xff]
      %v1271 = vld [vmem:[%s444 + $0x109] sm:$0xff]
      %v1272 = vld [vmem:[%s444 + $0x111] sm:$0xff]
      %v1273 = vld [vmem:[%s444 + $0x121] sm:$0xff]
      %v1274 = vld [vmem:[%s444 + $0x129] sm:$0xff]
      %v1275 = vld [vmem:[%s444 + $0x139] sm:$0xff]
      %v1276 = vld [vmem:[%s444 + $0x141] sm:$0xff]
      %v1277 = vld [vmem:[%s444 + $0x151] sm:$0xff]
      %v1278 = vld [vmem:[%s444 + $0x159] sm:$0xff]
      %v1279 = vld [vmem:[%s444 + $0x169] sm:$0xff]
      %v1280 = vld [vmem:[%s444 + $0x171] sm:$0xff]
      %v1281 = vpack.c.bf16 %v1249, %v1249
      %v1282 = vpack.c.bf16 %v1250, %v1250
      %v1283 = vpack.c.bf16 %v1251, %v1251
      %v1284 = vpack.c.bf16 %v1252, %v1252
      %v1285 = vpack.c.bf16 %v1253, %v1253
      %v1286 = vpack.c.bf16 %v1254, %v1254
      %v1287 = vpack.c.bf16 %v1255, %v1255
      %v1288 = vpack.c.bf16 %v1256, %v1256
      %v1289 = vpack.c.bf16 %v1257, %v1257
      %v1290 = vpack.c.bf16 %v1258, %v1258
      %v1291 = vpack.c.bf16 %v1259, %v1259
      %v1292 = vpack.c.bf16 %v1260, %v1260
      %v1293 = vpack.c.bf16 %v1261, %v1261
      %v1294 = vpack.c.bf16 %v1262, %v1262
      %v1295 = vpack.c.bf16 %v1263, %v1263
      %v1296 = vpack.c.bf16 %v1264, %v1264
      %v1297 = vpack.c.bf16 %v1265, %v1265
      %v1298 = vpack.c.bf16 %v1266, %v1266
      %v1299 = vpack.c.bf16 %v1267, %v1267
      %v1300 = vpack.c.bf16 %v1268, %v1268
      %v1301 = vpack.c.bf16 %v1269, %v1269
      %v1302 = vpack.c.bf16 %v1270, %v1270
      %v1303 = vpack.c.bf16 %v1271, %v1271
      %v1304 = vpack.c.bf16 %v1272, %v1272
      %v1305 = vpack.c.bf16 %v1273, %v1273
      %v1306 = vpack.c.bf16 %v1274, %v1274
      %v1307 = vpack.c.bf16 %v1275, %v1275
      %v1308 = vpack.c.bf16 %v1276, %v1276
      %v1309 = vpack.c.bf16 %v1277, %v1277
      %v1310 = vpack.c.bf16 %v1278, %v1278
      %v1311 = vpack.c.bf16 %v1279, %v1279
      %v1312 = vpack.c.bf16 %v1280, %v1280
      %1345 = vrot.lane.b32.xlu0 %v1281, 16
      %v1346 = vpop.permute.xlu0 %1345
      %1347 = vrot.lane.b32.xlu0 %v1282, 16
      %v1348 = vpop.permute.xlu0 %1347
      %1349 = vrot.lane.b32.xlu0 %v1283, 16
      %v1350 = vpop.permute.xlu0 %1349
      %1351 = vrot.lane.b32.xlu0 %v1284, 16
      %v1352 = vpop.permute.xlu0 %1351
      %1353 = vrot.lane.b32.xlu0 %v1285, 16
      %v1354 = vpop.permute.xlu0 %1353
      %1355 = vrot.lane.b32.xlu0 %v1286, 16
      %v1356 = vpop.permute.xlu0 %1355
      %1357 = vrot.lane.b32.xlu0 %v1287, 16
      %v1358 = vpop.permute.xlu0 %1357
      %1359 = vrot.lane.b32.xlu0 %v1288, 16
      %v1360 = vpop.permute.xlu0 %1359
      %1361 = vrot.lane.b32.xlu0 %v1289, 16
      %v1362 = vpop.permute.xlu0 %1361
      %1363 = vrot.lane.b32.xlu0 %v1290, 16
      %v1364 = vpop.permute.xlu0 %1363
      %1365 = vrot.lane.b32.xlu0 %v1291, 16
      %v1366 = vpop.permute.xlu0 %1365
      %1367 = vrot.lane.b32.xlu0 %v1292, 16
      %v1368 = vpop.permute.xlu0 %1367
      %1369 = vrot.lane.b32.xlu0 %v1293, 16
      %v1370 = vpop.permute.xlu0 %1369
      %1371 = vrot.lane.b32.xlu0 %v1294, 16
      %v1372 = vpop.permute.xlu0 %1371
      %1373 = vrot.lane.b32.xlu0 %v1295, 16
      %v1374 = vpop.permute.xlu0 %1373
      %1375 = vrot.lane.b32.xlu0 %v1296, 16
      %v1376 = vpop.permute.xlu0 %1375
      %1377 = vrot.lane.b32.xlu0 %v1297, 16
      %v1378 = vpop.permute.xlu0 %1377
      %1379 = vrot.lane.b32.xlu0 %v1298, 16
      %v1380 = vpop.permute.xlu0 %1379
      %1381 = vrot.lane.b32.xlu0 %v1299, 16
      %v1382 = vpop.permute.xlu0 %1381
      %1383 = vrot.lane.b32.xlu0 %v1300, 16
      %v1384 = vpop.permute.xlu0 %1383
      %1385 = vrot.lane.b32.xlu0 %v1301, 16
      %v1386 = vpop.permute.xlu0 %1385
      %1387 = vrot.lane.b32.xlu0 %v1302, 16
      %v1388 = vpop.permute.xlu0 %1387
      %1389 = vrot.lane.b32.xlu0 %v1303, 16
      %v1390 = vpop.permute.xlu0 %1389
      %1391 = vrot.lane.b32.xlu0 %v1304, 16
      %v1392 = vpop.permute.xlu0 %1391
      %1393 = vrot.lane.b32.xlu0 %v1305, 16
      %v1394 = vpop.permute.xlu0 %1393
      %1395 = vrot.lane.b32.xlu0 %v1306, 16
      %v1396 = vpop.permute.xlu0 %1395
      %1397 = vrot.lane.b32.xlu0 %v1307, 16
      %v1398 = vpop.permute.xlu0 %1397
      %1399 = vrot.lane.b32.xlu0 %v1308, 16
      %v1400 = vpop.permute.xlu0 %1399
      %1401 = vrot.lane.b32.xlu0 %v1309, 16
      %v1402 = vpop.permute.xlu0 %1401
      %1403 = vrot.lane.b32.xlu0 %v1310, 16
      %v1404 = vpop.permute.xlu0 %1403
      %1405 = vrot.lane.b32.xlu0 %v1311, 16
      %v1406 = vpop.permute.xlu0 %1405
      %1407 = vrot.lane.b32.xlu0 %v1312, 16
      %v1408 = vpop.permute.xlu0 %1407
      %vm1441 = vcmask 158848
      %1442 = vst.msk [vmem:[#allocation4] sm:$0xf] %vm1441, %v1346
      %1443 = vst.msk [vmem:[#allocation4 + $0x4] sm:$0xf] %vm1441, %v1348
      %1444 = vst.msk [vmem:[#allocation4 + $0x8] sm:$0xf] %vm1441, %v1350
      %1445 = vst.msk [vmem:[#allocation4 + $0xc] sm:$0xf] %vm1441, %v1352
      %1446 = vst.msk [vmem:[#allocation4 + $0x10] sm:$0xf] %vm1441, %v1354
      %1447 = vst.msk [vmem:[#allocation4 + $0x14] sm:$0xf] %vm1441, %v1356
      %1448 = vst.msk [vmem:[#allocation4 + $0x18] sm:$0xf] %vm1441, %v1358
      %1449 = vst.msk [vmem:[#allocation4 + $0x1c] sm:$0xf] %vm1441, %v1360
      %1450 = vst.msk [vmem:[#allocation4 + $0x20] sm:$0xf] %vm1441, %v1362
      %1451 = vst.msk [vmem:[#allocation4 + $0x24] sm:$0xf] %vm1441, %v1364
      %1452 = vst.msk [vmem:[#allocation4 + $0x28] sm:$0xf] %vm1441, %v1366
      %1453 = vst.msk [vmem:[#allocation4 + $0x2c] sm:$0xf] %vm1441, %v1368
      %1454 = vst.msk [vmem:[#allocation4 + $0x30] sm:$0xf] %vm1441, %v1370
      %1455 = vst.msk [vmem:[#allocation4 + $0x34] sm:$0xf] %vm1441, %v1372
      %1456 = vst.msk [vmem:[#allocation4 + $0x38] sm:$0xf] %vm1441, %v1374
      %1457 = vst.msk [vmem:[#allocation4 + $0x3c] sm:$0xf] %vm1441, %v1376
      %1458 = vst.msk [vmem:[#allocation4 + $0x40] sm:$0xf] %vm1441, %v1378
      %1459 = vst.msk [vmem:[#allocation4 + $0x44] sm:$0xf] %vm1441, %v1380
      %1460 = vst.msk [vmem:[#allocation4 + $0x48] sm:$0xf] %vm1441, %v1382
      %1461 = vst.msk [vmem:[#allocation4 + $0x4c] sm:$0xf] %vm1441, %v1384
      %1462 = vst.msk [vmem:[#allocation4 + $0x50] sm:$0xf] %vm1441, %v1386
      %1463 = vst.msk [vmem:[#allocation4 + $0x54] sm:$0xf] %vm1441, %v1388
      %1464 = vst.msk [vmem:[#allocation4 + $0x58] sm:$0xf] %vm1441, %v1390
      %1465 = vst.msk [vmem:[#allocation4 + $0x5c] sm:$0xf] %vm1441, %v1392
      %1466 = vst.msk [vmem:[#allocation4 + $0x60] sm:$0xf] %vm1441, %v1394
      %1467 = vst.msk [vmem:[#allocation4 + $0x64] sm:$0xf] %vm1441, %v1396
      %1468 = vst.msk [vmem:[#allocation4 + $0x68] sm:$0xf] %vm1441, %v1398
      %1469 = vst.msk [vmem:[#allocation4 + $0x6c] sm:$0xf] %vm1441, %v1400
      %1470 = vst.msk [vmem:[#allocation4 + $0x70] sm:$0xf] %vm1441, %v1402
      %1471 = vst.msk [vmem:[#allocation4 + $0x74] sm:$0xf] %vm1441, %v1404
      %1472 = vst.msk [vmem:[#allocation4 + $0x78] sm:$0xf] %vm1441, %v1406
      %1473 = vst.msk [vmem:[#allocation4 + $0x7c] sm:$0xf] %vm1441, %v1408
      %v1474 = vld [vmem:[%s444 + $0x2] sm:$0xff]
      %v1475 = vld [vmem:[%s444 + $0xa] sm:$0xff]
      %v1476 = vld [vmem:[%s444 + $0x1a] sm:$0xff]
      %v1477 = vld [vmem:[%s444 + $0x22] sm:$0xff]
      %v1478 = vld [vmem:[%s444 + $0x32] sm:$0xff]
      %v1479 = vld [vmem:[%s444 + $0x3a] sm:$0xff]
      %v1480 = vld [vmem:[%s444 + $0x4a] sm:$0xff]
      %v1481 = vld [vmem:[%s444 + $0x52] sm:$0xff]
      %v1482 = vld [vmem:[%s444 + $0x62] sm:$0xff]
      %v1483 = vld [vmem:[%s444 + $0x6a] sm:$0xff]
      %v1484 = vld [vmem:[%s444 + $0x7a] sm:$0xff]
      %v1485 = vld [vmem:[%s444 + $0x82] sm:$0xff]
      %v1486 = vld [vmem:[%s444 + $0x92] sm:$0xff]
      %v1487 = vld [vmem:[%s444 + $0x9a] sm:$0xff]
      %v1488 = vld [vmem:[%s444 + $0xaa] sm:$0xff]
      %v1489 = vld [vmem:[%s444 + $0xb2] sm:$0xff]
      %v1490 = vld [vmem:[%s444 + $0xc2] sm:$0xff]
      %v1491 = vld [vmem:[%s444 + $0xca] sm:$0xff]
      %v1492 = vld [vmem:[%s444 + $0xda] sm:$0xff]
      %v1493 = vld [vmem:[%s444 + $0xe2] sm:$0xff]
      %v1494 = vld [vmem:[%s444 + $0xf2] sm:$0xff]
      %v1495 = vld [vmem:[%s444 + $0xfa] sm:$0xff]
      %v1496 = vld [vmem:[%s444 + $0x10a] sm:$0xff]
      %v1497 = vld [vmem:[%s444 + $0x112] sm:$0xff]
      %v1498 = vld [vmem:[%s444 + $0x122] sm:$0xff]
      %v1499 = vld [vmem:[%s444 + $0x12a] sm:$0xff]
      %v1500 = vld [vmem:[%s444 + $0x13a] sm:$0xff]
      %v1501 = vld [vmem:[%s444 + $0x142] sm:$0xff]
      %v1502 = vld [vmem:[%s444 + $0x152] sm:$0xff]
      %v1503 = vld [vmem:[%s444 + $0x15a] sm:$0xff]
      %v1504 = vld [vmem:[%s444 + $0x16a] sm:$0xff]
      %v1505 = vld [vmem:[%s444 + $0x172] sm:$0xff]
      %v1506 = vpack.c.bf16 %v1474, %v1474
      %v1507 = vpack.c.bf16 %v1475, %v1475
      %v1508 = vpack.c.bf16 %v1476, %v1476
      %v1509 = vpack.c.bf16 %v1477, %v1477
      %v1510 = vpack.c.bf16 %v1478, %v1478
      %v1511 = vpack.c.bf16 %v1479, %v1479
      %v1512 = vpack.c.bf16 %v1480, %v1480
      %v1513 = vpack.c.bf16 %v1481, %v1481
      %v1514 = vpack.c.bf16 %v1482, %v1482
      %v1515 = vpack.c.bf16 %v1483, %v1483
      %v1516 = vpack.c.bf16 %v1484, %v1484
      %v1517 = vpack.c.bf16 %v1485, %v1485
      %v1518 = vpack.c.bf16 %v1486, %v1486
      %v1519 = vpack.c.bf16 %v1487, %v1487
      %v1520 = vpack.c.bf16 %v1488, %v1488
      %v1521 = vpack.c.bf16 %v1489, %v1489
      %v1522 = vpack.c.bf16 %v1490, %v1490
      %v1523 = vpack.c.bf16 %v1491, %v1491
      %v1524 = vpack.c.bf16 %v1492, %v1492
      %v1525 = vpack.c.bf16 %v1493, %v1493
      %v1526 = vpack.c.bf16 %v1494, %v1494
      %v1527 = vpack.c.bf16 %v1495, %v1495
      %v1528 = vpack.c.bf16 %v1496, %v1496
      %v1529 = vpack.c.bf16 %v1497, %v1497
      %v1530 = vpack.c.bf16 %v1498, %v1498
      %v1531 = vpack.c.bf16 %v1499, %v1499
      %v1532 = vpack.c.bf16 %v1500, %v1500
      %v1533 = vpack.c.bf16 %v1501, %v1501
      %v1534 = vpack.c.bf16 %v1502, %v1502
      %v1535 = vpack.c.bf16 %v1503, %v1503
      %v1536 = vpack.c.bf16 %v1504, %v1504
      %v1537 = vpack.c.bf16 %v1505, %v1505
      %1570 = vrot.lane.b32.xlu0 %v1506, 20
      %v1571 = vpop.permute.xlu0 %1570
      %1572 = vrot.lane.b32.xlu0 %v1507, 20
      %v1573 = vpop.permute.xlu0 %1572
      %1574 = vrot.lane.b32.xlu0 %v1508, 20
      %v1575 = vpop.permute.xlu0 %1574
      %1576 = vrot.lane.b32.xlu0 %v1509, 20
      %v1577 = vpop.permute.xlu0 %1576
      %1578 = vrot.lane.b32.xlu0 %v1510, 20
      %v1579 = vpop.permute.xlu0 %1578
      %1580 = vrot.lane.b32.xlu0 %v1511, 20
      %v1581 = vpop.permute.xlu0 %1580
      %1582 = vrot.lane.b32.xlu0 %v1512, 20
      %v1583 = vpop.permute.xlu0 %1582
      %1584 = vrot.lane.b32.xlu0 %v1513, 20
      %v1585 = vpop.permute.xlu0 %1584
      %1586 = vrot.lane.b32.xlu0 %v1514, 20
      %v1587 = vpop.permute.xlu0 %1586
      %1588 = vrot.lane.b32.xlu0 %v1515, 20
      %v1589 = vpop.permute.xlu0 %1588
      %1590 = vrot.lane.b32.xlu0 %v1516, 20
      %v1591 = vpop.permute.xlu0 %1590
      %1592 = vrot.lane.b32.xlu0 %v1517, 20
      %v1593 = vpop.permute.xlu0 %1592
      %1594 = vrot.lane.b32.xlu0 %v1518, 20
      %v1595 = vpop.permute.xlu0 %1594
      %1596 = vrot.lane.b32.xlu0 %v1519, 20
      %v1597 = vpop.permute.xlu0 %1596
      %1598 = vrot.lane.b32.xlu0 %v1520, 20
      %v1599 = vpop.permute.xlu0 %1598
      %1600 = vrot.lane.b32.xlu0 %v1521, 20
      %v1601 = vpop.permute.xlu0 %1600
      %1602 = vrot.lane.b32.xlu0 %v1522, 20
      %v1603 = vpop.permute.xlu0 %1602
      %1604 = vrot.lane.b32.xlu0 %v1523, 20
      %v1605 = vpop.permute.xlu0 %1604
      %1606 = vrot.lane.b32.xlu0 %v1524, 20
      %v1607 = vpop.permute.xlu0 %1606
      %1608 = vrot.lane.b32.xlu0 %v1525, 20
      %v1609 = vpop.permute.xlu0 %1608
      %1610 = vrot.lane.b32.xlu0 %v1526, 20
      %v1611 = vpop.permute.xlu0 %1610
      %1612 = vrot.lane.b32.xlu0 %v1527, 20
      %v1613 = vpop.permute.xlu0 %1612
      %1614 = vrot.lane.b32.xlu0 %v1528, 20
      %v1615 = vpop.permute.xlu0 %1614
      %1616 = vrot.lane.b32.xlu0 %v1529, 20
      %v1617 = vpop.permute.xlu0 %1616
      %1618 = vrot.lane.b32.xlu0 %v1530, 20
      %v1619 = vpop.permute.xlu0 %1618
      %1620 = vrot.lane.b32.xlu0 %v1531, 20
      %v1621 = vpop.permute.xlu0 %1620
      %1622 = vrot.lane.b32.xlu0 %v1532, 20
      %v1623 = vpop.permute.xlu0 %1622
      %1624 = vrot.lane.b32.xlu0 %v1533, 20
      %v1625 = vpop.permute.xlu0 %1624
      %1626 = vrot.lane.b32.xlu0 %v1534, 20
      %v1627 = vpop.permute.xlu0 %1626
      %1628 = vrot.lane.b32.xlu0 %v1535, 20
      %v1629 = vpop.permute.xlu0 %1628
      %1630 = vrot.lane.b32.xlu0 %v1536, 20
      %v1631 = vpop.permute.xlu0 %1630
      %1632 = vrot.lane.b32.xlu0 %v1537, 20
      %v1633 = vpop.permute.xlu0 %1632
      %vm1666 = vcmask 191648
      %1667 = vst.msk [vmem:[#allocation4] sm:$0xf] %vm1666, %v1571
      %1668 = vst.msk [vmem:[#allocation4 + $0x4] sm:$0xf] %vm1666, %v1573
      %1669 = vst.msk [vmem:[#allocation4 + $0x8] sm:$0xf] %vm1666, %v1575
      %1670 = vst.msk [vmem:[#allocation4 + $0xc] sm:$0xf] %vm1666, %v1577
      %1671 = vst.msk [vmem:[#allocation4 + $0x10] sm:$0xf] %vm1666, %v1579
      %1672 = vst.msk [vmem:[#allocation4 + $0x14] sm:$0xf] %vm1666, %v1581
      %1673 = vst.msk [vmem:[#allocation4 + $0x18] sm:$0xf] %vm1666, %v1583
      %1674 = vst.msk [vmem:[#allocation4 + $0x1c] sm:$0xf] %vm1666, %v1585
      %1675 = vst.msk [vmem:[#allocation4 + $0x20] sm:$0xf] %vm1666, %v1587
      %1676 = vst.msk [vmem:[#allocation4 + $0x24] sm:$0xf] %vm1666, %v1589
      %1677 = vst.msk [vmem:[#allocation4 + $0x28] sm:$0xf] %vm1666, %v1591
      %1678 = vst.msk [vmem:[#allocation4 + $0x2c] sm:$0xf] %vm1666, %v1593
      %1679 = vst.msk [vmem:[#allocation4 + $0x30] sm:$0xf] %vm1666, %v1595
      %1680 = vst.msk [vmem:[#allocation4 + $0x34] sm:$0xf] %vm1666, %v1597
      %1681 = vst.msk [vmem:[#allocation4 + $0x38] sm:$0xf] %vm1666, %v1599
      %1682 = vst.msk [vmem:[#allocation4 + $0x3c] sm:$0xf] %vm1666, %v1601
      %1683 = vst.msk [vmem:[#allocation4 + $0x40] sm:$0xf] %vm1666, %v1603
      %1684 = vst.msk [vmem:[#allocation4 + $0x44] sm:$0xf] %vm1666, %v1605
      %1685 = vst.msk [vmem:[#allocation4 + $0x48] sm:$0xf] %vm1666, %v1607
      %1686 = vst.msk [vmem:[#allocation4 + $0x4c] sm:$0xf] %vm1666, %v1609
      %1687 = vst.msk [vmem:[#allocation4 + $0x50] sm:$0xf] %vm1666, %v1611
      %1688 = vst.msk [vmem:[#allocation4 + $0x54] sm:$0xf] %vm1666, %v1613
      %1689 = vst.msk [vmem:[#allocation4 + $0x58] sm:$0xf] %vm1666, %v1615
      %1690 = vst.msk [vmem:[#allocation4 + $0x5c] sm:$0xf] %vm1666, %v1617
      %1691 = vst.msk [vmem:[#allocation4 + $0x60] sm:$0xf] %vm1666, %v1619
      %1692 = vst.msk [vmem:[#allocation4 + $0x64] sm:$0xf] %vm1666, %v1621
      %1693 = vst.msk [vmem:[#allocation4 + $0x68] sm:$0xf] %vm1666, %v1623
      %1694 = vst.msk [vmem:[#allocation4 + $0x6c] sm:$0xf] %vm1666, %v1625
      %1695 = vst.msk [vmem:[#allocation4 + $0x70] sm:$0xf] %vm1666, %v1627
      %1696 = vst.msk [vmem:[#allocation4 + $0x74] sm:$0xf] %vm1666, %v1629
      %1697 = vst.msk [vmem:[#allocation4 + $0x78] sm:$0xf] %vm1666, %v1631
      %1698 = vst.msk [vmem:[#allocation4 + $0x7c] sm:$0xf] %vm1666, %v1633
      %s1699 = scalar_lea.vmem [#allocation2], 48
      %v1700 = vld [vmem:[%s1699] sm:$0xff]
      %v1701 = vld [vmem:[%s1699 + $0x8] sm:$0xff]
      %v1702 = vld [vmem:[%s1699 + $0x18] sm:$0xff]
      %v1703 = vld [vmem:[%s1699 + $0x20] sm:$0xff]
      %v1704 = vld [vmem:[%s1699 + $0x30] sm:$0xff]
      %v1705 = vld [vmem:[%s1699 + $0x38] sm:$0xff]
      %v1706 = vld [vmem:[%s1699 + $0x48] sm:$0xff]
      %v1707 = vld [vmem:[%s1699 + $0x50] sm:$0xff]
      %v1708 = vld [vmem:[%s1699 + $0x60] sm:$0xff]
      %v1709 = vld [vmem:[%s1699 + $0x68] sm:$0xff]
      %v1710 = vld [vmem:[%s1699 + $0x78] sm:$0xff]
      %v1711 = vld [vmem:[%s1699 + $0x80] sm:$0xff]
      %v1712 = vld [vmem:[%s1699 + $0x90] sm:$0xff]
      %v1713 = vld [vmem:[%s1699 + $0x98] sm:$0xff]
      %v1714 = vld [vmem:[%s1699 + $0xa8] sm:$0xff]
      %v1715 = vld [vmem:[%s1699 + $0xb0] sm:$0xff]
      %v1716 = vld [vmem:[%s1699 + $0xc0] sm:$0xff]
      %v1717 = vld [vmem:[%s1699 + $0xc8] sm:$0xff]
      %v1718 = vld [vmem:[%s1699 + $0xd8] sm:$0xff]
      %v1719 = vld [vmem:[%s1699 + $0xe0] sm:$0xff]
      %v1720 = vld [vmem:[%s1699 + $0xf0] sm:$0xff]
      %v1721 = vld [vmem:[%s1699 + $0xf8] sm:$0xff]
      %v1722 = vld [vmem:[%s1699 + $0x108] sm:$0xff]
      %v1723 = vld [vmem:[%s1699 + $0x110] sm:$0xff]
      %v1724 = vld [vmem:[%s1699 + $0x120] sm:$0xff]
      %v1725 = vld [vmem:[%s1699 + $0x128] sm:$0xff]
      %v1726 = vld [vmem:[%s1699 + $0x138] sm:$0xff]
      %v1727 = vld [vmem:[%s1699 + $0x140] sm:$0xff]
      %v1728 = vld [vmem:[%s1699 + $0x150] sm:$0xff]
      %v1729 = vld [vmem:[%s1699 + $0x158] sm:$0xff]
      %v1730 = vld [vmem:[%s1699 + $0x168] sm:$0xff]
      %v1731 = vld [vmem:[%s1699 + $0x170] sm:$0xff]
      %v1732 = vpack.c.bf16 %v1700, %v1700
      %v1733 = vpack.c.bf16 %v1701, %v1701
      %v1734 = vpack.c.bf16 %v1702, %v1702
      %v1735 = vpack.c.bf16 %v1703, %v1703
      %v1736 = vpack.c.bf16 %v1704, %v1704
      %v1737 = vpack.c.bf16 %v1705, %v1705
      %v1738 = vpack.c.bf16 %v1706, %v1706
      %v1739 = vpack.c.bf16 %v1707, %v1707
      %v1740 = vpack.c.bf16 %v1708, %v1708
      %v1741 = vpack.c.bf16 %v1709, %v1709
      %v1742 = vpack.c.bf16 %v1710, %v1710
      %v1743 = vpack.c.bf16 %v1711, %v1711
      %v1744 = vpack.c.bf16 %v1712, %v1712
      %v1745 = vpack.c.bf16 %v1713, %v1713
      %v1746 = vpack.c.bf16 %v1714, %v1714
      %v1747 = vpack.c.bf16 %v1715, %v1715
      %v1748 = vpack.c.bf16 %v1716, %v1716
      %v1749 = vpack.c.bf16 %v1717, %v1717
      %v1750 = vpack.c.bf16 %v1718, %v1718
      %v1751 = vpack.c.bf16 %v1719, %v1719
      %v1752 = vpack.c.bf16 %v1720, %v1720
      %v1753 = vpack.c.bf16 %v1721, %v1721
      %v1754 = vpack.c.bf16 %v1722, %v1722
      %v1755 = vpack.c.bf16 %v1723, %v1723
      %v1756 = vpack.c.bf16 %v1724, %v1724
      %v1757 = vpack.c.bf16 %v1725, %v1725
      %v1758 = vpack.c.bf16 %v1726, %v1726
      %v1759 = vpack.c.bf16 %v1727, %v1727
      %v1760 = vpack.c.bf16 %v1728, %v1728
      %v1761 = vpack.c.bf16 %v1729, %v1729
      %v1762 = vpack.c.bf16 %v1730, %v1730
      %v1763 = vpack.c.bf16 %v1731, %v1731
      %1796 = vrot.lane.b32.xlu0 %v1732, 24
      %v1797 = vpop.permute.xlu0 %1796
      %1798 = vrot.lane.b32.xlu0 %v1733, 24
      %v1799 = vpop.permute.xlu0 %1798
      %1800 = vrot.lane.b32.xlu0 %v1734, 24
      %v1801 = vpop.permute.xlu0 %1800
      %1802 = vrot.lane.b32.xlu0 %v1735, 24
      %v1803 = vpop.permute.xlu0 %1802
      %1804 = vrot.lane.b32.xlu0 %v1736, 24
      %v1805 = vpop.permute.xlu0 %1804
      %1806 = vrot.lane.b32.xlu0 %v1737, 24
      %v1807 = vpop.permute.xlu0 %1806
      %1808 = vrot.lane.b32.xlu0 %v1738, 24
      %v1809 = vpop.permute.xlu0 %1808
      %1810 = vrot.lane.b32.xlu0 %v1739, 24
      %v1811 = vpop.permute.xlu0 %1810
      %1812 = vrot.lane.b32.xlu0 %v1740, 24
      %v1813 = vpop.permute.xlu0 %1812
      %1814 = vrot.lane.b32.xlu0 %v1741, 24
      %v1815 = vpop.permute.xlu0 %1814
      %1816 = vrot.lane.b32.xlu0 %v1742, 24
      %v1817 = vpop.permute.xlu0 %1816
      %1818 = vrot.lane.b32.xlu0 %v1743, 24
      %v1819 = vpop.permute.xlu0 %1818
      %1820 = vrot.lane.b32.xlu0 %v1744, 24
      %v1821 = vpop.permute.xlu0 %1820
      %1822 = vrot.lane.b32.xlu0 %v1745, 24
      %v1823 = vpop.permute.xlu0 %1822
      %1824 = vrot.lane.b32.xlu0 %v1746, 24
      %v1825 = vpop.permute.xlu0 %1824
      %1826 = vrot.lane.b32.xlu0 %v1747, 24
      %v1827 = vpop.permute.xlu0 %1826
      %1828 = vrot.lane.b32.xlu0 %v1748, 24
      %v1829 = vpop.permute.xlu0 %1828
      %1830 = vrot.lane.b32.xlu0 %v1749, 24
      %v1831 = vpop.permute.xlu0 %1830
      %1832 = vrot.lane.b32.xlu0 %v1750, 24
      %v1833 = vpop.permute.xlu0 %1832
      %1834 = vrot.lane.b32.xlu0 %v1751, 24
      %v1835 = vpop.permute.xlu0 %1834
      %1836 = vrot.lane.b32.xlu0 %v1752, 24
      %v1837 = vpop.permute.xlu0 %1836
      %1838 = vrot.lane.b32.xlu0 %v1753, 24
      %v1839 = vpop.permute.xlu0 %1838
      %1840 = vrot.lane.b32.xlu0 %v1754, 24
      %v1841 = vpop.permute.xlu0 %1840
      %1842 = vrot.lane.b32.xlu0 %v1755, 24
      %v1843 = vpop.permute.xlu0 %1842
      %1844 = vrot.lane.b32.xlu0 %v1756, 24
      %v1845 = vpop.permute.xlu0 %1844
      %1846 = vrot.lane.b32.xlu0 %v1757, 24
      %v1847 = vpop.permute.xlu0 %1846
      %1848 = vrot.lane.b32.xlu0 %v1758, 24
      %v1849 = vpop.permute.xlu0 %1848
      %1850 = vrot.lane.b32.xlu0 %v1759, 24
      %v1851 = vpop.permute.xlu0 %1850
      %1852 = vrot.lane.b32.xlu0 %v1760, 24
      %v1853 = vpop.permute.xlu0 %1852
      %1854 = vrot.lane.b32.xlu0 %v1761, 24
      %v1855 = vpop.permute.xlu0 %1854
      %1856 = vrot.lane.b32.xlu0 %v1762, 24
      %v1857 = vpop.permute.xlu0 %1856
      %1858 = vrot.lane.b32.xlu0 %v1763, 24
      %v1859 = vpop.permute.xlu0 %1858
      %vm1892 = vcmask 224448
      %1893 = vst.msk [vmem:[#allocation4] sm:$0xf] %vm1892, %v1797
      %1894 = vst.msk [vmem:[#allocation4 + $0x4] sm:$0xf] %vm1892, %v1799
      %1895 = vst.msk [vmem:[#allocation4 + $0x8] sm:$0xf] %vm1892, %v1801
      %1896 = vst.msk [vmem:[#allocation4 + $0xc] sm:$0xf] %vm1892, %v1803
      %1897 = vst.msk [vmem:[#allocation4 + $0x10] sm:$0xf] %vm1892, %v1805
      %1898 = vst.msk [vmem:[#allocation4 + $0x14] sm:$0xf] %vm1892, %v1807
      %1899 = vst.msk [vmem:[#allocation4 + $0x18] sm:$0xf] %vm1892, %v1809
      %1900 = vst.msk [vmem:[#allocation4 + $0x1c] sm:$0xf] %vm1892, %v1811
      %1901 = vst.msk [vmem:[#allocation4 + $0x20] sm:$0xf] %vm1892, %v1813
      %1902 = vst.msk [vmem:[#allocation4 + $0x24] sm:$0xf] %vm1892, %v1815
      %1903 = vst.msk [vmem:[#allocation4 + $0x28] sm:$0xf] %vm1892, %v1817
      %1904 = vst.msk [vmem:[#allocation4 + $0x2c] sm:$0xf] %vm1892, %v1819
      %1905 = vst.msk [vmem:[#allocation4 + $0x30] sm:$0xf] %vm1892, %v1821
      %1906 = vst.msk [vmem:[#allocation4 + $0x34] sm:$0xf] %vm1892, %v1823
      %1907 = vst.msk [vmem:[#allocation4 + $0x38] sm:$0xf] %vm1892, %v1825
      %1908 = vst.msk [vmem:[#allocation4 + $0x3c] sm:$0xf] %vm1892, %v1827
      %1909 = vst.msk [vmem:[#allocation4 + $0x40] sm:$0xf] %vm1892, %v1829
      %1910 = vst.msk [vmem:[#allocation4 + $0x44] sm:$0xf] %vm1892, %v1831
      %1911 = vst.msk [vmem:[#allocation4 + $0x48] sm:$0xf] %vm1892, %v1833
      %1912 = vst.msk [vmem:[#allocation4 + $0x4c] sm:$0xf] %vm1892, %v1835
      %1913 = vst.msk [vmem:[#allocation4 + $0x50] sm:$0xf] %vm1892, %v1837
      %1914 = vst.msk [vmem:[#allocation4 + $0x54] sm:$0xf] %vm1892, %v1839
      %1915 = vst.msk [vmem:[#allocation4 + $0x58] sm:$0xf] %vm1892, %v1841
      %1916 = vst.msk [vmem:[#allocation4 + $0x5c] sm:$0xf] %vm1892, %v1843
      %1917 = vst.msk [vmem:[#allocation4 + $0x60] sm:$0xf] %vm1892, %v1845
      %1918 = vst.msk [vmem:[#allocation4 + $0x64] sm:$0xf] %vm1892, %v1847
      %1919 = vst.msk [vmem:[#allocation4 + $0x68] sm:$0xf] %vm1892, %v1849
      %1920 = vst.msk [vmem:[#allocation4 + $0x6c] sm:$0xf] %vm1892, %v1851
      %1921 = vst.msk [vmem:[#allocation4 + $0x70] sm:$0xf] %vm1892, %v1853
      %1922 = vst.msk [vmem:[#allocation4 + $0x74] sm:$0xf] %vm1892, %v1855
      %1923 = vst.msk [vmem:[#allocation4 + $0x78] sm:$0xf] %vm1892, %v1857
      %1924 = vst.msk [vmem:[#allocation4 + $0x7c] sm:$0xf] %vm1892, %v1859
      %v1925 = vld [vmem:[%s1699 + $0x1] sm:$0xff]
      %v1926 = vld [vmem:[%s1699 + $0x9] sm:$0xff]
      %v1927 = vld [vmem:[%s1699 + $0x19] sm:$0xff]
      %v1928 = vld [vmem:[%s1699 + $0x21] sm:$0xff]
      %v1929 = vld [vmem:[%s1699 + $0x31] sm:$0xff]
      %v1930 = vld [vmem:[%s1699 + $0x39] sm:$0xff]
      %v1931 = vld [vmem:[%s1699 + $0x49] sm:$0xff]
      %v1932 = vld [vmem:[%s1699 + $0x51] sm:$0xff]
      %v1933 = vld [vmem:[%s1699 + $0x61] sm:$0xff]
      %v1934 = vld [vmem:[%s1699 + $0x69] sm:$0xff]
      %v1935 = vld [vmem:[%s1699 + $0x79] sm:$0xff]
      %v1936 = vld [vmem:[%s1699 + $0x81] sm:$0xff]
      %v1937 = vld [vmem:[%s1699 + $0x91] sm:$0xff]
      %v1938 = vld [vmem:[%s1699 + $0x99] sm:$0xff]
      %v1939 = vld [vmem:[%s1699 + $0xa9] sm:$0xff]
      %v1940 = vld [vmem:[%s1699 + $0xb1] sm:$0xff]
      %v1941 = vld [vmem:[%s1699 + $0xc1] sm:$0xff]
      %v1942 = vld [vmem:[%s1699 + $0xc9] sm:$0xff]
      %v1943 = vld [vmem:[%s1699 + $0xd9] sm:$0xff]
      %v1944 = vld [vmem:[%s1699 + $0xe1] sm:$0xff]
      %v1945 = vld [vmem:[%s1699 + $0xf1] sm:$0xff]
      %v1946 = vld [vmem:[%s1699 + $0xf9] sm:$0xff]
      %v1947 = vld [vmem:[%s1699 + $0x109] sm:$0xff]
      %v1948 = vld [vmem:[%s1699 + $0x111] sm:$0xff]
      %v1949 = vld [vmem:[%s1699 + $0x121] sm:$0xff]
      %v1950 = vld [vmem:[%s1699 + $0x129] sm:$0xff]
      %v1951 = vld [vmem:[%s1699 + $0x139] sm:$0xff]
      %v1952 = vld [vmem:[%s1699 + $0x141] sm:$0xff]
      %v1953 = vld [vmem:[%s1699 + $0x151] sm:$0xff]
      %v1954 = vld [vmem:[%s1699 + $0x159] sm:$0xff]
      %v1955 = vld [vmem:[%s1699 + $0x169] sm:$0xff]
      %v1956 = vld [vmem:[%s1699 + $0x171] sm:$0xff]
      %v1957 = vpack.c.bf16 %v1925, %v1925
      %v1958 = vpack.c.bf16 %v1926, %v1926
      %v1959 = vpack.c.bf16 %v1927, %v1927
      %v1960 = vpack.c.bf16 %v1928, %v1928
      %v1961 = vpack.c.bf16 %v1929, %v1929
      %v1962 = vpack.c.bf16 %v1930, %v1930
      %v1963 = vpack.c.bf16 %v1931, %v1931
      %v1964 = vpack.c.bf16 %v1932, %v1932
      %v1965 = vpack.c.bf16 %v1933, %v1933
      %v1966 = vpack.c.bf16 %v1934, %v1934
      %v1967 = vpack.c.bf16 %v1935, %v1935
      %v1968 = vpack.c.bf16 %v1936, %v1936
      %v1969 = vpack.c.bf16 %v1937, %v1937
      %v1970 = vpack.c.bf16 %v1938, %v1938
      %v1971 = vpack.c.bf16 %v1939, %v1939
      %v1972 = vpack.c.bf16 %v1940, %v1940
      %v1973 = vpack.c.bf16 %v1941, %v1941
      %v1974 = vpack.c.bf16 %v1942, %v1942
      %v1975 = vpack.c.bf16 %v1943, %v1943
      %v1976 = vpack.c.bf16 %v1944, %v1944
      %v1977 = vpack.c.bf16 %v1945, %v1945
      %v1978 = vpack.c.bf16 %v1946, %v1946
      %v1979 = vpack.c.bf16 %v1947, %v1947
      %v1980 = vpack.c.bf16 %v1948, %v1948
      %v1981 = vpack.c.bf16 %v1949, %v1949
      %v1982 = vpack.c.bf16 %v1950, %v1950
      %v1983 = vpack.c.bf16 %v1951, %v1951
      %v1984 = vpack.c.bf16 %v1952, %v1952
      %v1985 = vpack.c.bf16 %v1953, %v1953
      %v1986 = vpack.c.bf16 %v1954, %v1954
      %v1987 = vpack.c.bf16 %v1955, %v1955
      %v1988 = vpack.c.bf16 %v1956, %v1956
      %2021 = vrot.lane.b32.xlu0 %v1957, 28
      %v2022 = vpop.permute.xlu0 %2021
      %2023 = vrot.lane.b32.xlu0 %v1958, 28
      %v2024 = vpop.permute.xlu0 %2023
      %2025 = vrot.lane.b32.xlu0 %v1959, 28
      %v2026 = vpop.permute.xlu0 %2025
      %2027 = vrot.lane.b32.xlu0 %v1960, 28
      %v2028 = vpop.permute.xlu0 %2027
      %2029 = vrot.lane.b32.xlu0 %v1961, 28
      %v2030 = vpop.permute.xlu0 %2029
      %2031 = vrot.lane.b32.xlu0 %v1962, 28
      %v2032 = vpop.permute.xlu0 %2031
      %2033 = vrot.lane.b32.xlu0 %v1963, 28
      %v2034 = vpop.permute.xlu0 %2033
      %2035 = vrot.lane.b32.xlu0 %v1964, 28
      %v2036 = vpop.permute.xlu0 %2035
      %2037 = vrot.lane.b32.xlu0 %v1965, 28
      %v2038 = vpop.permute.xlu0 %2037
      %2039 = vrot.lane.b32.xlu0 %v1966, 28
      %v2040 = vpop.permute.xlu0 %2039
      %2041 = vrot.lane.b32.xlu0 %v1967, 28
      %v2042 = vpop.permute.xlu0 %2041
      %2043 = vrot.lane.b32.xlu0 %v1968, 28
      %v2044 = vpop.permute.xlu0 %2043
      %2045 = vrot.lane.b32.xlu0 %v1969, 28
      %v2046 = vpop.permute.xlu0 %2045
      %2047 = vrot.lane.b32.xlu0 %v1970, 28
      %v2048 = vpop.permute.xlu0 %2047
      %2049 = vrot.lane.b32.xlu0 %v1971, 28
      %v2050 = vpop.permute.xlu0 %2049
      %2051 = vrot.lane.b32.xlu0 %v1972, 28
      %v2052 = vpop.permute.xlu0 %2051
      %2053 = vrot.lane.b32.xlu0 %v1973, 28
      %v2054 = vpop.permute.xlu0 %2053
      %2055 = vrot.lane.b32.xlu0 %v1974, 28
      %v2056 = vpop.permute.xlu0 %2055
      %2057 = vrot.lane.b32.xlu0 %v1975, 28
      %v2058 = vpop.permute.xlu0 %2057
      %2059 = vrot.lane.b32.xlu0 %v1976, 28
      %v2060 = vpop.permute.xlu0 %2059
      %2061 = vrot.lane.b32.xlu0 %v1977, 28
      %v2062 = vpop.permute.xlu0 %2061
      %2063 = vrot.lane.b32.xlu0 %v1978, 28
      %v2064 = vpop.permute.xlu0 %2063
      %2065 = vrot.lane.b32.xlu0 %v1979, 28
      %v2066 = vpop.permute.xlu0 %2065
      %2067 = vrot.lane.b32.xlu0 %v1980, 28
      %v2068 = vpop.permute.xlu0 %2067
      %2069 = vrot.lane.b32.xlu0 %v1981, 28
      %v2070 = vpop.permute.xlu0 %2069
      %2071 = vrot.lane.b32.xlu0 %v1982, 28
      %v2072 = vpop.permute.xlu0 %2071
      %2073 = vrot.lane.b32.xlu0 %v1983, 28
      %v2074 = vpop.permute.xlu0 %2073
      %2075 = vrot.lane.b32.xlu0 %v1984, 28
      %v2076 = vpop.permute.xlu0 %2075
      %2077 = vrot.lane.b32.xlu0 %v1985, 28
      %v2078 = vpop.permute.xlu0 %2077
      %2079 = vrot.lane.b32.xlu0 %v1986, 28
      %v2080 = vpop.permute.xlu0 %2079
      %2081 = vrot.lane.b32.xlu0 %v1987, 28
      %v2082 = vpop.permute.xlu0 %2081
      %2083 = vrot.lane.b32.xlu0 %v1988, 28
      %v2084 = vpop.permute.xlu0 %2083
      %vm2117 = vcmask 257248
      %2118 = vst.msk [vmem:[#allocation4] sm:$0xf] %vm2117, %v2022
      %2119 = vst.msk [vmem:[#allocation4 + $0x4] sm:$0xf] %vm2117, %v2024
      %2120 = vst.msk [vmem:[#allocation4 + $0x8] sm:$0xf] %vm2117, %v2026
      %2121 = vst.msk [vmem:[#allocation4 + $0xc] sm:$0xf] %vm2117, %v2028
      %2122 = vst.msk [vmem:[#allocation4 + $0x10] sm:$0xf] %vm2117, %v2030
      %2123 = vst.msk [vmem:[#allocation4 + $0x14] sm:$0xf] %vm2117, %v2032
      %2124 = vst.msk [vmem:[#allocation4 + $0x18] sm:$0xf] %vm2117, %v2034
      %2125 = vst.msk [vmem:[#allocation4 + $0x1c] sm:$0xf] %vm2117, %v2036
      %2126 = vst.msk [vmem:[#allocation4 + $0x20] sm:$0xf] %vm2117, %v2038
      %2127 = vst.msk [vmem:[#allocation4 + $0x24] sm:$0xf] %vm2117, %v2040
      %2128 = vst.msk [vmem:[#allocation4 + $0x28] sm:$0xf] %vm2117, %v2042
      %2129 = vst.msk [vmem:[#allocation4 + $0x2c] sm:$0xf] %vm2117, %v2044
      %2130 = vst.msk [vmem:[#allocation4 + $0x30] sm:$0xf] %vm2117, %v2046
      %2131 = vst.msk [vmem:[#allocation4 + $0x34] sm:$0xf] %vm2117, %v2048
      %2132 = vst.msk [vmem:[#allocation4 + $0x38] sm:$0xf] %vm2117, %v2050
      %2133 = vst.msk [vmem:[#allocation4 + $0x3c] sm:$0xf] %vm2117, %v2052
      %2134 = vst.msk [vmem:[#allocation4 + $0x40] sm:$0xf] %vm2117, %v2054
      %2135 = vst.msk [vmem:[#allocation4 + $0x44] sm:$0xf] %vm2117, %v2056
      %2136 = vst.msk [vmem:[#allocation4 + $0x48] sm:$0xf] %vm2117, %v2058
      %2137 = vst.msk [vmem:[#allocation4 + $0x4c] sm:$0xf] %vm2117, %v2060
      %2138 = vst.msk [vmem:[#allocation4 + $0x50] sm:$0xf] %vm2117, %v2062
      %2139 = vst.msk [vmem:[#allocation4 + $0x54] sm:$0xf] %vm2117, %v2064
      %2140 = vst.msk [vmem:[#allocation4 + $0x58] sm:$0xf] %vm2117, %v2066
      %2141 = vst.msk [vmem:[#allocation4 + $0x5c] sm:$0xf] %vm2117, %v2068
      %2142 = vst.msk [vmem:[#allocation4 + $0x60] sm:$0xf] %vm2117, %v2070
      %2143 = vst.msk [vmem:[#allocation4 + $0x64] sm:$0xf] %vm2117, %v2072
      %2144 = vst.msk [vmem:[#allocation4 + $0x68] sm:$0xf] %vm2117, %v2074
      %2145 = vst.msk [vmem:[#allocation4 + $0x6c] sm:$0xf] %vm2117, %v2076
      %2146 = vst.msk [vmem:[#allocation4 + $0x70] sm:$0xf] %vm2117, %v2078
      %2147 = vst.msk [vmem:[#allocation4 + $0x74] sm:$0xf] %vm2117, %v2080
      %2148 = vst.msk [vmem:[#allocation4 + $0x78] sm:$0xf] %vm2117, %v2082
      %2149 = vst.msk [vmem:[#allocation4 + $0x7c] sm:$0xf] %vm2117, %v2084
      %v2150 = vld [vmem:[%s1699 + $0x2] sm:$0xff]
      %v2151 = vld [vmem:[%s1699 + $0xa] sm:$0xff]
      %v2152 = vld [vmem:[%s1699 + $0x1a] sm:$0xff]
      %v2153 = vld [vmem:[%s1699 + $0x22] sm:$0xff]
      %v2154 = vld [vmem:[%s1699 + $0x32] sm:$0xff]
      %v2155 = vld [vmem:[%s1699 + $0x3a] sm:$0xff]
      %v2156 = vld [vmem:[%s1699 + $0x4a] sm:$0xff]
      %v2157 = vld [vmem:[%s1699 + $0x52] sm:$0xff]
      %v2158 = vld [vmem:[%s1699 + $0x62] sm:$0xff]
      %v2159 = vld [vmem:[%s1699 + $0x6a] sm:$0xff]
      %v2160 = vld [vmem:[%s1699 + $0x7a] sm:$0xff]
      %v2161 = vld [vmem:[%s1699 + $0x82] sm:$0xff]
      %v2162 = vld [vmem:[%s1699 + $0x92] sm:$0xff]
      %v2163 = vld [vmem:[%s1699 + $0x9a] sm:$0xff]
      %v2164 = vld [vmem:[%s1699 + $0xaa] sm:$0xff]
      %v2165 = vld [vmem:[%s1699 + $0xb2] sm:$0xff]
      %v2166 = vld [vmem:[%s1699 + $0xc2] sm:$0xff]
      %v2167 = vld [vmem:[%s1699 + $0xca] sm:$0xff]
      %v2168 = vld [vmem:[%s1699 + $0xda] sm:$0xff]
      %v2169 = vld [vmem:[%s1699 + $0xe2] sm:$0xff]
      %v2170 = vld [vmem:[%s1699 + $0xf2] sm:$0xff]
      %v2171 = vld [vmem:[%s1699 + $0xfa] sm:$0xff]
      %v2172 = vld [vmem:[%s1699 + $0x10a] sm:$0xff]
      %v2173 = vld [vmem:[%s1699 + $0x112] sm:$0xff]
      %v2174 = vld [vmem:[%s1699 + $0x122] sm:$0xff]
      %v2175 = vld [vmem:[%s1699 + $0x12a] sm:$0xff]
      %v2176 = vld [vmem:[%s1699 + $0x13a] sm:$0xff]
      %v2177 = vld [vmem:[%s1699 + $0x142] sm:$0xff]
      %v2178 = vld [vmem:[%s1699 + $0x152] sm:$0xff]
      %v2179 = vld [vmem:[%s1699 + $0x15a] sm:$0xff]
      %v2180 = vld [vmem:[%s1699 + $0x16a] sm:$0xff]
      %v2181 = vld [vmem:[%s1699 + $0x172] sm:$0xff]
      %v2182 = vpack.c.bf16 %v2150, %v2150
      %v2183 = vpack.c.bf16 %v2151, %v2151
      %v2184 = vpack.c.bf16 %v2152, %v2152
      %v2185 = vpack.c.bf16 %v2153, %v2153
      %v2186 = vpack.c.bf16 %v2154, %v2154
      %v2187 = vpack.c.bf16 %v2155, %v2155
      %v2188 = vpack.c.bf16 %v2156, %v2156
      %v2189 = vpack.c.bf16 %v2157, %v2157
      %v2190 = vpack.c.bf16 %v2158, %v2158
      %v2191 = vpack.c.bf16 %v2159, %v2159
      %v2192 = vpack.c.bf16 %v2160, %v2160
      %v2193 = vpack.c.bf16 %v2161, %v2161
      %v2194 = vpack.c.bf16 %v2162, %v2162
      %v2195 = vpack.c.bf16 %v2163, %v2163
      %v2196 = vpack.c.bf16 %v2164, %v2164
      %v2197 = vpack.c.bf16 %v2165, %v2165
      %v2198 = vpack.c.bf16 %v2166, %v2166
      %v2199 = vpack.c.bf16 %v2167, %v2167
      %v2200 = vpack.c.bf16 %v2168, %v2168
      %v2201 = vpack.c.bf16 %v2169, %v2169
      %v2202 = vpack.c.bf16 %v2170, %v2170
      %v2203 = vpack.c.bf16 %v2171, %v2171
      %v2204 = vpack.c.bf16 %v2172, %v2172
      %v2205 = vpack.c.bf16 %v2173, %v2173
      %v2206 = vpack.c.bf16 %v2174, %v2174
      %v2207 = vpack.c.bf16 %v2175, %v2175
      %v2208 = vpack.c.bf16 %v2176, %v2176
      %v2209 = vpack.c.bf16 %v2177, %v2177
      %v2210 = vpack.c.bf16 %v2178, %v2178
      %v2211 = vpack.c.bf16 %v2179, %v2179
      %v2212 = vpack.c.bf16 %v2180, %v2180
      %v2213 = vpack.c.bf16 %v2181, %v2181
      %2246 = vrot.lane.b32.xlu0 %v2182, 32
      %v2247 = vpop.permute.xlu0 %2246
      %2248 = vrot.lane.b32.xlu0 %v2183, 32
      %v2249 = vpop.permute.xlu0 %2248
      %2250 = vrot.lane.b32.xlu0 %v2184, 32
      %v2251 = vpop.permute.xlu0 %2250
      %2252 = vrot.lane.b32.xlu0 %v2185, 32
      %v2253 = vpop.permute.xlu0 %2252
      %2254 = vrot.lane.b32.xlu0 %v2186, 32
      %v2255 = vpop.permute.xlu0 %2254
      %2256 = vrot.lane.b32.xlu0 %v2187, 32
      %v2257 = vpop.permute.xlu0 %2256
      %2258 = vrot.lane.b32.xlu0 %v2188, 32
      %v2259 = vpop.permute.xlu0 %2258
      %2260 = vrot.lane.b32.xlu0 %v2189, 32
      %v2261 = vpop.permute.xlu0 %2260
      %2262 = vrot.lane.b32.xlu0 %v2190, 32
      %v2263 = vpop.permute.xlu0 %2262
      %2264 = vrot.lane.b32.xlu0 %v2191, 32
      %v2265 = vpop.permute.xlu0 %2264
      %2266 = vrot.lane.b32.xlu0 %v2192, 32
      %v2267 = vpop.permute.xlu0 %2266
      %2268 = vrot.lane.b32.xlu0 %v2193, 32
      %v2269 = vpop.permute.xlu0 %2268
      %2270 = vrot.lane.b32.xlu0 %v2194, 32
      %v2271 = vpop.permute.xlu0 %2270
      %2272 = vrot.lane.b32.xlu0 %v2195, 32
      %v2273 = vpop.permute.xlu0 %2272
      %2274 = vrot.lane.b32.xlu0 %v2196, 32
      %v2275 = vpop.permute.xlu0 %2274
      %2276 = vrot.lane.b32.xlu0 %v2197, 32
      %v2277 = vpop.permute.xlu0 %2276
      %2278 = vrot.lane.b32.xlu0 %v2198, 32
      %v2279 = vpop.permute.xlu0 %2278
      %2280 = vrot.lane.b32.xlu0 %v2199, 32
      %v2281 = vpop.permute.xlu0 %2280
      %2282 = vrot.lane.b32.xlu0 %v2200, 32
      %v2283 = vpop.permute.xlu0 %2282
      %2284 = vrot.lane.b32.xlu0 %v2201, 32
      %v2285 = vpop.permute.xlu0 %2284
      %2286 = vrot.lane.b32.xlu0 %v2202, 32
      %v2287 = vpop.permute.xlu0 %2286
      %2288 = vrot.lane.b32.xlu0 %v2203, 32
      %v2289 = vpop.permute.xlu0 %2288
      %2290 = vrot.lane.b32.xlu0 %v2204, 32
      %v2291 = vpop.permute.xlu0 %2290
      %2292 = vrot.lane.b32.xlu0 %v2205, 32
      %v2293 = vpop.permute.xlu0 %2292
      %2294 = vrot.lane.b32.xlu0 %v2206, 32
      %v2295 = vpop.permute.xlu0 %2294
      %2296 = vrot.lane.b32.xlu0 %v2207, 32
      %v2297 = vpop.permute.xlu0 %2296
      %2298 = vrot.lane.b32.xlu0 %v2208, 32
      %v2299 = vpop.permute.xlu0 %2298
      %2300 = vrot.lane.b32.xlu0 %v2209, 32
      %v2301 = vpop.permute.xlu0 %2300
      %2302 = vrot.lane.b32.xlu0 %v2210, 32
      %v2303 = vpop.permute.xlu0 %2302
      %2304 = vrot.lane.b32.xlu0 %v2211, 32
      %v2305 = vpop.permute.xlu0 %2304
      %2306 = vrot.lane.b32.xlu0 %v2212, 32
      %v2307 = vpop.permute.xlu0 %2306
      %2308 = vrot.lane.b32.xlu0 %v2213, 32
      %v2309 = vpop.permute.xlu0 %2308
      %vm2342 = vcmask 290048
      %2343 = vst.msk [vmem:[#allocation4] sm:$0xf] %vm2342, %v2247
      %2344 = vst.msk [vmem:[#allocation4 + $0x4] sm:$0xf] %vm2342, %v2249
      %2345 = vst.msk [vmem:[#allocation4 + $0x8] sm:$0xf] %vm2342, %v2251
      %2346 = vst.msk [vmem:[#allocation4 + $0xc] sm:$0xf] %vm2342, %v2253
      %2347 = vst.msk [vmem:[#allocation4 + $0x10] sm:$0xf] %vm2342, %v2255
      %2348 = vst.msk [vmem:[#allocation4 + $0x14] sm:$0xf] %vm2342, %v2257
      %2349 = vst.msk [vmem:[#allocation4 + $0x18] sm:$0xf] %vm2342, %v2259
      %2350 = vst.msk [vmem:[#allocation4 + $0x1c] sm:$0xf] %vm2342, %v2261
      %2351 = vst.msk [vmem:[#allocation4 + $0x20] sm:$0xf] %vm2342, %v2263
      %2352 = vst.msk [vmem:[#allocation4 + $0x24] sm:$0xf] %vm2342, %v2265
      %2353 = vst.msk [vmem:[#allocation4 + $0x28] sm:$0xf] %vm2342, %v2267
      %2354 = vst.msk [vmem:[#allocation4 + $0x2c] sm:$0xf] %vm2342, %v2269
      %2355 = vst.msk [vmem:[#allocation4 + $0x30] sm:$0xf] %vm2342, %v2271
      %2356 = vst.msk [vmem:[#allocation4 + $0x34] sm:$0xf] %vm2342, %v2273
      %2357 = vst.msk [vmem:[#allocation4 + $0x38] sm:$0xf] %vm2342, %v2275
      %2358 = vst.msk [vmem:[#allocation4 + $0x3c] sm:$0xf] %vm2342, %v2277
      %2359 = vst.msk [vmem:[#allocation4 + $0x40] sm:$0xf] %vm2342, %v2279
      %2360 = vst.msk [vmem:[#allocation4 + $0x44] sm:$0xf] %vm2342, %v2281
      %2361 = vst.msk [vmem:[#allocation4 + $0x48] sm:$0xf] %vm2342, %v2283
      %2362 = vst.msk [vmem:[#allocation4 + $0x4c] sm:$0xf] %vm2342, %v2285
      %2363 = vst.msk [vmem:[#allocation4 + $0x50] sm:$0xf] %vm2342, %v2287
      %2364 = vst.msk [vmem:[#allocation4 + $0x54] sm:$0xf] %vm2342, %v2289
      %2365 = vst.msk [vmem:[#allocation4 + $0x58] sm:$0xf] %vm2342, %v2291
      %2366 = vst.msk [vmem:[#allocation4 + $0x5c] sm:$0xf] %vm2342, %v2293
      %2367 = vst.msk [vmem:[#allocation4 + $0x60] sm:$0xf] %vm2342, %v2295
      %2368 = vst.msk [vmem:[#allocation4 + $0x64] sm:$0xf] %vm2342, %v2297
      %2369 = vst.msk [vmem:[#allocation4 + $0x68] sm:$0xf] %vm2342, %v2299
      %2370 = vst.msk [vmem:[#allocation4 + $0x6c] sm:$0xf] %vm2342, %v2301
      %2371 = vst.msk [vmem:[#allocation4 + $0x70] sm:$0xf] %vm2342, %v2303
      %2372 = vst.msk [vmem:[#allocation4 + $0x74] sm:$0xf] %vm2342, %v2305
      %2373 = vst.msk [vmem:[#allocation4 + $0x78] sm:$0xf] %vm2342, %v2307
      %2374 = vst.msk [vmem:[#allocation4 + $0x7c] sm:$0xf] %vm2342, %v2309
      %v2375 = vld [vmem:[#allocation4] sm:$0xf]
      %v2376 = vld [vmem:[#allocation4 + $0x4] sm:$0xf]
      %v2377 = vld [vmem:[#allocation4 + $0x8] sm:$0xf]
      %v2378 = vld [vmem:[#allocation4 + $0xc] sm:$0xf]
      %v2379 = vld [vmem:[#allocation4 + $0x10] sm:$0xf]
      %v2380 = vld [vmem:[#allocation4 + $0x14] sm:$0xf]
      %v2381 = vld [vmem:[#allocation4 + $0x18] sm:$0xf]
      %v2382 = vld [vmem:[#allocation4 + $0x1c] sm:$0xf]
      %v2383 = vld [vmem:[#allocation4 + $0x20] sm:$0xf]
      %v2384 = vld [vmem:[#allocation4 + $0x24] sm:$0xf]
      %v2385 = vld [vmem:[#allocation4 + $0x28] sm:$0xf]
      %v2386 = vld [vmem:[#allocation4 + $0x2c] sm:$0xf]
      %v2387 = vld [vmem:[#allocation4 + $0x30] sm:$0xf]
      %v2388 = vld [vmem:[#allocation4 + $0x34] sm:$0xf]
      %v2389 = vld [vmem:[#allocation4 + $0x38] sm:$0xf]
      %v2390 = vld [vmem:[#allocation4 + $0x3c] sm:$0xf]
      %v2391 = vld [vmem:[#allocation4 + $0x40] sm:$0xf]
      %v2392 = vld [vmem:[#allocation4 + $0x44] sm:$0xf]
      %v2393 = vld [vmem:[#allocation4 + $0x48] sm:$0xf]
      %v2394 = vld [vmem:[#allocation4 + $0x4c] sm:$0xf]
      %v2395 = vld [vmem:[#allocation4 + $0x50] sm:$0xf]
      %v2396 = vld [vmem:[#allocation4 + $0x54] sm:$0xf]
      %v2397 = vld [vmem:[#allocation4 + $0x58] sm:$0xf]
      %v2398 = vld [vmem:[#allocation4 + $0x5c] sm:$0xf]
      %v2399 = vld [vmem:[#allocation4 + $0x60] sm:$0xf]
      %v2400 = vld [vmem:[#allocation4 + $0x64] sm:$0xf]
      %v2401 = vld [vmem:[#allocation4 + $0x68] sm:$0xf]
      %v2402 = vld [vmem:[#allocation4 + $0x6c] sm:$0xf]
      %v2403 = vld [vmem:[#allocation4 + $0x70] sm:$0xf]
      %v2404 = vld [vmem:[#allocation4 + $0x74] sm:$0xf]
      %v2405 = vld [vmem:[#allocation4 + $0x78] sm:$0xf]
      %v2406 = vld [vmem:[#allocation4 + $0x7c] sm:$0xf]
      %v2407 = vld [vmem:[%s1] sm:$0xf]
      %v2408 = vld [vmem:[%s1 + $0x4] sm:$0xf]
      %v2409 = vld [vmem:[%s1 + $0x8] sm:$0xf]
      %v2410 = vld [vmem:[%s1 + $0xc] sm:$0xf]
      %v2411 = vld [vmem:[%s1 + $0x10] sm:$0x3]
      %v2412 = vld [vmem:[%s2] sm:$0x1]
      %v2414 = vperm.slane %v2412, 0
      %v2448 = vunpack.c.l.b16 %v2375
      %v2449 = vunpack.c.l.b16 %v2376
      %v2450 = vunpack.c.l.b16 %v2377
      %v2451 = vunpack.c.l.b16 %v2378
      %v2452 = vunpack.c.l.b16 %v2379
      %v2453 = vunpack.c.l.b16 %v2380
      %v2454 = vunpack.c.l.b16 %v2381
      %v2455 = vunpack.c.l.b16 %v2382
      %v2456 = vunpack.c.l.b16 %v2383
      %v2457 = vunpack.c.l.b16 %v2384
      %v2458 = vunpack.c.l.b16 %v2385
      %v2459 = vunpack.c.l.b16 %v2386
      %v2460 = vunpack.c.l.b16 %v2387
      %v2461 = vunpack.c.l.b16 %v2388
      %v2462 = vunpack.c.l.b16 %v2389
      %v2463 = vunpack.c.l.b16 %v2390
      %v2464 = vunpack.c.l.b16 %v2391
      %v2465 = vunpack.c.l.b16 %v2392
      %v2466 = vunpack.c.l.b16 %v2393
      %v2467 = vunpack.c.l.b16 %v2394
      %v2468 = vunpack.c.l.b16 %v2395
      %v2469 = vunpack.c.l.b16 %v2396
      %v2470 = vunpack.c.l.b16 %v2397
      %v2471 = vunpack.c.l.b16 %v2398
      %v2472 = vunpack.c.l.b16 %v2399
      %v2473 = vunpack.c.l.b16 %v2400
      %v2474 = vunpack.c.l.b16 %v2401
      %v2475 = vunpack.c.l.b16 %v2402
      %v2476 = vunpack.c.l.b16 %v2403
      %v2477 = vunpack.c.l.b16 %v2404
      %v2478 = vunpack.c.l.b16 %v2405
      %v2479 = vunpack.c.l.b16 %v2406
      %v2480 = vpack.c.b16 %v2449, %v2448
      %v2481 = vpack.c.b16 %v2451, %v2450
      %v2482 = vpack.c.b16 %v2453, %v2452
      %v2483 = vpack.c.b16 %v2455, %v2454
      %v2484 = vpack.c.b16 %v2457, %v2456
      %v2485 = vpack.c.b16 %v2459, %v2458
      %v2486 = vpack.c.b16 %v2461, %v2460
      %v2487 = vpack.c.b16 %v2463, %v2462
      %v2488 = vpack.c.b16 %v2465, %v2464
      %v2489 = vpack.c.b16 %v2467, %v2466
      %v2490 = vpack.c.b16 %v2469, %v2468
      %v2491 = vpack.c.b16 %v2471, %v2470
      %v2492 = vpack.c.b16 %v2473, %v2472
      %v2493 = vpack.c.b16 %v2475, %v2474
      %v2494 = vpack.c.b16 %v2477, %v2476
      %v2495 = vpack.c.b16 %v2479, %v2478
      %v2501 = vunpack.c.l.b16 %v2407
      %v2502 = vunpack.c.l.b16 %v2408
      %v2503 = vunpack.c.l.b16 %v2409
      %v2504 = vunpack.c.l.b16 %v2410
      %v2505 = vunpack.c.l.b16 %v2411
      %v2506 = vpack.c.b16 %v2502, %v2501
      %v2507 = vpack.c.b16 %v2504, %v2503
      %v2508 = vpack.c.b16 %v2505, %v2505
      %vm2511 = vcmask 293888
      %v2513 = vsel %vm2511, %v2480, 0
      %v2516 = vsel %vm2511, %v2481, 0
      %v2519 = vsel %vm2511, %v2482, 0
      %v2522 = vsel %vm2511, %v2483, 0
      %v2525 = vsel %vm2511, %v2484, 0
      %v2528 = vsel %vm2511, %v2485, 0
      %v2531 = vsel %vm2511, %v2486, 0
      %v2534 = vsel %vm2511, %v2487, 0
      %v2537 = vsel %vm2511, %v2488, 0
      %v2540 = vsel %vm2511, %v2489, 0
      %v2543 = vsel %vm2511, %v2490, 0
      %v2546 = vsel %vm2511, %v2491, 0
      %v2549 = vsel %vm2511, %v2492, 0
      %v2552 = vsel %vm2511, %v2493, 0
      %v2555 = vsel %vm2511, %v2494, 0
      %v2558 = vsel %vm2511, %v2495, 0
      %vm2560 = vcmask 1041408
      %v2562 = vsel %vm2560, %v2508, 0
      %2564 = vmatpush.bf16.msra.mxu0 0
      %2565 = vmatpush.bf16.msra.mxu0 0
      %2566 = vmatpush.bf16.msra.mxu0 0
      %2567 = vmatpush.bf16.msra.mxu0 0
      %2568 = vmatpush.bf16.msra.mxu0 0
      %2569 = vmatpush.bf16.msra.mxu0 %v2562
      %2570 = vmatpush.bf16.msra.mxu0 %v2507
      %2571 = vmatpush.bf16.msra.mxu0 %v2506
      %2572 = vmatmul.bf16.gmra.mxu0 %v2513
      %v2573 = vpop.f32.mrf.mxu0
      %v2574 = vadd.f32 %v2414, %v2573
      %v2575 = vpop.f32.mrf.mxu0
      %v2576 = vadd.f32 %v2414, %v2575
      %2577 = vmatmul.bf16.gmra.mxu0 %v2516
      %v2578 = vpop.f32.mrf.mxu0
      %v2579 = vadd.f32 %v2414, %v2578
      %v2580 = vpop.f32.mrf.mxu0
      %v2581 = vadd.f32 %v2414, %v2580
      %2582 = vmatmul.bf16.gmra.mxu0 %v2519
      %v2583 = vpop.f32.mrf.mxu0
      %v2584 = vadd.f32 %v2414, %v2583
      %v2585 = vpop.f32.mrf.mxu0
      %v2586 = vadd.f32 %v2414, %v2585
      %2587 = vmatmul.bf16.gmra.mxu0 %v2522
      %v2588 = vpop.f32.mrf.mxu0
      %v2589 = vadd.f32 %v2414, %v2588
      %v2590 = vpop.f32.mrf.mxu0
      %v2591 = vadd.f32 %v2414, %v2590
      %2592 = vmatmul.bf16.gmra.mxu0 %v2525
      %v2593 = vpop.f32.mrf.mxu0
      %v2594 = vadd.f32 %v2414, %v2593
      %v2595 = vpop.f32.mrf.mxu0
      %v2596 = vadd.f32 %v2414, %v2595
      %2597 = vmatmul.bf16.gmra.mxu0 %v2528
      %v2598 = vpop.f32.mrf.mxu0
      %v2599 = vadd.f32 %v2414, %v2598
      %v2600 = vpop.f32.mrf.mxu0
      %v2601 = vadd.f32 %v2414, %v2600
      %2602 = vmatmul.bf16.gmra.mxu0 %v2531
      %v2603 = vpop.f32.mrf.mxu0
      %v2604 = vadd.f32 %v2414, %v2603
      %v2605 = vpop.f32.mrf.mxu0
      %v2606 = vadd.f32 %v2414, %v2605
      %2607 = vmatmul.bf16.gmra.mxu0 %v2534
      %v2608 = vpop.f32.mrf.mxu0
      %v2609 = vadd.f32 %v2414, %v2608
      %v2610 = vpop.f32.mrf.mxu0
      %v2611 = vadd.f32 %v2414, %v2610
      %2612 = vmatmul.bf16.gmra.mxu0 %v2537
      %v2613 = vpop.f32.mrf.mxu0
      %v2614 = vadd.f32 %v2414, %v2613
      %v2615 = vpop.f32.mrf.mxu0
      %v2616 = vadd.f32 %v2414, %v2615
      %2617 = vmatmul.bf16.gmra.mxu0 %v2540
      %v2618 = vpop.f32.mrf.mxu0
      %v2619 = vadd.f32 %v2414, %v2618
      %v2620 = vpop.f32.mrf.mxu0
      %v2621 = vadd.f32 %v2414, %v2620
      %2622 = vmatmul.bf16.gmra.mxu0 %v2543
      %v2623 = vpop.f32.mrf.mxu0
      %v2624 = vadd.f32 %v2414, %v2623
      %v2625 = vpop.f32.mrf.mxu0
      %v2626 = vadd.f32 %v2414, %v2625
      %2627 = vmatmul.bf16.gmra.mxu0 %v2546
      %v2628 = vpop.f32.mrf.mxu0
      %v2629 = vadd.f32 %v2414, %v2628
      %v2630 = vpop.f32.mrf.mxu0
      %v2631 = vadd.f32 %v2414, %v2630
      %2632 = vmatmul.bf16.gmra.mxu0 %v2549
      %v2633 = vpop.f32.mrf.mxu0
      %v2634 = vadd.f32 %v2414, %v2633
      %v2635 = vpop.f32.mrf.mxu0
      %v2636 = vadd.f32 %v2414, %v2635
      %2637 = vmatmul.bf16.gmra.mxu0 %v2552
      %v2638 = vpop.f32.mrf.mxu0
      %v2639 = vadd.f32 %v2414, %v2638
      %v2640 = vpop.f32.mrf.mxu0
      %v2641 = vadd.f32 %v2414, %v2640
      %2642 = vmatmul.bf16.gmra.mxu0 %v2555
      %v2643 = vpop.f32.mrf.mxu0
      %v2644 = vadd.f32 %v2414, %v2643
      %v2645 = vpop.f32.mrf.mxu0
      %v2646 = vadd.f32 %v2414, %v2645
      %2647 = vmatmul.bf16.gmra.mxu0 %v2558
      %v2648 = vpop.f32.mrf.mxu0
      %v2649 = vadd.f32 %v2414, %v2648
      %v2650 = vpop.f32.mrf.mxu0
      %v2651 = vadd.f32 %v2414, %v2650
      %2652 = vdwg.mxu0
      %v2653 = vmax.f32 %v2574, 0.0
      %v2654 = vmax.f32 %v2576, 0.0
      %v2655 = vmax.f32 %v2579, 0.0
      %v2656 = vmax.f32 %v2581, 0.0
      %v2657 = vmax.f32 %v2584, 0.0
      %v2658 = vmax.f32 %v2586, 0.0
      %v2659 = vmax.f32 %v2589, 0.0
      %v2660 = vmax.f32 %v2591, 0.0
      %v2661 = vmax.f32 %v2594, 0.0
      %v2662 = vmax.f32 %v2596, 0.0
      %v2663 = vmax.f32 %v2599, 0.0
      %v2664 = vmax.f32 %v2601, 0.0
      %v2665 = vmax.f32 %v2604, 0.0
      %v2666 = vmax.f32 %v2606, 0.0
      %v2667 = vmax.f32 %v2609, 0.0
      %v2668 = vmax.f32 %v2611, 0.0
      %v2669 = vmax.f32 %v2614, 0.0
      %v2670 = vmax.f32 %v2616, 0.0
      %v2671 = vmax.f32 %v2619, 0.0
      %v2672 = vmax.f32 %v2621, 0.0
      %v2673 = vmax.f32 %v2624, 0.0
      %v2674 = vmax.f32 %v2626, 0.0
      %v2675 = vmax.f32 %v2629, 0.0
      %v2676 = vmax.f32 %v2631, 0.0
      %v2677 = vmax.f32 %v2634, 0.0
      %v2678 = vmax.f32 %v2636, 0.0
      %v2679 = vmax.f32 %v2639, 0.0
      %v2680 = vmax.f32 %v2641, 0.0
      %v2681 = vmax.f32 %v2644, 0.0
      %v2682 = vmax.f32 %v2646, 0.0
      %v2683 = vmax.f32 %v2649, 0.0
      %v2684 = vmax.f32 %v2651, 0.0
      %s2685 = scalar_lea.vmem [#allocation3], 24
      %2686 = vst.msk [vmem:[%s2685 + $0x1] sm:$0xff] %vm366, %v2653
      %2687 = vst.msk [vmem:[%s2685 + $0x9] sm:$0xff] %vm366, %v2654
      %2688 = vst.msk [vmem:[%s2685 + $0x19] sm:$0xff] %vm366, %v2655
      %2689 = vst.msk [vmem:[%s2685 + $0x21] sm:$0xff] %vm366, %v2656
      %2690 = vst.msk [vmem:[%s2685 + $0x31] sm:$0xff] %vm366, %v2657
      %2691 = vst.msk [vmem:[%s2685 + $0x39] sm:$0xff] %vm366, %v2658
      %2692 = vst.msk [vmem:[%s2685 + $0x49] sm:$0xff] %vm366, %v2659
      %2693 = vst.msk [vmem:[%s2685 + $0x51] sm:$0xff] %vm366, %v2660
      %2694 = vst.msk [vmem:[%s2685 + $0x61] sm:$0xff] %vm366, %v2661
      %2695 = vst.msk [vmem:[%s2685 + $0x69] sm:$0xff] %vm366, %v2662
      %2696 = vst.msk [vmem:[%s2685 + $0x79] sm:$0xff] %vm366, %v2663
      %2697 = vst.msk [vmem:[%s2685 + $0x81] sm:$0xff] %vm366, %v2664
      %2698 = vst.msk [vmem:[%s2685 + $0x91] sm:$0xff] %vm366, %v2665
      %2699 = vst.msk [vmem:[%s2685 + $0x99] sm:$0xff] %vm366, %v2666
      %2700 = vst.msk [vmem:[%s2685 + $0xa9] sm:$0xff] %vm366, %v2667
      %2701 = vst.msk [vmem:[%s2685 + $0xb1] sm:$0xff] %vm366, %v2668
      %2702 = vst.msk [vmem:[%s2685 + $0xc1] sm:$0xff] %vm366, %v2669
      %2703 = vst.msk [vmem:[%s2685 + $0xc9] sm:$0xff] %vm366, %v2670
      %2704 = vst.msk [vmem:[%s2685 + $0xd9] sm:$0xff] %vm366, %v2671
      %2705 = vst.msk [vmem:[%s2685 + $0xe1] sm:$0xff] %vm366, %v2672
      %2706 = vst.msk [vmem:[%s2685 + $0xf1] sm:$0xff] %vm366, %v2673
      %2707 = vst.msk [vmem:[%s2685 + $0xf9] sm:$0xff] %vm366, %v2674
      %2708 = vst.msk [vmem:[%s2685 + $0x109] sm:$0xff] %vm366, %v2675
      %2709 = vst.msk [vmem:[%s2685 + $0x111] sm:$0xff] %vm366, %v2676
      %2710 = vst.msk [vmem:[%s2685 + $0x121] sm:$0xff] %vm366, %v2677
      %2711 = vst.msk [vmem:[%s2685 + $0x129] sm:$0xff] %vm366, %v2678
      %2712 = vst.msk [vmem:[%s2685 + $0x139] sm:$0xff] %vm366, %v2679
      %2713 = vst.msk [vmem:[%s2685 + $0x141] sm:$0xff] %vm366, %v2680
      %2714 = vst.msk [vmem:[%s2685 + $0x151] sm:$0xff] %vm366, %v2681
      %2715 = vst.msk [vmem:[%s2685 + $0x159] sm:$0xff] %vm366, %v2682
      %2716 = vst.msk [vmem:[%s2685 + $0x169] sm:$0xff] %vm366, %v2683
      %2717 = vst.msk [vmem:[%s2685 + $0x171] sm:$0xff] %vm366, %v2684
      %v2718 = vld [vmem:[#allocation3] sm:$0xff]
      %v2719 = vld [vmem:[#allocation3 + $0x8] sm:$0xff]
      %v2720 = vld [vmem:[#allocation3 + $0x18] sm:$0xff]
      %v2721 = vld [vmem:[#allocation3 + $0x20] sm:$0xff]
      %v2722 = vld [vmem:[#allocation3 + $0x30] sm:$0xff]
      %v2723 = vld [vmem:[#allocation3 + $0x38] sm:$0xff]
      %v2724 = vld [vmem:[#allocation3 + $0x48] sm:$0xff]
      %v2725 = vld [vmem:[#allocation3 + $0x50] sm:$0xff]
      %v2726 = vld [vmem:[#allocation3 + $0x60] sm:$0xff]
      %v2727 = vld [vmem:[#allocation3 + $0x68] sm:$0xff]
      %v2728 = vld [vmem:[#allocation3 + $0x78] sm:$0xff]
      %v2729 = vld [vmem:[#allocation3 + $0x80] sm:$0xff]
      %v2730 = vld [vmem:[#allocation3 + $0x90] sm:$0xff]
      %v2731 = vld [vmem:[#allocation3 + $0x98] sm:$0xff]
      %v2732 = vld [vmem:[#allocation3 + $0xa8] sm:$0xff]
      %v2733 = vld [vmem:[#allocation3 + $0xb0] sm:$0xff]
      %v2734 = vld [vmem:[#allocation3 + $0xc0] sm:$0xff]
      %v2735 = vld [vmem:[#allocation3 + $0xc8] sm:$0xff]
      %v2736 = vld [vmem:[#allocation3 + $0xd8] sm:$0xff]
      %v2737 = vld [vmem:[#allocation3 + $0xe0] sm:$0xff]
      %v2738 = vld [vmem:[#allocation3 + $0xf0] sm:$0xff]
      %v2739 = vld [vmem:[#allocation3 + $0xf8] sm:$0xff]
      %v2740 = vld [vmem:[#allocation3 + $0x108] sm:$0xff]
      %v2741 = vld [vmem:[#allocation3 + $0x110] sm:$0xff]
      %v2742 = vld [vmem:[#allocation3 + $0x120] sm:$0xff]
      %v2743 = vld [vmem:[#allocation3 + $0x128] sm:$0xff]
      %v2744 = vld [vmem:[#allocation3 + $0x138] sm:$0xff]
      %v2745 = vld [vmem:[#allocation3 + $0x140] sm:$0xff]
      %v2746 = vld [vmem:[#allocation3 + $0x150] sm:$0xff]
      %v2747 = vld [vmem:[#allocation3 + $0x158] sm:$0xff]
      %v2748 = vld [vmem:[#allocation3 + $0x168] sm:$0xff]
      %v2749 = vld [vmem:[#allocation3 + $0x170] sm:$0xff]
      %v2750 = vpack.c.bf16 %v2718, %v2718
      %v2751 = vpack.c.bf16 %v2719, %v2719
      %v2752 = vpack.c.bf16 %v2720, %v2720
      %v2753 = vpack.c.bf16 %v2721, %v2721
      %v2754 = vpack.c.bf16 %v2722, %v2722
      %v2755 = vpack.c.bf16 %v2723, %v2723
      %v2756 = vpack.c.bf16 %v2724, %v2724
      %v2757 = vpack.c.bf16 %v2725, %v2725
      %v2758 = vpack.c.bf16 %v2726, %v2726
      %v2759 = vpack.c.bf16 %v2727, %v2727
      %v2760 = vpack.c.bf16 %v2728, %v2728
      %v2761 = vpack.c.bf16 %v2729, %v2729
      %v2762 = vpack.c.bf16 %v2730, %v2730
      %v2763 = vpack.c.bf16 %v2731, %v2731
      %v2764 = vpack.c.bf16 %v2732, %v2732
      %v2765 = vpack.c.bf16 %v2733, %v2733
      %v2766 = vpack.c.bf16 %v2734, %v2734
      %v2767 = vpack.c.bf16 %v2735, %v2735
      %v2768 = vpack.c.bf16 %v2736, %v2736
      %v2769 = vpack.c.bf16 %v2737, %v2737
      %v2770 = vpack.c.bf16 %v2738, %v2738
      %v2771 = vpack.c.bf16 %v2739, %v2739
      %v2772 = vpack.c.bf16 %v2740, %v2740
      %v2773 = vpack.c.bf16 %v2741, %v2741
      %v2774 = vpack.c.bf16 %v2742, %v2742
      %v2775 = vpack.c.bf16 %v2743, %v2743
      %v2776 = vpack.c.bf16 %v2744, %v2744
      %v2777 = vpack.c.bf16 %v2745, %v2745
      %v2778 = vpack.c.bf16 %v2746, %v2746
      %v2779 = vpack.c.bf16 %v2747, %v2747
      %v2780 = vpack.c.bf16 %v2748, %v2748
      %v2781 = vpack.c.bf16 %v2749, %v2749
      %vm2782 = vcmask 60416
      %2783 = vst.msk [vmem:[#allocation5] sm:$0xf] %vm2782, %v2750
      %2784 = vst.msk [vmem:[#allocation5 + $0x4] sm:$0xf] %vm2782, %v2751
      %2785 = vst.msk [vmem:[#allocation5 + $0x8] sm:$0xf] %vm2782, %v2752
      %2786 = vst.msk [vmem:[#allocation5 + $0xc] sm:$0xf] %vm2782, %v2753
      %2787 = vst.msk [vmem:[#allocation5 + $0x10] sm:$0xf] %vm2782, %v2754
      %2788 = vst.msk [vmem:[#allocation5 + $0x14] sm:$0xf] %vm2782, %v2755
      %2789 = vst.msk [vmem:[#allocation5 + $0x18] sm:$0xf] %vm2782, %v2756
      %2790 = vst.msk [vmem:[#allocation5 + $0x1c] sm:$0xf] %vm2782, %v2757
      %2791 = vst.msk [vmem:[#allocation5 + $0x20] sm:$0xf] %vm2782, %v2758
      %2792 = vst.msk [vmem:[#allocation5 + $0x24] sm:$0xf] %vm2782, %v2759
      %2793 = vst.msk [vmem:[#allocation5 + $0x28] sm:$0xf] %vm2782, %v2760
      %2794 = vst.msk [vmem:[#allocation5 + $0x2c] sm:$0xf] %vm2782, %v2761
      %2795 = vst.msk [vmem:[#allocation5 + $0x30] sm:$0xf] %vm2782, %v2762
      %2796 = vst.msk [vmem:[#allocation5 + $0x34] sm:$0xf] %vm2782, %v2763
      %2797 = vst.msk [vmem:[#allocation5 + $0x38] sm:$0xf] %vm2782, %v2764
      %2798 = vst.msk [vmem:[#allocation5 + $0x3c] sm:$0xf] %vm2782, %v2765
      %2799 = vst.msk [vmem:[#allocation5 + $0x40] sm:$0xf] %vm2782, %v2766
      %2800 = vst.msk [vmem:[#allocation5 + $0x44] sm:$0xf] %vm2782, %v2767
      %2801 = vst.msk [vmem:[#allocation5 + $0x48] sm:$0xf] %vm2782, %v2768
      %2802 = vst.msk [vmem:[#allocation5 + $0x4c] sm:$0xf] %vm2782, %v2769
      %2803 = vst.msk [vmem:[#allocation5 + $0x50] sm:$0xf] %vm2782, %v2770
      %2804 = vst.msk [vmem:[#allocation5 + $0x54] sm:$0xf] %vm2782, %v2771
      %2805 = vst.msk [vmem:[#allocation5 + $0x58] sm:$0xf] %vm2782, %v2772
      %2806 = vst.msk [vmem:[#allocation5 + $0x5c] sm:$0xf] %vm2782, %v2773
      %2807 = vst.msk [vmem:[#allocation5 + $0x60] sm:$0xf] %vm2782, %v2774
      %2808 = vst.msk [vmem:[#allocation5 + $0x64] sm:$0xf] %vm2782, %v2775
      %2809 = vst.msk [vmem:[#allocation5 + $0x68] sm:$0xf] %vm2782, %v2776
      %2810 = vst.msk [vmem:[#allocation5 + $0x6c] sm:$0xf] %vm2782, %v2777
      %2811 = vst.msk [vmem:[#allocation5 + $0x70] sm:$0xf] %vm2782, %v2778
      %2812 = vst.msk [vmem:[#allocation5 + $0x74] sm:$0xf] %vm2782, %v2779
      %2813 = vst.msk [vmem:[#allocation5 + $0x78] sm:$0xf] %vm2782, %v2780
      %2814 = vst.msk [vmem:[#allocation5 + $0x7c] sm:$0xf] %vm2782, %v2781
      %v2815 = vld [vmem:[#allocation3 + $0x1] sm:$0xff]
      %v2816 = vld [vmem:[#allocation3 + $0x9] sm:$0xff]
      %v2817 = vld [vmem:[#allocation3 + $0x19] sm:$0xff]
      %v2818 = vld [vmem:[#allocation3 + $0x21] sm:$0xff]
      %v2819 = vld [vmem:[#allocation3 + $0x31] sm:$0xff]
      %v2820 = vld [vmem:[#allocation3 + $0x39] sm:$0xff]
      %v2821 = vld [vmem:[#allocation3 + $0x49] sm:$0xff]
      %v2822 = vld [vmem:[#allocation3 + $0x51] sm:$0xff]
      %v2823 = vld [vmem:[#allocation3 + $0x61] sm:$0xff]
      %v2824 = vld [vmem:[#allocation3 + $0x69] sm:$0xff]
      %v2825 = vld [vmem:[#allocation3 + $0x79] sm:$0xff]
      %v2826 = vld [vmem:[#allocation3 + $0x81] sm:$0xff]
      %v2827 = vld [vmem:[#allocation3 + $0x91] sm:$0xff]
      %v2828 = vld [vmem:[#allocation3 + $0x99] sm:$0xff]
      %v2829 = vld [vmem:[#allocation3 + $0xa9] sm:$0xff]
      %v2830 = vld [vmem:[#allocation3 + $0xb1] sm:$0xff]
      %v2831 = vld [vmem:[#allocation3 + $0xc1] sm:$0xff]
      %v2832 = vld [vmem:[#allocation3 + $0xc9] sm:$0xff]
      %v2833 = vld [vmem:[#allocation3 + $0xd9] sm:$0xff]
      %v2834 = vld [vmem:[#allocation3 + $0xe1] sm:$0xff]
      %v2835 = vld [vmem:[#allocation3 + $0xf1] sm:$0xff]
      %v2836 = vld [vmem:[#allocation3 + $0xf9] sm:$0xff]
      %v2837 = vld [vmem:[#allocation3 + $0x109] sm:$0xff]
      %v2838 = vld [vmem:[#allocation3 + $0x111] sm:$0xff]
      %v2839 = vld [vmem:[#allocation3 + $0x121] sm:$0xff]
      %v2840 = vld [vmem:[#allocation3 + $0x129] sm:$0xff]
      %v2841 = vld [vmem:[#allocation3 + $0x139] sm:$0xff]
      %v2842 = vld [vmem:[#allocation3 + $0x141] sm:$0xff]
      %v2843 = vld [vmem:[#allocation3 + $0x151] sm:$0xff]
      %v2844 = vld [vmem:[#allocation3 + $0x159] sm:$0xff]
      %v2845 = vld [vmem:[#allocation3 + $0x169] sm:$0xff]
      %v2846 = vld [vmem:[#allocation3 + $0x171] sm:$0xff]
      %v2847 = vpack.c.bf16 %v2815, %v2815
      %v2848 = vpack.c.bf16 %v2816, %v2816
      %v2849 = vpack.c.bf16 %v2817, %v2817
      %v2850 = vpack.c.bf16 %v2818, %v2818
      %v2851 = vpack.c.bf16 %v2819, %v2819
      %v2852 = vpack.c.bf16 %v2820, %v2820
      %v2853 = vpack.c.bf16 %v2821, %v2821
      %v2854 = vpack.c.bf16 %v2822, %v2822
      %v2855 = vpack.c.bf16 %v2823, %v2823
      %v2856 = vpack.c.bf16 %v2824, %v2824
      %v2857 = vpack.c.bf16 %v2825, %v2825
      %v2858 = vpack.c.bf16 %v2826, %v2826
      %v2859 = vpack.c.bf16 %v2827, %v2827
      %v2860 = vpack.c.bf16 %v2828, %v2828
      %v2861 = vpack.c.bf16 %v2829, %v2829
      %v2862 = vpack.c.bf16 %v2830, %v2830
      %v2863 = vpack.c.bf16 %v2831, %v2831
      %v2864 = vpack.c.bf16 %v2832, %v2832
      %v2865 = vpack.c.bf16 %v2833, %v2833
      %v2866 = vpack.c.bf16 %v2834, %v2834
      %v2867 = vpack.c.bf16 %v2835, %v2835
      %v2868 = vpack.c.bf16 %v2836, %v2836
      %v2869 = vpack.c.bf16 %v2837, %v2837
      %v2870 = vpack.c.bf16 %v2838, %v2838
      %v2871 = vpack.c.bf16 %v2839, %v2839
      %v2872 = vpack.c.bf16 %v2840, %v2840
      %v2873 = vpack.c.bf16 %v2841, %v2841
      %v2874 = vpack.c.bf16 %v2842, %v2842
      %v2875 = vpack.c.bf16 %v2843, %v2843
      %v2876 = vpack.c.bf16 %v2844, %v2844
      %v2877 = vpack.c.bf16 %v2845, %v2845
      %v2878 = vpack.c.bf16 %v2846, %v2846
      %2911 = vrot.lane.b32.xlu0 %v2847, 8
      %v2912 = vpop.permute.xlu0 %2911
      %2913 = vrot.lane.b32.xlu0 %v2848, 8
      %v2914 = vpop.permute.xlu0 %2913
      %2915 = vrot.lane.b32.xlu0 %v2849, 8
      %v2916 = vpop.permute.xlu0 %2915
      %2917 = vrot.lane.b32.xlu0 %v2850, 8
      %v2918 = vpop.permute.xlu0 %2917
      %2919 = vrot.lane.b32.xlu0 %v2851, 8
      %v2920 = vpop.permute.xlu0 %2919
      %2921 = vrot.lane.b32.xlu0 %v2852, 8
      %v2922 = vpop.permute.xlu0 %2921
      %2923 = vrot.lane.b32.xlu0 %v2853, 8
      %v2924 = vpop.permute.xlu0 %2923
      %2925 = vrot.lane.b32.xlu0 %v2854, 8
      %v2926 = vpop.permute.xlu0 %2925
      %2927 = vrot.lane.b32.xlu0 %v2855, 8
      %v2928 = vpop.permute.xlu0 %2927
      %2929 = vrot.lane.b32.xlu0 %v2856, 8
      %v2930 = vpop.permute.xlu0 %2929
      %2931 = vrot.lane.b32.xlu0 %v2857, 8
      %v2932 = vpop.permute.xlu0 %2931
      %2933 = vrot.lane.b32.xlu0 %v2858, 8
      %v2934 = vpop.permute.xlu0 %2933
      %2935 = vrot.lane.b32.xlu0 %v2859, 8
      %v2936 = vpop.permute.xlu0 %2935
      %2937 = vrot.lane.b32.xlu0 %v2860, 8
      %v2938 = vpop.permute.xlu0 %2937
      %2939 = vrot.lane.b32.xlu0 %v2861, 8
      %v2940 = vpop.permute.xlu0 %2939
      %2941 = vrot.lane.b32.xlu0 %v2862, 8
      %v2942 = vpop.permute.xlu0 %2941
      %2943 = vrot.lane.b32.xlu0 %v2863, 8
      %v2944 = vpop.permute.xlu0 %2943
      %2945 = vrot.lane.b32.xlu0 %v2864, 8
      %v2946 = vpop.permute.xlu0 %2945
      %2947 = vrot.lane.b32.xlu0 %v2865, 8
      %v2948 = vpop.permute.xlu0 %2947
      %2949 = vrot.lane.b32.xlu0 %v2866, 8
      %v2950 = vpop.permute.xlu0 %2949
      %2951 = vrot.lane.b32.xlu0 %v2867, 8
      %v2952 = vpop.permute.xlu0 %2951
      %2953 = vrot.lane.b32.xlu0 %v2868, 8
      %v2954 = vpop.permute.xlu0 %2953
      %2955 = vrot.lane.b32.xlu0 %v2869, 8
      %v2956 = vpop.permute.xlu0 %2955
      %2957 = vrot.lane.b32.xlu0 %v2870, 8
      %v2958 = vpop.permute.xlu0 %2957
      %2959 = vrot.lane.b32.xlu0 %v2871, 8
      %v2960 = vpop.permute.xlu0 %2959
      %2961 = vrot.lane.b32.xlu0 %v2872, 8
      %v2962 = vpop.permute.xlu0 %2961
      %2963 = vrot.lane.b32.xlu0 %v2873, 8
      %v2964 = vpop.permute.xlu0 %2963
      %2965 = vrot.lane.b32.xlu0 %v2874, 8
      %v2966 = vpop.permute.xlu0 %2965
      %2967 = vrot.lane.b32.xlu0 %v2875, 8
      %v2968 = vpop.permute.xlu0 %2967
      %2969 = vrot.lane.b32.xlu0 %v2876, 8
      %v2970 = vpop.permute.xlu0 %2969
      %2971 = vrot.lane.b32.xlu0 %v2877, 8
      %v2972 = vpop.permute.xlu0 %2971
      %2973 = vrot.lane.b32.xlu0 %v2878, 8
      %v2974 = vpop.permute.xlu0 %2973
      %vm3007 = vcmask 126016
      %3008 = vst.msk [vmem:[#allocation5] sm:$0xf] %vm3007, %v2912
      %3009 = vst.msk [vmem:[#allocation5 + $0x4] sm:$0xf] %vm3007, %v2914
      %3010 = vst.msk [vmem:[#allocation5 + $0x8] sm:$0xf] %vm3007, %v2916
      %3011 = vst.msk [vmem:[#allocation5 + $0xc] sm:$0xf] %vm3007, %v2918
      %3012 = vst.msk [vmem:[#allocation5 + $0x10] sm:$0xf] %vm3007, %v2920
      %3013 = vst.msk [vmem:[#allocation5 + $0x14] sm:$0xf] %vm3007, %v2922
      %3014 = vst.msk [vmem:[#allocation5 + $0x18] sm:$0xf] %vm3007, %v2924
      %3015 = vst.msk [vmem:[#allocation5 + $0x1c] sm:$0xf] %vm3007, %v2926
      %3016 = vst.msk [vmem:[#allocation5 + $0x20] sm:$0xf] %vm3007, %v2928
      %3017 = vst.msk [vmem:[#allocation5 + $0x24] sm:$0xf] %vm3007, %v2930
      %3018 = vst.msk [vmem:[#allocation5 + $0x28] sm:$0xf] %vm3007, %v2932
      %3019 = vst.msk [vmem:[#allocation5 + $0x2c] sm:$0xf] %vm3007, %v2934
      %3020 = vst.msk [vmem:[#allocation5 + $0x30] sm:$0xf] %vm3007, %v2936
      %3021 = vst.msk [vmem:[#allocation5 + $0x34] sm:$0xf] %vm3007, %v2938
      %3022 = vst.msk [vmem:[#allocation5 + $0x38] sm:$0xf] %vm3007, %v2940
      %3023 = vst.msk [vmem:[#allocation5 + $0x3c] sm:$0xf] %vm3007, %v2942
      %3024 = vst.msk [vmem:[#allocation5 + $0x40] sm:$0xf] %vm3007, %v2944
      %3025 = vst.msk [vmem:[#allocation5 + $0x44] sm:$0xf] %vm3007, %v2946
      %3026 = vst.msk [vmem:[#allocation5 + $0x48] sm:$0xf] %vm3007, %v2948
      %3027 = vst.msk [vmem:[#allocation5 + $0x4c] sm:$0xf] %vm3007, %v2950
      %3028 = vst.msk [vmem:[#allocation5 + $0x50] sm:$0xf] %vm3007, %v2952
      %3029 = vst.msk [vmem:[#allocation5 + $0x54] sm:$0xf] %vm3007, %v2954
      %3030 = vst.msk [vmem:[#allocation5 + $0x58] sm:$0xf] %vm3007, %v2956
      %3031 = vst.msk [vmem:[#allocation5 + $0x5c] sm:$0xf] %vm3007, %v2958
      %3032 = vst.msk [vmem:[#allocation5 + $0x60] sm:$0xf] %vm3007, %v2960
      %3033 = vst.msk [vmem:[#allocation5 + $0x64] sm:$0xf] %vm3007, %v2962
      %3034 = vst.msk [vmem:[#allocation5 + $0x68] sm:$0xf] %vm3007, %v2964
      %3035 = vst.msk [vmem:[#allocation5 + $0x6c] sm:$0xf] %vm3007, %v2966
      %3036 = vst.msk [vmem:[#allocation5 + $0x70] sm:$0xf] %vm3007, %v2968
      %3037 = vst.msk [vmem:[#allocation5 + $0x74] sm:$0xf] %vm3007, %v2970
      %3038 = vst.msk [vmem:[#allocation5 + $0x78] sm:$0xf] %vm3007, %v2972
      %3039 = vst.msk [vmem:[#allocation5 + $0x7c] sm:$0xf] %vm3007, %v2974
      %v3040 = vld [vmem:[#allocation3 + $0x2] sm:$0xff]
      %v3041 = vld [vmem:[#allocation3 + $0xa] sm:$0xff]
      %v3042 = vld [vmem:[#allocation3 + $0x1a] sm:$0xff]
      %v3043 = vld [vmem:[#allocation3 + $0x22] sm:$0xff]
      %v3044 = vld [vmem:[#allocation3 + $0x32] sm:$0xff]
      %v3045 = vld [vmem:[#allocation3 + $0x3a] sm:$0xff]
      %v3046 = vld [vmem:[#allocation3 + $0x4a] sm:$0xff]
      %v3047 = vld [vmem:[#allocation3 + $0x52] sm:$0xff]
      %v3048 = vld [vmem:[#allocation3 + $0x62] sm:$0xff]
      %v3049 = vld [vmem:[#allocation3 + $0x6a] sm:$0xff]
      %v3050 = vld [vmem:[#allocation3 + $0x7a] sm:$0xff]
      %v3051 = vld [vmem:[#allocation3 + $0x82] sm:$0xff]
      %v3052 = vld [vmem:[#allocation3 + $0x92] sm:$0xff]
      %v3053 = vld [vmem:[#allocation3 + $0x9a] sm:$0xff]
      %v3054 = vld [vmem:[#allocation3 + $0xaa] sm:$0xff]
      %v3055 = vld [vmem:[#allocation3 + $0xb2] sm:$0xff]
      %v3056 = vld [vmem:[#allocation3 + $0xc2] sm:$0xff]
      %v3057 = vld [vmem:[#allocation3 + $0xca] sm:$0xff]
      %v3058 = vld [vmem:[#allocation3 + $0xda] sm:$0xff]
      %v3059 = vld [vmem:[#allocation3 + $0xe2] sm:$0xff]
      %v3060 = vld [vmem:[#allocation3 + $0xf2] sm:$0xff]
      %v3061 = vld [vmem:[#allocation3 + $0xfa] sm:$0xff]
      %v3062 = vld [vmem:[#allocation3 + $0x10a] sm:$0xff]
      %v3063 = vld [vmem:[#allocation3 + $0x112] sm:$0xff]
      %v3064 = vld [vmem:[#allocation3 + $0x122] sm:$0xff]
      %v3065 = vld [vmem:[#allocation3 + $0x12a] sm:$0xff]
      %v3066 = vld [vmem:[#allocation3 + $0x13a] sm:$0xff]
      %v3067 = vld [vmem:[#allocation3 + $0x142] sm:$0xff]
      %v3068 = vld [vmem:[#allocation3 + $0x152] sm:$0xff]
      %v3069 = vld [vmem:[#allocation3 + $0x15a] sm:$0xff]
      %v3070 = vld [vmem:[#allocation3 + $0x16a] sm:$0xff]
      %v3071 = vld [vmem:[#allocation3 + $0x172] sm:$0xff]
      %v3072 = vpack.c.bf16 %v3040, %v3040
      %v3073 = vpack.c.bf16 %v3041, %v3041
      %v3074 = vpack.c.bf16 %v3042, %v3042
      %v3075 = vpack.c.bf16 %v3043, %v3043
      %v3076 = vpack.c.bf16 %v3044, %v3044
      %v3077 = vpack.c.bf16 %v3045, %v3045
      %v3078 = vpack.c.bf16 %v3046, %v3046
      %v3079 = vpack.c.bf16 %v3047, %v3047
      %v3080 = vpack.c.bf16 %v3048, %v3048
      %v3081 = vpack.c.bf16 %v3049, %v3049
      %v3082 = vpack.c.bf16 %v3050, %v3050
      %v3083 = vpack.c.bf16 %v3051, %v3051
      %v3084 = vpack.c.bf16 %v3052, %v3052
      %v3085 = vpack.c.bf16 %v3053, %v3053
      %v3086 = vpack.c.bf16 %v3054, %v3054
      %v3087 = vpack.c.bf16 %v3055, %v3055
      %v3088 = vpack.c.bf16 %v3056, %v3056
      %v3089 = vpack.c.bf16 %v3057, %v3057
      %v3090 = vpack.c.bf16 %v3058, %v3058
      %v3091 = vpack.c.bf16 %v3059, %v3059
      %v3092 = vpack.c.bf16 %v3060, %v3060
      %v3093 = vpack.c.bf16 %v3061, %v3061
      %v3094 = vpack.c.bf16 %v3062, %v3062
      %v3095 = vpack.c.bf16 %v3063, %v3063
      %v3096 = vpack.c.bf16 %v3064, %v3064
      %v3097 = vpack.c.bf16 %v3065, %v3065
      %v3098 = vpack.c.bf16 %v3066, %v3066
      %v3099 = vpack.c.bf16 %v3067, %v3067
      %v3100 = vpack.c.bf16 %v3068, %v3068
      %v3101 = vpack.c.bf16 %v3069, %v3069
      %v3102 = vpack.c.bf16 %v3070, %v3070
      %v3103 = vpack.c.bf16 %v3071, %v3071
      %3136 = vrot.lane.b32.xlu0 %v3072, 16
      %v3137 = vpop.permute.xlu0 %3136
      %3138 = vrot.lane.b32.xlu0 %v3073, 16
      %v3139 = vpop.permute.xlu0 %3138
      %3140 = vrot.lane.b32.xlu0 %v3074, 16
      %v3141 = vpop.permute.xlu0 %3140
      %3142 = vrot.lane.b32.xlu0 %v3075, 16
      %v3143 = vpop.permute.xlu0 %3142
      %3144 = vrot.lane.b32.xlu0 %v3076, 16
      %v3145 = vpop.permute.xlu0 %3144
      %3146 = vrot.lane.b32.xlu0 %v3077, 16
      %v3147 = vpop.permute.xlu0 %3146
      %3148 = vrot.lane.b32.xlu0 %v3078, 16
      %v3149 = vpop.permute.xlu0 %3148
      %3150 = vrot.lane.b32.xlu0 %v3079, 16
      %v3151 = vpop.permute.xlu0 %3150
      %3152 = vrot.lane.b32.xlu0 %v3080, 16
      %v3153 = vpop.permute.xlu0 %3152
      %3154 = vrot.lane.b32.xlu0 %v3081, 16
      %v3155 = vpop.permute.xlu0 %3154
      %3156 = vrot.lane.b32.xlu0 %v3082, 16
      %v3157 = vpop.permute.xlu0 %3156
      %3158 = vrot.lane.b32.xlu0 %v3083, 16
      %v3159 = vpop.permute.xlu0 %3158
      %3160 = vrot.lane.b32.xlu0 %v3084, 16
      %v3161 = vpop.permute.xlu0 %3160
      %3162 = vrot.lane.b32.xlu0 %v3085, 16
      %v3163 = vpop.permute.xlu0 %3162
      %3164 = vrot.lane.b32.xlu0 %v3086, 16
      %v3165 = vpop.permute.xlu0 %3164
      %3166 = vrot.lane.b32.xlu0 %v3087, 16
      %v3167 = vpop.permute.xlu0 %3166
      %3168 = vrot.lane.b32.xlu0 %v3088, 16
      %v3169 = vpop.permute.xlu0 %3168
      %3170 = vrot.lane.b32.xlu0 %v3089, 16
      %v3171 = vpop.permute.xlu0 %3170
      %3172 = vrot.lane.b32.xlu0 %v3090, 16
      %v3173 = vpop.permute.xlu0 %3172
      %3174 = vrot.lane.b32.xlu0 %v3091, 16
      %v3175 = vpop.permute.xlu0 %3174
      %3176 = vrot.lane.b32.xlu0 %v3092, 16
      %v3177 = vpop.permute.xlu0 %3176
      %3178 = vrot.lane.b32.xlu0 %v3093, 16
      %v3179 = vpop.permute.xlu0 %3178
      %3180 = vrot.lane.b32.xlu0 %v3094, 16
      %v3181 = vpop.permute.xlu0 %3180
      %3182 = vrot.lane.b32.xlu0 %v3095, 16
      %v3183 = vpop.permute.xlu0 %3182
      %3184 = vrot.lane.b32.xlu0 %v3096, 16
      %v3185 = vpop.permute.xlu0 %3184
      %3186 = vrot.lane.b32.xlu0 %v3097, 16
      %v3187 = vpop.permute.xlu0 %3186
      %3188 = vrot.lane.b32.xlu0 %v3098, 16
      %v3189 = vpop.permute.xlu0 %3188
      %3190 = vrot.lane.b32.xlu0 %v3099, 16
      %v3191 = vpop.permute.xlu0 %3190
      %3192 = vrot.lane.b32.xlu0 %v3100, 16
      %v3193 = vpop.permute.xlu0 %3192
      %3194 = vrot.lane.b32.xlu0 %v3101, 16
      %v3195 = vpop.permute.xlu0 %3194
      %3196 = vrot.lane.b32.xlu0 %v3102, 16
      %v3197 = vpop.permute.xlu0 %3196
      %3198 = vrot.lane.b32.xlu0 %v3103, 16
      %v3199 = vpop.permute.xlu0 %3198
      %vm3232 = vcmask 191616
      %3233 = vst.msk [vmem:[#allocation5] sm:$0xf] %vm3232, %v3137
      %3234 = vst.msk [vmem:[#allocation5 + $0x4] sm:$0xf] %vm3232, %v3139
      %3235 = vst.msk [vmem:[#allocation5 + $0x8] sm:$0xf] %vm3232, %v3141
      %3236 = vst.msk [vmem:[#allocation5 + $0xc] sm:$0xf] %vm3232, %v3143
      %3237 = vst.msk [vmem:[#allocation5 + $0x10] sm:$0xf] %vm3232, %v3145
      %3238 = vst.msk [vmem:[#allocation5 + $0x14] sm:$0xf] %vm3232, %v3147
      %3239 = vst.msk [vmem:[#allocation5 + $0x18] sm:$0xf] %vm3232, %v3149
      %3240 = vst.msk [vmem:[#allocation5 + $0x1c] sm:$0xf] %vm3232, %v3151
      %3241 = vst.msk [vmem:[#allocation5 + $0x20] sm:$0xf] %vm3232, %v3153
      %3242 = vst.msk [vmem:[#allocation5 + $0x24] sm:$0xf] %vm3232, %v3155
      %3243 = vst.msk [vmem:[#allocation5 + $0x28] sm:$0xf] %vm3232, %v3157
      %3244 = vst.msk [vmem:[#allocation5 + $0x2c] sm:$0xf] %vm3232, %v3159
      %3245 = vst.msk [vmem:[#allocation5 + $0x30] sm:$0xf] %vm3232, %v3161
      %3246 = vst.msk [vmem:[#allocation5 + $0x34] sm:$0xf] %vm3232, %v3163
      %3247 = vst.msk [vmem:[#allocation5 + $0x38] sm:$0xf] %vm3232, %v3165
      %3248 = vst.msk [vmem:[#allocation5 + $0x3c] sm:$0xf] %vm3232, %v3167
      %3249 = vst.msk [vmem:[#allocation5 + $0x40] sm:$0xf] %vm3232, %v3169
      %3250 = vst.msk [vmem:[#allocation5 + $0x44] sm:$0xf] %vm3232, %v3171
      %3251 = vst.msk [vmem:[#allocation5 + $0x48] sm:$0xf] %vm3232, %v3173
      %3252 = vst.msk [vmem:[#allocation5 + $0x4c] sm:$0xf] %vm3232, %v3175
      %3253 = vst.msk [vmem:[#allocation5 + $0x50] sm:$0xf] %vm3232, %v3177
      %3254 = vst.msk [vmem:[#allocation5 + $0x54] sm:$0xf] %vm3232, %v3179
      %3255 = vst.msk [vmem:[#allocation5 + $0x58] sm:$0xf] %vm3232, %v3181
      %3256 = vst.msk [vmem:[#allocation5 + $0x5c] sm:$0xf] %vm3232, %v3183
      %3257 = vst.msk [vmem:[#allocation5 + $0x60] sm:$0xf] %vm3232, %v3185
      %3258 = vst.msk [vmem:[#allocation5 + $0x64] sm:$0xf] %vm3232, %v3187
      %3259 = vst.msk [vmem:[#allocation5 + $0x68] sm:$0xf] %vm3232, %v3189
      %3260 = vst.msk [vmem:[#allocation5 + $0x6c] sm:$0xf] %vm3232, %v3191
      %3261 = vst.msk [vmem:[#allocation5 + $0x70] sm:$0xf] %vm3232, %v3193
      %3262 = vst.msk [vmem:[#allocation5 + $0x74] sm:$0xf] %vm3232, %v3195
      %3263 = vst.msk [vmem:[#allocation5 + $0x78] sm:$0xf] %vm3232, %v3197
      %3264 = vst.msk [vmem:[#allocation5 + $0x7c] sm:$0xf] %vm3232, %v3199
      %v3265 = vld [vmem:[%s2685] sm:$0xff]
      %v3266 = vld [vmem:[%s2685 + $0x8] sm:$0xff]
      %v3267 = vld [vmem:[%s2685 + $0x18] sm:$0xff]
      %v3268 = vld [vmem:[%s2685 + $0x20] sm:$0xff]
      %v3269 = vld [vmem:[%s2685 + $0x30] sm:$0xff]
      %v3270 = vld [vmem:[%s2685 + $0x38] sm:$0xff]
      %v3271 = vld [vmem:[%s2685 + $0x48] sm:$0xff]
      %v3272 = vld [vmem:[%s2685 + $0x50] sm:$0xff]
      %v3273 = vld [vmem:[%s2685 + $0x60] sm:$0xff]
      %v3274 = vld [vmem:[%s2685 + $0x68] sm:$0xff]
      %v3275 = vld [vmem:[%s2685 + $0x78] sm:$0xff]
      %v3276 = vld [vmem:[%s2685 + $0x80] sm:$0xff]
      %v3277 = vld [vmem:[%s2685 + $0x90] sm:$0xff]
      %v3278 = vld [vmem:[%s2685 + $0x98] sm:$0xff]
      %v3279 = vld [vmem:[%s2685 + $0xa8] sm:$0xff]
      %v3280 = vld [vmem:[%s2685 + $0xb0] sm:$0xff]
      %v3281 = vld [vmem:[%s2685 + $0xc0] sm:$0xff]
      %v3282 = vld [vmem:[%s2685 + $0xc8] sm:$0xff]
      %v3283 = vld [vmem:[%s2685 + $0xd8] sm:$0xff]
      %v3284 = vld [vmem:[%s2685 + $0xe0] sm:$0xff]
      %v3285 = vld [vmem:[%s2685 + $0xf0] sm:$0xff]
      %v3286 = vld [vmem:[%s2685 + $0xf8] sm:$0xff]
      %v3287 = vld [vmem:[%s2685 + $0x108] sm:$0xff]
      %v3288 = vld [vmem:[%s2685 + $0x110] sm:$0xff]
      %v3289 = vld [vmem:[%s2685 + $0x120] sm:$0xff]
      %v3290 = vld [vmem:[%s2685 + $0x128] sm:$0xff]
      %v3291 = vld [vmem:[%s2685 + $0x138] sm:$0xff]
      %v3292 = vld [vmem:[%s2685 + $0x140] sm:$0xff]
      %v3293 = vld [vmem:[%s2685 + $0x150] sm:$0xff]
      %v3294 = vld [vmem:[%s2685 + $0x158] sm:$0xff]
      %v3295 = vld [vmem:[%s2685 + $0x168] sm:$0xff]
      %v3296 = vld [vmem:[%s2685 + $0x170] sm:$0xff]
      %v3297 = vpack.c.bf16 %v3265, %v3265
      %v3298 = vpack.c.bf16 %v3266, %v3266
      %v3299 = vpack.c.bf16 %v3267, %v3267
      %v3300 = vpack.c.bf16 %v3268, %v3268
      %v3301 = vpack.c.bf16 %v3269, %v3269
      %v3302 = vpack.c.bf16 %v3270, %v3270
      %v3303 = vpack.c.bf16 %v3271, %v3271
      %v3304 = vpack.c.bf16 %v3272, %v3272
      %v3305 = vpack.c.bf16 %v3273, %v3273
      %v3306 = vpack.c.bf16 %v3274, %v3274
      %v3307 = vpack.c.bf16 %v3275, %v3275
      %v3308 = vpack.c.bf16 %v3276, %v3276
      %v3309 = vpack.c.bf16 %v3277, %v3277
      %v3310 = vpack.c.bf16 %v3278, %v3278
      %v3311 = vpack.c.bf16 %v3279, %v3279
      %v3312 = vpack.c.bf16 %v3280, %v3280
      %v3313 = vpack.c.bf16 %v3281, %v3281
      %v3314 = vpack.c.bf16 %v3282, %v3282
      %v3315 = vpack.c.bf16 %v3283, %v3283
      %v3316 = vpack.c.bf16 %v3284, %v3284
      %v3317 = vpack.c.bf16 %v3285, %v3285
      %v3318 = vpack.c.bf16 %v3286, %v3286
      %v3319 = vpack.c.bf16 %v3287, %v3287
      %v3320 = vpack.c.bf16 %v3288, %v3288
      %v3321 = vpack.c.bf16 %v3289, %v3289
      %v3322 = vpack.c.bf16 %v3290, %v3290
      %v3323 = vpack.c.bf16 %v3291, %v3291
      %v3324 = vpack.c.bf16 %v3292, %v3292
      %v3325 = vpack.c.bf16 %v3293, %v3293
      %v3326 = vpack.c.bf16 %v3294, %v3294
      %v3327 = vpack.c.bf16 %v3295, %v3295
      %v3328 = vpack.c.bf16 %v3296, %v3296
      %3361 = vrot.lane.b32.xlu0 %v3297, 24
      %v3362 = vpop.permute.xlu0 %3361
      %3363 = vrot.lane.b32.xlu0 %v3298, 24
      %v3364 = vpop.permute.xlu0 %3363
      %3365 = vrot.lane.b32.xlu0 %v3299, 24
      %v3366 = vpop.permute.xlu0 %3365
      %3367 = vrot.lane.b32.xlu0 %v3300, 24
      %v3368 = vpop.permute.xlu0 %3367
      %3369 = vrot.lane.b32.xlu0 %v3301, 24
      %v3370 = vpop.permute.xlu0 %3369
      %3371 = vrot.lane.b32.xlu0 %v3302, 24
      %v3372 = vpop.permute.xlu0 %3371
      %3373 = vrot.lane.b32.xlu0 %v3303, 24
      %v3374 = vpop.permute.xlu0 %3373
      %3375 = vrot.lane.b32.xlu0 %v3304, 24
      %v3376 = vpop.permute.xlu0 %3375
      %3377 = vrot.lane.b32.xlu0 %v3305, 24
      %v3378 = vpop.permute.xlu0 %3377
      %3379 = vrot.lane.b32.xlu0 %v3306, 24
      %v3380 = vpop.permute.xlu0 %3379
      %3381 = vrot.lane.b32.xlu0 %v3307, 24
      %v3382 = vpop.permute.xlu0 %3381
      %3383 = vrot.lane.b32.xlu0 %v3308, 24
      %v3384 = vpop.permute.xlu0 %3383
      %3385 = vrot.lane.b32.xlu0 %v3309, 24
      %v3386 = vpop.permute.xlu0 %3385
      %3387 = vrot.lane.b32.xlu0 %v3310, 24
      %v3388 = vpop.permute.xlu0 %3387
      %3389 = vrot.lane.b32.xlu0 %v3311, 24
      %v3390 = vpop.permute.xlu0 %3389
      %3391 = vrot.lane.b32.xlu0 %v3312, 24
      %v3392 = vpop.permute.xlu0 %3391
      %3393 = vrot.lane.b32.xlu0 %v3313, 24
      %v3394 = vpop.permute.xlu0 %3393
      %3395 = vrot.lane.b32.xlu0 %v3314, 24
      %v3396 = vpop.permute.xlu0 %3395
      %3397 = vrot.lane.b32.xlu0 %v3315, 24
      %v3398 = vpop.permute.xlu0 %3397
      %3399 = vrot.lane.b32.xlu0 %v3316, 24
      %v3400 = vpop.permute.xlu0 %3399
      %3401 = vrot.lane.b32.xlu0 %v3317, 24
      %v3402 = vpop.permute.xlu0 %3401
      %3403 = vrot.lane.b32.xlu0 %v3318, 24
      %v3404 = vpop.permute.xlu0 %3403
      %3405 = vrot.lane.b32.xlu0 %v3319, 24
      %v3406 = vpop.permute.xlu0 %3405
      %3407 = vrot.lane.b32.xlu0 %v3320, 24
      %v3408 = vpop.permute.xlu0 %3407
      %3409 = vrot.lane.b32.xlu0 %v3321, 24
      %v3410 = vpop.permute.xlu0 %3409
      %3411 = vrot.lane.b32.xlu0 %v3322, 24
      %v3412 = vpop.permute.xlu0 %3411
      %3413 = vrot.lane.b32.xlu0 %v3323, 24
      %v3414 = vpop.permute.xlu0 %3413
      %3415 = vrot.lane.b32.xlu0 %v3324, 24
      %v3416 = vpop.permute.xlu0 %3415
      %3417 = vrot.lane.b32.xlu0 %v3325, 24
      %v3418 = vpop.permute.xlu0 %3417
      %3419 = vrot.lane.b32.xlu0 %v3326, 24
      %v3420 = vpop.permute.xlu0 %3419
      %3421 = vrot.lane.b32.xlu0 %v3327, 24
      %v3422 = vpop.permute.xlu0 %3421
      %3423 = vrot.lane.b32.xlu0 %v3328, 24
      %v3424 = vpop.permute.xlu0 %3423
      %vm3457 = vcmask 257216
      %3458 = vst.msk [vmem:[#allocation5] sm:$0xf] %vm3457, %v3362
      %3459 = vst.msk [vmem:[#allocation5 + $0x4] sm:$0xf] %vm3457, %v3364
      %3460 = vst.msk [vmem:[#allocation5 + $0x8] sm:$0xf] %vm3457, %v3366
      %3461 = vst.msk [vmem:[#allocation5 + $0xc] sm:$0xf] %vm3457, %v3368
      %3462 = vst.msk [vmem:[#allocation5 + $0x10] sm:$0xf] %vm3457, %v3370
      %3463 = vst.msk [vmem:[#allocation5 + $0x14] sm:$0xf] %vm3457, %v3372
      %3464 = vst.msk [vmem:[#allocation5 + $0x18] sm:$0xf] %vm3457, %v3374
      %3465 = vst.msk [vmem:[#allocation5 + $0x1c] sm:$0xf] %vm3457, %v3376
      %3466 = vst.msk [vmem:[#allocation5 + $0x20] sm:$0xf] %vm3457, %v3378
      %3467 = vst.msk [vmem:[#allocation5 + $0x24] sm:$0xf] %vm3457, %v3380
      %3468 = vst.msk [vmem:[#allocation5 + $0x28] sm:$0xf] %vm3457, %v3382
      %3469 = vst.msk [vmem:[#allocation5 + $0x2c] sm:$0xf] %vm3457, %v3384
      %3470 = vst.msk [vmem:[#allocation5 + $0x30] sm:$0xf] %vm3457, %v3386
      %3471 = vst.msk [vmem:[#allocation5 + $0x34] sm:$0xf] %vm3457, %v3388
      %3472 = vst.msk [vmem:[#allocation5 + $0x38] sm:$0xf] %vm3457, %v3390
      %3473 = vst.msk [vmem:[#allocation5 + $0x3c] sm:$0xf] %vm3457, %v3392
      %3474 = vst.msk [vmem:[#allocation5 + $0x40] sm:$0xf] %vm3457, %v3394
      %3475 = vst.msk [vmem:[#allocation5 + $0x44] sm:$0xf] %vm3457, %v3396
      %3476 = vst.msk [vmem:[#allocation5 + $0x48] sm:$0xf] %vm3457, %v3398
      %3477 = vst.msk [vmem:[#allocation5 + $0x4c] sm:$0xf] %vm3457, %v3400
      %3478 = vst.msk [vmem:[#allocation5 + $0x50] sm:$0xf] %vm3457, %v3402
      %3479 = vst.msk [vmem:[#allocation5 + $0x54] sm:$0xf] %vm3457, %v3404
      %3480 = vst.msk [vmem:[#allocation5 + $0x58] sm:$0xf] %vm3457, %v3406
      %3481 = vst.msk [vmem:[#allocation5 + $0x5c] sm:$0xf] %vm3457, %v3408
      %3482 = vst.msk [vmem:[#allocation5 + $0x60] sm:$0xf] %vm3457, %v3410
      %3483 = vst.msk [vmem:[#allocation5 + $0x64] sm:$0xf] %vm3457, %v3412
      %3484 = vst.msk [vmem:[#allocation5 + $0x68] sm:$0xf] %vm3457, %v3414
      %3485 = vst.msk [vmem:[#allocation5 + $0x6c] sm:$0xf] %vm3457, %v3416
      %3486 = vst.msk [vmem:[#allocation5 + $0x70] sm:$0xf] %vm3457, %v3418
      %3487 = vst.msk [vmem:[#allocation5 + $0x74] sm:$0xf] %vm3457, %v3420
      %3488 = vst.msk [vmem:[#allocation5 + $0x78] sm:$0xf] %vm3457, %v3422
      %3489 = vst.msk [vmem:[#allocation5 + $0x7c] sm:$0xf] %vm3457, %v3424
      %v3490 = vld [vmem:[%s2685 + $0x1] sm:$0xff]
      %v3491 = vld [vmem:[%s2685 + $0x9] sm:$0xff]
      %v3492 = vld [vmem:[%s2685 + $0x19] sm:$0xff]
      %v3493 = vld [vmem:[%s2685 + $0x21] sm:$0xff]
      %v3494 = vld [vmem:[%s2685 + $0x31] sm:$0xff]
      %v3495 = vld [vmem:[%s2685 + $0x39] sm:$0xff]
      %v3496 = vld [vmem:[%s2685 + $0x49] sm:$0xff]
      %v3497 = vld [vmem:[%s2685 + $0x51] sm:$0xff]
      %v3498 = vld [vmem:[%s2685 + $0x61] sm:$0xff]
      %v3499 = vld [vmem:[%s2685 + $0x69] sm:$0xff]
      %v3500 = vld [vmem:[%s2685 + $0x79] sm:$0xff]
      %v3501 = vld [vmem:[%s2685 + $0x81] sm:$0xff]
      %v3502 = vld [vmem:[%s2685 + $0x91] sm:$0xff]
      %v3503 = vld [vmem:[%s2685 + $0x99] sm:$0xff]
      %v3504 = vld [vmem:[%s2685 + $0xa9] sm:$0xff]
      %v3505 = vld [vmem:[%s2685 + $0xb1] sm:$0xff]
      %v3506 = vld [vmem:[%s2685 + $0xc1] sm:$0xff]
      %v3507 = vld [vmem:[%s2685 + $0xc9] sm:$0xff]
      %v3508 = vld [vmem:[%s2685 + $0xd9] sm:$0xff]
      %v3509 = vld [vmem:[%s2685 + $0xe1] sm:$0xff]
      %v3510 = vld [vmem:[%s2685 + $0xf1] sm:$0xff]
      %v3511 = vld [vmem:[%s2685 + $0xf9] sm:$0xff]
      %v3512 = vld [vmem:[%s2685 + $0x109] sm:$0xff]
      %v3513 = vld [vmem:[%s2685 + $0x111] sm:$0xff]
      %v3514 = vld [vmem:[%s2685 + $0x121] sm:$0xff]
      %v3515 = vld [vmem:[%s2685 + $0x129] sm:$0xff]
      %v3516 = vld [vmem:[%s2685 + $0x139] sm:$0xff]
      %v3517 = vld [vmem:[%s2685 + $0x141] sm:$0xff]
      %v3518 = vld [vmem:[%s2685 + $0x151] sm:$0xff]
      %v3519 = vld [vmem:[%s2685 + $0x159] sm:$0xff]
      %v3520 = vld [vmem:[%s2685 + $0x169] sm:$0xff]
      %v3521 = vld [vmem:[%s2685 + $0x171] sm:$0xff]
      %v3522 = vpack.c.bf16 %v3490, %v3490
      %v3523 = vpack.c.bf16 %v3491, %v3491
      %v3524 = vpack.c.bf16 %v3492, %v3492
      %v3525 = vpack.c.bf16 %v3493, %v3493
      %v3526 = vpack.c.bf16 %v3494, %v3494
      %v3527 = vpack.c.bf16 %v3495, %v3495
      %v3528 = vpack.c.bf16 %v3496, %v3496
      %v3529 = vpack.c.bf16 %v3497, %v3497
      %v3530 = vpack.c.bf16 %v3498, %v3498
      %v3531 = vpack.c.bf16 %v3499, %v3499
      %v3532 = vpack.c.bf16 %v3500, %v3500
      %v3533 = vpack.c.bf16 %v3501, %v3501
      %v3534 = vpack.c.bf16 %v3502, %v3502
      %v3535 = vpack.c.bf16 %v3503, %v3503
      %v3536 = vpack.c.bf16 %v3504, %v3504
      %v3537 = vpack.c.bf16 %v3505, %v3505
      %v3538 = vpack.c.bf16 %v3506, %v3506
      %v3539 = vpack.c.bf16 %v3507, %v3507
      %v3540 = vpack.c.bf16 %v3508, %v3508
      %v3541 = vpack.c.bf16 %v3509, %v3509
      %v3542 = vpack.c.bf16 %v3510, %v3510
      %v3543 = vpack.c.bf16 %v3511, %v3511
      %v3544 = vpack.c.bf16 %v3512, %v3512
      %v3545 = vpack.c.bf16 %v3513, %v3513
      %v3546 = vpack.c.bf16 %v3514, %v3514
      %v3547 = vpack.c.bf16 %v3515, %v3515
      %v3548 = vpack.c.bf16 %v3516, %v3516
      %v3549 = vpack.c.bf16 %v3517, %v3517
      %v3550 = vpack.c.bf16 %v3518, %v3518
      %v3551 = vpack.c.bf16 %v3519, %v3519
      %v3552 = vpack.c.bf16 %v3520, %v3520
      %v3553 = vpack.c.bf16 %v3521, %v3521
      %3586 = vrot.lane.b32.xlu0 %v3522, 32
      %v3587 = vpop.permute.xlu0 %3586
      %3588 = vrot.lane.b32.xlu0 %v3523, 32
      %v3589 = vpop.permute.xlu0 %3588
      %3590 = vrot.lane.b32.xlu0 %v3524, 32
      %v3591 = vpop.permute.xlu0 %3590
      %3592 = vrot.lane.b32.xlu0 %v3525, 32
      %v3593 = vpop.permute.xlu0 %3592
      %3594 = vrot.lane.b32.xlu0 %v3526, 32
      %v3595 = vpop.permute.xlu0 %3594
      %3596 = vrot.lane.b32.xlu0 %v3527, 32
      %v3597 = vpop.permute.xlu0 %3596
      %3598 = vrot.lane.b32.xlu0 %v3528, 32
      %v3599 = vpop.permute.xlu0 %3598
      %3600 = vrot.lane.b32.xlu0 %v3529, 32
      %v3601 = vpop.permute.xlu0 %3600
      %3602 = vrot.lane.b32.xlu0 %v3530, 32
      %v3603 = vpop.permute.xlu0 %3602
      %3604 = vrot.lane.b32.xlu0 %v3531, 32
      %v3605 = vpop.permute.xlu0 %3604
      %3606 = vrot.lane.b32.xlu0 %v3532, 32
      %v3607 = vpop.permute.xlu0 %3606
      %3608 = vrot.lane.b32.xlu0 %v3533, 32
      %v3609 = vpop.permute.xlu0 %3608
      %3610 = vrot.lane.b32.xlu0 %v3534, 32
      %v3611 = vpop.permute.xlu0 %3610
      %3612 = vrot.lane.b32.xlu0 %v3535, 32
      %v3613 = vpop.permute.xlu0 %3612
      %3614 = vrot.lane.b32.xlu0 %v3536, 32
      %v3615 = vpop.permute.xlu0 %3614
      %3616 = vrot.lane.b32.xlu0 %v3537, 32
      %v3617 = vpop.permute.xlu0 %3616
      %3618 = vrot.lane.b32.xlu0 %v3538, 32
      %v3619 = vpop.permute.xlu0 %3618
      %3620 = vrot.lane.b32.xlu0 %v3539, 32
      %v3621 = vpop.permute.xlu0 %3620
      %3622 = vrot.lane.b32.xlu0 %v3540, 32
      %v3623 = vpop.permute.xlu0 %3622
      %3624 = vrot.lane.b32.xlu0 %v3541, 32
      %v3625 = vpop.permute.xlu0 %3624
      %3626 = vrot.lane.b32.xlu0 %v3542, 32
      %v3627 = vpop.permute.xlu0 %3626
      %3628 = vrot.lane.b32.xlu0 %v3543, 32
      %v3629 = vpop.permute.xlu0 %3628
      %3630 = vrot.lane.b32.xlu0 %v3544, 32
      %v3631 = vpop.permute.xlu0 %3630
      %3632 = vrot.lane.b32.xlu0 %v3545, 32
      %v3633 = vpop.permute.xlu0 %3632
      %3634 = vrot.lane.b32.xlu0 %v3546, 32
      %v3635 = vpop.permute.xlu0 %3634
      %3636 = vrot.lane.b32.xlu0 %v3547, 32
      %v3637 = vpop.permute.xlu0 %3636
      %3638 = vrot.lane.b32.xlu0 %v3548, 32
      %v3639 = vpop.permute.xlu0 %3638
      %3640 = vrot.lane.b32.xlu0 %v3549, 32
      %v3641 = vpop.permute.xlu0 %3640
      %3642 = vrot.lane.b32.xlu0 %v3550, 32
      %v3643 = vpop.permute.xlu0 %3642
      %3644 = vrot.lane.b32.xlu0 %v3551, 32
      %v3645 = vpop.permute.xlu0 %3644
      %3646 = vrot.lane.b32.xlu0 %v3552, 32
      %v3647 = vpop.permute.xlu0 %3646
      %3648 = vrot.lane.b32.xlu0 %v3553, 32
      %v3649 = vpop.permute.xlu0 %3648
      %vm3682 = vcmask 322816
      %3683 = vst.msk [vmem:[#allocation5] sm:$0xf] %vm3682, %v3587
      %3684 = vst.msk [vmem:[#allocation5 + $0x4] sm:$0xf] %vm3682, %v3589
      %3685 = vst.msk [vmem:[#allocation5 + $0x8] sm:$0xf] %vm3682, %v3591
      %3686 = vst.msk [vmem:[#allocation5 + $0xc] sm:$0xf] %vm3682, %v3593
      %3687 = vst.msk [vmem:[#allocation5 + $0x10] sm:$0xf] %vm3682, %v3595
      %3688 = vst.msk [vmem:[#allocation5 + $0x14] sm:$0xf] %vm3682, %v3597
      %3689 = vst.msk [vmem:[#allocation5 + $0x18] sm:$0xf] %vm3682, %v3599
      %3690 = vst.msk [vmem:[#allocation5 + $0x1c] sm:$0xf] %vm3682, %v3601
      %3691 = vst.msk [vmem:[#allocation5 + $0x20] sm:$0xf] %vm3682, %v3603
      %3692 = vst.msk [vmem:[#allocation5 + $0x24] sm:$0xf] %vm3682, %v3605
      %3693 = vst.msk [vmem:[#allocation5 + $0x28] sm:$0xf] %vm3682, %v3607
      %3694 = vst.msk [vmem:[#allocation5 + $0x2c] sm:$0xf] %vm3682, %v3609
      %3695 = vst.msk [vmem:[#allocation5 + $0x30] sm:$0xf] %vm3682, %v3611
      %3696 = vst.msk [vmem:[#allocation5 + $0x34] sm:$0xf] %vm3682, %v3613
      %3697 = vst.msk [vmem:[#allocation5 + $0x38] sm:$0xf] %vm3682, %v3615
      %3698 = vst.msk [vmem:[#allocation5 + $0x3c] sm:$0xf] %vm3682, %v3617
      %3699 = vst.msk [vmem:[#allocation5 + $0x40] sm:$0xf] %vm3682, %v3619
      %3700 = vst.msk [vmem:[#allocation5 + $0x44] sm:$0xf] %vm3682, %v3621
      %3701 = vst.msk [vmem:[#allocation5 + $0x48] sm:$0xf] %vm3682, %v3623
      %3702 = vst.msk [vmem:[#allocation5 + $0x4c] sm:$0xf] %vm3682, %v3625
      %3703 = vst.msk [vmem:[#allocation5 + $0x50] sm:$0xf] %vm3682, %v3627
      %3704 = vst.msk [vmem:[#allocation5 + $0x54] sm:$0xf] %vm3682, %v3629
      %3705 = vst.msk [vmem:[#allocation5 + $0x58] sm:$0xf] %vm3682, %v3631
      %3706 = vst.msk [vmem:[#allocation5 + $0x5c] sm:$0xf] %vm3682, %v3633
      %3707 = vst.msk [vmem:[#allocation5 + $0x60] sm:$0xf] %vm3682, %v3635
      %3708 = vst.msk [vmem:[#allocation5 + $0x64] sm:$0xf] %vm3682, %v3637
      %3709 = vst.msk [vmem:[#allocation5 + $0x68] sm:$0xf] %vm3682, %v3639
      %3710 = vst.msk [vmem:[#allocation5 + $0x6c] sm:$0xf] %vm3682, %v3641
      %3711 = vst.msk [vmem:[#allocation5 + $0x70] sm:$0xf] %vm3682, %v3643
      %3712 = vst.msk [vmem:[#allocation5 + $0x74] sm:$0xf] %vm3682, %v3645
      %3713 = vst.msk [vmem:[#allocation5 + $0x78] sm:$0xf] %vm3682, %v3647
      %3714 = vst.msk [vmem:[#allocation5 + $0x7c] sm:$0xf] %vm3682, %v3649
      %v3715 = vld [vmem:[%s2685 + $0x2] sm:$0xff]
      %v3716 = vld [vmem:[%s2685 + $0xa] sm:$0xff]
      %v3717 = vld [vmem:[%s2685 + $0x1a] sm:$0xff]
      %v3718 = vld [vmem:[%s2685 + $0x22] sm:$0xff]
      %v3719 = vld [vmem:[%s2685 + $0x32] sm:$0xff]
      %v3720 = vld [vmem:[%s2685 + $0x3a] sm:$0xff]
      %v3721 = vld [vmem:[%s2685 + $0x4a] sm:$0xff]
      %v3722 = vld [vmem:[%s2685 + $0x52] sm:$0xff]
      %v3723 = vld [vmem:[%s2685 + $0x62] sm:$0xff]
      %v3724 = vld [vmem:[%s2685 + $0x6a] sm:$0xff]
      %v3725 = vld [vmem:[%s2685 + $0x7a] sm:$0xff]
      %v3726 = vld [vmem:[%s2685 + $0x82] sm:$0xff]
      %v3727 = vld [vmem:[%s2685 + $0x92] sm:$0xff]
      %v3728 = vld [vmem:[%s2685 + $0x9a] sm:$0xff]
      %v3729 = vld [vmem:[%s2685 + $0xaa] sm:$0xff]
      %v3730 = vld [vmem:[%s2685 + $0xb2] sm:$0xff]
      %v3731 = vld [vmem:[%s2685 + $0xc2] sm:$0xff]
      %v3732 = vld [vmem:[%s2685 + $0xca] sm:$0xff]
      %v3733 = vld [vmem:[%s2685 + $0xda] sm:$0xff]
      %v3734 = vld [vmem:[%s2685 + $0xe2] sm:$0xff]
      %v3735 = vld [vmem:[%s2685 + $0xf2] sm:$0xff]
      %v3736 = vld [vmem:[%s2685 + $0xfa] sm:$0xff]
      %v3737 = vld [vmem:[%s2685 + $0x10a] sm:$0xff]
      %v3738 = vld [vmem:[%s2685 + $0x112] sm:$0xff]
      %v3739 = vld [vmem:[%s2685 + $0x122] sm:$0xff]
      %v3740 = vld [vmem:[%s2685 + $0x12a] sm:$0xff]
      %v3741 = vld [vmem:[%s2685 + $0x13a] sm:$0xff]
      %v3742 = vld [vmem:[%s2685 + $0x142] sm:$0xff]
      %v3743 = vld [vmem:[%s2685 + $0x152] sm:$0xff]
      %v3744 = vld [vmem:[%s2685 + $0x15a] sm:$0xff]
      %v3745 = vld [vmem:[%s2685 + $0x16a] sm:$0xff]
      %v3746 = vld [vmem:[%s2685 + $0x172] sm:$0xff]
      %v3747 = vpack.c.bf16 %v3715, %v3715
      %v3748 = vpack.c.bf16 %v3716, %v3716
      %v3749 = vpack.c.bf16 %v3717, %v3717
      %v3750 = vpack.c.bf16 %v3718, %v3718
      %v3751 = vpack.c.bf16 %v3719, %v3719
      %v3752 = vpack.c.bf16 %v3720, %v3720
      %v3753 = vpack.c.bf16 %v3721, %v3721
      %v3754 = vpack.c.bf16 %v3722, %v3722
      %v3755 = vpack.c.bf16 %v3723, %v3723
      %v3756 = vpack.c.bf16 %v3724, %v3724
      %v3757 = vpack.c.bf16 %v3725, %v3725
      %v3758 = vpack.c.bf16 %v3726, %v3726
      %v3759 = vpack.c.bf16 %v3727, %v3727
      %v3760 = vpack.c.bf16 %v3728, %v3728
      %v3761 = vpack.c.bf16 %v3729, %v3729
      %v3762 = vpack.c.bf16 %v3730, %v3730
      %v3763 = vpack.c.bf16 %v3731, %v3731
      %v3764 = vpack.c.bf16 %v3732, %v3732
      %v3765 = vpack.c.bf16 %v3733, %v3733
      %v3766 = vpack.c.bf16 %v3734, %v3734
      %v3767 = vpack.c.bf16 %v3735, %v3735
      %v3768 = vpack.c.bf16 %v3736, %v3736
      %v3769 = vpack.c.bf16 %v3737, %v3737
      %v3770 = vpack.c.bf16 %v3738, %v3738
      %v3771 = vpack.c.bf16 %v3739, %v3739
      %v3772 = vpack.c.bf16 %v3740, %v3740
      %v3773 = vpack.c.bf16 %v3741, %v3741
      %v3774 = vpack.c.bf16 %v3742, %v3742
      %v3775 = vpack.c.bf16 %v3743, %v3743
      %v3776 = vpack.c.bf16 %v3744, %v3744
      %v3777 = vpack.c.bf16 %v3745, %v3745
      %v3778 = vpack.c.bf16 %v3746, %v3746
      %3811 = vrot.lane.b32.xlu0 %v3747, 40
      %v3812 = vpop.permute.xlu0 %3811
      %3813 = vrot.lane.b32.xlu0 %v3748, 40
      %v3814 = vpop.permute.xlu0 %3813
      %3815 = vrot.lane.b32.xlu0 %v3749, 40
      %v3816 = vpop.permute.xlu0 %3815
      %3817 = vrot.lane.b32.xlu0 %v3750, 40
      %v3818 = vpop.permute.xlu0 %3817
      %3819 = vrot.lane.b32.xlu0 %v3751, 40
      %v3820 = vpop.permute.xlu0 %3819
      %3821 = vrot.lane.b32.xlu0 %v3752, 40
      %v3822 = vpop.permute.xlu0 %3821
      %3823 = vrot.lane.b32.xlu0 %v3753, 40
      %v3824 = vpop.permute.xlu0 %3823
      %3825 = vrot.lane.b32.xlu0 %v3754, 40
      %v3826 = vpop.permute.xlu0 %3825
      %3827 = vrot.lane.b32.xlu0 %v3755, 40
      %v3828 = vpop.permute.xlu0 %3827
      %3829 = vrot.lane.b32.xlu0 %v3756, 40
      %v3830 = vpop.permute.xlu0 %3829
      %3831 = vrot.lane.b32.xlu0 %v3757, 40
      %v3832 = vpop.permute.xlu0 %3831
      %3833 = vrot.lane.b32.xlu0 %v3758, 40
      %v3834 = vpop.permute.xlu0 %3833
      %3835 = vrot.lane.b32.xlu0 %v3759, 40
      %v3836 = vpop.permute.xlu0 %3835
      %3837 = vrot.lane.b32.xlu0 %v3760, 40
      %v3838 = vpop.permute.xlu0 %3837
      %3839 = vrot.lane.b32.xlu0 %v3761, 40
      %v3840 = vpop.permute.xlu0 %3839
      %3841 = vrot.lane.b32.xlu0 %v3762, 40
      %v3842 = vpop.permute.xlu0 %3841
      %3843 = vrot.lane.b32.xlu0 %v3763, 40
      %v3844 = vpop.permute.xlu0 %3843
      %3845 = vrot.lane.b32.xlu0 %v3764, 40
      %v3846 = vpop.permute.xlu0 %3845
      %3847 = vrot.lane.b32.xlu0 %v3765, 40
      %v3848 = vpop.permute.xlu0 %3847
      %3849 = vrot.lane.b32.xlu0 %v3766, 40
      %v3850 = vpop.permute.xlu0 %3849
      %3851 = vrot.lane.b32.xlu0 %v3767, 40
      %v3852 = vpop.permute.xlu0 %3851
      %3853 = vrot.lane.b32.xlu0 %v3768, 40
      %v3854 = vpop.permute.xlu0 %3853
      %3855 = vrot.lane.b32.xlu0 %v3769, 40
      %v3856 = vpop.permute.xlu0 %3855
      %3857 = vrot.lane.b32.xlu0 %v3770, 40
      %v3858 = vpop.permute.xlu0 %3857
      %3859 = vrot.lane.b32.xlu0 %v3771, 40
      %v3860 = vpop.permute.xlu0 %3859
      %3861 = vrot.lane.b32.xlu0 %v3772, 40
      %v3862 = vpop.permute.xlu0 %3861
      %3863 = vrot.lane.b32.xlu0 %v3773, 40
      %v3864 = vpop.permute.xlu0 %3863
      %3865 = vrot.lane.b32.xlu0 %v3774, 40
      %v3866 = vpop.permute.xlu0 %3865
      %3867 = vrot.lane.b32.xlu0 %v3775, 40
      %v3868 = vpop.permute.xlu0 %3867
      %3869 = vrot.lane.b32.xlu0 %v3776, 40
      %v3870 = vpop.permute.xlu0 %3869
      %3871 = vrot.lane.b32.xlu0 %v3777, 40
      %v3872 = vpop.permute.xlu0 %3871
      %3873 = vrot.lane.b32.xlu0 %v3778, 40
      %v3874 = vpop.permute.xlu0 %3873
      %vm3907 = vcmask 388416
      %3908 = vst.msk [vmem:[#allocation5] sm:$0xf] %vm3907, %v3812
      %3909 = vst.msk [vmem:[#allocation5 + $0x4] sm:$0xf] %vm3907, %v3814
      %3910 = vst.msk [vmem:[#allocation5 + $0x8] sm:$0xf] %vm3907, %v3816
      %3911 = vst.msk [vmem:[#allocation5 + $0xc] sm:$0xf] %vm3907, %v3818
      %3912 = vst.msk [vmem:[#allocation5 + $0x10] sm:$0xf] %vm3907, %v3820
      %3913 = vst.msk [vmem:[#allocation5 + $0x14] sm:$0xf] %vm3907, %v3822
      %3914 = vst.msk [vmem:[#allocation5 + $0x18] sm:$0xf] %vm3907, %v3824
      %3915 = vst.msk [vmem:[#allocation5 + $0x1c] sm:$0xf] %vm3907, %v3826
      %3916 = vst.msk [vmem:[#allocation5 + $0x20] sm:$0xf] %vm3907, %v3828
      %3917 = vst.msk [vmem:[#allocation5 + $0x24] sm:$0xf] %vm3907, %v3830
      %3918 = vst.msk [vmem:[#allocation5 + $0x28] sm:$0xf] %vm3907, %v3832
      %3919 = vst.msk [vmem:[#allocation5 + $0x2c] sm:$0xf] %vm3907, %v3834
      %3920 = vst.msk [vmem:[#allocation5 + $0x30] sm:$0xf] %vm3907, %v3836
      %3921 = vst.msk [vmem:[#allocation5 + $0x34] sm:$0xf] %vm3907, %v3838
      %3922 = vst.msk [vmem:[#allocation5 + $0x38] sm:$0xf] %vm3907, %v3840
      %3923 = vst.msk [vmem:[#allocation5 + $0x3c] sm:$0xf] %vm3907, %v3842
      %3924 = vst.msk [vmem:[#allocation5 + $0x40] sm:$0xf] %vm3907, %v3844
      %3925 = vst.msk [vmem:[#allocation5 + $0x44] sm:$0xf] %vm3907, %v3846
      %3926 = vst.msk [vmem:[#allocation5 + $0x48] sm:$0xf] %vm3907, %v3848
      %3927 = vst.msk [vmem:[#allocation5 + $0x4c] sm:$0xf] %vm3907, %v3850
      %3928 = vst.msk [vmem:[#allocation5 + $0x50] sm:$0xf] %vm3907, %v3852
      %3929 = vst.msk [vmem:[#allocation5 + $0x54] sm:$0xf] %vm3907, %v3854
      %3930 = vst.msk [vmem:[#allocation5 + $0x58] sm:$0xf] %vm3907, %v3856
      %3931 = vst.msk [vmem:[#allocation5 + $0x5c] sm:$0xf] %vm3907, %v3858
      %3932 = vst.msk [vmem:[#allocation5 + $0x60] sm:$0xf] %vm3907, %v3860
      %3933 = vst.msk [vmem:[#allocation5 + $0x64] sm:$0xf] %vm3907, %v3862
      %3934 = vst.msk [vmem:[#allocation5 + $0x68] sm:$0xf] %vm3907, %v3864
      %3935 = vst.msk [vmem:[#allocation5 + $0x6c] sm:$0xf] %vm3907, %v3866
      %3936 = vst.msk [vmem:[#allocation5 + $0x70] sm:$0xf] %vm3907, %v3868
      %3937 = vst.msk [vmem:[#allocation5 + $0x74] sm:$0xf] %vm3907, %v3870
      %3938 = vst.msk [vmem:[#allocation5 + $0x78] sm:$0xf] %vm3907, %v3872
      %3939 = vst.msk [vmem:[#allocation5 + $0x7c] sm:$0xf] %vm3907, %v3874
      %s3940 = scalar_lea.vmem [#allocation3], 48
      %v3941 = vld [vmem:[%s3940] sm:$0xff]
      %v3942 = vld [vmem:[%s3940 + $0x8] sm:$0xff]
      %v3943 = vld [vmem:[%s3940 + $0x18] sm:$0xff]
      %v3944 = vld [vmem:[%s3940 + $0x20] sm:$0xff]
      %v3945 = vld [vmem:[%s3940 + $0x30] sm:$0xff]
      %v3946 = vld [vmem:[%s3940 + $0x38] sm:$0xff]
      %v3947 = vld [vmem:[%s3940 + $0x48] sm:$0xff]
      %v3948 = vld [vmem:[%s3940 + $0x50] sm:$0xff]
      %v3949 = vld [vmem:[%s3940 + $0x60] sm:$0xff]
      %v3950 = vld [vmem:[%s3940 + $0x68] sm:$0xff]
      %v3951 = vld [vmem:[%s3940 + $0x78] sm:$0xff]
      %v3952 = vld [vmem:[%s3940 + $0x80] sm:$0xff]
      %v3953 = vld [vmem:[%s3940 + $0x90] sm:$0xff]
      %v3954 = vld [vmem:[%s3940 + $0x98] sm:$0xff]
      %v3955 = vld [vmem:[%s3940 + $0xa8] sm:$0xff]
      %v3956 = vld [vmem:[%s3940 + $0xb0] sm:$0xff]
      %v3957 = vld [vmem:[%s3940 + $0xc0] sm:$0xff]
      %v3958 = vld [vmem:[%s3940 + $0xc8] sm:$0xff]
      %v3959 = vld [vmem:[%s3940 + $0xd8] sm:$0xff]
      %v3960 = vld [vmem:[%s3940 + $0xe0] sm:$0xff]
      %v3961 = vld [vmem:[%s3940 + $0xf0] sm:$0xff]
      %v3962 = vld [vmem:[%s3940 + $0xf8] sm:$0xff]
      %v3963 = vld [vmem:[%s3940 + $0x108] sm:$0xff]
      %v3964 = vld [vmem:[%s3940 + $0x110] sm:$0xff]
      %v3965 = vld [vmem:[%s3940 + $0x120] sm:$0xff]
      %v3966 = vld [vmem:[%s3940 + $0x128] sm:$0xff]
      %v3967 = vld [vmem:[%s3940 + $0x138] sm:$0xff]
      %v3968 = vld [vmem:[%s3940 + $0x140] sm:$0xff]
      %v3969 = vld [vmem:[%s3940 + $0x150] sm:$0xff]
      %v3970 = vld [vmem:[%s3940 + $0x158] sm:$0xff]
      %v3971 = vld [vmem:[%s3940 + $0x168] sm:$0xff]
      %v3972 = vld [vmem:[%s3940 + $0x170] sm:$0xff]
      %v3973 = vpack.c.bf16 %v3941, %v3941
      %v3974 = vpack.c.bf16 %v3942, %v3942
      %v3975 = vpack.c.bf16 %v3943, %v3943
      %v3976 = vpack.c.bf16 %v3944, %v3944
      %v3977 = vpack.c.bf16 %v3945, %v3945
      %v3978 = vpack.c.bf16 %v3946, %v3946
      %v3979 = vpack.c.bf16 %v3947, %v3947
      %v3980 = vpack.c.bf16 %v3948, %v3948
      %v3981 = vpack.c.bf16 %v3949, %v3949
      %v3982 = vpack.c.bf16 %v3950, %v3950
      %v3983 = vpack.c.bf16 %v3951, %v3951
      %v3984 = vpack.c.bf16 %v3952, %v3952
      %v3985 = vpack.c.bf16 %v3953, %v3953
      %v3986 = vpack.c.bf16 %v3954, %v3954
      %v3987 = vpack.c.bf16 %v3955, %v3955
      %v3988 = vpack.c.bf16 %v3956, %v3956
      %v3989 = vpack.c.bf16 %v3957, %v3957
      %v3990 = vpack.c.bf16 %v3958, %v3958
      %v3991 = vpack.c.bf16 %v3959, %v3959
      %v3992 = vpack.c.bf16 %v3960, %v3960
      %v3993 = vpack.c.bf16 %v3961, %v3961
      %v3994 = vpack.c.bf16 %v3962, %v3962
      %v3995 = vpack.c.bf16 %v3963, %v3963
      %v3996 = vpack.c.bf16 %v3964, %v3964
      %v3997 = vpack.c.bf16 %v3965, %v3965
      %v3998 = vpack.c.bf16 %v3966, %v3966
      %v3999 = vpack.c.bf16 %v3967, %v3967
      %v4000 = vpack.c.bf16 %v3968, %v3968
      %v4001 = vpack.c.bf16 %v3969, %v3969
      %v4002 = vpack.c.bf16 %v3970, %v3970
      %v4003 = vpack.c.bf16 %v3971, %v3971
      %v4004 = vpack.c.bf16 %v3972, %v3972
      %4037 = vrot.lane.b32.xlu0 %v3973, 48
      %v4038 = vpop.permute.xlu0 %4037
      %4039 = vrot.lane.b32.xlu0 %v3974, 48
      %v4040 = vpop.permute.xlu0 %4039
      %4041 = vrot.lane.b32.xlu0 %v3975, 48
      %v4042 = vpop.permute.xlu0 %4041
      %4043 = vrot.lane.b32.xlu0 %v3976, 48
      %v4044 = vpop.permute.xlu0 %4043
      %4045 = vrot.lane.b32.xlu0 %v3977, 48
      %v4046 = vpop.permute.xlu0 %4045
      %4047 = vrot.lane.b32.xlu0 %v3978, 48
      %v4048 = vpop.permute.xlu0 %4047
      %4049 = vrot.lane.b32.xlu0 %v3979, 48
      %v4050 = vpop.permute.xlu0 %4049
      %4051 = vrot.lane.b32.xlu0 %v3980, 48
      %v4052 = vpop.permute.xlu0 %4051
      %4053 = vrot.lane.b32.xlu0 %v3981, 48
      %v4054 = vpop.permute.xlu0 %4053
      %4055 = vrot.lane.b32.xlu0 %v3982, 48
      %v4056 = vpop.permute.xlu0 %4055
      %4057 = vrot.lane.b32.xlu0 %v3983, 48
      %v4058 = vpop.permute.xlu0 %4057
      %4059 = vrot.lane.b32.xlu0 %v3984, 48
      %v4060 = vpop.permute.xlu0 %4059
      %4061 = vrot.lane.b32.xlu0 %v3985, 48
      %v4062 = vpop.permute.xlu0 %4061
      %4063 = vrot.lane.b32.xlu0 %v3986, 48
      %v4064 = vpop.permute.xlu0 %4063
      %4065 = vrot.lane.b32.xlu0 %v3987, 48
      %v4066 = vpop.permute.xlu0 %4065
      %4067 = vrot.lane.b32.xlu0 %v3988, 48
      %v4068 = vpop.permute.xlu0 %4067
      %4069 = vrot.lane.b32.xlu0 %v3989, 48
      %v4070 = vpop.permute.xlu0 %4069
      %4071 = vrot.lane.b32.xlu0 %v3990, 48
      %v4072 = vpop.permute.xlu0 %4071
      %4073 = vrot.lane.b32.xlu0 %v3991, 48
      %v4074 = vpop.permute.xlu0 %4073
      %4075 = vrot.lane.b32.xlu0 %v3992, 48
      %v4076 = vpop.permute.xlu0 %4075
      %4077 = vrot.lane.b32.xlu0 %v3993, 48
      %v4078 = vpop.permute.xlu0 %4077
      %4079 = vrot.lane.b32.xlu0 %v3994, 48
      %v4080 = vpop.permute.xlu0 %4079
      %4081 = vrot.lane.b32.xlu0 %v3995, 48
      %v4082 = vpop.permute.xlu0 %4081
      %4083 = vrot.lane.b32.xlu0 %v3996, 48
      %v4084 = vpop.permute.xlu0 %4083
      %4085 = vrot.lane.b32.xlu0 %v3997, 48
      %v4086 = vpop.permute.xlu0 %4085
      %4087 = vrot.lane.b32.xlu0 %v3998, 48
      %v4088 = vpop.permute.xlu0 %4087
      %4089 = vrot.lane.b32.xlu0 %v3999, 48
      %v4090 = vpop.permute.xlu0 %4089
      %4091 = vrot.lane.b32.xlu0 %v4000, 48
      %v4092 = vpop.permute.xlu0 %4091
      %4093 = vrot.lane.b32.xlu0 %v4001, 48
      %v4094 = vpop.permute.xlu0 %4093
      %4095 = vrot.lane.b32.xlu0 %v4002, 48
      %v4096 = vpop.permute.xlu0 %4095
      %4097 = vrot.lane.b32.xlu0 %v4003, 48
      %v4098 = vpop.permute.xlu0 %4097
      %4099 = vrot.lane.b32.xlu0 %v4004, 48
      %v4100 = vpop.permute.xlu0 %4099
      %vm4133 = vcmask 454016
      %4134 = vst.msk [vmem:[#allocation5] sm:$0xf] %vm4133, %v4038
      %4135 = vst.msk [vmem:[#allocation5 + $0x4] sm:$0xf] %vm4133, %v4040
      %4136 = vst.msk [vmem:[#allocation5 + $0x8] sm:$0xf] %vm4133, %v4042
      %4137 = vst.msk [vmem:[#allocation5 + $0xc] sm:$0xf] %vm4133, %v4044
      %4138 = vst.msk [vmem:[#allocation5 + $0x10] sm:$0xf] %vm4133, %v4046
      %4139 = vst.msk [vmem:[#allocation5 + $0x14] sm:$0xf] %vm4133, %v4048
      %4140 = vst.msk [vmem:[#allocation5 + $0x18] sm:$0xf] %vm4133, %v4050
      %4141 = vst.msk [vmem:[#allocation5 + $0x1c] sm:$0xf] %vm4133, %v4052
      %4142 = vst.msk [vmem:[#allocation5 + $0x20] sm:$0xf] %vm4133, %v4054
      %4143 = vst.msk [vmem:[#allocation5 + $0x24] sm:$0xf] %vm4133, %v4056
      %4144 = vst.msk [vmem:[#allocation5 + $0x28] sm:$0xf] %vm4133, %v4058
      %4145 = vst.msk [vmem:[#allocation5 + $0x2c] sm:$0xf] %vm4133, %v4060
      %4146 = vst.msk [vmem:[#allocation5 + $0x30] sm:$0xf] %vm4133, %v4062
      %4147 = vst.msk [vmem:[#allocation5 + $0x34] sm:$0xf] %vm4133, %v4064
      %4148 = vst.msk [vmem:[#allocation5 + $0x38] sm:$0xf] %vm4133, %v4066
      %4149 = vst.msk [vmem:[#allocation5 + $0x3c] sm:$0xf] %vm4133, %v4068
      %4150 = vst.msk [vmem:[#allocation5 + $0x40] sm:$0xf] %vm4133, %v4070
      %4151 = vst.msk [vmem:[#allocation5 + $0x44] sm:$0xf] %vm4133, %v4072
      %4152 = vst.msk [vmem:[#allocation5 + $0x48] sm:$0xf] %vm4133, %v4074
      %4153 = vst.msk [vmem:[#allocation5 + $0x4c] sm:$0xf] %vm4133, %v4076
      %4154 = vst.msk [vmem:[#allocation5 + $0x50] sm:$0xf] %vm4133, %v4078
      %4155 = vst.msk [vmem:[#allocation5 + $0x54] sm:$0xf] %vm4133, %v4080
      %4156 = vst.msk [vmem:[#allocation5 + $0x58] sm:$0xf] %vm4133, %v4082
      %4157 = vst.msk [vmem:[#allocation5 + $0x5c] sm:$0xf] %vm4133, %v4084
      %4158 = vst.msk [vmem:[#allocation5 + $0x60] sm:$0xf] %vm4133, %v4086
      %4159 = vst.msk [vmem:[#allocation5 + $0x64] sm:$0xf] %vm4133, %v4088
      %4160 = vst.msk [vmem:[#allocation5 + $0x68] sm:$0xf] %vm4133, %v4090
      %4161 = vst.msk [vmem:[#allocation5 + $0x6c] sm:$0xf] %vm4133, %v4092
      %4162 = vst.msk [vmem:[#allocation5 + $0x70] sm:$0xf] %vm4133, %v4094
      %4163 = vst.msk [vmem:[#allocation5 + $0x74] sm:$0xf] %vm4133, %v4096
      %4164 = vst.msk [vmem:[#allocation5 + $0x78] sm:$0xf] %vm4133, %v4098
      %4165 = vst.msk [vmem:[#allocation5 + $0x7c] sm:$0xf] %vm4133, %v4100
      %v4166 = vld [vmem:[%s3940 + $0x1] sm:$0xff]
      %v4167 = vld [vmem:[%s3940 + $0x9] sm:$0xff]
      %v4168 = vld [vmem:[%s3940 + $0x19] sm:$0xff]
      %v4169 = vld [vmem:[%s3940 + $0x21] sm:$0xff]
      %v4170 = vld [vmem:[%s3940 + $0x31] sm:$0xff]
      %v4171 = vld [vmem:[%s3940 + $0x39] sm:$0xff]
      %v4172 = vld [vmem:[%s3940 + $0x49] sm:$0xff]
      %v4173 = vld [vmem:[%s3940 + $0x51] sm:$0xff]
      %v4174 = vld [vmem:[%s3940 + $0x61] sm:$0xff]
      %v4175 = vld [vmem:[%s3940 + $0x69] sm:$0xff]
      %v4176 = vld [vmem:[%s3940 + $0x79] sm:$0xff]
      %v4177 = vld [vmem:[%s3940 + $0x81] sm:$0xff]
      %v4178 = vld [vmem:[%s3940 + $0x91] sm:$0xff]
      %v4179 = vld [vmem:[%s3940 + $0x99] sm:$0xff]
      %v4180 = vld [vmem:[%s3940 + $0xa9] sm:$0xff]
      %v4181 = vld [vmem:[%s3940 + $0xb1] sm:$0xff]
      %v4182 = vld [vmem:[%s3940 + $0xc1] sm:$0xff]
      %v4183 = vld [vmem:[%s3940 + $0xc9] sm:$0xff]
      %v4184 = vld [vmem:[%s3940 + $0xd9] sm:$0xff]
      %v4185 = vld [vmem:[%s3940 + $0xe1] sm:$0xff]
      %v4186 = vld [vmem:[%s3940 + $0xf1] sm:$0xff]
      %v4187 = vld [vmem:[%s3940 + $0xf9] sm:$0xff]
      %v4188 = vld [vmem:[%s3940 + $0x109] sm:$0xff]
      %v4189 = vld [vmem:[%s3940 + $0x111] sm:$0xff]
      %v4190 = vld [vmem:[%s3940 + $0x121] sm:$0xff]
      %v4191 = vld [vmem:[%s3940 + $0x129] sm:$0xff]
      %v4192 = vld [vmem:[%s3940 + $0x139] sm:$0xff]
      %v4193 = vld [vmem:[%s3940 + $0x141] sm:$0xff]
      %v4194 = vld [vmem:[%s3940 + $0x151] sm:$0xff]
      %v4195 = vld [vmem:[%s3940 + $0x159] sm:$0xff]
      %v4196 = vld [vmem:[%s3940 + $0x169] sm:$0xff]
      %v4197 = vld [vmem:[%s3940 + $0x171] sm:$0xff]
      %v4198 = vpack.c.bf16 %v4166, %v4166
      %v4199 = vpack.c.bf16 %v4167, %v4167
      %v4200 = vpack.c.bf16 %v4168, %v4168
      %v4201 = vpack.c.bf16 %v4169, %v4169
      %v4202 = vpack.c.bf16 %v4170, %v4170
      %v4203 = vpack.c.bf16 %v4171, %v4171
      %v4204 = vpack.c.bf16 %v4172, %v4172
      %v4205 = vpack.c.bf16 %v4173, %v4173
      %v4206 = vpack.c.bf16 %v4174, %v4174
      %v4207 = vpack.c.bf16 %v4175, %v4175
      %v4208 = vpack.c.bf16 %v4176, %v4176
      %v4209 = vpack.c.bf16 %v4177, %v4177
      %v4210 = vpack.c.bf16 %v4178, %v4178
      %v4211 = vpack.c.bf16 %v4179, %v4179
      %v4212 = vpack.c.bf16 %v4180, %v4180
      %v4213 = vpack.c.bf16 %v4181, %v4181
      %v4214 = vpack.c.bf16 %v4182, %v4182
      %v4215 = vpack.c.bf16 %v4183, %v4183
      %v4216 = vpack.c.bf16 %v4184, %v4184
      %v4217 = vpack.c.bf16 %v4185, %v4185
      %v4218 = vpack.c.bf16 %v4186, %v4186
      %v4219 = vpack.c.bf16 %v4187, %v4187
      %v4220 = vpack.c.bf16 %v4188, %v4188
      %v4221 = vpack.c.bf16 %v4189, %v4189
      %v4222 = vpack.c.bf16 %v4190, %v4190
      %v4223 = vpack.c.bf16 %v4191, %v4191
      %v4224 = vpack.c.bf16 %v4192, %v4192
      %v4225 = vpack.c.bf16 %v4193, %v4193
      %v4226 = vpack.c.bf16 %v4194, %v4194
      %v4227 = vpack.c.bf16 %v4195, %v4195
      %v4228 = vpack.c.bf16 %v4196, %v4196
      %v4229 = vpack.c.bf16 %v4197, %v4197
      %4262 = vrot.lane.b32.xlu0 %v4198, 56
      %v4263 = vpop.permute.xlu0 %4262
      %4264 = vrot.lane.b32.xlu0 %v4199, 56
      %v4265 = vpop.permute.xlu0 %4264
      %4266 = vrot.lane.b32.xlu0 %v4200, 56
      %v4267 = vpop.permute.xlu0 %4266
      %4268 = vrot.lane.b32.xlu0 %v4201, 56
      %v4269 = vpop.permute.xlu0 %4268
      %4270 = vrot.lane.b32.xlu0 %v4202, 56
      %v4271 = vpop.permute.xlu0 %4270
      %4272 = vrot.lane.b32.xlu0 %v4203, 56
      %v4273 = vpop.permute.xlu0 %4272
      %4274 = vrot.lane.b32.xlu0 %v4204, 56
      %v4275 = vpop.permute.xlu0 %4274
      %4276 = vrot.lane.b32.xlu0 %v4205, 56
      %v4277 = vpop.permute.xlu0 %4276
      %4278 = vrot.lane.b32.xlu0 %v4206, 56
      %v4279 = vpop.permute.xlu0 %4278
      %4280 = vrot.lane.b32.xlu0 %v4207, 56
      %v4281 = vpop.permute.xlu0 %4280
      %4282 = vrot.lane.b32.xlu0 %v4208, 56
      %v4283 = vpop.permute.xlu0 %4282
      %4284 = vrot.lane.b32.xlu0 %v4209, 56
      %v4285 = vpop.permute.xlu0 %4284
      %4286 = vrot.lane.b32.xlu0 %v4210, 56
      %v4287 = vpop.permute.xlu0 %4286
      %4288 = vrot.lane.b32.xlu0 %v4211, 56
      %v4289 = vpop.permute.xlu0 %4288
      %4290 = vrot.lane.b32.xlu0 %v4212, 56
      %v4291 = vpop.permute.xlu0 %4290
      %4292 = vrot.lane.b32.xlu0 %v4213, 56
      %v4293 = vpop.permute.xlu0 %4292
      %4294 = vrot.lane.b32.xlu0 %v4214, 56
      %v4295 = vpop.permute.xlu0 %4294
      %4296 = vrot.lane.b32.xlu0 %v4215, 56
      %v4297 = vpop.permute.xlu0 %4296
      %4298 = vrot.lane.b32.xlu0 %v4216, 56
      %v4299 = vpop.permute.xlu0 %4298
      %4300 = vrot.lane.b32.xlu0 %v4217, 56
      %v4301 = vpop.permute.xlu0 %4300
      %4302 = vrot.lane.b32.xlu0 %v4218, 56
      %v4303 = vpop.permute.xlu0 %4302
      %4304 = vrot.lane.b32.xlu0 %v4219, 56
      %v4305 = vpop.permute.xlu0 %4304
      %4306 = vrot.lane.b32.xlu0 %v4220, 56
      %v4307 = vpop.permute.xlu0 %4306
      %4308 = vrot.lane.b32.xlu0 %v4221, 56
      %v4309 = vpop.permute.xlu0 %4308
      %4310 = vrot.lane.b32.xlu0 %v4222, 56
      %v4311 = vpop.permute.xlu0 %4310
      %4312 = vrot.lane.b32.xlu0 %v4223, 56
      %v4313 = vpop.permute.xlu0 %4312
      %4314 = vrot.lane.b32.xlu0 %v4224, 56
      %v4315 = vpop.permute.xlu0 %4314
      %4316 = vrot.lane.b32.xlu0 %v4225, 56
      %v4317 = vpop.permute.xlu0 %4316
      %4318 = vrot.lane.b32.xlu0 %v4226, 56
      %v4319 = vpop.permute.xlu0 %4318
      %4320 = vrot.lane.b32.xlu0 %v4227, 56
      %v4321 = vpop.permute.xlu0 %4320
      %4322 = vrot.lane.b32.xlu0 %v4228, 56
      %v4323 = vpop.permute.xlu0 %4322
      %4324 = vrot.lane.b32.xlu0 %v4229, 56
      %v4325 = vpop.permute.xlu0 %4324
      %vm4358 = vcmask 519616
      %4359 = vst.msk [vmem:[#allocation5] sm:$0xf] %vm4358, %v4263
      %4360 = vst.msk [vmem:[#allocation5 + $0x4] sm:$0xf] %vm4358, %v4265
      %4361 = vst.msk [vmem:[#allocation5 + $0x8] sm:$0xf] %vm4358, %v4267
      %4362 = vst.msk [vmem:[#allocation5 + $0xc] sm:$0xf] %vm4358, %v4269
      %4363 = vst.msk [vmem:[#allocation5 + $0x10] sm:$0xf] %vm4358, %v4271
      %4364 = vst.msk [vmem:[#allocation5 + $0x14] sm:$0xf] %vm4358, %v4273
      %4365 = vst.msk [vmem:[#allocation5 + $0x18] sm:$0xf] %vm4358, %v4275
      %4366 = vst.msk [vmem:[#allocation5 + $0x1c] sm:$0xf] %vm4358, %v4277
      %4367 = vst.msk [vmem:[#allocation5 + $0x20] sm:$0xf] %vm4358, %v4279
      %4368 = vst.msk [vmem:[#allocation5 + $0x24] sm:$0xf] %vm4358, %v4281
      %4369 = vst.msk [vmem:[#allocation5 + $0x28] sm:$0xf] %vm4358, %v4283
      %4370 = vst.msk [vmem:[#allocation5 + $0x2c] sm:$0xf] %vm4358, %v4285
      %4371 = vst.msk [vmem:[#allocation5 + $0x30] sm:$0xf] %vm4358, %v4287
      %4372 = vst.msk [vmem:[#allocation5 + $0x34] sm:$0xf] %vm4358, %v4289
      %4373 = vst.msk [vmem:[#allocation5 + $0x38] sm:$0xf] %vm4358, %v4291
      %4374 = vst.msk [vmem:[#allocation5 + $0x3c] sm:$0xf] %vm4358, %v4293
      %4375 = vst.msk [vmem:[#allocation5 + $0x40] sm:$0xf] %vm4358, %v4295
      %4376 = vst.msk [vmem:[#allocation5 + $0x44] sm:$0xf] %vm4358, %v4297
      %4377 = vst.msk [vmem:[#allocation5 + $0x48] sm:$0xf] %vm4358, %v4299
      %4378 = vst.msk [vmem:[#allocation5 + $0x4c] sm:$0xf] %vm4358, %v4301
      %4379 = vst.msk [vmem:[#allocation5 + $0x50] sm:$0xf] %vm4358, %v4303
      %4380 = vst.msk [vmem:[#allocation5 + $0x54] sm:$0xf] %vm4358, %v4305
      %4381 = vst.msk [vmem:[#allocation5 + $0x58] sm:$0xf] %vm4358, %v4307
      %4382 = vst.msk [vmem:[#allocation5 + $0x5c] sm:$0xf] %vm4358, %v4309
      %4383 = vst.msk [vmem:[#allocation5 + $0x60] sm:$0xf] %vm4358, %v4311
      %4384 = vst.msk [vmem:[#allocation5 + $0x64] sm:$0xf] %vm4358, %v4313
      %4385 = vst.msk [vmem:[#allocation5 + $0x68] sm:$0xf] %vm4358, %v4315
      %4386 = vst.msk [vmem:[#allocation5 + $0x6c] sm:$0xf] %vm4358, %v4317
      %4387 = vst.msk [vmem:[#allocation5 + $0x70] sm:$0xf] %vm4358, %v4319
      %4388 = vst.msk [vmem:[#allocation5 + $0x74] sm:$0xf] %vm4358, %v4321
      %4389 = vst.msk [vmem:[#allocation5 + $0x78] sm:$0xf] %vm4358, %v4323
      %4390 = vst.msk [vmem:[#allocation5 + $0x7c] sm:$0xf] %vm4358, %v4325
      %v4391 = vld [vmem:[%s3940 + $0x2] sm:$0xff]
      %v4392 = vld [vmem:[%s3940 + $0xa] sm:$0xff]
      %v4393 = vld [vmem:[%s3940 + $0x1a] sm:$0xff]
      %v4394 = vld [vmem:[%s3940 + $0x22] sm:$0xff]
      %v4395 = vld [vmem:[%s3940 + $0x32] sm:$0xff]
      %v4396 = vld [vmem:[%s3940 + $0x3a] sm:$0xff]
      %v4397 = vld [vmem:[%s3940 + $0x4a] sm:$0xff]
      %v4398 = vld [vmem:[%s3940 + $0x52] sm:$0xff]
      %v4399 = vld [vmem:[%s3940 + $0x62] sm:$0xff]
      %v4400 = vld [vmem:[%s3940 + $0x6a] sm:$0xff]
      %v4401 = vld [vmem:[%s3940 + $0x7a] sm:$0xff]
      %v4402 = vld [vmem:[%s3940 + $0x82] sm:$0xff]
      %v4403 = vld [vmem:[%s3940 + $0x92] sm:$0xff]
      %v4404 = vld [vmem:[%s3940 + $0x9a] sm:$0xff]
      %v4405 = vld [vmem:[%s3940 + $0xaa] sm:$0xff]
      %v4406 = vld [vmem:[%s3940 + $0xb2] sm:$0xff]
      %v4407 = vld [vmem:[%s3940 + $0xc2] sm:$0xff]
      %v4408 = vld [vmem:[%s3940 + $0xca] sm:$0xff]
      %v4409 = vld [vmem:[%s3940 + $0xda] sm:$0xff]
      %v4410 = vld [vmem:[%s3940 + $0xe2] sm:$0xff]
      %v4411 = vld [vmem:[%s3940 + $0xf2] sm:$0xff]
      %v4412 = vld [vmem:[%s3940 + $0xfa] sm:$0xff]
      %v4413 = vld [vmem:[%s3940 + $0x10a] sm:$0xff]
      %v4414 = vld [vmem:[%s3940 + $0x112] sm:$0xff]
      %v4415 = vld [vmem:[%s3940 + $0x122] sm:$0xff]
      %v4416 = vld [vmem:[%s3940 + $0x12a] sm:$0xff]
      %v4417 = vld [vmem:[%s3940 + $0x13a] sm:$0xff]
      %v4418 = vld [vmem:[%s3940 + $0x142] sm:$0xff]
      %v4419 = vld [vmem:[%s3940 + $0x152] sm:$0xff]
      %v4420 = vld [vmem:[%s3940 + $0x15a] sm:$0xff]
      %v4421 = vld [vmem:[%s3940 + $0x16a] sm:$0xff]
      %v4422 = vld [vmem:[%s3940 + $0x172] sm:$0xff]
      %v4423 = vpack.c.bf16 %v4391, %v4391
      %v4424 = vpack.c.bf16 %v4392, %v4392
      %v4425 = vpack.c.bf16 %v4393, %v4393
      %v4426 = vpack.c.bf16 %v4394, %v4394
      %v4427 = vpack.c.bf16 %v4395, %v4395
      %v4428 = vpack.c.bf16 %v4396, %v4396
      %v4429 = vpack.c.bf16 %v4397, %v4397
      %v4430 = vpack.c.bf16 %v4398, %v4398
      %v4431 = vpack.c.bf16 %v4399, %v4399
      %v4432 = vpack.c.bf16 %v4400, %v4400
      %v4433 = vpack.c.bf16 %v4401, %v4401
      %v4434 = vpack.c.bf16 %v4402, %v4402
      %v4435 = vpack.c.bf16 %v4403, %v4403
      %v4436 = vpack.c.bf16 %v4404, %v4404
      %v4437 = vpack.c.bf16 %v4405, %v4405
      %v4438 = vpack.c.bf16 %v4406, %v4406
      %v4439 = vpack.c.bf16 %v4407, %v4407
      %v4440 = vpack.c.bf16 %v4408, %v4408
      %v4441 = vpack.c.bf16 %v4409, %v4409
      %v4442 = vpack.c.bf16 %v4410, %v4410
      %v4443 = vpack.c.bf16 %v4411, %v4411
      %v4444 = vpack.c.bf16 %v4412, %v4412
      %v4445 = vpack.c.bf16 %v4413, %v4413
      %v4446 = vpack.c.bf16 %v4414, %v4414
      %v4447 = vpack.c.bf16 %v4415, %v4415
      %v4448 = vpack.c.bf16 %v4416, %v4416
      %v4449 = vpack.c.bf16 %v4417, %v4417
      %v4450 = vpack.c.bf16 %v4418, %v4418
      %v4451 = vpack.c.bf16 %v4419, %v4419
      %v4452 = vpack.c.bf16 %v4420, %v4420
      %v4453 = vpack.c.bf16 %v4421, %v4421
      %v4454 = vpack.c.bf16 %v4422, %v4422
      %4487 = vrot.lane.b32.xlu0 %v4423, 64
      %v4488 = vpop.permute.xlu0 %4487
      %4489 = vrot.lane.b32.xlu0 %v4424, 64
      %v4490 = vpop.permute.xlu0 %4489
      %4491 = vrot.lane.b32.xlu0 %v4425, 64
      %v4492 = vpop.permute.xlu0 %4491
      %4493 = vrot.lane.b32.xlu0 %v4426, 64
      %v4494 = vpop.permute.xlu0 %4493
      %4495 = vrot.lane.b32.xlu0 %v4427, 64
      %v4496 = vpop.permute.xlu0 %4495
      %4497 = vrot.lane.b32.xlu0 %v4428, 64
      %v4498 = vpop.permute.xlu0 %4497
      %4499 = vrot.lane.b32.xlu0 %v4429, 64
      %v4500 = vpop.permute.xlu0 %4499
      %4501 = vrot.lane.b32.xlu0 %v4430, 64
      %v4502 = vpop.permute.xlu0 %4501
      %4503 = vrot.lane.b32.xlu0 %v4431, 64
      %v4504 = vpop.permute.xlu0 %4503
      %4505 = vrot.lane.b32.xlu0 %v4432, 64
      %v4506 = vpop.permute.xlu0 %4505
      %4507 = vrot.lane.b32.xlu0 %v4433, 64
      %v4508 = vpop.permute.xlu0 %4507
      %4509 = vrot.lane.b32.xlu0 %v4434, 64
      %v4510 = vpop.permute.xlu0 %4509
      %4511 = vrot.lane.b32.xlu0 %v4435, 64
      %v4512 = vpop.permute.xlu0 %4511
      %4513 = vrot.lane.b32.xlu0 %v4436, 64
      %v4514 = vpop.permute.xlu0 %4513
      %4515 = vrot.lane.b32.xlu0 %v4437, 64
      %v4516 = vpop.permute.xlu0 %4515
      %4517 = vrot.lane.b32.xlu0 %v4438, 64
      %v4518 = vpop.permute.xlu0 %4517
      %4519 = vrot.lane.b32.xlu0 %v4439, 64
      %v4520 = vpop.permute.xlu0 %4519
      %4521 = vrot.lane.b32.xlu0 %v4440, 64
      %v4522 = vpop.permute.xlu0 %4521
      %4523 = vrot.lane.b32.xlu0 %v4441, 64
      %v4524 = vpop.permute.xlu0 %4523
      %4525 = vrot.lane.b32.xlu0 %v4442, 64
      %v4526 = vpop.permute.xlu0 %4525
      %4527 = vrot.lane.b32.xlu0 %v4443, 64
      %v4528 = vpop.permute.xlu0 %4527
      %4529 = vrot.lane.b32.xlu0 %v4444, 64
      %v4530 = vpop.permute.xlu0 %4529
      %4531 = vrot.lane.b32.xlu0 %v4445, 64
      %v4532 = vpop.permute.xlu0 %4531
      %4533 = vrot.lane.b32.xlu0 %v4446, 64
      %v4534 = vpop.permute.xlu0 %4533
      %4535 = vrot.lane.b32.xlu0 %v4447, 64
      %v4536 = vpop.permute.xlu0 %4535
      %4537 = vrot.lane.b32.xlu0 %v4448, 64
      %v4538 = vpop.permute.xlu0 %4537
      %4539 = vrot.lane.b32.xlu0 %v4449, 64
      %v4540 = vpop.permute.xlu0 %4539
      %4541 = vrot.lane.b32.xlu0 %v4450, 64
      %v4542 = vpop.permute.xlu0 %4541
      %4543 = vrot.lane.b32.xlu0 %v4451, 64
      %v4544 = vpop.permute.xlu0 %4543
      %4545 = vrot.lane.b32.xlu0 %v4452, 64
      %v4546 = vpop.permute.xlu0 %4545
      %4547 = vrot.lane.b32.xlu0 %v4453, 64
      %v4548 = vpop.permute.xlu0 %4547
      %4549 = vrot.lane.b32.xlu0 %v4454, 64
      %v4550 = vpop.permute.xlu0 %4549
      %vm4583 = vcmask 585216
      %4584 = vst.msk [vmem:[#allocation5] sm:$0xf] %vm4583, %v4488
      %4585 = vst.msk [vmem:[#allocation5 + $0x4] sm:$0xf] %vm4583, %v4490
      %4586 = vst.msk [vmem:[#allocation5 + $0x8] sm:$0xf] %vm4583, %v4492
      %4587 = vst.msk [vmem:[#allocation5 + $0xc] sm:$0xf] %vm4583, %v4494
      %4588 = vst.msk [vmem:[#allocation5 + $0x10] sm:$0xf] %vm4583, %v4496
      %4589 = vst.msk [vmem:[#allocation5 + $0x14] sm:$0xf] %vm4583, %v4498
      %4590 = vst.msk [vmem:[#allocation5 + $0x18] sm:$0xf] %vm4583, %v4500
      %4591 = vst.msk [vmem:[#allocation5 + $0x1c] sm:$0xf] %vm4583, %v4502
      %4592 = vst.msk [vmem:[#allocation5 + $0x20] sm:$0xf] %vm4583, %v4504
      %4593 = vst.msk [vmem:[#allocation5 + $0x24] sm:$0xf] %vm4583, %v4506
      %4594 = vst.msk [vmem:[#allocation5 + $0x28] sm:$0xf] %vm4583, %v4508
      %4595 = vst.msk [vmem:[#allocation5 + $0x2c] sm:$0xf] %vm4583, %v4510
      %4596 = vst.msk [vmem:[#allocation5 + $0x30] sm:$0xf] %vm4583, %v4512
      %4597 = vst.msk [vmem:[#allocation5 + $0x34] sm:$0xf] %vm4583, %v4514
      %4598 = vst.msk [vmem:[#allocation5 + $0x38] sm:$0xf] %vm4583, %v4516
      %4599 = vst.msk [vmem:[#allocation5 + $0x3c] sm:$0xf] %vm4583, %v4518
      %4600 = vst.msk [vmem:[#allocation5 + $0x40] sm:$0xf] %vm4583, %v4520
      %4601 = vst.msk [vmem:[#allocation5 + $0x44] sm:$0xf] %vm4583, %v4522
      %4602 = vst.msk [vmem:[#allocation5 + $0x48] sm:$0xf] %vm4583, %v4524
      %4603 = vst.msk [vmem:[#allocation5 + $0x4c] sm:$0xf] %vm4583, %v4526
      %4604 = vst.msk [vmem:[#allocation5 + $0x50] sm:$0xf] %vm4583, %v4528
      %4605 = vst.msk [vmem:[#allocation5 + $0x54] sm:$0xf] %vm4583, %v4530
      %4606 = vst.msk [vmem:[#allocation5 + $0x58] sm:$0xf] %vm4583, %v4532
      %4607 = vst.msk [vmem:[#allocation5 + $0x5c] sm:$0xf] %vm4583, %v4534
      %4608 = vst.msk [vmem:[#allocation5 + $0x60] sm:$0xf] %vm4583, %v4536
      %4609 = vst.msk [vmem:[#allocation5 + $0x64] sm:$0xf] %vm4583, %v4538
      %4610 = vst.msk [vmem:[#allocation5 + $0x68] sm:$0xf] %vm4583, %v4540
      %4611 = vst.msk [vmem:[#allocation5 + $0x6c] sm:$0xf] %vm4583, %v4542
      %4612 = vst.msk [vmem:[#allocation5 + $0x70] sm:$0xf] %vm4583, %v4544
      %4613 = vst.msk [vmem:[#allocation5 + $0x74] sm:$0xf] %vm4583, %v4546
      %4614 = vst.msk [vmem:[#allocation5 + $0x78] sm:$0xf] %vm4583, %v4548
      %4615 = vst.msk [vmem:[#allocation5 + $0x7c] sm:$0xf] %vm4583, %v4550
      %v4616 = vld [vmem:[#allocation5] sm:$0xf]
      %v4617 = vld [vmem:[#allocation5 + $0x4] sm:$0xf]
      %v4618 = vld [vmem:[#allocation5 + $0x8] sm:$0xf]
      %v4619 = vld [vmem:[#allocation5 + $0xc] sm:$0xf]
      %v4620 = vld [vmem:[#allocation5 + $0x10] sm:$0xf]
      %v4621 = vld [vmem:[#allocation5 + $0x14] sm:$0xf]
      %v4622 = vld [vmem:[#allocation5 + $0x18] sm:$0xf]
      %v4623 = vld [vmem:[#allocation5 + $0x1c] sm:$0xf]
      %v4624 = vld [vmem:[#allocation5 + $0x20] sm:$0xf]
      %v4625 = vld [vmem:[#allocation5 + $0x24] sm:$0xf]
      %v4626 = vld [vmem:[#allocation5 + $0x28] sm:$0xf]
      %v4627 = vld [vmem:[#allocation5 + $0x2c] sm:$0xf]
      %v4628 = vld [vmem:[#allocation5 + $0x30] sm:$0xf]
      %v4629 = vld [vmem:[#allocation5 + $0x34] sm:$0xf]
      %v4630 = vld [vmem:[#allocation5 + $0x38] sm:$0xf]
      %v4631 = vld [vmem:[#allocation5 + $0x3c] sm:$0xf]
      %v4632 = vld [vmem:[#allocation5 + $0x40] sm:$0xf]
      %v4633 = vld [vmem:[#allocation5 + $0x44] sm:$0xf]
      %v4634 = vld [vmem:[#allocation5 + $0x48] sm:$0xf]
      %v4635 = vld [vmem:[#allocation5 + $0x4c] sm:$0xf]
      %v4636 = vld [vmem:[#allocation5 + $0x50] sm:$0xf]
      %v4637 = vld [vmem:[#allocation5 + $0x54] sm:$0xf]
      %v4638 = vld [vmem:[#allocation5 + $0x58] sm:$0xf]
      %v4639 = vld [vmem:[#allocation5 + $0x5c] sm:$0xf]
      %v4640 = vld [vmem:[#allocation5 + $0x60] sm:$0xf]
      %v4641 = vld [vmem:[#allocation5 + $0x64] sm:$0xf]
      %v4642 = vld [vmem:[#allocation5 + $0x68] sm:$0xf]
      %v4643 = vld [vmem:[#allocation5 + $0x6c] sm:$0xf]
      %v4644 = vld [vmem:[#allocation5 + $0x70] sm:$0xf]
      %v4645 = vld [vmem:[#allocation5 + $0x74] sm:$0xf]
      %v4646 = vld [vmem:[#allocation5 + $0x78] sm:$0xf]
      %v4647 = vld [vmem:[#allocation5 + $0x7c] sm:$0xf]
      %v4648 = vld [vmem:[%s3] sm:$0xf]
      %v4649 = vld [vmem:[%s3 + $0x4] sm:$0xf]
      %v4650 = vld [vmem:[%s3 + $0x8] sm:$0xf]
      %v4651 = vld [vmem:[%s3 + $0xc] sm:$0xf]
      %v4652 = vld [vmem:[%s3 + $0x10] sm:$0xf]
      %v4653 = vld [vmem:[%s3 + $0x14] sm:$0xf]
      %v4654 = vld [vmem:[%s3 + $0x18] sm:$0xf]
      %v4655 = vld [vmem:[%s3 + $0x1c] sm:$0xf]
      %v4656 = vld [vmem:[%s3 + $0x20] sm:$0xf]
      %v4657 = vld [vmem:[%s4] sm:$0x1]
      %v4659 = vperm.slane %v4657, 0
      %v4693 = vunpack.c.l.b16 %v4616
      %v4694 = vunpack.c.l.b16 %v4617
      %v4695 = vunpack.c.l.b16 %v4618
      %v4696 = vunpack.c.l.b16 %v4619
      %v4697 = vunpack.c.l.b16 %v4620
      %v4698 = vunpack.c.l.b16 %v4621
      %v4699 = vunpack.c.l.b16 %v4622
      %v4700 = vunpack.c.l.b16 %v4623
      %v4701 = vunpack.c.l.b16 %v4624
      %v4702 = vunpack.c.l.b16 %v4625
      %v4703 = vunpack.c.l.b16 %v4626
      %v4704 = vunpack.c.l.b16 %v4627
      %v4705 = vunpack.c.l.b16 %v4628
      %v4706 = vunpack.c.l.b16 %v4629
      %v4707 = vunpack.c.l.b16 %v4630
      %v4708 = vunpack.c.l.b16 %v4631
      %v4709 = vunpack.c.l.b16 %v4632
      %v4710 = vunpack.c.l.b16 %v4633
      %v4711 = vunpack.c.l.b16 %v4634
      %v4712 = vunpack.c.l.b16 %v4635
      %v4713 = vunpack.c.l.b16 %v4636
      %v4714 = vunpack.c.l.b16 %v4637
      %v4715 = vunpack.c.l.b16 %v4638
      %v4716 = vunpack.c.l.b16 %v4639
      %v4717 = vunpack.c.l.b16 %v4640
      %v4718 = vunpack.c.l.b16 %v4641
      %v4719 = vunpack.c.l.b16 %v4642
      %v4720 = vunpack.c.l.b16 %v4643
      %v4721 = vunpack.c.l.b16 %v4644
      %v4722 = vunpack.c.l.b16 %v4645
      %v4723 = vunpack.c.l.b16 %v4646
      %v4724 = vunpack.c.l.b16 %v4647
      %v4725 = vpack.c.b16 %v4694, %v4693
      %v4726 = vpack.c.b16 %v4696, %v4695
      %v4727 = vpack.c.b16 %v4698, %v4697
      %v4728 = vpack.c.b16 %v4700, %v4699
      %v4729 = vpack.c.b16 %v4702, %v4701
      %v4730 = vpack.c.b16 %v4704, %v4703
      %v4731 = vpack.c.b16 %v4706, %v4705
      %v4732 = vpack.c.b16 %v4708, %v4707
      %v4733 = vpack.c.b16 %v4710, %v4709
      %v4734 = vpack.c.b16 %v4712, %v4711
      %v4735 = vpack.c.b16 %v4714, %v4713
      %v4736 = vpack.c.b16 %v4716, %v4715
      %v4737 = vpack.c.b16 %v4718, %v4717
      %v4738 = vpack.c.b16 %v4720, %v4719
      %v4739 = vpack.c.b16 %v4722, %v4721
      %v4740 = vpack.c.b16 %v4724, %v4723
      %v4750 = vunpack.c.l.b16 %v4648
      %v4751 = vunpack.c.l.b16 %v4649
      %v4752 = vunpack.c.l.b16 %v4650
      %v4753 = vunpack.c.l.b16 %v4651
      %v4754 = vunpack.c.l.b16 %v4652
      %v4755 = vunpack.c.l.b16 %v4653
      %v4756 = vunpack.c.l.b16 %v4654
      %v4757 = vunpack.c.l.b16 %v4655
      %v4758 = vunpack.c.l.b16 %v4656
      %v4759 = vpack.c.b16 %v4751, %v4750
      %v4760 = vpack.c.b16 %v4753, %v4752
      %v4761 = vpack.c.b16 %v4755, %v4754
      %v4762 = vpack.c.b16 %v4757, %v4756
      %v4763 = vpack.c.b16 %v4758, %v4758
      %vm4768 = vcmask 588800
      %v4770 = vsel %vm4768, %v4725, 0
      %v4773 = vsel %vm4768, %v4726, 0
      %v4776 = vsel %vm4768, %v4727, 0
      %v4779 = vsel %vm4768, %v4728, 0
      %v4782 = vsel %vm4768, %v4729, 0
      %v4785 = vsel %vm4768, %v4730, 0
      %v4788 = vsel %vm4768, %v4731, 0
      %v4791 = vsel %vm4768, %v4732, 0
      %v4794 = vsel %vm4768, %v4733, 0
      %v4797 = vsel %vm4768, %v4734, 0
      %v4800 = vsel %vm4768, %v4735, 0
      %v4803 = vsel %vm4768, %v4736, 0
      %v4806 = vsel %vm4768, %v4737, 0
      %v4809 = vsel %vm4768, %v4738, 0
      %v4812 = vsel %vm4768, %v4739, 0
      %v4815 = vsel %vm4768, %v4740, 0
      %vm4817 = vcmask 1043456
      %v4819 = vsel %vm4817, %v4763, 0
      %4821 = vmatpush.bf16.msra.mxu0 0
      %4822 = vmatpush.bf16.msra.mxu0 0
      %4823 = vmatpush.bf16.msra.mxu0 0
      %4824 = vmatpush.bf16.msra.mxu0 %v4819
      %4825 = vmatpush.bf16.msra.mxu0 %v4762
      %4826 = vmatpush.bf16.msra.mxu0 %v4761
      %4827 = vmatpush.bf16.msra.mxu0 %v4760
      %4828 = vmatpush.bf16.msra.mxu0 %v4759
      %4829 = vmatmul.bf16.gmra.mxu0 %v4770
      %v4830 = vpop.f32.mrf.mxu0
      %v4831 = vadd.f32 %v4659, %v4830
      %v4832 = vpop.f32.mrf.mxu0
      %v4833 = vadd.f32 %v4659, %v4832
      %4834 = vmatmul.bf16.gmra.mxu0 %v4773
      %v4835 = vpop.f32.mrf.mxu0
      %v4836 = vadd.f32 %v4659, %v4835
      %v4837 = vpop.f32.mrf.mxu0
      %v4838 = vadd.f32 %v4659, %v4837
      %4839 = vmatmul.bf16.gmra.mxu0 %v4776
      %v4840 = vpop.f32.mrf.mxu0
      %v4841 = vadd.f32 %v4659, %v4840
      %v4842 = vpop.f32.mrf.mxu0
      %v4843 = vadd.f32 %v4659, %v4842
      %4844 = vmatmul.bf16.gmra.mxu0 %v4779
      %v4845 = vpop.f32.mrf.mxu0
      %v4846 = vadd.f32 %v4659, %v4845
      %v4847 = vpop.f32.mrf.mxu0
      %v4848 = vadd.f32 %v4659, %v4847
      %4849 = vmatmul.bf16.gmra.mxu0 %v4782
      %v4850 = vpop.f32.mrf.mxu0
      %v4851 = vadd.f32 %v4659, %v4850
      %v4852 = vpop.f32.mrf.mxu0
      %v4853 = vadd.f32 %v4659, %v4852
      %4854 = vmatmul.bf16.gmra.mxu0 %v4785
      %v4855 = vpop.f32.mrf.mxu0
      %v4856 = vadd.f32 %v4659, %v4855
      %v4857 = vpop.f32.mrf.mxu0
      %v4858 = vadd.f32 %v4659, %v4857
      %4859 = vmatmul.bf16.gmra.mxu0 %v4788
      %v4860 = vpop.f32.mrf.mxu0
      %v4861 = vadd.f32 %v4659, %v4860
      %v4862 = vpop.f32.mrf.mxu0
      %v4863 = vadd.f32 %v4659, %v4862
      %4864 = vmatmul.bf16.gmra.mxu0 %v4791
      %v4865 = vpop.f32.mrf.mxu0
      %v4866 = vadd.f32 %v4659, %v4865
      %v4867 = vpop.f32.mrf.mxu0
      %v4868 = vadd.f32 %v4659, %v4867
      %4869 = vmatmul.bf16.gmra.mxu0 %v4794
      %v4870 = vpop.f32.mrf.mxu0
      %v4871 = vadd.f32 %v4659, %v4870
      %v4872 = vpop.f32.mrf.mxu0
      %v4873 = vadd.f32 %v4659, %v4872
      %4874 = vmatmul.bf16.gmra.mxu0 %v4797
      %v4875 = vpop.f32.mrf.mxu0
      %v4876 = vadd.f32 %v4659, %v4875
      %v4877 = vpop.f32.mrf.mxu0
      %v4878 = vadd.f32 %v4659, %v4877
      %4879 = vmatmul.bf16.gmra.mxu0 %v4800
      %v4880 = vpop.f32.mrf.mxu0
      %v4881 = vadd.f32 %v4659, %v4880
      %v4882 = vpop.f32.mrf.mxu0
      %v4883 = vadd.f32 %v4659, %v4882
      %4884 = vmatmul.bf16.gmra.mxu0 %v4803
      %v4885 = vpop.f32.mrf.mxu0
      %v4886 = vadd.f32 %v4659, %v4885
      %v4887 = vpop.f32.mrf.mxu0
      %v4888 = vadd.f32 %v4659, %v4887
      %4889 = vmatmul.bf16.gmra.mxu0 %v4806
      %v4890 = vpop.f32.mrf.mxu0
      %v4891 = vadd.f32 %v4659, %v4890
      %v4892 = vpop.f32.mrf.mxu0
      %v4893 = vadd.f32 %v4659, %v4892
      %4894 = vmatmul.bf16.gmra.mxu0 %v4809
      %v4895 = vpop.f32.mrf.mxu0
      %v4896 = vadd.f32 %v4659, %v4895
      %v4897 = vpop.f32.mrf.mxu0
      %v4898 = vadd.f32 %v4659, %v4897
      %4899 = vmatmul.bf16.gmra.mxu0 %v4812
      %v4900 = vpop.f32.mrf.mxu0
      %v4901 = vadd.f32 %v4659, %v4900
      %v4902 = vpop.f32.mrf.mxu0
      %v4903 = vadd.f32 %v4659, %v4902
      %4904 = vmatmul.bf16.gmra.mxu0 %v4815
      %v4905 = vpop.f32.mrf.mxu0
      %v4906 = vadd.f32 %v4659, %v4905
      %v4907 = vpop.f32.mrf.mxu0
      %v4908 = vadd.f32 %v4659, %v4907
      %4909 = vdwg.mxu0
      %v4910 = vmax.f32 %v4831, 0.0
      %v4911 = vmax.f32 %v4833, 0.0
      %v4912 = vmax.f32 %v4836, 0.0
      %v4913 = vmax.f32 %v4838, 0.0
      %v4914 = vmax.f32 %v4841, 0.0
      %v4915 = vmax.f32 %v4843, 0.0
      %v4916 = vmax.f32 %v4846, 0.0
      %v4917 = vmax.f32 %v4848, 0.0
      %v4918 = vmax.f32 %v4851, 0.0
      %v4919 = vmax.f32 %v4853, 0.0
      %v4920 = vmax.f32 %v4856, 0.0
      %v4921 = vmax.f32 %v4858, 0.0
      %v4922 = vmax.f32 %v4861, 0.0
      %v4923 = vmax.f32 %v4863, 0.0
      %v4924 = vmax.f32 %v4866, 0.0
      %v4925 = vmax.f32 %v4868, 0.0
      %v4926 = vmax.f32 %v4871, 0.0
      %v4927 = vmax.f32 %v4873, 0.0
      %v4928 = vmax.f32 %v4876, 0.0
      %v4929 = vmax.f32 %v4878, 0.0
      %v4930 = vmax.f32 %v4881, 0.0
      %v4931 = vmax.f32 %v4883, 0.0
      %v4932 = vmax.f32 %v4886, 0.0
      %v4933 = vmax.f32 %v4888, 0.0
      %v4934 = vmax.f32 %v4891, 0.0
      %v4935 = vmax.f32 %v4893, 0.0
      %v4936 = vmax.f32 %v4896, 0.0
      %v4937 = vmax.f32 %v4898, 0.0
      %v4938 = vmax.f32 %v4901, 0.0
      %v4939 = vmax.f32 %v4903, 0.0
      %v4940 = vmax.f32 %v4906, 0.0
      %v4941 = vmax.f32 %v4908, 0.0
      %4942 = vst.msk [vmem:[%s2685 + $0x1] sm:$0xff] %vm366, %v4910
      %4943 = vst.msk [vmem:[%s2685 + $0x9] sm:$0xff] %vm366, %v4911
      %4944 = vst.msk [vmem:[%s2685 + $0x19] sm:$0xff] %vm366, %v4912
      %4945 = vst.msk [vmem:[%s2685 + $0x21] sm:$0xff] %vm366, %v4913
      %4946 = vst.msk [vmem:[%s2685 + $0x31] sm:$0xff] %vm366, %v4914
      %4947 = vst.msk [vmem:[%s2685 + $0x39] sm:$0xff] %vm366, %v4915
      %4948 = vst.msk [vmem:[%s2685 + $0x49] sm:$0xff] %vm366, %v4916
      %4949 = vst.msk [vmem:[%s2685 + $0x51] sm:$0xff] %vm366, %v4917
      %4950 = vst.msk [vmem:[%s2685 + $0x61] sm:$0xff] %vm366, %v4918
      %4951 = vst.msk [vmem:[%s2685 + $0x69] sm:$0xff] %vm366, %v4919
      %4952 = vst.msk [vmem:[%s2685 + $0x79] sm:$0xff] %vm366, %v4920
      %4953 = vst.msk [vmem:[%s2685 + $0x81] sm:$0xff] %vm366, %v4921
      %4954 = vst.msk [vmem:[%s2685 + $0x91] sm:$0xff] %vm366, %v4922
      %4955 = vst.msk [vmem:[%s2685 + $0x99] sm:$0xff] %vm366, %v4923
      %4956 = vst.msk [vmem:[%s2685 + $0xa9] sm:$0xff] %vm366, %v4924
      %4957 = vst.msk [vmem:[%s2685 + $0xb1] sm:$0xff] %vm366, %v4925
      %4958 = vst.msk [vmem:[%s2685 + $0xc1] sm:$0xff] %vm366, %v4926
      %4959 = vst.msk [vmem:[%s2685 + $0xc9] sm:$0xff] %vm366, %v4927
      %4960 = vst.msk [vmem:[%s2685 + $0xd9] sm:$0xff] %vm366, %v4928
      %4961 = vst.msk [vmem:[%s2685 + $0xe1] sm:$0xff] %vm366, %v4929
      %4962 = vst.msk [vmem:[%s2685 + $0xf1] sm:$0xff] %vm366, %v4930
      %4963 = vst.msk [vmem:[%s2685 + $0xf9] sm:$0xff] %vm366, %v4931
      %4964 = vst.msk [vmem:[%s2685 + $0x109] sm:$0xff] %vm366, %v4932
      %4965 = vst.msk [vmem:[%s2685 + $0x111] sm:$0xff] %vm366, %v4933
      %4966 = vst.msk [vmem:[%s2685 + $0x121] sm:$0xff] %vm366, %v4934
      %4967 = vst.msk [vmem:[%s2685 + $0x129] sm:$0xff] %vm366, %v4935
      %4968 = vst.msk [vmem:[%s2685 + $0x139] sm:$0xff] %vm366, %v4936
      %4969 = vst.msk [vmem:[%s2685 + $0x141] sm:$0xff] %vm366, %v4937
      %4970 = vst.msk [vmem:[%s2685 + $0x151] sm:$0xff] %vm366, %v4938
      %4971 = vst.msk [vmem:[%s2685 + $0x159] sm:$0xff] %vm366, %v4939
      %4972 = vst.msk [vmem:[%s2685 + $0x169] sm:$0xff] %vm366, %v4940
      %4973 = vst.msk [vmem:[%s2685 + $0x171] sm:$0xff] %vm366, %v4941
      %v4974 = vld [vmem:[#allocation3] sm:$0xff]
      %v4975 = vld [vmem:[#allocation3 + $0x8] sm:$0xff]
      %v4976 = vld [vmem:[#allocation3 + $0x18] sm:$0xff]
      %v4977 = vld [vmem:[#allocation3 + $0x20] sm:$0xff]
      %v4978 = vld [vmem:[#allocation3 + $0x30] sm:$0xff]
      %v4979 = vld [vmem:[#allocation3 + $0x38] sm:$0xff]
      %v4980 = vld [vmem:[#allocation3 + $0x48] sm:$0xff]
      %v4981 = vld [vmem:[#allocation3 + $0x50] sm:$0xff]
      %v4982 = vld [vmem:[#allocation3 + $0x60] sm:$0xff]
      %v4983 = vld [vmem:[#allocation3 + $0x68] sm:$0xff]
      %v4984 = vld [vmem:[#allocation3 + $0x78] sm:$0xff]
      %v4985 = vld [vmem:[#allocation3 + $0x80] sm:$0xff]
      %v4986 = vld [vmem:[#allocation3 + $0x90] sm:$0xff]
      %v4987 = vld [vmem:[#allocation3 + $0x98] sm:$0xff]
      %v4988 = vld [vmem:[#allocation3 + $0xa8] sm:$0xff]
      %v4989 = vld [vmem:[#allocation3 + $0xb0] sm:$0xff]
      %v4990 = vld [vmem:[#allocation3 + $0xc0] sm:$0xff]
      %v4991 = vld [vmem:[#allocation3 + $0xc8] sm:$0xff]
      %v4992 = vld [vmem:[#allocation3 + $0xd8] sm:$0xff]
      %v4993 = vld [vmem:[#allocation3 + $0xe0] sm:$0xff]
      %v4994 = vld [vmem:[#allocation3 + $0xf0] sm:$0xff]
      %v4995 = vld [vmem:[#allocation3 + $0xf8] sm:$0xff]
      %v4996 = vld [vmem:[#allocation3 + $0x108] sm:$0xff]
      %v4997 = vld [vmem:[#allocation3 + $0x110] sm:$0xff]
      %v4998 = vld [vmem:[#allocation3 + $0x120] sm:$0xff]
      %v4999 = vld [vmem:[#allocation3 + $0x128] sm:$0xff]
      %v5000 = vld [vmem:[#allocation3 + $0x138] sm:$0xff]
      %v5001 = vld [vmem:[#allocation3 + $0x140] sm:$0xff]
      %v5002 = vld [vmem:[#allocation3 + $0x150] sm:$0xff]
      %v5003 = vld [vmem:[#allocation3 + $0x158] sm:$0xff]
      %v5004 = vld [vmem:[#allocation3 + $0x168] sm:$0xff]
      %v5005 = vld [vmem:[#allocation3 + $0x170] sm:$0xff]
      %v5006 = vpack.c.bf16 %v4974, %v4974
      %v5007 = vpack.c.bf16 %v4975, %v4975
      %v5008 = vpack.c.bf16 %v4976, %v4976
      %v5009 = vpack.c.bf16 %v4977, %v4977
      %v5010 = vpack.c.bf16 %v4978, %v4978
      %v5011 = vpack.c.bf16 %v4979, %v4979
      %v5012 = vpack.c.bf16 %v4980, %v4980
      %v5013 = vpack.c.bf16 %v4981, %v4981
      %v5014 = vpack.c.bf16 %v4982, %v4982
      %v5015 = vpack.c.bf16 %v4983, %v4983
      %v5016 = vpack.c.bf16 %v4984, %v4984
      %v5017 = vpack.c.bf16 %v4985, %v4985
      %v5018 = vpack.c.bf16 %v4986, %v4986
      %v5019 = vpack.c.bf16 %v4987, %v4987
      %v5020 = vpack.c.bf16 %v4988, %v4988
      %v5021 = vpack.c.bf16 %v4989, %v4989
      %v5022 = vpack.c.bf16 %v4990, %v4990
      %v5023 = vpack.c.bf16 %v4991, %v4991
      %v5024 = vpack.c.bf16 %v4992, %v4992
      %v5025 = vpack.c.bf16 %v4993, %v4993
      %v5026 = vpack.c.bf16 %v4994, %v4994
      %v5027 = vpack.c.bf16 %v4995, %v4995
      %v5028 = vpack.c.bf16 %v4996, %v4996
      %v5029 = vpack.c.bf16 %v4997, %v4997
      %v5030 = vpack.c.bf16 %v4998, %v4998
      %v5031 = vpack.c.bf16 %v4999, %v4999
      %v5032 = vpack.c.bf16 %v5000, %v5000
      %v5033 = vpack.c.bf16 %v5001, %v5001
      %v5034 = vpack.c.bf16 %v5002, %v5002
      %v5035 = vpack.c.bf16 %v5003, %v5003
      %v5036 = vpack.c.bf16 %v5004, %v5004
      %v5037 = vpack.c.bf16 %v5005, %v5005
      %5038 = vst.msk [vmem:[#allocation5] sm:$0xf] %vm2782, %v5006
      %5039 = vst.msk [vmem:[#allocation5 + $0x4] sm:$0xf] %vm2782, %v5007
      %5040 = vst.msk [vmem:[#allocation5 + $0x8] sm:$0xf] %vm2782, %v5008
      %5041 = vst.msk [vmem:[#allocation5 + $0xc] sm:$0xf] %vm2782, %v5009
      %5042 = vst.msk [vmem:[#allocation5 + $0x10] sm:$0xf] %vm2782, %v5010
      %5043 = vst.msk [vmem:[#allocation5 + $0x14] sm:$0xf] %vm2782, %v5011
      %5044 = vst.msk [vmem:[#allocation5 + $0x18] sm:$0xf] %vm2782, %v5012
      %5045 = vst.msk [vmem:[#allocation5 + $0x1c] sm:$0xf] %vm2782, %v5013
      %5046 = vst.msk [vmem:[#allocation5 + $0x20] sm:$0xf] %vm2782, %v5014
      %5047 = vst.msk [vmem:[#allocation5 + $0x24] sm:$0xf] %vm2782, %v5015
      %5048 = vst.msk [vmem:[#allocation5 + $0x28] sm:$0xf] %vm2782, %v5016
      %5049 = vst.msk [vmem:[#allocation5 + $0x2c] sm:$0xf] %vm2782, %v5017
      %5050 = vst.msk [vmem:[#allocation5 + $0x30] sm:$0xf] %vm2782, %v5018
      %5051 = vst.msk [vmem:[#allocation5 + $0x34] sm:$0xf] %vm2782, %v5019
      %5052 = vst.msk [vmem:[#allocation5 + $0x38] sm:$0xf] %vm2782, %v5020
      %5053 = vst.msk [vmem:[#allocation5 + $0x3c] sm:$0xf] %vm2782, %v5021
      %5054 = vst.msk [vmem:[#allocation5 + $0x40] sm:$0xf] %vm2782, %v5022
      %5055 = vst.msk [vmem:[#allocation5 + $0x44] sm:$0xf] %vm2782, %v5023
      %5056 = vst.msk [vmem:[#allocation5 + $0x48] sm:$0xf] %vm2782, %v5024
      %5057 = vst.msk [vmem:[#allocation5 + $0x4c] sm:$0xf] %vm2782, %v5025
      %5058 = vst.msk [vmem:[#allocation5 + $0x50] sm:$0xf] %vm2782, %v5026
      %5059 = vst.msk [vmem:[#allocation5 + $0x54] sm:$0xf] %vm2782, %v5027
      %5060 = vst.msk [vmem:[#allocation5 + $0x58] sm:$0xf] %vm2782, %v5028
      %5061 = vst.msk [vmem:[#allocation5 + $0x5c] sm:$0xf] %vm2782, %v5029
      %5062 = vst.msk [vmem:[#allocation5 + $0x60] sm:$0xf] %vm2782, %v5030
      %5063 = vst.msk [vmem:[#allocation5 + $0x64] sm:$0xf] %vm2782, %v5031
      %5064 = vst.msk [vmem:[#allocation5 + $0x68] sm:$0xf] %vm2782, %v5032
      %5065 = vst.msk [vmem:[#allocation5 + $0x6c] sm:$0xf] %vm2782, %v5033
      %5066 = vst.msk [vmem:[#allocation5 + $0x70] sm:$0xf] %vm2782, %v5034
      %5067 = vst.msk [vmem:[#allocation5 + $0x74] sm:$0xf] %vm2782, %v5035
      %5068 = vst.msk [vmem:[#allocation5 + $0x78] sm:$0xf] %vm2782, %v5036
      %5069 = vst.msk [vmem:[#allocation5 + $0x7c] sm:$0xf] %vm2782, %v5037
      %v5070 = vld [vmem:[#allocation3 + $0x1] sm:$0xff]
      %v5071 = vld [vmem:[#allocation3 + $0x9] sm:$0xff]
      %v5072 = vld [vmem:[#allocation3 + $0x19] sm:$0xff]
      %v5073 = vld [vmem:[#allocation3 + $0x21] sm:$0xff]
      %v5074 = vld [vmem:[#allocation3 + $0x31] sm:$0xff]
      %v5075 = vld [vmem:[#allocation3 + $0x39] sm:$0xff]
      %v5076 = vld [vmem:[#allocation3 + $0x49] sm:$0xff]
      %v5077 = vld [vmem:[#allocation3 + $0x51] sm:$0xff]
      %v5078 = vld [vmem:[#allocation3 + $0x61] sm:$0xff]
      %v5079 = vld [vmem:[#allocation3 + $0x69] sm:$0xff]
      %v5080 = vld [vmem:[#allocation3 + $0x79] sm:$0xff]
      %v5081 = vld [vmem:[#allocation3 + $0x81] sm:$0xff]
      %v5082 = vld [vmem:[#allocation3 + $0x91] sm:$0xff]
      %v5083 = vld [vmem:[#allocation3 + $0x99] sm:$0xff]
      %v5084 = vld [vmem:[#allocation3 + $0xa9] sm:$0xff]
      %v5085 = vld [vmem:[#allocation3 + $0xb1] sm:$0xff]
      %v5086 = vld [vmem:[#allocation3 + $0xc1] sm:$0xff]
      %v5087 = vld [vmem:[#allocation3 + $0xc9] sm:$0xff]
      %v5088 = vld [vmem:[#allocation3 + $0xd9] sm:$0xff]
      %v5089 = vld [vmem:[#allocation3 + $0xe1] sm:$0xff]
      %v5090 = vld [vmem:[#allocation3 + $0xf1] sm:$0xff]
      %v5091 = vld [vmem:[#allocation3 + $0xf9] sm:$0xff]
      %v5092 = vld [vmem:[#allocation3 + $0x109] sm:$0xff]
      %v5093 = vld [vmem:[#allocation3 + $0x111] sm:$0xff]
      %v5094 = vld [vmem:[#allocation3 + $0x121] sm:$0xff]
      %v5095 = vld [vmem:[#allocation3 + $0x129] sm:$0xff]
      %v5096 = vld [vmem:[#allocation3 + $0x139] sm:$0xff]
      %v5097 = vld [vmem:[#allocation3 + $0x141] sm:$0xff]
      %v5098 = vld [vmem:[#allocation3 + $0x151] sm:$0xff]
      %v5099 = vld [vmem:[#allocation3 + $0x159] sm:$0xff]
      %v5100 = vld [vmem:[#allocation3 + $0x169] sm:$0xff]
      %v5101 = vld [vmem:[#allocation3 + $0x171] sm:$0xff]
      %v5102 = vpack.c.bf16 %v5070, %v5070
      %v5103 = vpack.c.bf16 %v5071, %v5071
      %v5104 = vpack.c.bf16 %v5072, %v5072
      %v5105 = vpack.c.bf16 %v5073, %v5073
      %v5106 = vpack.c.bf16 %v5074, %v5074
      %v5107 = vpack.c.bf16 %v5075, %v5075
      %v5108 = vpack.c.bf16 %v5076, %v5076
      %v5109 = vpack.c.bf16 %v5077, %v5077
      %v5110 = vpack.c.bf16 %v5078, %v5078
      %v5111 = vpack.c.bf16 %v5079, %v5079
      %v5112 = vpack.c.bf16 %v5080, %v5080
      %v5113 = vpack.c.bf16 %v5081, %v5081
      %v5114 = vpack.c.bf16 %v5082, %v5082
      %v5115 = vpack.c.bf16 %v5083, %v5083
      %v5116 = vpack.c.bf16 %v5084, %v5084
      %v5117 = vpack.c.bf16 %v5085, %v5085
      %v5118 = vpack.c.bf16 %v5086, %v5086
      %v5119 = vpack.c.bf16 %v5087, %v5087
      %v5120 = vpack.c.bf16 %v5088, %v5088
      %v5121 = vpack.c.bf16 %v5089, %v5089
      %v5122 = vpack.c.bf16 %v5090, %v5090
      %v5123 = vpack.c.bf16 %v5091, %v5091
      %v5124 = vpack.c.bf16 %v5092, %v5092
      %v5125 = vpack.c.bf16 %v5093, %v5093
      %v5126 = vpack.c.bf16 %v5094, %v5094
      %v5127 = vpack.c.bf16 %v5095, %v5095
      %v5128 = vpack.c.bf16 %v5096, %v5096
      %v5129 = vpack.c.bf16 %v5097, %v5097
      %v5130 = vpack.c.bf16 %v5098, %v5098
      %v5131 = vpack.c.bf16 %v5099, %v5099
      %v5132 = vpack.c.bf16 %v5100, %v5100
      %v5133 = vpack.c.bf16 %v5101, %v5101
      %5166 = vrot.lane.b32.xlu0 %v5102, 8
      %v5167 = vpop.permute.xlu0 %5166
      %5168 = vrot.lane.b32.xlu0 %v5103, 8
      %v5169 = vpop.permute.xlu0 %5168
      %5170 = vrot.lane.b32.xlu0 %v5104, 8
      %v5171 = vpop.permute.xlu0 %5170
      %5172 = vrot.lane.b32.xlu0 %v5105, 8
      %v5173 = vpop.permute.xlu0 %5172
      %5174 = vrot.lane.b32.xlu0 %v5106, 8
      %v5175 = vpop.permute.xlu0 %5174
      %5176 = vrot.lane.b32.xlu0 %v5107, 8
      %v5177 = vpop.permute.xlu0 %5176
      %5178 = vrot.lane.b32.xlu0 %v5108, 8
      %v5179 = vpop.permute.xlu0 %5178
      %5180 = vrot.lane.b32.xlu0 %v5109, 8
      %v5181 = vpop.permute.xlu0 %5180
      %5182 = vrot.lane.b32.xlu0 %v5110, 8
      %v5183 = vpop.permute.xlu0 %5182
      %5184 = vrot.lane.b32.xlu0 %v5111, 8
      %v5185 = vpop.permute.xlu0 %5184
      %5186 = vrot.lane.b32.xlu0 %v5112, 8
      %v5187 = vpop.permute.xlu0 %5186
      %5188 = vrot.lane.b32.xlu0 %v5113, 8
      %v5189 = vpop.permute.xlu0 %5188
      %5190 = vrot.lane.b32.xlu0 %v5114, 8
      %v5191 = vpop.permute.xlu0 %5190
      %5192 = vrot.lane.b32.xlu0 %v5115, 8
      %v5193 = vpop.permute.xlu0 %5192
      %5194 = vrot.lane.b32.xlu0 %v5116, 8
      %v5195 = vpop.permute.xlu0 %5194
      %5196 = vrot.lane.b32.xlu0 %v5117, 8
      %v5197 = vpop.permute.xlu0 %5196
      %5198 = vrot.lane.b32.xlu0 %v5118, 8
      %v5199 = vpop.permute.xlu0 %5198
      %5200 = vrot.lane.b32.xlu0 %v5119, 8
      %v5201 = vpop.permute.xlu0 %5200
      %5202 = vrot.lane.b32.xlu0 %v5120, 8
      %v5203 = vpop.permute.xlu0 %5202
      %5204 = vrot.lane.b32.xlu0 %v5121, 8
      %v5205 = vpop.permute.xlu0 %5204
      %5206 = vrot.lane.b32.xlu0 %v5122, 8
      %v5207 = vpop.permute.xlu0 %5206
      %5208 = vrot.lane.b32.xlu0 %v5123, 8
      %v5209 = vpop.permute.xlu0 %5208
      %5210 = vrot.lane.b32.xlu0 %v5124, 8
      %v5211 = vpop.permute.xlu0 %5210
      %5212 = vrot.lane.b32.xlu0 %v5125, 8
      %v5213 = vpop.permute.xlu0 %5212
      %5214 = vrot.lane.b32.xlu0 %v5126, 8
      %v5215 = vpop.permute.xlu0 %5214
      %5216 = vrot.lane.b32.xlu0 %v5127, 8
      %v5217 = vpop.permute.xlu0 %5216
      %5218 = vrot.lane.b32.xlu0 %v5128, 8
      %v5219 = vpop.permute.xlu0 %5218
      %5220 = vrot.lane.b32.xlu0 %v5129, 8
      %v5221 = vpop.permute.xlu0 %5220
      %5222 = vrot.lane.b32.xlu0 %v5130, 8
      %v5223 = vpop.permute.xlu0 %5222
      %5224 = vrot.lane.b32.xlu0 %v5131, 8
      %v5225 = vpop.permute.xlu0 %5224
      %5226 = vrot.lane.b32.xlu0 %v5132, 8
      %v5227 = vpop.permute.xlu0 %5226
      %5228 = vrot.lane.b32.xlu0 %v5133, 8
      %v5229 = vpop.permute.xlu0 %5228
      %5262 = vst.msk [vmem:[#allocation5] sm:$0xf] %vm3007, %v5167
      %5263 = vst.msk [vmem:[#allocation5 + $0x4] sm:$0xf] %vm3007, %v5169
      %5264 = vst.msk [vmem:[#allocation5 + $0x8] sm:$0xf] %vm3007, %v5171
      %5265 = vst.msk [vmem:[#allocation5 + $0xc] sm:$0xf] %vm3007, %v5173
      %5266 = vst.msk [vmem:[#allocation5 + $0x10] sm:$0xf] %vm3007, %v5175
      %5267 = vst.msk [vmem:[#allocation5 + $0x14] sm:$0xf] %vm3007, %v5177
      %5268 = vst.msk [vmem:[#allocation5 + $0x18] sm:$0xf] %vm3007, %v5179
      %5269 = vst.msk [vmem:[#allocation5 + $0x1c] sm:$0xf] %vm3007, %v5181
      %5270 = vst.msk [vmem:[#allocation5 + $0x20] sm:$0xf] %vm3007, %v5183
      %5271 = vst.msk [vmem:[#allocation5 + $0x24] sm:$0xf] %vm3007, %v5185
      %5272 = vst.msk [vmem:[#allocation5 + $0x28] sm:$0xf] %vm3007, %v5187
      %5273 = vst.msk [vmem:[#allocation5 + $0x2c] sm:$0xf] %vm3007, %v5189
      %5274 = vst.msk [vmem:[#allocation5 + $0x30] sm:$0xf] %vm3007, %v5191
      %5275 = vst.msk [vmem:[#allocation5 + $0x34] sm:$0xf] %vm3007, %v5193
      %5276 = vst.msk [vmem:[#allocation5 + $0x38] sm:$0xf] %vm3007, %v5195
      %5277 = vst.msk [vmem:[#allocation5 + $0x3c] sm:$0xf] %vm3007, %v5197
      %5278 = vst.msk [vmem:[#allocation5 + $0x40] sm:$0xf] %vm3007, %v5199
      %5279 = vst.msk [vmem:[#allocation5 + $0x44] sm:$0xf] %vm3007, %v5201
      %5280 = vst.msk [vmem:[#allocation5 + $0x48] sm:$0xf] %vm3007, %v5203
      %5281 = vst.msk [vmem:[#allocation5 + $0x4c] sm:$0xf] %vm3007, %v5205
      %5282 = vst.msk [vmem:[#allocation5 + $0x50] sm:$0xf] %vm3007, %v5207
      %5283 = vst.msk [vmem:[#allocation5 + $0x54] sm:$0xf] %vm3007, %v5209
      %5284 = vst.msk [vmem:[#allocation5 + $0x58] sm:$0xf] %vm3007, %v5211
      %5285 = vst.msk [vmem:[#allocation5 + $0x5c] sm:$0xf] %vm3007, %v5213
      %5286 = vst.msk [vmem:[#allocation5 + $0x60] sm:$0xf] %vm3007, %v5215
      %5287 = vst.msk [vmem:[#allocation5 + $0x64] sm:$0xf] %vm3007, %v5217
      %5288 = vst.msk [vmem:[#allocation5 + $0x68] sm:$0xf] %vm3007, %v5219
      %5289 = vst.msk [vmem:[#allocation5 + $0x6c] sm:$0xf] %vm3007, %v5221
      %5290 = vst.msk [vmem:[#allocation5 + $0x70] sm:$0xf] %vm3007, %v5223
      %5291 = vst.msk [vmem:[#allocation5 + $0x74] sm:$0xf] %vm3007, %v5225
      %5292 = vst.msk [vmem:[#allocation5 + $0x78] sm:$0xf] %vm3007, %v5227
      %5293 = vst.msk [vmem:[#allocation5 + $0x7c] sm:$0xf] %vm3007, %v5229
      %v5294 = vld [vmem:[#allocation3 + $0x2] sm:$0xff]
      %v5295 = vld [vmem:[#allocation3 + $0xa] sm:$0xff]
      %v5296 = vld [vmem:[#allocation3 + $0x1a] sm:$0xff]
      %v5297 = vld [vmem:[#allocation3 + $0x22] sm:$0xff]
      %v5298 = vld [vmem:[#allocation3 + $0x32] sm:$0xff]
      %v5299 = vld [vmem:[#allocation3 + $0x3a] sm:$0xff]
      %v5300 = vld [vmem:[#allocation3 + $0x4a] sm:$0xff]
      %v5301 = vld [vmem:[#allocation3 + $0x52] sm:$0xff]
      %v5302 = vld [vmem:[#allocation3 + $0x62] sm:$0xff]
      %v5303 = vld [vmem:[#allocation3 + $0x6a] sm:$0xff]
      %v5304 = vld [vmem:[#allocation3 + $0x7a] sm:$0xff]
      %v5305 = vld [vmem:[#allocation3 + $0x82] sm:$0xff]
      %v5306 = vld [vmem:[#allocation3 + $0x92] sm:$0xff]
      %v5307 = vld [vmem:[#allocation3 + $0x9a] sm:$0xff]
      %v5308 = vld [vmem:[#allocation3 + $0xaa] sm:$0xff]
      %v5309 = vld [vmem:[#allocation3 + $0xb2] sm:$0xff]
      %v5310 = vld [vmem:[#allocation3 + $0xc2] sm:$0xff]
      %v5311 = vld [vmem:[#allocation3 + $0xca] sm:$0xff]
      %v5312 = vld [vmem:[#allocation3 + $0xda] sm:$0xff]
      %v5313 = vld [vmem:[#allocation3 + $0xe2] sm:$0xff]
      %v5314 = vld [vmem:[#allocation3 + $0xf2] sm:$0xff]
      %v5315 = vld [vmem:[#allocation3 + $0xfa] sm:$0xff]
      %v5316 = vld [vmem:[#allocation3 + $0x10a] sm:$0xff]
      %v5317 = vld [vmem:[#allocation3 + $0x112] sm:$0xff]
      %v5318 = vld [vmem:[#allocation3 + $0x122] sm:$0xff]
      %v5319 = vld [vmem:[#allocation3 + $0x12a] sm:$0xff]
      %v5320 = vld [vmem:[#allocation3 + $0x13a] sm:$0xff]
      %v5321 = vld [vmem:[#allocation3 + $0x142] sm:$0xff]
      %v5322 = vld [vmem:[#allocation3 + $0x152] sm:$0xff]
      %v5323 = vld [vmem:[#allocation3 + $0x15a] sm:$0xff]
      %v5324 = vld [vmem:[#allocation3 + $0x16a] sm:$0xff]
      %v5325 = vld [vmem:[#allocation3 + $0x172] sm:$0xff]
      %v5326 = vpack.c.bf16 %v5294, %v5294
      %v5327 = vpack.c.bf16 %v5295, %v5295
      %v5328 = vpack.c.bf16 %v5296, %v5296
      %v5329 = vpack.c.bf16 %v5297, %v5297
      %v5330 = vpack.c.bf16 %v5298, %v5298
      %v5331 = vpack.c.bf16 %v5299, %v5299
      %v5332 = vpack.c.bf16 %v5300, %v5300
      %v5333 = vpack.c.bf16 %v5301, %v5301
      %v5334 = vpack.c.bf16 %v5302, %v5302
      %v5335 = vpack.c.bf16 %v5303, %v5303
      %v5336 = vpack.c.bf16 %v5304, %v5304
      %v5337 = vpack.c.bf16 %v5305, %v5305
      %v5338 = vpack.c.bf16 %v5306, %v5306
      %v5339 = vpack.c.bf16 %v5307, %v5307
      %v5340 = vpack.c.bf16 %v5308, %v5308
      %v5341 = vpack.c.bf16 %v5309, %v5309
      %v5342 = vpack.c.bf16 %v5310, %v5310
      %v5343 = vpack.c.bf16 %v5311, %v5311
      %v5344 = vpack.c.bf16 %v5312, %v5312
      %v5345 = vpack.c.bf16 %v5313, %v5313
      %v5346 = vpack.c.bf16 %v5314, %v5314
      %v5347 = vpack.c.bf16 %v5315, %v5315
      %v5348 = vpack.c.bf16 %v5316, %v5316
      %v5349 = vpack.c.bf16 %v5317, %v5317
      %v5350 = vpack.c.bf16 %v5318, %v5318
      %v5351 = vpack.c.bf16 %v5319, %v5319
      %v5352 = vpack.c.bf16 %v5320, %v5320
      %v5353 = vpack.c.bf16 %v5321, %v5321
      %v5354 = vpack.c.bf16 %v5322, %v5322
      %v5355 = vpack.c.bf16 %v5323, %v5323
      %v5356 = vpack.c.bf16 %v5324, %v5324
      %v5357 = vpack.c.bf16 %v5325, %v5325
      %5390 = vrot.lane.b32.xlu0 %v5326, 16
      %v5391 = vpop.permute.xlu0 %5390
      %5392 = vrot.lane.b32.xlu0 %v5327, 16
      %v5393 = vpop.permute.xlu0 %5392
      %5394 = vrot.lane.b32.xlu0 %v5328, 16
      %v5395 = vpop.permute.xlu0 %5394
      %5396 = vrot.lane.b32.xlu0 %v5329, 16
      %v5397 = vpop.permute.xlu0 %5396
      %5398 = vrot.lane.b32.xlu0 %v5330, 16
      %v5399 = vpop.permute.xlu0 %5398
      %5400 = vrot.lane.b32.xlu0 %v5331, 16
      %v5401 = vpop.permute.xlu0 %5400
      %5402 = vrot.lane.b32.xlu0 %v5332, 16
      %v5403 = vpop.permute.xlu0 %5402
      %5404 = vrot.lane.b32.xlu0 %v5333, 16
      %v5405 = vpop.permute.xlu0 %5404
      %5406 = vrot.lane.b32.xlu0 %v5334, 16
      %v5407 = vpop.permute.xlu0 %5406
      %5408 = vrot.lane.b32.xlu0 %v5335, 16
      %v5409 = vpop.permute.xlu0 %5408
      %5410 = vrot.lane.b32.xlu0 %v5336, 16
      %v5411 = vpop.permute.xlu0 %5410
      %5412 = vrot.lane.b32.xlu0 %v5337, 16
      %v5413 = vpop.permute.xlu0 %5412
      %5414 = vrot.lane.b32.xlu0 %v5338, 16
      %v5415 = vpop.permute.xlu0 %5414
      %5416 = vrot.lane.b32.xlu0 %v5339, 16
      %v5417 = vpop.permute.xlu0 %5416
      %5418 = vrot.lane.b32.xlu0 %v5340, 16
      %v5419 = vpop.permute.xlu0 %5418
      %5420 = vrot.lane.b32.xlu0 %v5341, 16
      %v5421 = vpop.permute.xlu0 %5420
      %5422 = vrot.lane.b32.xlu0 %v5342, 16
      %v5423 = vpop.permute.xlu0 %5422
      %5424 = vrot.lane.b32.xlu0 %v5343, 16
      %v5425 = vpop.permute.xlu0 %5424
      %5426 = vrot.lane.b32.xlu0 %v5344, 16
      %v5427 = vpop.permute.xlu0 %5426
      %5428 = vrot.lane.b32.xlu0 %v5345, 16
      %v5429 = vpop.permute.xlu0 %5428
      %5430 = vrot.lane.b32.xlu0 %v5346, 16
      %v5431 = vpop.permute.xlu0 %5430
      %5432 = vrot.lane.b32.xlu0 %v5347, 16
      %v5433 = vpop.permute.xlu0 %5432
      %5434 = vrot.lane.b32.xlu0 %v5348, 16
      %v5435 = vpop.permute.xlu0 %5434
      %5436 = vrot.lane.b32.xlu0 %v5349, 16
      %v5437 = vpop.permute.xlu0 %5436
      %5438 = vrot.lane.b32.xlu0 %v5350, 16
      %v5439 = vpop.permute.xlu0 %5438
      %5440 = vrot.lane.b32.xlu0 %v5351, 16
      %v5441 = vpop.permute.xlu0 %5440
      %5442 = vrot.lane.b32.xlu0 %v5352, 16
      %v5443 = vpop.permute.xlu0 %5442
      %5444 = vrot.lane.b32.xlu0 %v5353, 16
      %v5445 = vpop.permute.xlu0 %5444
      %5446 = vrot.lane.b32.xlu0 %v5354, 16
      %v5447 = vpop.permute.xlu0 %5446
      %5448 = vrot.lane.b32.xlu0 %v5355, 16
      %v5449 = vpop.permute.xlu0 %5448
      %5450 = vrot.lane.b32.xlu0 %v5356, 16
      %v5451 = vpop.permute.xlu0 %5450
      %5452 = vrot.lane.b32.xlu0 %v5357, 16
      %v5453 = vpop.permute.xlu0 %5452
      %5486 = vst.msk [vmem:[#allocation5] sm:$0xf] %vm3232, %v5391
      %5487 = vst.msk [vmem:[#allocation5 + $0x4] sm:$0xf] %vm3232, %v5393
      %5488 = vst.msk [vmem:[#allocation5 + $0x8] sm:$0xf] %vm3232, %v5395
      %5489 = vst.msk [vmem:[#allocation5 + $0xc] sm:$0xf] %vm3232, %v5397
      %5490 = vst.msk [vmem:[#allocation5 + $0x10] sm:$0xf] %vm3232, %v5399
      %5491 = vst.msk [vmem:[#allocation5 + $0x14] sm:$0xf] %vm3232, %v5401
      %5492 = vst.msk [vmem:[#allocation5 + $0x18] sm:$0xf] %vm3232, %v5403
      %5493 = vst.msk [vmem:[#allocation5 + $0x1c] sm:$0xf] %vm3232, %v5405
      %5494 = vst.msk [vmem:[#allocation5 + $0x20] sm:$0xf] %vm3232, %v5407
      %5495 = vst.msk [vmem:[#allocation5 + $0x24] sm:$0xf] %vm3232, %v5409
      %5496 = vst.msk [vmem:[#allocation5 + $0x28] sm:$0xf] %vm3232, %v5411
      %5497 = vst.msk [vmem:[#allocation5 + $0x2c] sm:$0xf] %vm3232, %v5413
      %5498 = vst.msk [vmem:[#allocation5 + $0x30] sm:$0xf] %vm3232, %v5415
      %5499 = vst.msk [vmem:[#allocation5 + $0x34] sm:$0xf] %vm3232, %v5417
      %5500 = vst.msk [vmem:[#allocation5 + $0x38] sm:$0xf] %vm3232, %v5419
      %5501 = vst.msk [vmem:[#allocation5 + $0x3c] sm:$0xf] %vm3232, %v5421
      %5502 = vst.msk [vmem:[#allocation5 + $0x40] sm:$0xf] %vm3232, %v5423
      %5503 = vst.msk [vmem:[#allocation5 + $0x44] sm:$0xf] %vm3232, %v5425
      %5504 = vst.msk [vmem:[#allocation5 + $0x48] sm:$0xf] %vm3232, %v5427
      %5505 = vst.msk [vmem:[#allocation5 + $0x4c] sm:$0xf] %vm3232, %v5429
      %5506 = vst.msk [vmem:[#allocation5 + $0x50] sm:$0xf] %vm3232, %v5431
      %5507 = vst.msk [vmem:[#allocation5 + $0x54] sm:$0xf] %vm3232, %v5433
      %5508 = vst.msk [vmem:[#allocation5 + $0x58] sm:$0xf] %vm3232, %v5435
      %5509 = vst.msk [vmem:[#allocation5 + $0x5c] sm:$0xf] %vm3232, %v5437
      %5510 = vst.msk [vmem:[#allocation5 + $0x60] sm:$0xf] %vm3232, %v5439
      %5511 = vst.msk [vmem:[#allocation5 + $0x64] sm:$0xf] %vm3232, %v5441
      %5512 = vst.msk [vmem:[#allocation5 + $0x68] sm:$0xf] %vm3232, %v5443
      %5513 = vst.msk [vmem:[#allocation5 + $0x6c] sm:$0xf] %vm3232, %v5445
      %5514 = vst.msk [vmem:[#allocation5 + $0x70] sm:$0xf] %vm3232, %v5447
      %5515 = vst.msk [vmem:[#allocation5 + $0x74] sm:$0xf] %vm3232, %v5449
      %5516 = vst.msk [vmem:[#allocation5 + $0x78] sm:$0xf] %vm3232, %v5451
      %5517 = vst.msk [vmem:[#allocation5 + $0x7c] sm:$0xf] %vm3232, %v5453
      %v5518 = vld [vmem:[%s2685] sm:$0xff]
      %v5519 = vld [vmem:[%s2685 + $0x8] sm:$0xff]
      %v5520 = vld [vmem:[%s2685 + $0x18] sm:$0xff]
      %v5521 = vld [vmem:[%s2685 + $0x20] sm:$0xff]
      %v5522 = vld [vmem:[%s2685 + $0x30] sm:$0xff]
      %v5523 = vld [vmem:[%s2685 + $0x38] sm:$0xff]
      %v5524 = vld [vmem:[%s2685 + $0x48] sm:$0xff]
      %v5525 = vld [vmem:[%s2685 + $0x50] sm:$0xff]
      %v5526 = vld [vmem:[%s2685 + $0x60] sm:$0xff]
      %v5527 = vld [vmem:[%s2685 + $0x68] sm:$0xff]
      %v5528 = vld [vmem:[%s2685 + $0x78] sm:$0xff]
      %v5529 = vld [vmem:[%s2685 + $0x80] sm:$0xff]
      %v5530 = vld [vmem:[%s2685 + $0x90] sm:$0xff]
      %v5531 = vld [vmem:[%s2685 + $0x98] sm:$0xff]
      %v5532 = vld [vmem:[%s2685 + $0xa8] sm:$0xff]
      %v5533 = vld [vmem:[%s2685 + $0xb0] sm:$0xff]
      %v5534 = vld [vmem:[%s2685 + $0xc0] sm:$0xff]
      %v5535 = vld [vmem:[%s2685 + $0xc8] sm:$0xff]
      %v5536 = vld [vmem:[%s2685 + $0xd8] sm:$0xff]
      %v5537 = vld [vmem:[%s2685 + $0xe0] sm:$0xff]
      %v5538 = vld [vmem:[%s2685 + $0xf0] sm:$0xff]
      %v5539 = vld [vmem:[%s2685 + $0xf8] sm:$0xff]
      %v5540 = vld [vmem:[%s2685 + $0x108] sm:$0xff]
      %v5541 = vld [vmem:[%s2685 + $0x110] sm:$0xff]
      %v5542 = vld [vmem:[%s2685 + $0x120] sm:$0xff]
      %v5543 = vld [vmem:[%s2685 + $0x128] sm:$0xff]
      %v5544 = vld [vmem:[%s2685 + $0x138] sm:$0xff]
      %v5545 = vld [vmem:[%s2685 + $0x140] sm:$0xff]
      %v5546 = vld [vmem:[%s2685 + $0x150] sm:$0xff]
      %v5547 = vld [vmem:[%s2685 + $0x158] sm:$0xff]
      %v5548 = vld [vmem:[%s2685 + $0x168] sm:$0xff]
      %v5549 = vld [vmem:[%s2685 + $0x170] sm:$0xff]
      %v5550 = vpack.c.bf16 %v5518, %v5518
      %v5551 = vpack.c.bf16 %v5519, %v5519
      %v5552 = vpack.c.bf16 %v5520, %v5520
      %v5553 = vpack.c.bf16 %v5521, %v5521
      %v5554 = vpack.c.bf16 %v5522, %v5522
      %v5555 = vpack.c.bf16 %v5523, %v5523
      %v5556 = vpack.c.bf16 %v5524, %v5524
      %v5557 = vpack.c.bf16 %v5525, %v5525
      %v5558 = vpack.c.bf16 %v5526, %v5526
      %v5559 = vpack.c.bf16 %v5527, %v5527
      %v5560 = vpack.c.bf16 %v5528, %v5528
      %v5561 = vpack.c.bf16 %v5529, %v5529
      %v5562 = vpack.c.bf16 %v5530, %v5530
      %v5563 = vpack.c.bf16 %v5531, %v5531
      %v5564 = vpack.c.bf16 %v5532, %v5532
      %v5565 = vpack.c.bf16 %v5533, %v5533
      %v5566 = vpack.c.bf16 %v5534, %v5534
      %v5567 = vpack.c.bf16 %v5535, %v5535
      %v5568 = vpack.c.bf16 %v5536, %v5536
      %v5569 = vpack.c.bf16 %v5537, %v5537
      %v5570 = vpack.c.bf16 %v5538, %v5538
      %v5571 = vpack.c.bf16 %v5539, %v5539
      %v5572 = vpack.c.bf16 %v5540, %v5540
      %v5573 = vpack.c.bf16 %v5541, %v5541
      %v5574 = vpack.c.bf16 %v5542, %v5542
      %v5575 = vpack.c.bf16 %v5543, %v5543
      %v5576 = vpack.c.bf16 %v5544, %v5544
      %v5577 = vpack.c.bf16 %v5545, %v5545
      %v5578 = vpack.c.bf16 %v5546, %v5546
      %v5579 = vpack.c.bf16 %v5547, %v5547
      %v5580 = vpack.c.bf16 %v5548, %v5548
      %v5581 = vpack.c.bf16 %v5549, %v5549
      %5614 = vrot.lane.b32.xlu0 %v5550, 24
      %v5615 = vpop.permute.xlu0 %5614
      %5616 = vrot.lane.b32.xlu0 %v5551, 24
      %v5617 = vpop.permute.xlu0 %5616
      %5618 = vrot.lane.b32.xlu0 %v5552, 24
      %v5619 = vpop.permute.xlu0 %5618
      %5620 = vrot.lane.b32.xlu0 %v5553, 24
      %v5621 = vpop.permute.xlu0 %5620
      %5622 = vrot.lane.b32.xlu0 %v5554, 24
      %v5623 = vpop.permute.xlu0 %5622
      %5624 = vrot.lane.b32.xlu0 %v5555, 24
      %v5625 = vpop.permute.xlu0 %5624
      %5626 = vrot.lane.b32.xlu0 %v5556, 24
      %v5627 = vpop.permute.xlu0 %5626
      %5628 = vrot.lane.b32.xlu0 %v5557, 24
      %v5629 = vpop.permute.xlu0 %5628
      %5630 = vrot.lane.b32.xlu0 %v5558, 24
      %v5631 = vpop.permute.xlu0 %5630
      %5632 = vrot.lane.b32.xlu0 %v5559, 24
      %v5633 = vpop.permute.xlu0 %5632
      %5634 = vrot.lane.b32.xlu0 %v5560, 24
      %v5635 = vpop.permute.xlu0 %5634
      %5636 = vrot.lane.b32.xlu0 %v5561, 24
      %v5637 = vpop.permute.xlu0 %5636
      %5638 = vrot.lane.b32.xlu0 %v5562, 24
      %v5639 = vpop.permute.xlu0 %5638
      %5640 = vrot.lane.b32.xlu0 %v5563, 24
      %v5641 = vpop.permute.xlu0 %5640
      %5642 = vrot.lane.b32.xlu0 %v5564, 24
      %v5643 = vpop.permute.xlu0 %5642
      %5644 = vrot.lane.b32.xlu0 %v5565, 24
      %v5645 = vpop.permute.xlu0 %5644
      %5646 = vrot.lane.b32.xlu0 %v5566, 24
      %v5647 = vpop.permute.xlu0 %5646
      %5648 = vrot.lane.b32.xlu0 %v5567, 24
      %v5649 = vpop.permute.xlu0 %5648
      %5650 = vrot.lane.b32.xlu0 %v5568, 24
      %v5651 = vpop.permute.xlu0 %5650
      %5652 = vrot.lane.b32.xlu0 %v5569, 24
      %v5653 = vpop.permute.xlu0 %5652
      %5654 = vrot.lane.b32.xlu0 %v5570, 24
      %v5655 = vpop.permute.xlu0 %5654
      %5656 = vrot.lane.b32.xlu0 %v5571, 24
      %v5657 = vpop.permute.xlu0 %5656
      %5658 = vrot.lane.b32.xlu0 %v5572, 24
      %v5659 = vpop.permute.xlu0 %5658
      %5660 = vrot.lane.b32.xlu0 %v5573, 24
      %v5661 = vpop.permute.xlu0 %5660
      %5662 = vrot.lane.b32.xlu0 %v5574, 24
      %v5663 = vpop.permute.xlu0 %5662
      %5664 = vrot.lane.b32.xlu0 %v5575, 24
      %v5665 = vpop.permute.xlu0 %5664
      %5666 = vrot.lane.b32.xlu0 %v5576, 24
      %v5667 = vpop.permute.xlu0 %5666
      %5668 = vrot.lane.b32.xlu0 %v5577, 24
      %v5669 = vpop.permute.xlu0 %5668
      %5670 = vrot.lane.b32.xlu0 %v5578, 24
      %v5671 = vpop.permute.xlu0 %5670
      %5672 = vrot.lane.b32.xlu0 %v5579, 24
      %v5673 = vpop.permute.xlu0 %5672
      %5674 = vrot.lane.b32.xlu0 %v5580, 24
      %v5675 = vpop.permute.xlu0 %5674
      %5676 = vrot.lane.b32.xlu0 %v5581, 24
      %v5677 = vpop.permute.xlu0 %5676
      %5710 = vst.msk [vmem:[#allocation5] sm:$0xf] %vm3457, %v5615
      %5711 = vst.msk [vmem:[#allocation5 + $0x4] sm:$0xf] %vm3457, %v5617
      %5712 = vst.msk [vmem:[#allocation5 + $0x8] sm:$0xf] %vm3457, %v5619
      %5713 = vst.msk [vmem:[#allocation5 + $0xc] sm:$0xf] %vm3457, %v5621
      %5714 = vst.msk [vmem:[#allocation5 + $0x10] sm:$0xf] %vm3457, %v5623
      %5715 = vst.msk [vmem:[#allocation5 + $0x14] sm:$0xf] %vm3457, %v5625
      %5716 = vst.msk [vmem:[#allocation5 + $0x18] sm:$0xf] %vm3457, %v5627
      %5717 = vst.msk [vmem:[#allocation5 + $0x1c] sm:$0xf] %vm3457, %v5629
      %5718 = vst.msk [vmem:[#allocation5 + $0x20] sm:$0xf] %vm3457, %v5631
      %5719 = vst.msk [vmem:[#allocation5 + $0x24] sm:$0xf] %vm3457, %v5633
      %5720 = vst.msk [vmem:[#allocation5 + $0x28] sm:$0xf] %vm3457, %v5635
      %5721 = vst.msk [vmem:[#allocation5 + $0x2c] sm:$0xf] %vm3457, %v5637
      %5722 = vst.msk [vmem:[#allocation5 + $0x30] sm:$0xf] %vm3457, %v5639
      %5723 = vst.msk [vmem:[#allocation5 + $0x34] sm:$0xf] %vm3457, %v5641
      %5724 = vst.msk [vmem:[#allocation5 + $0x38] sm:$0xf] %vm3457, %v5643
      %5725 = vst.msk [vmem:[#allocation5 + $0x3c] sm:$0xf] %vm3457, %v5645
      %5726 = vst.msk [vmem:[#allocation5 + $0x40] sm:$0xf] %vm3457, %v5647
      %5727 = vst.msk [vmem:[#allocation5 + $0x44] sm:$0xf] %vm3457, %v5649
      %5728 = vst.msk [vmem:[#allocation5 + $0x48] sm:$0xf] %vm3457, %v5651
      %5729 = vst.msk [vmem:[#allocation5 + $0x4c] sm:$0xf] %vm3457, %v5653
      %5730 = vst.msk [vmem:[#allocation5 + $0x50] sm:$0xf] %vm3457, %v5655
      %5731 = vst.msk [vmem:[#allocation5 + $0x54] sm:$0xf] %vm3457, %v5657
      %5732 = vst.msk [vmem:[#allocation5 + $0x58] sm:$0xf] %vm3457, %v5659
      %5733 = vst.msk [vmem:[#allocation5 + $0x5c] sm:$0xf] %vm3457, %v5661
      %5734 = vst.msk [vmem:[#allocation5 + $0x60] sm:$0xf] %vm3457, %v5663
      %5735 = vst.msk [vmem:[#allocation5 + $0x64] sm:$0xf] %vm3457, %v5665
      %5736 = vst.msk [vmem:[#allocation5 + $0x68] sm:$0xf] %vm3457, %v5667
      %5737 = vst.msk [vmem:[#allocation5 + $0x6c] sm:$0xf] %vm3457, %v5669
      %5738 = vst.msk [vmem:[#allocation5 + $0x70] sm:$0xf] %vm3457, %v5671
      %5739 = vst.msk [vmem:[#allocation5 + $0x74] sm:$0xf] %vm3457, %v5673
      %5740 = vst.msk [vmem:[#allocation5 + $0x78] sm:$0xf] %vm3457, %v5675
      %5741 = vst.msk [vmem:[#allocation5 + $0x7c] sm:$0xf] %vm3457, %v5677
      %v5742 = vld [vmem:[%s2685 + $0x1] sm:$0xff]
      %v5743 = vld [vmem:[%s2685 + $0x9] sm:$0xff]
      %v5744 = vld [vmem:[%s2685 + $0x19] sm:$0xff]
      %v5745 = vld [vmem:[%s2685 + $0x21] sm:$0xff]
      %v5746 = vld [vmem:[%s2685 + $0x31] sm:$0xff]
      %v5747 = vld [vmem:[%s2685 + $0x39] sm:$0xff]
      %v5748 = vld [vmem:[%s2685 + $0x49] sm:$0xff]
      %v5749 = vld [vmem:[%s2685 + $0x51] sm:$0xff]
      %v5750 = vld [vmem:[%s2685 + $0x61] sm:$0xff]
      %v5751 = vld [vmem:[%s2685 + $0x69] sm:$0xff]
      %v5752 = vld [vmem:[%s2685 + $0x79] sm:$0xff]
      %v5753 = vld [vmem:[%s2685 + $0x81] sm:$0xff]
      %v5754 = vld [vmem:[%s2685 + $0x91] sm:$0xff]
      %v5755 = vld [vmem:[%s2685 + $0x99] sm:$0xff]
      %v5756 = vld [vmem:[%s2685 + $0xa9] sm:$0xff]
      %v5757 = vld [vmem:[%s2685 + $0xb1] sm:$0xff]
      %v5758 = vld [vmem:[%s2685 + $0xc1] sm:$0xff]
      %v5759 = vld [vmem:[%s2685 + $0xc9] sm:$0xff]
      %v5760 = vld [vmem:[%s2685 + $0xd9] sm:$0xff]
      %v5761 = vld [vmem:[%s2685 + $0xe1] sm:$0xff]
      %v5762 = vld [vmem:[%s2685 + $0xf1] sm:$0xff]
      %v5763 = vld [vmem:[%s2685 + $0xf9] sm:$0xff]
      %v5764 = vld [vmem:[%s2685 + $0x109] sm:$0xff]
      %v5765 = vld [vmem:[%s2685 + $0x111] sm:$0xff]
      %v5766 = vld [vmem:[%s2685 + $0x121] sm:$0xff]
      %v5767 = vld [vmem:[%s2685 + $0x129] sm:$0xff]
      %v5768 = vld [vmem:[%s2685 + $0x139] sm:$0xff]
      %v5769 = vld [vmem:[%s2685 + $0x141] sm:$0xff]
      %v5770 = vld [vmem:[%s2685 + $0x151] sm:$0xff]
      %v5771 = vld [vmem:[%s2685 + $0x159] sm:$0xff]
      %v5772 = vld [vmem:[%s2685 + $0x169] sm:$0xff]
      %v5773 = vld [vmem:[%s2685 + $0x171] sm:$0xff]
      %v5774 = vpack.c.bf16 %v5742, %v5742
      %v5775 = vpack.c.bf16 %v5743, %v5743
      %v5776 = vpack.c.bf16 %v5744, %v5744
      %v5777 = vpack.c.bf16 %v5745, %v5745
      %v5778 = vpack.c.bf16 %v5746, %v5746
      %v5779 = vpack.c.bf16 %v5747, %v5747
      %v5780 = vpack.c.bf16 %v5748, %v5748
      %v5781 = vpack.c.bf16 %v5749, %v5749
      %v5782 = vpack.c.bf16 %v5750, %v5750
      %v5783 = vpack.c.bf16 %v5751, %v5751
      %v5784 = vpack.c.bf16 %v5752, %v5752
      %v5785 = vpack.c.bf16 %v5753, %v5753
      %v5786 = vpack.c.bf16 %v5754, %v5754
      %v5787 = vpack.c.bf16 %v5755, %v5755
      %v5788 = vpack.c.bf16 %v5756, %v5756
      %v5789 = vpack.c.bf16 %v5757, %v5757
      %v5790 = vpack.c.bf16 %v5758, %v5758
      %v5791 = vpack.c.bf16 %v5759, %v5759
      %v5792 = vpack.c.bf16 %v5760, %v5760
      %v5793 = vpack.c.bf16 %v5761, %v5761
      %v5794 = vpack.c.bf16 %v5762, %v5762
      %v5795 = vpack.c.bf16 %v5763, %v5763
      %v5796 = vpack.c.bf16 %v5764, %v5764
      %v5797 = vpack.c.bf16 %v5765, %v5765
      %v5798 = vpack.c.bf16 %v5766, %v5766
      %v5799 = vpack.c.bf16 %v5767, %v5767
      %v5800 = vpack.c.bf16 %v5768, %v5768
      %v5801 = vpack.c.bf16 %v5769, %v5769
      %v5802 = vpack.c.bf16 %v5770, %v5770
      %v5803 = vpack.c.bf16 %v5771, %v5771
      %v5804 = vpack.c.bf16 %v5772, %v5772
      %v5805 = vpack.c.bf16 %v5773, %v5773
      %5838 = vrot.lane.b32.xlu0 %v5774, 32
      %v5839 = vpop.permute.xlu0 %5838
      %5840 = vrot.lane.b32.xlu0 %v5775, 32
      %v5841 = vpop.permute.xlu0 %5840
      %5842 = vrot.lane.b32.xlu0 %v5776, 32
      %v5843 = vpop.permute.xlu0 %5842
      %5844 = vrot.lane.b32.xlu0 %v5777, 32
      %v5845 = vpop.permute.xlu0 %5844
      %5846 = vrot.lane.b32.xlu0 %v5778, 32
      %v5847 = vpop.permute.xlu0 %5846
      %5848 = vrot.lane.b32.xlu0 %v5779, 32
      %v5849 = vpop.permute.xlu0 %5848
      %5850 = vrot.lane.b32.xlu0 %v5780, 32
      %v5851 = vpop.permute.xlu0 %5850
      %5852 = vrot.lane.b32.xlu0 %v5781, 32
      %v5853 = vpop.permute.xlu0 %5852
      %5854 = vrot.lane.b32.xlu0 %v5782, 32
      %v5855 = vpop.permute.xlu0 %5854
      %5856 = vrot.lane.b32.xlu0 %v5783, 32
      %v5857 = vpop.permute.xlu0 %5856
      %5858 = vrot.lane.b32.xlu0 %v5784, 32
      %v5859 = vpop.permute.xlu0 %5858
      %5860 = vrot.lane.b32.xlu0 %v5785, 32
      %v5861 = vpop.permute.xlu0 %5860
      %5862 = vrot.lane.b32.xlu0 %v5786, 32
      %v5863 = vpop.permute.xlu0 %5862
      %5864 = vrot.lane.b32.xlu0 %v5787, 32
      %v5865 = vpop.permute.xlu0 %5864
      %5866 = vrot.lane.b32.xlu0 %v5788, 32
      %v5867 = vpop.permute.xlu0 %5866
      %5868 = vrot.lane.b32.xlu0 %v5789, 32
      %v5869 = vpop.permute.xlu0 %5868
      %5870 = vrot.lane.b32.xlu0 %v5790, 32
      %v5871 = vpop.permute.xlu0 %5870
      %5872 = vrot.lane.b32.xlu0 %v5791, 32
      %v5873 = vpop.permute.xlu0 %5872
      %5874 = vrot.lane.b32.xlu0 %v5792, 32
      %v5875 = vpop.permute.xlu0 %5874
      %5876 = vrot.lane.b32.xlu0 %v5793, 32
      %v5877 = vpop.permute.xlu0 %5876
      %5878 = vrot.lane.b32.xlu0 %v5794, 32
      %v5879 = vpop.permute.xlu0 %5878
      %5880 = vrot.lane.b32.xlu0 %v5795, 32
      %v5881 = vpop.permute.xlu0 %5880
      %5882 = vrot.lane.b32.xlu0 %v5796, 32
      %v5883 = vpop.permute.xlu0 %5882
      %5884 = vrot.lane.b32.xlu0 %v5797, 32
      %v5885 = vpop.permute.xlu0 %5884
      %5886 = vrot.lane.b32.xlu0 %v5798, 32
      %v5887 = vpop.permute.xlu0 %5886
      %5888 = vrot.lane.b32.xlu0 %v5799, 32
      %v5889 = vpop.permute.xlu0 %5888
      %5890 = vrot.lane.b32.xlu0 %v5800, 32
      %v5891 = vpop.permute.xlu0 %5890
      %5892 = vrot.lane.b32.xlu0 %v5801, 32
      %v5893 = vpop.permute.xlu0 %5892
      %5894 = vrot.lane.b32.xlu0 %v5802, 32
      %v5895 = vpop.permute.xlu0 %5894
      %5896 = vrot.lane.b32.xlu0 %v5803, 32
      %v5897 = vpop.permute.xlu0 %5896
      %5898 = vrot.lane.b32.xlu0 %v5804, 32
      %v5899 = vpop.permute.xlu0 %5898
      %5900 = vrot.lane.b32.xlu0 %v5805, 32
      %v5901 = vpop.permute.xlu0 %5900
      %5934 = vst.msk [vmem:[#allocation5] sm:$0xf] %vm3682, %v5839
      %5935 = vst.msk [vmem:[#allocation5 + $0x4] sm:$0xf] %vm3682, %v5841
      %5936 = vst.msk [vmem:[#allocation5 + $0x8] sm:$0xf] %vm3682, %v5843
      %5937 = vst.msk [vmem:[#allocation5 + $0xc] sm:$0xf] %vm3682, %v5845
      %5938 = vst.msk [vmem:[#allocation5 + $0x10] sm:$0xf] %vm3682, %v5847
      %5939 = vst.msk [vmem:[#allocation5 + $0x14] sm:$0xf] %vm3682, %v5849
      %5940 = vst.msk [vmem:[#allocation5 + $0x18] sm:$0xf] %vm3682, %v5851
      %5941 = vst.msk [vmem:[#allocation5 + $0x1c] sm:$0xf] %vm3682, %v5853
      %5942 = vst.msk [vmem:[#allocation5 + $0x20] sm:$0xf] %vm3682, %v5855
      %5943 = vst.msk [vmem:[#allocation5 + $0x24] sm:$0xf] %vm3682, %v5857
      %5944 = vst.msk [vmem:[#allocation5 + $0x28] sm:$0xf] %vm3682, %v5859
      %5945 = vst.msk [vmem:[#allocation5 + $0x2c] sm:$0xf] %vm3682, %v5861
      %5946 = vst.msk [vmem:[#allocation5 + $0x30] sm:$0xf] %vm3682, %v5863
      %5947 = vst.msk [vmem:[#allocation5 + $0x34] sm:$0xf] %vm3682, %v5865
      %5948 = vst.msk [vmem:[#allocation5 + $0x38] sm:$0xf] %vm3682, %v5867
      %5949 = vst.msk [vmem:[#allocation5 + $0x3c] sm:$0xf] %vm3682, %v5869
      %5950 = vst.msk [vmem:[#allocation5 + $0x40] sm:$0xf] %vm3682, %v5871
      %5951 = vst.msk [vmem:[#allocation5 + $0x44] sm:$0xf] %vm3682, %v5873
      %5952 = vst.msk [vmem:[#allocation5 + $0x48] sm:$0xf] %vm3682, %v5875
      %5953 = vst.msk [vmem:[#allocation5 + $0x4c] sm:$0xf] %vm3682, %v5877
      %5954 = vst.msk [vmem:[#allocation5 + $0x50] sm:$0xf] %vm3682, %v5879
      %5955 = vst.msk [vmem:[#allocation5 + $0x54] sm:$0xf] %vm3682, %v5881
      %5956 = vst.msk [vmem:[#allocation5 + $0x58] sm:$0xf] %vm3682, %v5883
      %5957 = vst.msk [vmem:[#allocation5 + $0x5c] sm:$0xf] %vm3682, %v5885
      %5958 = vst.msk [vmem:[#allocation5 + $0x60] sm:$0xf] %vm3682, %v5887
      %5959 = vst.msk [vmem:[#allocation5 + $0x64] sm:$0xf] %vm3682, %v5889
      %5960 = vst.msk [vmem:[#allocation5 + $0x68] sm:$0xf] %vm3682, %v5891
      %5961 = vst.msk [vmem:[#allocation5 + $0x6c] sm:$0xf] %vm3682, %v5893
      %5962 = vst.msk [vmem:[#allocation5 + $0x70] sm:$0xf] %vm3682, %v5895
      %5963 = vst.msk [vmem:[#allocation5 + $0x74] sm:$0xf] %vm3682, %v5897
      %5964 = vst.msk [vmem:[#allocation5 + $0x78] sm:$0xf] %vm3682, %v5899
      %5965 = vst.msk [vmem:[#allocation5 + $0x7c] sm:$0xf] %vm3682, %v5901
      %v5966 = vld [vmem:[%s2685 + $0x2] sm:$0xff]
      %v5967 = vld [vmem:[%s2685 + $0xa] sm:$0xff]
      %v5968 = vld [vmem:[%s2685 + $0x1a] sm:$0xff]
      %v5969 = vld [vmem:[%s2685 + $0x22] sm:$0xff]
      %v5970 = vld [vmem:[%s2685 + $0x32] sm:$0xff]
      %v5971 = vld [vmem:[%s2685 + $0x3a] sm:$0xff]
      %v5972 = vld [vmem:[%s2685 + $0x4a] sm:$0xff]
      %v5973 = vld [vmem:[%s2685 + $0x52] sm:$0xff]
      %v5974 = vld [vmem:[%s2685 + $0x62] sm:$0xff]
      %v5975 = vld [vmem:[%s2685 + $0x6a] sm:$0xff]
      %v5976 = vld [vmem:[%s2685 + $0x7a] sm:$0xff]
      %v5977 = vld [vmem:[%s2685 + $0x82] sm:$0xff]
      %v5978 = vld [vmem:[%s2685 + $0x92] sm:$0xff]
      %v5979 = vld [vmem:[%s2685 + $0x9a] sm:$0xff]
      %v5980 = vld [vmem:[%s2685 + $0xaa] sm:$0xff]
      %v5981 = vld [vmem:[%s2685 + $0xb2] sm:$0xff]
      %v5982 = vld [vmem:[%s2685 + $0xc2] sm:$0xff]
      %v5983 = vld [vmem:[%s2685 + $0xca] sm:$0xff]
      %v5984 = vld [vmem:[%s2685 + $0xda] sm:$0xff]
      %v5985 = vld [vmem:[%s2685 + $0xe2] sm:$0xff]
      %v5986 = vld [vmem:[%s2685 + $0xf2] sm:$0xff]
      %v5987 = vld [vmem:[%s2685 + $0xfa] sm:$0xff]
      %v5988 = vld [vmem:[%s2685 + $0x10a] sm:$0xff]
      %v5989 = vld [vmem:[%s2685 + $0x112] sm:$0xff]
      %v5990 = vld [vmem:[%s2685 + $0x122] sm:$0xff]
      %v5991 = vld [vmem:[%s2685 + $0x12a] sm:$0xff]
      %v5992 = vld [vmem:[%s2685 + $0x13a] sm:$0xff]
      %v5993 = vld [vmem:[%s2685 + $0x142] sm:$0xff]
      %v5994 = vld [vmem:[%s2685 + $0x152] sm:$0xff]
      %v5995 = vld [vmem:[%s2685 + $0x15a] sm:$0xff]
      %v5996 = vld [vmem:[%s2685 + $0x16a] sm:$0xff]
      %v5997 = vld [vmem:[%s2685 + $0x172] sm:$0xff]
      %v5998 = vpack.c.bf16 %v5966, %v5966
      %v5999 = vpack.c.bf16 %v5967, %v5967
      %v6000 = vpack.c.bf16 %v5968, %v5968
      %v6001 = vpack.c.bf16 %v5969, %v5969
      %v6002 = vpack.c.bf16 %v5970, %v5970
      %v6003 = vpack.c.bf16 %v5971, %v5971
      %v6004 = vpack.c.bf16 %v5972, %v5972
      %v6005 = vpack.c.bf16 %v5973, %v5973
      %v6006 = vpack.c.bf16 %v5974, %v5974
      %v6007 = vpack.c.bf16 %v5975, %v5975
      %v6008 = vpack.c.bf16 %v5976, %v5976
      %v6009 = vpack.c.bf16 %v5977, %v5977
      %v6010 = vpack.c.bf16 %v5978, %v5978
      %v6011 = vpack.c.bf16 %v5979, %v5979
      %v6012 = vpack.c.bf16 %v5980, %v5980
      %v6013 = vpack.c.bf16 %v5981, %v5981
      %v6014 = vpack.c.bf16 %v5982, %v5982
      %v6015 = vpack.c.bf16 %v5983, %v5983
      %v6016 = vpack.c.bf16 %v5984, %v5984
      %v6017 = vpack.c.bf16 %v5985, %v5985
      %v6018 = vpack.c.bf16 %v5986, %v5986
      %v6019 = vpack.c.bf16 %v5987, %v5987
      %v6020 = vpack.c.bf16 %v5988, %v5988
      %v6021 = vpack.c.bf16 %v5989, %v5989
      %v6022 = vpack.c.bf16 %v5990, %v5990
      %v6023 = vpack.c.bf16 %v5991, %v5991
      %v6024 = vpack.c.bf16 %v5992, %v5992
      %v6025 = vpack.c.bf16 %v5993, %v5993
      %v6026 = vpack.c.bf16 %v5994, %v5994
      %v6027 = vpack.c.bf16 %v5995, %v5995
      %v6028 = vpack.c.bf16 %v5996, %v5996
      %v6029 = vpack.c.bf16 %v5997, %v5997
      %6062 = vrot.lane.b32.xlu0 %v5998, 40
      %v6063 = vpop.permute.xlu0 %6062
      %6064 = vrot.lane.b32.xlu0 %v5999, 40
      %v6065 = vpop.permute.xlu0 %6064
      %6066 = vrot.lane.b32.xlu0 %v6000, 40
      %v6067 = vpop.permute.xlu0 %6066
      %6068 = vrot.lane.b32.xlu0 %v6001, 40
      %v6069 = vpop.permute.xlu0 %6068
      %6070 = vrot.lane.b32.xlu0 %v6002, 40
      %v6071 = vpop.permute.xlu0 %6070
      %6072 = vrot.lane.b32.xlu0 %v6003, 40
      %v6073 = vpop.permute.xlu0 %6072
      %6074 = vrot.lane.b32.xlu0 %v6004, 40
      %v6075 = vpop.permute.xlu0 %6074
      %6076 = vrot.lane.b32.xlu0 %v6005, 40
      %v6077 = vpop.permute.xlu0 %6076
      %6078 = vrot.lane.b32.xlu0 %v6006, 40
      %v6079 = vpop.permute.xlu0 %6078
      %6080 = vrot.lane.b32.xlu0 %v6007, 40
      %v6081 = vpop.permute.xlu0 %6080
      %6082 = vrot.lane.b32.xlu0 %v6008, 40
      %v6083 = vpop.permute.xlu0 %6082
      %6084 = vrot.lane.b32.xlu0 %v6009, 40
      %v6085 = vpop.permute.xlu0 %6084
      %6086 = vrot.lane.b32.xlu0 %v6010, 40
      %v6087 = vpop.permute.xlu0 %6086
      %6088 = vrot.lane.b32.xlu0 %v6011, 40
      %v6089 = vpop.permute.xlu0 %6088
      %6090 = vrot.lane.b32.xlu0 %v6012, 40
      %v6091 = vpop.permute.xlu0 %6090
      %6092 = vrot.lane.b32.xlu0 %v6013, 40
      %v6093 = vpop.permute.xlu0 %6092
      %6094 = vrot.lane.b32.xlu0 %v6014, 40
      %v6095 = vpop.permute.xlu0 %6094
      %6096 = vrot.lane.b32.xlu0 %v6015, 40
      %v6097 = vpop.permute.xlu0 %6096
      %6098 = vrot.lane.b32.xlu0 %v6016, 40
      %v6099 = vpop.permute.xlu0 %6098
      %6100 = vrot.lane.b32.xlu0 %v6017, 40
      %v6101 = vpop.permute.xlu0 %6100
      %6102 = vrot.lane.b32.xlu0 %v6018, 40
      %v6103 = vpop.permute.xlu0 %6102
      %6104 = vrot.lane.b32.xlu0 %v6019, 40
      %v6105 = vpop.permute.xlu0 %6104
      %6106 = vrot.lane.b32.xlu0 %v6020, 40
      %v6107 = vpop.permute.xlu0 %6106
      %6108 = vrot.lane.b32.xlu0 %v6021, 40
      %v6109 = vpop.permute.xlu0 %6108
      %6110 = vrot.lane.b32.xlu0 %v6022, 40
      %v6111 = vpop.permute.xlu0 %6110
      %6112 = vrot.lane.b32.xlu0 %v6023, 40
      %v6113 = vpop.permute.xlu0 %6112
      %6114 = vrot.lane.b32.xlu0 %v6024, 40
      %v6115 = vpop.permute.xlu0 %6114
      %6116 = vrot.lane.b32.xlu0 %v6025, 40
      %v6117 = vpop.permute.xlu0 %6116
      %6118 = vrot.lane.b32.xlu0 %v6026, 40
      %v6119 = vpop.permute.xlu0 %6118
      %6120 = vrot.lane.b32.xlu0 %v6027, 40
      %v6121 = vpop.permute.xlu0 %6120
      %6122 = vrot.lane.b32.xlu0 %v6028, 40
      %v6123 = vpop.permute.xlu0 %6122
      %6124 = vrot.lane.b32.xlu0 %v6029, 40
      %v6125 = vpop.permute.xlu0 %6124
      %6158 = vst.msk [vmem:[#allocation5] sm:$0xf] %vm3907, %v6063
      %6159 = vst.msk [vmem:[#allocation5 + $0x4] sm:$0xf] %vm3907, %v6065
      %6160 = vst.msk [vmem:[#allocation5 + $0x8] sm:$0xf] %vm3907, %v6067
      %6161 = vst.msk [vmem:[#allocation5 + $0xc] sm:$0xf] %vm3907, %v6069
      %6162 = vst.msk [vmem:[#allocation5 + $0x10] sm:$0xf] %vm3907, %v6071
      %6163 = vst.msk [vmem:[#allocation5 + $0x14] sm:$0xf] %vm3907, %v6073
      %6164 = vst.msk [vmem:[#allocation5 + $0x18] sm:$0xf] %vm3907, %v6075
      %6165 = vst.msk [vmem:[#allocation5 + $0x1c] sm:$0xf] %vm3907, %v6077
      %6166 = vst.msk [vmem:[#allocation5 + $0x20] sm:$0xf] %vm3907, %v6079
      %6167 = vst.msk [vmem:[#allocation5 + $0x24] sm:$0xf] %vm3907, %v6081
      %6168 = vst.msk [vmem:[#allocation5 + $0x28] sm:$0xf] %vm3907, %v6083
      %6169 = vst.msk [vmem:[#allocation5 + $0x2c] sm:$0xf] %vm3907, %v6085
      %6170 = vst.msk [vmem:[#allocation5 + $0x30] sm:$0xf] %vm3907, %v6087
      %6171 = vst.msk [vmem:[#allocation5 + $0x34] sm:$0xf] %vm3907, %v6089
      %6172 = vst.msk [vmem:[#allocation5 + $0x38] sm:$0xf] %vm3907, %v6091
      %6173 = vst.msk [vmem:[#allocation5 + $0x3c] sm:$0xf] %vm3907, %v6093
      %6174 = vst.msk [vmem:[#allocation5 + $0x40] sm:$0xf] %vm3907, %v6095
      %6175 = vst.msk [vmem:[#allocation5 + $0x44] sm:$0xf] %vm3907, %v6097
      %6176 = vst.msk [vmem:[#allocation5 + $0x48] sm:$0xf] %vm3907, %v6099
      %6177 = vst.msk [vmem:[#allocation5 + $0x4c] sm:$0xf] %vm3907, %v6101
      %6178 = vst.msk [vmem:[#allocation5 + $0x50] sm:$0xf] %vm3907, %v6103
      %6179 = vst.msk [vmem:[#allocation5 + $0x54] sm:$0xf] %vm3907, %v6105
      %6180 = vst.msk [vmem:[#allocation5 + $0x58] sm:$0xf] %vm3907, %v6107
      %6181 = vst.msk [vmem:[#allocation5 + $0x5c] sm:$0xf] %vm3907, %v6109
      %6182 = vst.msk [vmem:[#allocation5 + $0x60] sm:$0xf] %vm3907, %v6111
      %6183 = vst.msk [vmem:[#allocation5 + $0x64] sm:$0xf] %vm3907, %v6113
      %6184 = vst.msk [vmem:[#allocation5 + $0x68] sm:$0xf] %vm3907, %v6115
      %6185 = vst.msk [vmem:[#allocation5 + $0x6c] sm:$0xf] %vm3907, %v6117
      %6186 = vst.msk [vmem:[#allocation5 + $0x70] sm:$0xf] %vm3907, %v6119
      %6187 = vst.msk [vmem:[#allocation5 + $0x74] sm:$0xf] %vm3907, %v6121
      %6188 = vst.msk [vmem:[#allocation5 + $0x78] sm:$0xf] %vm3907, %v6123
      %6189 = vst.msk [vmem:[#allocation5 + $0x7c] sm:$0xf] %vm3907, %v6125
      %v6190 = vld [vmem:[%s3940] sm:$0xff]
      %v6191 = vld [vmem:[%s3940 + $0x8] sm:$0xff]
      %v6192 = vld [vmem:[%s3940 + $0x18] sm:$0xff]
      %v6193 = vld [vmem:[%s3940 + $0x20] sm:$0xff]
      %v6194 = vld [vmem:[%s3940 + $0x30] sm:$0xff]
      %v6195 = vld [vmem:[%s3940 + $0x38] sm:$0xff]
      %v6196 = vld [vmem:[%s3940 + $0x48] sm:$0xff]
      %v6197 = vld [vmem:[%s3940 + $0x50] sm:$0xff]
      %v6198 = vld [vmem:[%s3940 + $0x60] sm:$0xff]
      %v6199 = vld [vmem:[%s3940 + $0x68] sm:$0xff]
      %v6200 = vld [vmem:[%s3940 + $0x78] sm:$0xff]
      %v6201 = vld [vmem:[%s3940 + $0x80] sm:$0xff]
      %v6202 = vld [vmem:[%s3940 + $0x90] sm:$0xff]
      %v6203 = vld [vmem:[%s3940 + $0x98] sm:$0xff]
      %v6204 = vld [vmem:[%s3940 + $0xa8] sm:$0xff]
      %v6205 = vld [vmem:[%s3940 + $0xb0] sm:$0xff]
      %v6206 = vld [vmem:[%s3940 + $0xc0] sm:$0xff]
      %v6207 = vld [vmem:[%s3940 + $0xc8] sm:$0xff]
      %v6208 = vld [vmem:[%s3940 + $0xd8] sm:$0xff]
      %v6209 = vld [vmem:[%s3940 + $0xe0] sm:$0xff]
      %v6210 = vld [vmem:[%s3940 + $0xf0] sm:$0xff]
      %v6211 = vld [vmem:[%s3940 + $0xf8] sm:$0xff]
      %v6212 = vld [vmem:[%s3940 + $0x108] sm:$0xff]
      %v6213 = vld [vmem:[%s3940 + $0x110] sm:$0xff]
      %v6214 = vld [vmem:[%s3940 + $0x120] sm:$0xff]
      %v6215 = vld [vmem:[%s3940 + $0x128] sm:$0xff]
      %v6216 = vld [vmem:[%s3940 + $0x138] sm:$0xff]
      %v6217 = vld [vmem:[%s3940 + $0x140] sm:$0xff]
      %v6218 = vld [vmem:[%s3940 + $0x150] sm:$0xff]
      %v6219 = vld [vmem:[%s3940 + $0x158] sm:$0xff]
      %v6220 = vld [vmem:[%s3940 + $0x168] sm:$0xff]
      %v6221 = vld [vmem:[%s3940 + $0x170] sm:$0xff]
      %v6222 = vpack.c.bf16 %v6190, %v6190
      %v6223 = vpack.c.bf16 %v6191, %v6191
      %v6224 = vpack.c.bf16 %v6192, %v6192
      %v6225 = vpack.c.bf16 %v6193, %v6193
      %v6226 = vpack.c.bf16 %v6194, %v6194
      %v6227 = vpack.c.bf16 %v6195, %v6195
      %v6228 = vpack.c.bf16 %v6196, %v6196
      %v6229 = vpack.c.bf16 %v6197, %v6197
      %v6230 = vpack.c.bf16 %v6198, %v6198
      %v6231 = vpack.c.bf16 %v6199, %v6199
      %v6232 = vpack.c.bf16 %v6200, %v6200
      %v6233 = vpack.c.bf16 %v6201, %v6201
      %v6234 = vpack.c.bf16 %v6202, %v6202
      %v6235 = vpack.c.bf16 %v6203, %v6203
      %v6236 = vpack.c.bf16 %v6204, %v6204
      %v6237 = vpack.c.bf16 %v6205, %v6205
      %v6238 = vpack.c.bf16 %v6206, %v6206
      %v6239 = vpack.c.bf16 %v6207, %v6207
      %v6240 = vpack.c.bf16 %v6208, %v6208
      %v6241 = vpack.c.bf16 %v6209, %v6209
      %v6242 = vpack.c.bf16 %v6210, %v6210
      %v6243 = vpack.c.bf16 %v6211, %v6211
      %v6244 = vpack.c.bf16 %v6212, %v6212
      %v6245 = vpack.c.bf16 %v6213, %v6213
      %v6246 = vpack.c.bf16 %v6214, %v6214
      %v6247 = vpack.c.bf16 %v6215, %v6215
      %v6248 = vpack.c.bf16 %v6216, %v6216
      %v6249 = vpack.c.bf16 %v6217, %v6217
      %v6250 = vpack.c.bf16 %v6218, %v6218
      %v6251 = vpack.c.bf16 %v6219, %v6219
      %v6252 = vpack.c.bf16 %v6220, %v6220
      %v6253 = vpack.c.bf16 %v6221, %v6221
      %6286 = vrot.lane.b32.xlu0 %v6222, 48
      %v6287 = vpop.permute.xlu0 %6286
      %6288 = vrot.lane.b32.xlu0 %v6223, 48
      %v6289 = vpop.permute.xlu0 %6288
      %6290 = vrot.lane.b32.xlu0 %v6224, 48
      %v6291 = vpop.permute.xlu0 %6290
      %6292 = vrot.lane.b32.xlu0 %v6225, 48
      %v6293 = vpop.permute.xlu0 %6292
      %6294 = vrot.lane.b32.xlu0 %v6226, 48
      %v6295 = vpop.permute.xlu0 %6294
      %6296 = vrot.lane.b32.xlu0 %v6227, 48
      %v6297 = vpop.permute.xlu0 %6296
      %6298 = vrot.lane.b32.xlu0 %v6228, 48
      %v6299 = vpop.permute.xlu0 %6298
      %6300 = vrot.lane.b32.xlu0 %v6229, 48
      %v6301 = vpop.permute.xlu0 %6300
      %6302 = vrot.lane.b32.xlu0 %v6230, 48
      %v6303 = vpop.permute.xlu0 %6302
      %6304 = vrot.lane.b32.xlu0 %v6231, 48
      %v6305 = vpop.permute.xlu0 %6304
      %6306 = vrot.lane.b32.xlu0 %v6232, 48
      %v6307 = vpop.permute.xlu0 %6306
      %6308 = vrot.lane.b32.xlu0 %v6233, 48
      %v6309 = vpop.permute.xlu0 %6308
      %6310 = vrot.lane.b32.xlu0 %v6234, 48
      %v6311 = vpop.permute.xlu0 %6310
      %6312 = vrot.lane.b32.xlu0 %v6235, 48
      %v6313 = vpop.permute.xlu0 %6312
      %6314 = vrot.lane.b32.xlu0 %v6236, 48
      %v6315 = vpop.permute.xlu0 %6314
      %6316 = vrot.lane.b32.xlu0 %v6237, 48
      %v6317 = vpop.permute.xlu0 %6316
      %6318 = vrot.lane.b32.xlu0 %v6238, 48
      %v6319 = vpop.permute.xlu0 %6318
      %6320 = vrot.lane.b32.xlu0 %v6239, 48
      %v6321 = vpop.permute.xlu0 %6320
      %6322 = vrot.lane.b32.xlu0 %v6240, 48
      %v6323 = vpop.permute.xlu0 %6322
      %6324 = vrot.lane.b32.xlu0 %v6241, 48
      %v6325 = vpop.permute.xlu0 %6324
      %6326 = vrot.lane.b32.xlu0 %v6242, 48
      %v6327 = vpop.permute.xlu0 %6326
      %6328 = vrot.lane.b32.xlu0 %v6243, 48
      %v6329 = vpop.permute.xlu0 %6328
      %6330 = vrot.lane.b32.xlu0 %v6244, 48
      %v6331 = vpop.permute.xlu0 %6330
      %6332 = vrot.lane.b32.xlu0 %v6245, 48
      %v6333 = vpop.permute.xlu0 %6332
      %6334 = vrot.lane.b32.xlu0 %v6246, 48
      %v6335 = vpop.permute.xlu0 %6334
      %6336 = vrot.lane.b32.xlu0 %v6247, 48
      %v6337 = vpop.permute.xlu0 %6336
      %6338 = vrot.lane.b32.xlu0 %v6248, 48
      %v6339 = vpop.permute.xlu0 %6338
      %6340 = vrot.lane.b32.xlu0 %v6249, 48
      %v6341 = vpop.permute.xlu0 %6340
      %6342 = vrot.lane.b32.xlu0 %v6250, 48
      %v6343 = vpop.permute.xlu0 %6342
      %6344 = vrot.lane.b32.xlu0 %v6251, 48
      %v6345 = vpop.permute.xlu0 %6344
      %6346 = vrot.lane.b32.xlu0 %v6252, 48
      %v6347 = vpop.permute.xlu0 %6346
      %6348 = vrot.lane.b32.xlu0 %v6253, 48
      %v6349 = vpop.permute.xlu0 %6348
      %6382 = vst.msk [vmem:[#allocation5] sm:$0xf] %vm4133, %v6287
      %6383 = vst.msk [vmem:[#allocation5 + $0x4] sm:$0xf] %vm4133, %v6289
      %6384 = vst.msk [vmem:[#allocation5 + $0x8] sm:$0xf] %vm4133, %v6291
      %6385 = vst.msk [vmem:[#allocation5 + $0xc] sm:$0xf] %vm4133, %v6293
      %6386 = vst.msk [vmem:[#allocation5 + $0x10] sm:$0xf] %vm4133, %v6295
      %6387 = vst.msk [vmem:[#allocation5 + $0x14] sm:$0xf] %vm4133, %v6297
      %6388 = vst.msk [vmem:[#allocation5 + $0x18] sm:$0xf] %vm4133, %v6299
      %6389 = vst.msk [vmem:[#allocation5 + $0x1c] sm:$0xf] %vm4133, %v6301
      %6390 = vst.msk [vmem:[#allocation5 + $0x20] sm:$0xf] %vm4133, %v6303
      %6391 = vst.msk [vmem:[#allocation5 + $0x24] sm:$0xf] %vm4133, %v6305
      %6392 = vst.msk [vmem:[#allocation5 + $0x28] sm:$0xf] %vm4133, %v6307
      %6393 = vst.msk [vmem:[#allocation5 + $0x2c] sm:$0xf] %vm4133, %v6309
      %6394 = vst.msk [vmem:[#allocation5 + $0x30] sm:$0xf] %vm4133, %v6311
      %6395 = vst.msk [vmem:[#allocation5 + $0x34] sm:$0xf] %vm4133, %v6313
      %6396 = vst.msk [vmem:[#allocation5 + $0x38] sm:$0xf] %vm4133, %v6315
      %6397 = vst.msk [vmem:[#allocation5 + $0x3c] sm:$0xf] %vm4133, %v6317
      %6398 = vst.msk [vmem:[#allocation5 + $0x40] sm:$0xf] %vm4133, %v6319
      %6399 = vst.msk [vmem:[#allocation5 + $0x44] sm:$0xf] %vm4133, %v6321
      %6400 = vst.msk [vmem:[#allocation5 + $0x48] sm:$0xf] %vm4133, %v6323
      %6401 = vst.msk [vmem:[#allocation5 + $0x4c] sm:$0xf] %vm4133, %v6325
      %6402 = vst.msk [vmem:[#allocation5 + $0x50] sm:$0xf] %vm4133, %v6327
      %6403 = vst.msk [vmem:[#allocation5 + $0x54] sm:$0xf] %vm4133, %v6329
      %6404 = vst.msk [vmem:[#allocation5 + $0x58] sm:$0xf] %vm4133, %v6331
      %6405 = vst.msk [vmem:[#allocation5 + $0x5c] sm:$0xf] %vm4133, %v6333
      %6406 = vst.msk [vmem:[#allocation5 + $0x60] sm:$0xf] %vm4133, %v6335
      %6407 = vst.msk [vmem:[#allocation5 + $0x64] sm:$0xf] %vm4133, %v6337
      %6408 = vst.msk [vmem:[#allocation5 + $0x68] sm:$0xf] %vm4133, %v6339
      %6409 = vst.msk [vmem:[#allocation5 + $0x6c] sm:$0xf] %vm4133, %v6341
      %6410 = vst.msk [vmem:[#allocation5 + $0x70] sm:$0xf] %vm4133, %v6343
      %6411 = vst.msk [vmem:[#allocation5 + $0x74] sm:$0xf] %vm4133, %v6345
      %6412 = vst.msk [vmem:[#allocation5 + $0x78] sm:$0xf] %vm4133, %v6347
      %6413 = vst.msk [vmem:[#allocation5 + $0x7c] sm:$0xf] %vm4133, %v6349
      %v6414 = vld [vmem:[%s3940 + $0x1] sm:$0xff]
      %v6415 = vld [vmem:[%s3940 + $0x9] sm:$0xff]
      %v6416 = vld [vmem:[%s3940 + $0x19] sm:$0xff]
      %v6417 = vld [vmem:[%s3940 + $0x21] sm:$0xff]
      %v6418 = vld [vmem:[%s3940 + $0x31] sm:$0xff]
      %v6419 = vld [vmem:[%s3940 + $0x39] sm:$0xff]
      %v6420 = vld [vmem:[%s3940 + $0x49] sm:$0xff]
      %v6421 = vld [vmem:[%s3940 + $0x51] sm:$0xff]
      %v6422 = vld [vmem:[%s3940 + $0x61] sm:$0xff]
      %v6423 = vld [vmem:[%s3940 + $0x69] sm:$0xff]
      %v6424 = vld [vmem:[%s3940 + $0x79] sm:$0xff]
      %v6425 = vld [vmem:[%s3940 + $0x81] sm:$0xff]
      %v6426 = vld [vmem:[%s3940 + $0x91] sm:$0xff]
      %v6427 = vld [vmem:[%s3940 + $0x99] sm:$0xff]
      %v6428 = vld [vmem:[%s3940 + $0xa9] sm:$0xff]
      %v6429 = vld [vmem:[%s3940 + $0xb1] sm:$0xff]
      %v6430 = vld [vmem:[%s3940 + $0xc1] sm:$0xff]
      %v6431 = vld [vmem:[%s3940 + $0xc9] sm:$0xff]
      %v6432 = vld [vmem:[%s3940 + $0xd9] sm:$0xff]
      %v6433 = vld [vmem:[%s3940 + $0xe1] sm:$0xff]
      %v6434 = vld [vmem:[%s3940 + $0xf1] sm:$0xff]
      %v6435 = vld [vmem:[%s3940 + $0xf9] sm:$0xff]
      %v6436 = vld [vmem:[%s3940 + $0x109] sm:$0xff]
      %v6437 = vld [vmem:[%s3940 + $0x111] sm:$0xff]
      %v6438 = vld [vmem:[%s3940 + $0x121] sm:$0xff]
      %v6439 = vld [vmem:[%s3940 + $0x129] sm:$0xff]
      %v6440 = vld [vmem:[%s3940 + $0x139] sm:$0xff]
      %v6441 = vld [vmem:[%s3940 + $0x141] sm:$0xff]
      %v6442 = vld [vmem:[%s3940 + $0x151] sm:$0xff]
      %v6443 = vld [vmem:[%s3940 + $0x159] sm:$0xff]
      %v6444 = vld [vmem:[%s3940 + $0x169] sm:$0xff]
      %v6445 = vld [vmem:[%s3940 + $0x171] sm:$0xff]
      %v6446 = vpack.c.bf16 %v6414, %v6414
      %v6447 = vpack.c.bf16 %v6415, %v6415
      %v6448 = vpack.c.bf16 %v6416, %v6416
      %v6449 = vpack.c.bf16 %v6417, %v6417
      %v6450 = vpack.c.bf16 %v6418, %v6418
      %v6451 = vpack.c.bf16 %v6419, %v6419
      %v6452 = vpack.c.bf16 %v6420, %v6420
      %v6453 = vpack.c.bf16 %v6421, %v6421
      %v6454 = vpack.c.bf16 %v6422, %v6422
      %v6455 = vpack.c.bf16 %v6423, %v6423
      %v6456 = vpack.c.bf16 %v6424, %v6424
      %v6457 = vpack.c.bf16 %v6425, %v6425
      %v6458 = vpack.c.bf16 %v6426, %v6426
      %v6459 = vpack.c.bf16 %v6427, %v6427
      %v6460 = vpack.c.bf16 %v6428, %v6428
      %v6461 = vpack.c.bf16 %v6429, %v6429
      %v6462 = vpack.c.bf16 %v6430, %v6430
      %v6463 = vpack.c.bf16 %v6431, %v6431
      %v6464 = vpack.c.bf16 %v6432, %v6432
      %v6465 = vpack.c.bf16 %v6433, %v6433
      %v6466 = vpack.c.bf16 %v6434, %v6434
      %v6467 = vpack.c.bf16 %v6435, %v6435
      %v6468 = vpack.c.bf16 %v6436, %v6436
      %v6469 = vpack.c.bf16 %v6437, %v6437
      %v6470 = vpack.c.bf16 %v6438, %v6438
      %v6471 = vpack.c.bf16 %v6439, %v6439
      %v6472 = vpack.c.bf16 %v6440, %v6440
      %v6473 = vpack.c.bf16 %v6441, %v6441
      %v6474 = vpack.c.bf16 %v6442, %v6442
      %v6475 = vpack.c.bf16 %v6443, %v6443
      %v6476 = vpack.c.bf16 %v6444, %v6444
      %v6477 = vpack.c.bf16 %v6445, %v6445
      %6510 = vrot.lane.b32.xlu0 %v6446, 56
      %v6511 = vpop.permute.xlu0 %6510
      %6512 = vrot.lane.b32.xlu0 %v6447, 56
      %v6513 = vpop.permute.xlu0 %6512
      %6514 = vrot.lane.b32.xlu0 %v6448, 56
      %v6515 = vpop.permute.xlu0 %6514
      %6516 = vrot.lane.b32.xlu0 %v6449, 56
      %v6517 = vpop.permute.xlu0 %6516
      %6518 = vrot.lane.b32.xlu0 %v6450, 56
      %v6519 = vpop.permute.xlu0 %6518
      %6520 = vrot.lane.b32.xlu0 %v6451, 56
      %v6521 = vpop.permute.xlu0 %6520
      %6522 = vrot.lane.b32.xlu0 %v6452, 56
      %v6523 = vpop.permute.xlu0 %6522
      %6524 = vrot.lane.b32.xlu0 %v6453, 56
      %v6525 = vpop.permute.xlu0 %6524
      %6526 = vrot.lane.b32.xlu0 %v6454, 56
      %v6527 = vpop.permute.xlu0 %6526
      %6528 = vrot.lane.b32.xlu0 %v6455, 56
      %v6529 = vpop.permute.xlu0 %6528
      %6530 = vrot.lane.b32.xlu0 %v6456, 56
      %v6531 = vpop.permute.xlu0 %6530
      %6532 = vrot.lane.b32.xlu0 %v6457, 56
      %v6533 = vpop.permute.xlu0 %6532
      %6534 = vrot.lane.b32.xlu0 %v6458, 56
      %v6535 = vpop.permute.xlu0 %6534
      %6536 = vrot.lane.b32.xlu0 %v6459, 56
      %v6537 = vpop.permute.xlu0 %6536
      %6538 = vrot.lane.b32.xlu0 %v6460, 56
      %v6539 = vpop.permute.xlu0 %6538
      %6540 = vrot.lane.b32.xlu0 %v6461, 56
      %v6541 = vpop.permute.xlu0 %6540
      %6542 = vrot.lane.b32.xlu0 %v6462, 56
      %v6543 = vpop.permute.xlu0 %6542
      %6544 = vrot.lane.b32.xlu0 %v6463, 56
      %v6545 = vpop.permute.xlu0 %6544
      %6546 = vrot.lane.b32.xlu0 %v6464, 56
      %v6547 = vpop.permute.xlu0 %6546
      %6548 = vrot.lane.b32.xlu0 %v6465, 56
      %v6549 = vpop.permute.xlu0 %6548
      %6550 = vrot.lane.b32.xlu0 %v6466, 56
      %v6551 = vpop.permute.xlu0 %6550
      %6552 = vrot.lane.b32.xlu0 %v6467, 56
      %v6553 = vpop.permute.xlu0 %6552
      %6554 = vrot.lane.b32.xlu0 %v6468, 56
      %v6555 = vpop.permute.xlu0 %6554
      %6556 = vrot.lane.b32.xlu0 %v6469, 56
      %v6557 = vpop.permute.xlu0 %6556
      %6558 = vrot.lane.b32.xlu0 %v6470, 56
      %v6559 = vpop.permute.xlu0 %6558
      %6560 = vrot.lane.b32.xlu0 %v6471, 56
      %v6561 = vpop.permute.xlu0 %6560
      %6562 = vrot.lane.b32.xlu0 %v6472, 56
      %v6563 = vpop.permute.xlu0 %6562
      %6564 = vrot.lane.b32.xlu0 %v6473, 56
      %v6565 = vpop.permute.xlu0 %6564
      %6566 = vrot.lane.b32.xlu0 %v6474, 56
      %v6567 = vpop.permute.xlu0 %6566
      %6568 = vrot.lane.b32.xlu0 %v6475, 56
      %v6569 = vpop.permute.xlu0 %6568
      %6570 = vrot.lane.b32.xlu0 %v6476, 56
      %v6571 = vpop.permute.xlu0 %6570
      %6572 = vrot.lane.b32.xlu0 %v6477, 56
      %v6573 = vpop.permute.xlu0 %6572
      %6606 = vst.msk [vmem:[#allocation5] sm:$0xf] %vm4358, %v6511
      %6607 = vst.msk [vmem:[#allocation5 + $0x4] sm:$0xf] %vm4358, %v6513
      %6608 = vst.msk [vmem:[#allocation5 + $0x8] sm:$0xf] %vm4358, %v6515
      %6609 = vst.msk [vmem:[#allocation5 + $0xc] sm:$0xf] %vm4358, %v6517
      %6610 = vst.msk [vmem:[#allocation5 + $0x10] sm:$0xf] %vm4358, %v6519
      %6611 = vst.msk [vmem:[#allocation5 + $0x14] sm:$0xf] %vm4358, %v6521
      %6612 = vst.msk [vmem:[#allocation5 + $0x18] sm:$0xf] %vm4358, %v6523
      %6613 = vst.msk [vmem:[#allocation5 + $0x1c] sm:$0xf] %vm4358, %v6525
      %6614 = vst.msk [vmem:[#allocation5 + $0x20] sm:$0xf] %vm4358, %v6527
      %6615 = vst.msk [vmem:[#allocation5 + $0x24] sm:$0xf] %vm4358, %v6529
      %6616 = vst.msk [vmem:[#allocation5 + $0x28] sm:$0xf] %vm4358, %v6531
      %6617 = vst.msk [vmem:[#allocation5 + $0x2c] sm:$0xf] %vm4358, %v6533
      %6618 = vst.msk [vmem:[#allocation5 + $0x30] sm:$0xf] %vm4358, %v6535
      %6619 = vst.msk [vmem:[#allocation5 + $0x34] sm:$0xf] %vm4358, %v6537
      %6620 = vst.msk [vmem:[#allocation5 + $0x38] sm:$0xf] %vm4358, %v6539
      %6621 = vst.msk [vmem:[#allocation5 + $0x3c] sm:$0xf] %vm4358, %v6541
      %6622 = vst.msk [vmem:[#allocation5 + $0x40] sm:$0xf] %vm4358, %v6543
      %6623 = vst.msk [vmem:[#allocation5 + $0x44] sm:$0xf] %vm4358, %v6545
      %6624 = vst.msk [vmem:[#allocation5 + $0x48] sm:$0xf] %vm4358, %v6547
      %6625 = vst.msk [vmem:[#allocation5 + $0x4c] sm:$0xf] %vm4358, %v6549
      %6626 = vst.msk [vmem:[#allocation5 + $0x50] sm:$0xf] %vm4358, %v6551
      %6627 = vst.msk [vmem:[#allocation5 + $0x54] sm:$0xf] %vm4358, %v6553
      %6628 = vst.msk [vmem:[#allocation5 + $0x58] sm:$0xf] %vm4358, %v6555
      %6629 = vst.msk [vmem:[#allocation5 + $0x5c] sm:$0xf] %vm4358, %v6557
      %6630 = vst.msk [vmem:[#allocation5 + $0x60] sm:$0xf] %vm4358, %v6559
      %6631 = vst.msk [vmem:[#allocation5 + $0x64] sm:$0xf] %vm4358, %v6561
      %6632 = vst.msk [vmem:[#allocation5 + $0x68] sm:$0xf] %vm4358, %v6563
      %6633 = vst.msk [vmem:[#allocation5 + $0x6c] sm:$0xf] %vm4358, %v6565
      %6634 = vst.msk [vmem:[#allocation5 + $0x70] sm:$0xf] %vm4358, %v6567
      %6635 = vst.msk [vmem:[#allocation5 + $0x74] sm:$0xf] %vm4358, %v6569
      %6636 = vst.msk [vmem:[#allocation5 + $0x78] sm:$0xf] %vm4358, %v6571
      %6637 = vst.msk [vmem:[#allocation5 + $0x7c] sm:$0xf] %vm4358, %v6573
      %v6638 = vld [vmem:[%s3940 + $0x2] sm:$0xff]
      %v6639 = vld [vmem:[%s3940 + $0xa] sm:$0xff]
      %v6640 = vld [vmem:[%s3940 + $0x1a] sm:$0xff]
      %v6641 = vld [vmem:[%s3940 + $0x22] sm:$0xff]
      %v6642 = vld [vmem:[%s3940 + $0x32] sm:$0xff]
      %v6643 = vld [vmem:[%s3940 + $0x3a] sm:$0xff]
      %v6644 = vld [vmem:[%s3940 + $0x4a] sm:$0xff]
      %v6645 = vld [vmem:[%s3940 + $0x52] sm:$0xff]
      %v6646 = vld [vmem:[%s3940 + $0x62] sm:$0xff]
      %v6647 = vld [vmem:[%s3940 + $0x6a] sm:$0xff]
      %v6648 = vld [vmem:[%s3940 + $0x7a] sm:$0xff]
      %v6649 = vld [vmem:[%s3940 + $0x82] sm:$0xff]
      %v6650 = vld [vmem:[%s3940 + $0x92] sm:$0xff]
      %v6651 = vld [vmem:[%s3940 + $0x9a] sm:$0xff]
      %v6652 = vld [vmem:[%s3940 + $0xaa] sm:$0xff]
      %v6653 = vld [vmem:[%s3940 + $0xb2] sm:$0xff]
      %v6654 = vld [vmem:[%s3940 + $0xc2] sm:$0xff]
      %v6655 = vld [vmem:[%s3940 + $0xca] sm:$0xff]
      %v6656 = vld [vmem:[%s3940 + $0xda] sm:$0xff]
      %v6657 = vld [vmem:[%s3940 + $0xe2] sm:$0xff]
      %v6658 = vld [vmem:[%s3940 + $0xf2] sm:$0xff]
      %v6659 = vld [vmem:[%s3940 + $0xfa] sm:$0xff]
      %v6660 = vld [vmem:[%s3940 + $0x10a] sm:$0xff]
      %v6661 = vld [vmem:[%s3940 + $0x112] sm:$0xff]
      %v6662 = vld [vmem:[%s3940 + $0x122] sm:$0xff]
      %v6663 = vld [vmem:[%s3940 + $0x12a] sm:$0xff]
      %v6664 = vld [vmem:[%s3940 + $0x13a] sm:$0xff]
      %v6665 = vld [vmem:[%s3940 + $0x142] sm:$0xff]
      %v6666 = vld [vmem:[%s3940 + $0x152] sm:$0xff]
      %v6667 = vld [vmem:[%s3940 + $0x15a] sm:$0xff]
      %v6668 = vld [vmem:[%s3940 + $0x16a] sm:$0xff]
      %v6669 = vld [vmem:[%s3940 + $0x172] sm:$0xff]
      %v6670 = vpack.c.bf16 %v6638, %v6638
      %v6671 = vpack.c.bf16 %v6639, %v6639
      %v6672 = vpack.c.bf16 %v6640, %v6640
      %v6673 = vpack.c.bf16 %v6641, %v6641
      %v6674 = vpack.c.bf16 %v6642, %v6642
      %v6675 = vpack.c.bf16 %v6643, %v6643
      %v6676 = vpack.c.bf16 %v6644, %v6644
      %v6677 = vpack.c.bf16 %v6645, %v6645
      %v6678 = vpack.c.bf16 %v6646, %v6646
      %v6679 = vpack.c.bf16 %v6647, %v6647
      %v6680 = vpack.c.bf16 %v6648, %v6648
      %v6681 = vpack.c.bf16 %v6649, %v6649
      %v6682 = vpack.c.bf16 %v6650, %v6650
      %v6683 = vpack.c.bf16 %v6651, %v6651
      %v6684 = vpack.c.bf16 %v6652, %v6652
      %v6685 = vpack.c.bf16 %v6653, %v6653
      %v6686 = vpack.c.bf16 %v6654, %v6654
      %v6687 = vpack.c.bf16 %v6655, %v6655
      %v6688 = vpack.c.bf16 %v6656, %v6656
      %v6689 = vpack.c.bf16 %v6657, %v6657
      %v6690 = vpack.c.bf16 %v6658, %v6658
      %v6691 = vpack.c.bf16 %v6659, %v6659
      %v6692 = vpack.c.bf16 %v6660, %v6660
      %v6693 = vpack.c.bf16 %v6661, %v6661
      %v6694 = vpack.c.bf16 %v6662, %v6662
      %v6695 = vpack.c.bf16 %v6663, %v6663
      %v6696 = vpack.c.bf16 %v6664, %v6664
      %v6697 = vpack.c.bf16 %v6665, %v6665
      %v6698 = vpack.c.bf16 %v6666, %v6666
      %v6699 = vpack.c.bf16 %v6667, %v6667
      %v6700 = vpack.c.bf16 %v6668, %v6668
      %v6701 = vpack.c.bf16 %v6669, %v6669
      %6734 = vrot.lane.b32.xlu0 %v6670, 64
      %v6735 = vpop.permute.xlu0 %6734
      %6736 = vrot.lane.b32.xlu0 %v6671, 64
      %v6737 = vpop.permute.xlu0 %6736
      %6738 = vrot.lane.b32.xlu0 %v6672, 64
      %v6739 = vpop.permute.xlu0 %6738
      %6740 = vrot.lane.b32.xlu0 %v6673, 64
      %v6741 = vpop.permute.xlu0 %6740
      %6742 = vrot.lane.b32.xlu0 %v6674, 64
      %v6743 = vpop.permute.xlu0 %6742
      %6744 = vrot.lane.b32.xlu0 %v6675, 64
      %v6745 = vpop.permute.xlu0 %6744
      %6746 = vrot.lane.b32.xlu0 %v6676, 64
      %v6747 = vpop.permute.xlu0 %6746
      %6748 = vrot.lane.b32.xlu0 %v6677, 64
      %v6749 = vpop.permute.xlu0 %6748
      %6750 = vrot.lane.b32.xlu0 %v6678, 64
      %v6751 = vpop.permute.xlu0 %6750
      %6752 = vrot.lane.b32.xlu0 %v6679, 64
      %v6753 = vpop.permute.xlu0 %6752
      %6754 = vrot.lane.b32.xlu0 %v6680, 64
      %v6755 = vpop.permute.xlu0 %6754
      %6756 = vrot.lane.b32.xlu0 %v6681, 64
      %v6757 = vpop.permute.xlu0 %6756
      %6758 = vrot.lane.b32.xlu0 %v6682, 64
      %v6759 = vpop.permute.xlu0 %6758
      %6760 = vrot.lane.b32.xlu0 %v6683, 64
      %v6761 = vpop.permute.xlu0 %6760
      %6762 = vrot.lane.b32.xlu0 %v6684, 64
      %v6763 = vpop.permute.xlu0 %6762
      %6764 = vrot.lane.b32.xlu0 %v6685, 64
      %v6765 = vpop.permute.xlu0 %6764
      %6766 = vrot.lane.b32.xlu0 %v6686, 64
      %v6767 = vpop.permute.xlu0 %6766
      %6768 = vrot.lane.b32.xlu0 %v6687, 64
      %v6769 = vpop.permute.xlu0 %6768
      %6770 = vrot.lane.b32.xlu0 %v6688, 64
      %v6771 = vpop.permute.xlu0 %6770
      %6772 = vrot.lane.b32.xlu0 %v6689, 64
      %v6773 = vpop.permute.xlu0 %6772
      %6774 = vrot.lane.b32.xlu0 %v6690, 64
      %v6775 = vpop.permute.xlu0 %6774
      %6776 = vrot.lane.b32.xlu0 %v6691, 64
      %v6777 = vpop.permute.xlu0 %6776
      %6778 = vrot.lane.b32.xlu0 %v6692, 64
      %v6779 = vpop.permute.xlu0 %6778
      %6780 = vrot.lane.b32.xlu0 %v6693, 64
      %v6781 = vpop.permute.xlu0 %6780
      %6782 = vrot.lane.b32.xlu0 %v6694, 64
      %v6783 = vpop.permute.xlu0 %6782
      %6784 = vrot.lane.b32.xlu0 %v6695, 64
      %v6785 = vpop.permute.xlu0 %6784
      %6786 = vrot.lane.b32.xlu0 %v6696, 64
      %v6787 = vpop.permute.xlu0 %6786
      %6788 = vrot.lane.b32.xlu0 %v6697, 64
      %v6789 = vpop.permute.xlu0 %6788
      %6790 = vrot.lane.b32.xlu0 %v6698, 64
      %v6791 = vpop.permute.xlu0 %6790
      %6792 = vrot.lane.b32.xlu0 %v6699, 64
      %v6793 = vpop.permute.xlu0 %6792
      %6794 = vrot.lane.b32.xlu0 %v6700, 64
      %v6795 = vpop.permute.xlu0 %6794
      %6796 = vrot.lane.b32.xlu0 %v6701, 64
      %v6797 = vpop.permute.xlu0 %6796
      %6830 = vst.msk [vmem:[#allocation5] sm:$0xf] %vm4583, %v6735
      %6831 = vst.msk [vmem:[#allocation5 + $0x4] sm:$0xf] %vm4583, %v6737
      %6832 = vst.msk [vmem:[#allocation5 + $0x8] sm:$0xf] %vm4583, %v6739
      %6833 = vst.msk [vmem:[#allocation5 + $0xc] sm:$0xf] %vm4583, %v6741
      %6834 = vst.msk [vmem:[#allocation5 + $0x10] sm:$0xf] %vm4583, %v6743
      %6835 = vst.msk [vmem:[#allocation5 + $0x14] sm:$0xf] %vm4583, %v6745
      %6836 = vst.msk [vmem:[#allocation5 + $0x18] sm:$0xf] %vm4583, %v6747
      %6837 = vst.msk [vmem:[#allocation5 + $0x1c] sm:$0xf] %vm4583, %v6749
      %6838 = vst.msk [vmem:[#allocation5 + $0x20] sm:$0xf] %vm4583, %v6751
      %6839 = vst.msk [vmem:[#allocation5 + $0x24] sm:$0xf] %vm4583, %v6753
      %6840 = vst.msk [vmem:[#allocation5 + $0x28] sm:$0xf] %vm4583, %v6755
      %6841 = vst.msk [vmem:[#allocation5 + $0x2c] sm:$0xf] %vm4583, %v6757
      %6842 = vst.msk [vmem:[#allocation5 + $0x30] sm:$0xf] %vm4583, %v6759
      %6843 = vst.msk [vmem:[#allocation5 + $0x34] sm:$0xf] %vm4583, %v6761
      %6844 = vst.msk [vmem:[#allocation5 + $0x38] sm:$0xf] %vm4583, %v6763
      %6845 = vst.msk [vmem:[#allocation5 + $0x3c] sm:$0xf] %vm4583, %v6765
      %6846 = vst.msk [vmem:[#allocation5 + $0x40] sm:$0xf] %vm4583, %v6767
      %6847 = vst.msk [vmem:[#allocation5 + $0x44] sm:$0xf] %vm4583, %v6769
      %6848 = vst.msk [vmem:[#allocation5 + $0x48] sm:$0xf] %vm4583, %v6771
      %6849 = vst.msk [vmem:[#allocation5 + $0x4c] sm:$0xf] %vm4583, %v6773
      %6850 = vst.msk [vmem:[#allocation5 + $0x50] sm:$0xf] %vm4583, %v6775
      %6851 = vst.msk [vmem:[#allocation5 + $0x54] sm:$0xf] %vm4583, %v6777
      %6852 = vst.msk [vmem:[#allocation5 + $0x58] sm:$0xf] %vm4583, %v6779
      %6853 = vst.msk [vmem:[#allocation5 + $0x5c] sm:$0xf] %vm4583, %v6781
      %6854 = vst.msk [vmem:[#allocation5 + $0x60] sm:$0xf] %vm4583, %v6783
      %6855 = vst.msk [vmem:[#allocation5 + $0x64] sm:$0xf] %vm4583, %v6785
      %6856 = vst.msk [vmem:[#allocation5 + $0x68] sm:$0xf] %vm4583, %v6787
      %6857 = vst.msk [vmem:[#allocation5 + $0x6c] sm:$0xf] %vm4583, %v6789
      %6858 = vst.msk [vmem:[#allocation5 + $0x70] sm:$0xf] %vm4583, %v6791
      %6859 = vst.msk [vmem:[#allocation5 + $0x74] sm:$0xf] %vm4583, %v6793
      %6860 = vst.msk [vmem:[#allocation5 + $0x78] sm:$0xf] %vm4583, %v6795
      %6861 = vst.msk [vmem:[#allocation5 + $0x7c] sm:$0xf] %vm4583, %v6797
      %v6862 = vld [vmem:[#allocation5] sm:$0xf]
      %v6863 = vld [vmem:[#allocation5 + $0x4] sm:$0xf]
      %v6864 = vld [vmem:[#allocation5 + $0x8] sm:$0xf]
      %v6865 = vld [vmem:[#allocation5 + $0xc] sm:$0xf]
      %v6866 = vld [vmem:[#allocation5 + $0x10] sm:$0xf]
      %v6867 = vld [vmem:[#allocation5 + $0x14] sm:$0xf]
      %v6868 = vld [vmem:[#allocation5 + $0x18] sm:$0xf]
      %v6869 = vld [vmem:[#allocation5 + $0x1c] sm:$0xf]
      %v6870 = vld [vmem:[#allocation5 + $0x20] sm:$0xf]
      %v6871 = vld [vmem:[#allocation5 + $0x24] sm:$0xf]
      %v6872 = vld [vmem:[#allocation5 + $0x28] sm:$0xf]
      %v6873 = vld [vmem:[#allocation5 + $0x2c] sm:$0xf]
      %v6874 = vld [vmem:[#allocation5 + $0x30] sm:$0xf]
      %v6875 = vld [vmem:[#allocation5 + $0x34] sm:$0xf]
      %v6876 = vld [vmem:[#allocation5 + $0x38] sm:$0xf]
      %v6877 = vld [vmem:[#allocation5 + $0x3c] sm:$0xf]
      %v6878 = vld [vmem:[#allocation5 + $0x40] sm:$0xf]
      %v6879 = vld [vmem:[#allocation5 + $0x44] sm:$0xf]
      %v6880 = vld [vmem:[#allocation5 + $0x48] sm:$0xf]
      %v6881 = vld [vmem:[#allocation5 + $0x4c] sm:$0xf]
      %v6882 = vld [vmem:[#allocation5 + $0x50] sm:$0xf]
      %v6883 = vld [vmem:[#allocation5 + $0x54] sm:$0xf]
      %v6884 = vld [vmem:[#allocation5 + $0x58] sm:$0xf]
      %v6885 = vld [vmem:[#allocation5 + $0x5c] sm:$0xf]
      %v6886 = vld [vmem:[#allocation5 + $0x60] sm:$0xf]
      %v6887 = vld [vmem:[#allocation5 + $0x64] sm:$0xf]
      %v6888 = vld [vmem:[#allocation5 + $0x68] sm:$0xf]
      %v6889 = vld [vmem:[#allocation5 + $0x6c] sm:$0xf]
      %v6890 = vld [vmem:[#allocation5 + $0x70] sm:$0xf]
      %v6891 = vld [vmem:[#allocation5 + $0x74] sm:$0xf]
      %v6892 = vld [vmem:[#allocation5 + $0x78] sm:$0xf]
      %v6893 = vld [vmem:[#allocation5 + $0x7c] sm:$0xf]
      %v6894 = vld [vmem:[%s5] sm:$0xf]
      %v6895 = vld [vmem:[%s5 + $0x4] sm:$0xf]
      %v6896 = vld [vmem:[%s5 + $0x8] sm:$0xf]
      %v6897 = vld [vmem:[%s5 + $0xc] sm:$0xf]
      %v6898 = vld [vmem:[%s5 + $0x10] sm:$0xf]
      %v6899 = vld [vmem:[%s5 + $0x14] sm:$0xf]
      %v6900 = vld [vmem:[%s5 + $0x18] sm:$0xf]
      %v6901 = vld [vmem:[%s5 + $0x1c] sm:$0xf]
      %v6902 = vld [vmem:[%s5 + $0x20] sm:$0xf]
      %v6903 = vld [vmem:[%s6] sm:$0x1]
      %v6905 = vperm.slane %v6903, 0
      %v6939 = vunpack.c.l.b16 %v6862
      %v6940 = vunpack.c.l.b16 %v6863
      %v6941 = vunpack.c.l.b16 %v6864
      %v6942 = vunpack.c.l.b16 %v6865
      %v6943 = vunpack.c.l.b16 %v6866
      %v6944 = vunpack.c.l.b16 %v6867
      %v6945 = vunpack.c.l.b16 %v6868
      %v6946 = vunpack.c.l.b16 %v6869
      %v6947 = vunpack.c.l.b16 %v6870
      %v6948 = vunpack.c.l.b16 %v6871
      %v6949 = vunpack.c.l.b16 %v6872
      %v6950 = vunpack.c.l.b16 %v6873
      %v6951 = vunpack.c.l.b16 %v6874
      %v6952 = vunpack.c.l.b16 %v6875
      %v6953 = vunpack.c.l.b16 %v6876
      %v6954 = vunpack.c.l.b16 %v6877
      %v6955 = vunpack.c.l.b16 %v6878
      %v6956 = vunpack.c.l.b16 %v6879
      %v6957 = vunpack.c.l.b16 %v6880
      %v6958 = vunpack.c.l.b16 %v6881
      %v6959 = vunpack.c.l.b16 %v6882
      %v6960 = vunpack.c.l.b16 %v6883
      %v6961 = vunpack.c.l.b16 %v6884
      %v6962 = vunpack.c.l.b16 %v6885
      %v6963 = vunpack.c.l.b16 %v6886
      %v6964 = vunpack.c.l.b16 %v6887
      %v6965 = vunpack.c.l.b16 %v6888
      %v6966 = vunpack.c.l.b16 %v6889
      %v6967 = vunpack.c.l.b16 %v6890
      %v6968 = vunpack.c.l.b16 %v6891
      %v6969 = vunpack.c.l.b16 %v6892
      %v6970 = vunpack.c.l.b16 %v6893
      %v6971 = vpack.c.b16 %v6940, %v6939
      %v6972 = vpack.c.b16 %v6942, %v6941
      %v6973 = vpack.c.b16 %v6944, %v6943
      %v6974 = vpack.c.b16 %v6946, %v6945
      %v6975 = vpack.c.b16 %v6948, %v6947
      %v6976 = vpack.c.b16 %v6950, %v6949
      %v6977 = vpack.c.b16 %v6952, %v6951
      %v6978 = vpack.c.b16 %v6954, %v6953
      %v6979 = vpack.c.b16 %v6956, %v6955
      %v6980 = vpack.c.b16 %v6958, %v6957
      %v6981 = vpack.c.b16 %v6960, %v6959
      %v6982 = vpack.c.b16 %v6962, %v6961
      %v6983 = vpack.c.b16 %v6964, %v6963
      %v6984 = vpack.c.b16 %v6966, %v6965
      %v6985 = vpack.c.b16 %v6968, %v6967
      %v6986 = vpack.c.b16 %v6970, %v6969
      %v6996 = vunpack.c.l.b16 %v6894
      %v6997 = vunpack.c.l.b16 %v6895
      %v6998 = vunpack.c.l.b16 %v6896
      %v6999 = vunpack.c.l.b16 %v6897
      %v7000 = vunpack.c.l.b16 %v6898
      %v7001 = vunpack.c.l.b16 %v6899
      %v7002 = vunpack.c.l.b16 %v6900
      %v7003 = vunpack.c.l.b16 %v6901
      %v7004 = vunpack.c.l.b16 %v6902
      %v7005 = vpack.c.b16 %v6997, %v6996
      %v7006 = vpack.c.b16 %v6999, %v6998
      %v7007 = vpack.c.b16 %v7001, %v7000
      %v7008 = vpack.c.b16 %v7003, %v7002
      %v7009 = vpack.c.b16 %v7004, %v7004
      %v7015 = vsel %vm4768, %v6971, 0
      %v7018 = vsel %vm4768, %v6972, 0
      %v7021 = vsel %vm4768, %v6973, 0
      %v7024 = vsel %vm4768, %v6974, 0
      %v7027 = vsel %vm4768, %v6975, 0
      %v7030 = vsel %vm4768, %v6976, 0
      %v7033 = vsel %vm4768, %v6977, 0
      %v7036 = vsel %vm4768, %v6978, 0
      %v7039 = vsel %vm4768, %v6979, 0
      %v7042 = vsel %vm4768, %v6980, 0
      %v7045 = vsel %vm4768, %v6981, 0
      %v7048 = vsel %vm4768, %v6982, 0
      %v7051 = vsel %vm4768, %v6983, 0
      %v7054 = vsel %vm4768, %v6984, 0
      %v7057 = vsel %vm4768, %v6985, 0
      %v7060 = vsel %vm4768, %v6986, 0
      %v7063 = vsel %vm4817, %v7009, 0
      %7065 = vmatpush.bf16.msra.mxu0 0
      %7066 = vmatpush.bf16.msra.mxu0 0
      %7067 = vmatpush.bf16.msra.mxu0 0
      %7068 = vmatpush.bf16.msra.mxu0 %v7063
      %7069 = vmatpush.bf16.msra.mxu0 %v7008
      %7070 = vmatpush.bf16.msra.mxu0 %v7007
      %7071 = vmatpush.bf16.msra.mxu0 %v7006
      %7072 = vmatpush.bf16.msra.mxu0 %v7005
      %7073 = vmatmul.bf16.gmra.mxu0 %v7015
      %v7074 = vpop.f32.mrf.mxu0
      %v7075 = vadd.f32 %v6905, %v7074
      %v7076 = vpop.f32.mrf.mxu0
      %v7077 = vadd.f32 %v6905, %v7076
      %7078 = vmatmul.bf16.gmra.mxu0 %v7018
      %v7079 = vpop.f32.mrf.mxu0
      %v7080 = vadd.f32 %v6905, %v7079
      %v7081 = vpop.f32.mrf.mxu0
      %v7082 = vadd.f32 %v6905, %v7081
      %7083 = vmatmul.bf16.gmra.mxu0 %v7021
      %v7084 = vpop.f32.mrf.mxu0
      %v7085 = vadd.f32 %v6905, %v7084
      %v7086 = vpop.f32.mrf.mxu0
      %v7087 = vadd.f32 %v6905, %v7086
      %7088 = vmatmul.bf16.gmra.mxu0 %v7024
      %v7089 = vpop.f32.mrf.mxu0
      %v7090 = vadd.f32 %v6905, %v7089
      %v7091 = vpop.f32.mrf.mxu0
      %v7092 = vadd.f32 %v6905, %v7091
      %7093 = vmatmul.bf16.gmra.mxu0 %v7027
      %v7094 = vpop.f32.mrf.mxu0
      %v7095 = vadd.f32 %v6905, %v7094
      %v7096 = vpop.f32.mrf.mxu0
      %v7097 = vadd.f32 %v6905, %v7096
      %7098 = vmatmul.bf16.gmra.mxu0 %v7030
      %v7099 = vpop.f32.mrf.mxu0
      %v7100 = vadd.f32 %v6905, %v7099
      %v7101 = vpop.f32.mrf.mxu0
      %v7102 = vadd.f32 %v6905, %v7101
      %7103 = vmatmul.bf16.gmra.mxu0 %v7033
      %v7104 = vpop.f32.mrf.mxu0
      %v7105 = vadd.f32 %v6905, %v7104
      %v7106 = vpop.f32.mrf.mxu0
      %v7107 = vadd.f32 %v6905, %v7106
      %7108 = vmatmul.bf16.gmra.mxu0 %v7036
      %v7109 = vpop.f32.mrf.mxu0
      %v7110 = vadd.f32 %v6905, %v7109
      %v7111 = vpop.f32.mrf.mxu0
      %v7112 = vadd.f32 %v6905, %v7111
      %7113 = vmatmul.bf16.gmra.mxu0 %v7039
      %v7114 = vpop.f32.mrf.mxu0
      %v7115 = vadd.f32 %v6905, %v7114
      %v7116 = vpop.f32.mrf.mxu0
      %v7117 = vadd.f32 %v6905, %v7116
      %7118 = vmatmul.bf16.gmra.mxu0 %v7042
      %v7119 = vpop.f32.mrf.mxu0
      %v7120 = vadd.f32 %v6905, %v7119
      %v7121 = vpop.f32.mrf.mxu0
      %v7122 = vadd.f32 %v6905, %v7121
      %7123 = vmatmul.bf16.gmra.mxu0 %v7045
      %v7124 = vpop.f32.mrf.mxu0
      %v7125 = vadd.f32 %v6905, %v7124
      %v7126 = vpop.f32.mrf.mxu0
      %v7127 = vadd.f32 %v6905, %v7126
      %7128 = vmatmul.bf16.gmra.mxu0 %v7048
      %v7129 = vpop.f32.mrf.mxu0
      %v7130 = vadd.f32 %v6905, %v7129
      %v7131 = vpop.f32.mrf.mxu0
      %v7132 = vadd.f32 %v6905, %v7131
      %7133 = vmatmul.bf16.gmra.mxu0 %v7051
      %v7134 = vpop.f32.mrf.mxu0
      %v7135 = vadd.f32 %v6905, %v7134
      %v7136 = vpop.f32.mrf.mxu0
      %v7137 = vadd.f32 %v6905, %v7136
      %7138 = vmatmul.bf16.gmra.mxu0 %v7054
      %v7139 = vpop.f32.mrf.mxu0
      %v7140 = vadd.f32 %v6905, %v7139
      %v7141 = vpop.f32.mrf.mxu0
      %v7142 = vadd.f32 %v6905, %v7141
      %7143 = vmatmul.bf16.gmra.mxu0 %v7057
      %v7144 = vpop.f32.mrf.mxu0
      %v7145 = vadd.f32 %v6905, %v7144
      %v7146 = vpop.f32.mrf.mxu0
      %v7147 = vadd.f32 %v6905, %v7146
      %7148 = vmatmul.bf16.gmra.mxu0 %v7060
      %v7149 = vpop.f32.mrf.mxu0
      %v7150 = vadd.f32 %v6905, %v7149
      %v7151 = vpop.f32.mrf.mxu0
      %v7152 = vadd.f32 %v6905, %v7151
      %7153 = vdwg.mxu0
      %v7154 = vmax.f32 %v7075, 0.0
      %v7155 = vmax.f32 %v7077, 0.0
      %v7156 = vmax.f32 %v7080, 0.0
      %v7157 = vmax.f32 %v7082, 0.0
      %v7158 = vmax.f32 %v7085, 0.0
      %v7159 = vmax.f32 %v7087, 0.0
      %v7160 = vmax.f32 %v7090, 0.0
      %v7161 = vmax.f32 %v7092, 0.0
      %v7162 = vmax.f32 %v7095, 0.0
      %v7163 = vmax.f32 %v7097, 0.0
      %v7164 = vmax.f32 %v7100, 0.0
      %v7165 = vmax.f32 %v7102, 0.0
      %v7166 = vmax.f32 %v7105, 0.0
      %v7167 = vmax.f32 %v7107, 0.0
      %v7168 = vmax.f32 %v7110, 0.0
      %v7169 = vmax.f32 %v7112, 0.0
      %v7170 = vmax.f32 %v7115, 0.0
      %v7171 = vmax.f32 %v7117, 0.0
      %v7172 = vmax.f32 %v7120, 0.0
      %v7173 = vmax.f32 %v7122, 0.0
      %v7174 = vmax.f32 %v7125, 0.0
      %v7175 = vmax.f32 %v7127, 0.0
      %v7176 = vmax.f32 %v7130, 0.0
      %v7177 = vmax.f32 %v7132, 0.0
      %v7178 = vmax.f32 %v7135, 0.0
      %v7179 = vmax.f32 %v7137, 0.0
      %v7180 = vmax.f32 %v7140, 0.0
      %v7181 = vmax.f32 %v7142, 0.0
      %v7182 = vmax.f32 %v7145, 0.0
      %v7183 = vmax.f32 %v7147, 0.0
      %v7184 = vmax.f32 %v7150, 0.0
      %v7185 = vmax.f32 %v7152, 0.0
      %v7218 = vrot.slane %v7154, 2
      %v7219 = vrot.slane %v7154, 4
      %v7220 = vrot.slane %v7154, 6
      %v7221 = vrot.slane %v7155, 2
      %v7222 = vrot.slane %v7155, 4
      %v7223 = vrot.slane %v7155, 6
      %v7224 = vrot.slane %v7156, 2
      %v7225 = vrot.slane %v7156, 4
      %v7226 = vrot.slane %v7156, 6
      %v7227 = vrot.slane %v7157, 2
      %v7228 = vrot.slane %v7157, 4
      %v7229 = vrot.slane %v7157, 6
      %v7230 = vrot.slane %v7158, 2
      %v7231 = vrot.slane %v7158, 4
      %v7232 = vrot.slane %v7158, 6
      %v7233 = vrot.slane %v7159, 2
      %v7234 = vrot.slane %v7159, 4
      %v7235 = vrot.slane %v7159, 6
      %v7236 = vrot.slane %v7160, 2
      %v7237 = vrot.slane %v7160, 4
      %v7238 = vrot.slane %v7160, 6
      %v7239 = vrot.slane %v7161, 2
      %v7240 = vrot.slane %v7161, 4
      %v7241 = vrot.slane %v7161, 6
      %v7242 = vrot.slane %v7162, 2
      %v7243 = vrot.slane %v7162, 4
      %v7244 = vrot.slane %v7162, 6
      %v7245 = vrot.slane %v7163, 2
      %v7246 = vrot.slane %v7163, 4
      %v7247 = vrot.slane %v7163, 6
      %v7248 = vrot.slane %v7164, 2
      %v7249 = vrot.slane %v7164, 4
      %v7250 = vrot.slane %v7164, 6
      %v7251 = vrot.slane %v7165, 2
      %v7252 = vrot.slane %v7165, 4
      %v7253 = vrot.slane %v7165, 6
      %v7254 = vrot.slane %v7166, 2
      %v7255 = vrot.slane %v7166, 4
      %v7256 = vrot.slane %v7166, 6
      %v7257 = vrot.slane %v7167, 2
      %v7258 = vrot.slane %v7167, 4
      %v7259 = vrot.slane %v7167, 6
      %v7260 = vrot.slane %v7168, 2
      %v7261 = vrot.slane %v7168, 4
      %v7262 = vrot.slane %v7168, 6
      %v7263 = vrot.slane %v7169, 2
      %v7264 = vrot.slane %v7169, 4
      %v7265 = vrot.slane %v7169, 6
      %v7266 = vrot.slane %v7170, 2
      %v7267 = vrot.slane %v7170, 4
      %v7268 = vrot.slane %v7170, 6
      %v7269 = vrot.slane %v7171, 2
      %v7270 = vrot.slane %v7171, 4
      %v7271 = vrot.slane %v7171, 6
      %v7272 = vrot.slane %v7172, 2
      %v7273 = vrot.slane %v7172, 4
      %v7274 = vrot.slane %v7172, 6
      %v7275 = vrot.slane %v7173, 2
      %v7276 = vrot.slane %v7173, 4
      %v7277 = vrot.slane %v7173, 6
      %v7278 = vrot.slane %v7174, 2
      %v7279 = vrot.slane %v7174, 4
      %v7280 = vrot.slane %v7174, 6
      %v7281 = vrot.slane %v7175, 2
      %v7282 = vrot.slane %v7175, 4
      %v7283 = vrot.slane %v7175, 6
      %v7284 = vrot.slane %v7176, 2
      %v7285 = vrot.slane %v7176, 4
      %v7286 = vrot.slane %v7176, 6
      %v7287 = vrot.slane %v7177, 2
      %v7288 = vrot.slane %v7177, 4
      %v7289 = vrot.slane %v7177, 6
      %v7290 = vrot.slane %v7178, 2
      %v7291 = vrot.slane %v7178, 4
      %v7292 = vrot.slane %v7178, 6
      %v7293 = vrot.slane %v7179, 2
      %v7294 = vrot.slane %v7179, 4
      %v7295 = vrot.slane %v7179, 6
      %v7296 = vrot.slane %v7180, 2
      %v7297 = vrot.slane %v7180, 4
      %v7298 = vrot.slane %v7180, 6
      %v7299 = vrot.slane %v7181, 2
      %v7300 = vrot.slane %v7181, 4
      %v7301 = vrot.slane %v7181, 6
      %v7302 = vrot.slane %v7182, 2
      %v7303 = vrot.slane %v7182, 4
      %v7304 = vrot.slane %v7182, 6
      %v7305 = vrot.slane %v7183, 2
      %v7306 = vrot.slane %v7183, 4
      %v7307 = vrot.slane %v7183, 6
      %v7308 = vrot.slane %v7184, 2
      %v7309 = vrot.slane %v7184, 4
      %v7310 = vrot.slane %v7184, 6
      %v7311 = vrot.slane %v7185, 2
      %v7312 = vrot.slane %v7185, 4
      %v7313 = vrot.slane %v7185, 6
      %v7410 = vlaneseq
      %v7411 = vshrl.u32 %v7410, 7
      %v7412 = vmul.u32 %v7411, 2
      %v7413 = vadd.s32 %v7412, 32
      %v7414 = vadd.s32 %v7412, 64
      %v7415 = vadd.s32 %v7412, 96
      %v7416 = vadd.s32 %v7412, 128
      %v7417 = vadd.s32 %v7412, 160
      %v7418 = vadd.s32 %v7412, 192
      %v7419 = vadd.s32 %v7412, 224
      %v7420 = vadd.s32 %v7412, 1
      %v7421 = vadd.s32 %v7413, 1
      %v7422 = vadd.s32 %v7414, 1
      %v7423 = vadd.s32 %v7415, 1
      %v7424 = vadd.s32 %v7416, 1
      %v7425 = vadd.s32 %v7417, 1
      %v7426 = vadd.s32 %v7418, 1
      %v7427 = vadd.s32 %v7419, 1
      %v7428 = vadd.s32 %v7412, 16
      %v7429 = vadd.s32 %v7412, 48
      %v7430 = vadd.s32 %v7412, 80
      %v7431 = vadd.s32 %v7412, 112
      %v7432 = vadd.s32 %v7412, 144
      %v7433 = vadd.s32 %v7412, 176
      %v7434 = vadd.s32 %v7412, 208
      %v7435 = vadd.s32 %v7412, 240
      %v7436 = vadd.s32 %v7428, 1
      %v7437 = vadd.s32 %v7429, 1
      %v7438 = vadd.s32 %v7430, 1
      %v7439 = vadd.s32 %v7431, 1
      %v7440 = vadd.s32 %v7432, 1
      %v7441 = vadd.s32 %v7433, 1
      %v7442 = vadd.s32 %v7434, 1
      %v7443 = vadd.s32 %v7435, 1
      %v7444 = vrot.slane %v7154, 7
      %v7445 = vrot.slane %v7218, 7
      %v7446 = vrot.slane %v7219, 7
      %v7447 = vrot.slane %v7220, 7
      %v7448 = vrot.slane %v7155, 7
      %v7449 = vrot.slane %v7221, 7
      %v7450 = vrot.slane %v7222, 7
      %v7451 = vrot.slane %v7223, 7
      %v7452 = vrot.slane %v7158, 7
      %v7453 = vrot.slane %v7230, 7
      %v7454 = vrot.slane %v7231, 7
      %v7455 = vrot.slane %v7232, 7
      %v7456 = vrot.slane %v7159, 7
      %v7457 = vrot.slane %v7233, 7
      %v7458 = vrot.slane %v7234, 7
      %v7459 = vrot.slane %v7235, 7
      %v7460 = vrot.slane %v7162, 7
      %v7461 = vrot.slane %v7242, 7
      %v7462 = vrot.slane %v7243, 7
      %v7463 = vrot.slane %v7244, 7
      %v7464 = vrot.slane %v7163, 7
      %v7465 = vrot.slane %v7245, 7
      %v7466 = vrot.slane %v7246, 7
      %v7467 = vrot.slane %v7247, 7
      %v7468 = vrot.slane %v7166, 7
      %v7469 = vrot.slane %v7254, 7
      %v7470 = vrot.slane %v7255, 7
      %v7471 = vrot.slane %v7256, 7
      %v7472 = vrot.slane %v7167, 7
      %v7473 = vrot.slane %v7257, 7
      %v7474 = vrot.slane %v7258, 7
      %v7475 = vrot.slane %v7259, 7
      %v7476 = vrot.slane %v7170, 7
      %v7477 = vrot.slane %v7266, 7
      %v7478 = vrot.slane %v7267, 7
      %v7479 = vrot.slane %v7268, 7
      %v7480 = vrot.slane %v7171, 7
      %v7481 = vrot.slane %v7269, 7
      %v7482 = vrot.slane %v7270, 7
      %v7483 = vrot.slane %v7271, 7
      %v7484 = vrot.slane %v7174, 7
      %v7485 = vrot.slane %v7278, 7
      %v7486 = vrot.slane %v7279, 7
      %v7487 = vrot.slane %v7280, 7
      %v7488 = vrot.slane %v7175, 7
      %v7489 = vrot.slane %v7281, 7
      %v7490 = vrot.slane %v7282, 7
      %v7491 = vrot.slane %v7283, 7
      %v7492 = vrot.slane %v7178, 7
      %v7493 = vrot.slane %v7290, 7
      %v7494 = vrot.slane %v7291, 7
      %v7495 = vrot.slane %v7292, 7
      %v7496 = vrot.slane %v7179, 7
      %v7497 = vrot.slane %v7293, 7
      %v7498 = vrot.slane %v7294, 7
      %v7499 = vrot.slane %v7295, 7
      %v7500 = vrot.slane %v7182, 7
      %v7501 = vrot.slane %v7302, 7
      %v7502 = vrot.slane %v7303, 7
      %v7503 = vrot.slane %v7304, 7
      %v7504 = vrot.slane %v7183, 7
      %v7505 = vrot.slane %v7305, 7
      %v7506 = vrot.slane %v7306, 7
      %v7507 = vrot.slane %v7307, 7
      %vm7572 = vcmp.gt.f32.partialorder %v7154, %v7444
      %vm7573 = vcmp.gt.f32.partialorder %v7218, %v7445
      %vm7574 = vcmp.gt.f32.partialorder %v7219, %v7446
      %vm7575 = vcmp.gt.f32.partialorder %v7220, %v7447
      %vm7576 = vcmp.gt.f32.partialorder %v7155, %v7448
      %vm7577 = vcmp.gt.f32.partialorder %v7221, %v7449
      %vm7578 = vcmp.gt.f32.partialorder %v7222, %v7450
      %vm7579 = vcmp.gt.f32.partialorder %v7223, %v7451
      %vm7580 = vcmp.gt.f32.partialorder %v7158, %v7452
      %vm7581 = vcmp.gt.f32.partialorder %v7230, %v7453
      %vm7582 = vcmp.gt.f32.partialorder %v7231, %v7454
      %vm7583 = vcmp.gt.f32.partialorder %v7232, %v7455
      %vm7584 = vcmp.gt.f32.partialorder %v7159, %v7456
      %vm7585 = vcmp.gt.f32.partialorder %v7233, %v7457
      %vm7586 = vcmp.gt.f32.partialorder %v7234, %v7458
      %vm7587 = vcmp.gt.f32.partialorder %v7235, %v7459
      %vm7588 = vcmp.gt.f32.partialorder %v7162, %v7460
      %vm7589 = vcmp.gt.f32.partialorder %v7242, %v7461
      %vm7590 = vcmp.gt.f32.partialorder %v7243, %v7462
      %vm7591 = vcmp.gt.f32.partialorder %v7244, %v7463
      %vm7592 = vcmp.gt.f32.partialorder %v7163, %v7464
      %vm7593 = vcmp.gt.f32.partialorder %v7245, %v7465
      %vm7594 = vcmp.gt.f32.partialorder %v7246, %v7466
      %vm7595 = vcmp.gt.f32.partialorder %v7247, %v7467
      %vm7596 = vcmp.gt.f32.partialorder %v7166, %v7468
      %vm7597 = vcmp.gt.f32.partialorder %v7254, %v7469
      %vm7598 = vcmp.gt.f32.partialorder %v7255, %v7470
      %vm7599 = vcmp.gt.f32.partialorder %v7256, %v7471
      %vm7600 = vcmp.gt.f32.partialorder %v7167, %v7472
      %vm7601 = vcmp.gt.f32.partialorder %v7257, %v7473
      %vm7602 = vcmp.gt.f32.partialorder %v7258, %v7474
      %vm7603 = vcmp.gt.f32.partialorder %v7259, %v7475
      %vm7604 = vcmp.gt.f32.partialorder %v7170, %v7476
      %vm7605 = vcmp.gt.f32.partialorder %v7266, %v7477
      %vm7606 = vcmp.gt.f32.partialorder %v7267, %v7478
      %vm7607 = vcmp.gt.f32.partialorder %v7268, %v7479
      %vm7608 = vcmp.gt.f32.partialorder %v7171, %v7480
      %vm7609 = vcmp.gt.f32.partialorder %v7269, %v7481
      %vm7610 = vcmp.gt.f32.partialorder %v7270, %v7482
      %vm7611 = vcmp.gt.f32.partialorder %v7271, %v7483
      %vm7612 = vcmp.gt.f32.partialorder %v7174, %v7484
      %vm7613 = vcmp.gt.f32.partialorder %v7278, %v7485
      %vm7614 = vcmp.gt.f32.partialorder %v7279, %v7486
      %vm7615 = vcmp.gt.f32.partialorder %v7280, %v7487
      %vm7616 = vcmp.gt.f32.partialorder %v7175, %v7488
      %vm7617 = vcmp.gt.f32.partialorder %v7281, %v7489
      %vm7618 = vcmp.gt.f32.partialorder %v7282, %v7490
      %vm7619 = vcmp.gt.f32.partialorder %v7283, %v7491
      %vm7620 = vcmp.gt.f32.partialorder %v7178, %v7492
      %vm7621 = vcmp.gt.f32.partialorder %v7290, %v7493
      %vm7622 = vcmp.gt.f32.partialorder %v7291, %v7494
      %vm7623 = vcmp.gt.f32.partialorder %v7292, %v7495
      %vm7624 = vcmp.gt.f32.partialorder %v7179, %v7496
      %vm7625 = vcmp.gt.f32.partialorder %v7293, %v7497
      %vm7626 = vcmp.gt.f32.partialorder %v7294, %v7498
      %vm7627 = vcmp.gt.f32.partialorder %v7295, %v7499
      %vm7628 = vcmp.gt.f32.partialorder %v7182, %v7500
      %vm7629 = vcmp.gt.f32.partialorder %v7302, %v7501
      %vm7630 = vcmp.gt.f32.partialorder %v7303, %v7502
      %vm7631 = vcmp.gt.f32.partialorder %v7304, %v7503
      %vm7632 = vcmp.gt.f32.partialorder %v7183, %v7504
      %vm7633 = vcmp.gt.f32.partialorder %v7305, %v7505
      %vm7634 = vcmp.gt.f32.partialorder %v7306, %v7506
      %vm7635 = vcmp.gt.f32.partialorder %v7307, %v7507
      %v7636 = vsel %vm7572, %v7154, %v7444
      %v7637 = vsel %vm7573, %v7218, %v7445
      %v7638 = vsel %vm7574, %v7219, %v7446
      %v7639 = vsel %vm7575, %v7220, %v7447
      %v7640 = vsel %vm7576, %v7155, %v7448
      %v7641 = vsel %vm7577, %v7221, %v7449
      %v7642 = vsel %vm7578, %v7222, %v7450
      %v7643 = vsel %vm7579, %v7223, %v7451
      %v7644 = vsel %vm7580, %v7158, %v7452
      %v7645 = vsel %vm7581, %v7230, %v7453
      %v7646 = vsel %vm7582, %v7231, %v7454
      %v7647 = vsel %vm7583, %v7232, %v7455
      %v7648 = vsel %vm7584, %v7159, %v7456
      %v7649 = vsel %vm7585, %v7233, %v7457
      %v7650 = vsel %vm7586, %v7234, %v7458
      %v7651 = vsel %vm7587, %v7235, %v7459
      %v7652 = vsel %vm7588, %v7162, %v7460
      %v7653 = vsel %vm7589, %v7242, %v7461
      %v7654 = vsel %vm7590, %v7243, %v7462
      %v7655 = vsel %vm7591, %v7244, %v7463
      %v7656 = vsel %vm7592, %v7163, %v7464
      %v7657 = vsel %vm7593, %v7245, %v7465
      %v7658 = vsel %vm7594, %v7246, %v7466
      %v7659 = vsel %vm7595, %v7247, %v7467
      %v7660 = vsel %vm7596, %v7166, %v7468
      %v7661 = vsel %vm7597, %v7254, %v7469
      %v7662 = vsel %vm7598, %v7255, %v7470
      %v7663 = vsel %vm7599, %v7256, %v7471
      %v7664 = vsel %vm7600, %v7167, %v7472
      %v7665 = vsel %vm7601, %v7257, %v7473
      %v7666 = vsel %vm7602, %v7258, %v7474
      %v7667 = vsel %vm7603, %v7259, %v7475
      %v7668 = vsel %vm7604, %v7170, %v7476
      %v7669 = vsel %vm7605, %v7266, %v7477
      %v7670 = vsel %vm7606, %v7267, %v7478
      %v7671 = vsel %vm7607, %v7268, %v7479
      %v7672 = vsel %vm7608, %v7171, %v7480
      %v7673 = vsel %vm7609, %v7269, %v7481
      %v7674 = vsel %vm7610, %v7270, %v7482
      %v7675 = vsel %vm7611, %v7271, %v7483
      %v7676 = vsel %vm7612, %v7174, %v7484
      %v7677 = vsel %vm7613, %v7278, %v7485
      %v7678 = vsel %vm7614, %v7279, %v7486
      %v7679 = vsel %vm7615, %v7280, %v7487
      %v7680 = vsel %vm7616, %v7175, %v7488
      %v7681 = vsel %vm7617, %v7281, %v7489
      %v7682 = vsel %vm7618, %v7282, %v7490
      %v7683 = vsel %vm7619, %v7283, %v7491
      %v7684 = vsel %vm7620, %v7178, %v7492
      %v7685 = vsel %vm7621, %v7290, %v7493
      %v7686 = vsel %vm7622, %v7291, %v7494
      %v7687 = vsel %vm7623, %v7292, %v7495
      %v7688 = vsel %vm7624, %v7179, %v7496
      %v7689 = vsel %vm7625, %v7293, %v7497
      %v7690 = vsel %vm7626, %v7294, %v7498
      %v7691 = vsel %vm7627, %v7295, %v7499
      %v7692 = vsel %vm7628, %v7182, %v7500
      %v7693 = vsel %vm7629, %v7302, %v7501
      %v7694 = vsel %vm7630, %v7303, %v7502
      %v7695 = vsel %vm7631, %v7304, %v7503
      %v7696 = vsel %vm7632, %v7183, %v7504
      %v7697 = vsel %vm7633, %v7305, %v7505
      %v7698 = vsel %vm7634, %v7306, %v7506
      %v7699 = vsel %vm7635, %v7307, %v7507
      %v7701 = vunpack.c.l.s4 269488144
      %v7702 = vunpack.c.0.s8 %v7701
      %v7703 = vperm.slane %v7420, %v7702
      %v7705 = vunpack.c.l.s4 842150450
      %v7706 = vunpack.c.0.s8 %v7705
      %v7707 = vperm.slane %v7420, %v7706
      %v7709 = vunpack.c.l.s4 1414812756
      %v7710 = vunpack.c.0.s8 %v7709
      %v7711 = vperm.slane %v7420, %v7710
      %v7713 = vunpack.c.l.s4 1987475062
      %v7714 = vunpack.c.0.s8 %v7713
      %v7715 = vperm.slane %v7420, %v7714
      %v7717 = vunpack.c.l.s4 269488144
      %v7718 = vunpack.c.0.s8 %v7717
      %v7719 = vperm.slane %v7421, %v7718
      %v7721 = vunpack.c.l.s4 842150450
      %v7722 = vunpack.c.0.s8 %v7721
      %v7723 = vperm.slane %v7421, %v7722
      %v7725 = vunpack.c.l.s4 1414812756
      %v7726 = vunpack.c.0.s8 %v7725
      %v7727 = vperm.slane %v7421, %v7726
      %v7729 = vunpack.c.l.s4 1987475062
      %v7730 = vunpack.c.0.s8 %v7729
      %v7731 = vperm.slane %v7421, %v7730
      %v7733 = vunpack.c.l.s4 269488144
      %v7734 = vunpack.c.0.s8 %v7733
      %v7735 = vperm.slane %v7422, %v7734
      %v7737 = vunpack.c.l.s4 842150450
      %v7738 = vunpack.c.0.s8 %v7737
      %v7739 = vperm.slane %v7422, %v7738
      %v7741 = vunpack.c.l.s4 1414812756
      %v7742 = vunpack.c.0.s8 %v7741
      %v7743 = vperm.slane %v7422, %v7742
      %v7745 = vunpack.c.l.s4 1987475062
      %v7746 = vunpack.c.0.s8 %v7745
      %v7747 = vperm.slane %v7422, %v7746
      %v7749 = vunpack.c.l.s4 269488144
      %v7750 = vunpack.c.0.s8 %v7749
      %v7751 = vperm.slane %v7423, %v7750
      %v7753 = vunpack.c.l.s4 842150450
      %v7754 = vunpack.c.0.s8 %v7753
      %v7755 = vperm.slane %v7423, %v7754
      %v7757 = vunpack.c.l.s4 1414812756
      %v7758 = vunpack.c.0.s8 %v7757
      %v7759 = vperm.slane %v7423, %v7758
      %v7761 = vunpack.c.l.s4 1987475062
      %v7762 = vunpack.c.0.s8 %v7761
      %v7763 = vperm.slane %v7423, %v7762
      %v7765 = vunpack.c.l.s4 269488144
      %v7766 = vunpack.c.0.s8 %v7765
      %v7767 = vperm.slane %v7424, %v7766
      %v7769 = vunpack.c.l.s4 842150450
      %v7770 = vunpack.c.0.s8 %v7769
      %v7771 = vperm.slane %v7424, %v7770
      %v7773 = vunpack.c.l.s4 1414812756
      %v7774 = vunpack.c.0.s8 %v7773
      %v7775 = vperm.slane %v7424, %v7774
      %v7777 = vunpack.c.l.s4 1987475062
      %v7778 = vunpack.c.0.s8 %v7777
      %v7779 = vperm.slane %v7424, %v7778
      %v7781 = vunpack.c.l.s4 269488144
      %v7782 = vunpack.c.0.s8 %v7781
      %v7783 = vperm.slane %v7425, %v7782
      %v7785 = vunpack.c.l.s4 842150450
      %v7786 = vunpack.c.0.s8 %v7785
      %v7787 = vperm.slane %v7425, %v7786
      %v7789 = vunpack.c.l.s4 1414812756
      %v7790 = vunpack.c.0.s8 %v7789
      %v7791 = vperm.slane %v7425, %v7790
      %v7793 = vunpack.c.l.s4 1987475062
      %v7794 = vunpack.c.0.s8 %v7793
      %v7795 = vperm.slane %v7425, %v7794
      %v7797 = vunpack.c.l.s4 269488144
      %v7798 = vunpack.c.0.s8 %v7797
      %v7799 = vperm.slane %v7426, %v7798
      %v7801 = vunpack.c.l.s4 842150450
      %v7802 = vunpack.c.0.s8 %v7801
      %v7803 = vperm.slane %v7426, %v7802
      %v7805 = vunpack.c.l.s4 1414812756
      %v7806 = vunpack.c.0.s8 %v7805
      %v7807 = vperm.slane %v7426, %v7806
      %v7809 = vunpack.c.l.s4 1987475062
      %v7810 = vunpack.c.0.s8 %v7809
      %v7811 = vperm.slane %v7426, %v7810
      %v7813 = vunpack.c.l.s4 269488144
      %v7814 = vunpack.c.0.s8 %v7813
      %v7815 = vperm.slane %v7427, %v7814
      %v7817 = vunpack.c.l.s4 842150450
      %v7818 = vunpack.c.0.s8 %v7817
      %v7819 = vperm.slane %v7427, %v7818
      %v7821 = vunpack.c.l.s4 1414812756
      %v7822 = vunpack.c.0.s8 %v7821
      %v7823 = vperm.slane %v7427, %v7822
      %v7825 = vunpack.c.l.s4 1987475062
      %v7826 = vunpack.c.0.s8 %v7825
      %v7827 = vperm.slane %v7427, %v7826
      %v7828 = vrot.slane %v7703, 7
      %v7829 = vrot.slane %v7707, 7
      %v7830 = vrot.slane %v7711, 7
      %v7831 = vrot.slane %v7715, 7
      %v7832 = vrot.slane %v7719, 7
      %v7833 = vrot.slane %v7723, 7
      %v7834 = vrot.slane %v7727, 7
      %v7835 = vrot.slane %v7731, 7
      %v7836 = vrot.slane %v7735, 7
      %v7837 = vrot.slane %v7739, 7
      %v7838 = vrot.slane %v7743, 7
      %v7839 = vrot.slane %v7747, 7
      %v7840 = vrot.slane %v7751, 7
      %v7841 = vrot.slane %v7755, 7
      %v7842 = vrot.slane %v7759, 7
      %v7843 = vrot.slane %v7763, 7
      %v7844 = vrot.slane %v7767, 7
      %v7845 = vrot.slane %v7771, 7
      %v7846 = vrot.slane %v7775, 7
      %v7847 = vrot.slane %v7779, 7
      %v7848 = vrot.slane %v7783, 7
      %v7849 = vrot.slane %v7787, 7
      %v7850 = vrot.slane %v7791, 7
      %v7851 = vrot.slane %v7795, 7
      %v7852 = vrot.slane %v7799, 7
      %v7853 = vrot.slane %v7803, 7
      %v7854 = vrot.slane %v7807, 7
      %v7855 = vrot.slane %v7811, 7
      %v7856 = vrot.slane %v7815, 7
      %v7857 = vrot.slane %v7819, 7
      %v7858 = vrot.slane %v7823, 7
      %v7859 = vrot.slane %v7827, 7
      %v7861 = vunpack.c.l.s4 269488144
      %v7862 = vunpack.c.0.s8 %v7861
      %v7863 = vperm.slane %v7412, %v7862
      %v7865 = vunpack.c.l.s4 842150450
      %v7866 = vunpack.c.0.s8 %v7865
      %v7867 = vperm.slane %v7412, %v7866
      %v7869 = vunpack.c.l.s4 1414812756
      %v7870 = vunpack.c.0.s8 %v7869
      %v7871 = vperm.slane %v7412, %v7870
      %v7873 = vunpack.c.l.s4 1987475062
      %v7874 = vunpack.c.0.s8 %v7873
      %v7875 = vperm.slane %v7412, %v7874
      %v7877 = vunpack.c.l.s4 269488144
      %v7878 = vunpack.c.0.s8 %v7877
      %v7879 = vperm.slane %v7413, %v7878
      %v7881 = vunpack.c.l.s4 842150450
      %v7882 = vunpack.c.0.s8 %v7881
      %v7883 = vperm.slane %v7413, %v7882
      %v7885 = vunpack.c.l.s4 1414812756
      %v7886 = vunpack.c.0.s8 %v7885
      %v7887 = vperm.slane %v7413, %v7886
      %v7889 = vunpack.c.l.s4 1987475062
      %v7890 = vunpack.c.0.s8 %v7889
      %v7891 = vperm.slane %v7413, %v7890
      %v7893 = vunpack.c.l.s4 269488144
      %v7894 = vunpack.c.0.s8 %v7893
      %v7895 = vperm.slane %v7414, %v7894
      %v7897 = vunpack.c.l.s4 842150450
      %v7898 = vunpack.c.0.s8 %v7897
      %v7899 = vperm.slane %v7414, %v7898
      %v7901 = vunpack.c.l.s4 1414812756
      %v7902 = vunpack.c.0.s8 %v7901
      %v7903 = vperm.slane %v7414, %v7902
      %v7905 = vunpack.c.l.s4 1987475062
      %v7906 = vunpack.c.0.s8 %v7905
      %v7907 = vperm.slane %v7414, %v7906
      %v7909 = vunpack.c.l.s4 269488144
      %v7910 = vunpack.c.0.s8 %v7909
      %v7911 = vperm.slane %v7415, %v7910
      %v7913 = vunpack.c.l.s4 842150450
      %v7914 = vunpack.c.0.s8 %v7913
      %v7915 = vperm.slane %v7415, %v7914
      %v7917 = vunpack.c.l.s4 1414812756
      %v7918 = vunpack.c.0.s8 %v7917
      %v7919 = vperm.slane %v7415, %v7918
      %v7921 = vunpack.c.l.s4 1987475062
      %v7922 = vunpack.c.0.s8 %v7921
      %v7923 = vperm.slane %v7415, %v7922
      %v7925 = vunpack.c.l.s4 269488144
      %v7926 = vunpack.c.0.s8 %v7925
      %v7927 = vperm.slane %v7416, %v7926
      %v7929 = vunpack.c.l.s4 842150450
      %v7930 = vunpack.c.0.s8 %v7929
      %v7931 = vperm.slane %v7416, %v7930
      %v7933 = vunpack.c.l.s4 1414812756
      %v7934 = vunpack.c.0.s8 %v7933
      %v7935 = vperm.slane %v7416, %v7934
      %v7937 = vunpack.c.l.s4 1987475062
      %v7938 = vunpack.c.0.s8 %v7937
      %v7939 = vperm.slane %v7416, %v7938
      %v7941 = vunpack.c.l.s4 269488144
      %v7942 = vunpack.c.0.s8 %v7941
      %v7943 = vperm.slane %v7417, %v7942
      %v7945 = vunpack.c.l.s4 842150450
      %v7946 = vunpack.c.0.s8 %v7945
      %v7947 = vperm.slane %v7417, %v7946
      %v7949 = vunpack.c.l.s4 1414812756
      %v7950 = vunpack.c.0.s8 %v7949
      %v7951 = vperm.slane %v7417, %v7950
      %v7953 = vunpack.c.l.s4 1987475062
      %v7954 = vunpack.c.0.s8 %v7953
      %v7955 = vperm.slane %v7417, %v7954
      %v7957 = vunpack.c.l.s4 269488144
      %v7958 = vunpack.c.0.s8 %v7957
      %v7959 = vperm.slane %v7418, %v7958
      %v7961 = vunpack.c.l.s4 842150450
      %v7962 = vunpack.c.0.s8 %v7961
      %v7963 = vperm.slane %v7418, %v7962
      %v7965 = vunpack.c.l.s4 1414812756
      %v7966 = vunpack.c.0.s8 %v7965
      %v7967 = vperm.slane %v7418, %v7966
      %v7969 = vunpack.c.l.s4 1987475062
      %v7970 = vunpack.c.0.s8 %v7969
      %v7971 = vperm.slane %v7418, %v7970
      %v7973 = vunpack.c.l.s4 269488144
      %v7974 = vunpack.c.0.s8 %v7973
      %v7975 = vperm.slane %v7419, %v7974
      %v7977 = vunpack.c.l.s4 842150450
      %v7978 = vunpack.c.0.s8 %v7977
      %v7979 = vperm.slane %v7419, %v7978
      %v7981 = vunpack.c.l.s4 1414812756
      %v7982 = vunpack.c.0.s8 %v7981
      %v7983 = vperm.slane %v7419, %v7982
      %v7985 = vunpack.c.l.s4 1987475062
      %v7986 = vunpack.c.0.s8 %v7985
      %v7987 = vperm.slane %v7419, %v7986
      %v7988 = vrot.slane %v7863, 7
      %v7989 = vrot.slane %v7867, 7
      %v7990 = vrot.slane %v7871, 7
      %v7991 = vrot.slane %v7875, 7
      %v7992 = vrot.slane %v7879, 7
      %v7993 = vrot.slane %v7883, 7
      %v7994 = vrot.slane %v7887, 7
      %v7995 = vrot.slane %v7891, 7
      %v7996 = vrot.slane %v7895, 7
      %v7997 = vrot.slane %v7899, 7
      %v7998 = vrot.slane %v7903, 7
      %v7999 = vrot.slane %v7907, 7
      %v8000 = vrot.slane %v7911, 7
      %v8001 = vrot.slane %v7915, 7
      %v8002 = vrot.slane %v7919, 7
      %v8003 = vrot.slane %v7923, 7
      %v8004 = vrot.slane %v7927, 7
      %v8005 = vrot.slane %v7931, 7
      %v8006 = vrot.slane %v7935, 7
      %v8007 = vrot.slane %v7939, 7
      %v8008 = vrot.slane %v7943, 7
      %v8009 = vrot.slane %v7947, 7
      %v8010 = vrot.slane %v7951, 7
      %v8011 = vrot.slane %v7955, 7
      %v8012 = vrot.slane %v7959, 7
      %v8013 = vrot.slane %v7963, 7
      %v8014 = vrot.slane %v7967, 7
      %v8015 = vrot.slane %v7971, 7
      %v8016 = vrot.slane %v7975, 7
      %v8017 = vrot.slane %v7979, 7
      %v8018 = vrot.slane %v7983, 7
      %v8019 = vrot.slane %v7987, 7
      %v8020 = vsel %vm7572, %v7828, %v7988
      %v8021 = vsel %vm7573, %v7703, %v7863
      %v8022 = vsel %vm7574, %v7829, %v7989
      %v8023 = vsel %vm7575, %v7707, %v7867
      %v8024 = vsel %vm7576, %v7830, %v7990
      %v8025 = vsel %vm7577, %v7711, %v7871
      %v8026 = vsel %vm7578, %v7831, %v7991
      %v8027 = vsel %vm7579, %v7715, %v7875
      %v8028 = vsel %vm7580, %v7832, %v7992
      %v8029 = vsel %vm7581, %v7719, %v7879
      %v8030 = vsel %vm7582, %v7833, %v7993
      %v8031 = vsel %vm7583, %v7723, %v7883
      %v8032 = vsel %vm7584, %v7834, %v7994
      %v8033 = vsel %vm7585, %v7727, %v7887
      %v8034 = vsel %vm7586, %v7835, %v7995
      %v8035 = vsel %vm7587, %v7731, %v7891
      %v8036 = vsel %vm7588, %v7836, %v7996
      %v8037 = vsel %vm7589, %v7735, %v7895
      %v8038 = vsel %vm7590, %v7837, %v7997
      %v8039 = vsel %vm7591, %v7739, %v7899
      %v8040 = vsel %vm7592, %v7838, %v7998
      %v8041 = vsel %vm7593, %v7743, %v7903
      %v8042 = vsel %vm7594, %v7839, %v7999
      %v8043 = vsel %vm7595, %v7747, %v7907
      %v8044 = vsel %vm7596, %v7840, %v8000
      %v8045 = vsel %vm7597, %v7751, %v7911
      %v8046 = vsel %vm7598, %v7841, %v8001
      %v8047 = vsel %vm7599, %v7755, %v7915
      %v8048 = vsel %vm7600, %v7842, %v8002
      %v8049 = vsel %vm7601, %v7759, %v7919
      %v8050 = vsel %vm7602, %v7843, %v8003
      %v8051 = vsel %vm7603, %v7763, %v7923
      %v8052 = vsel %vm7604, %v7844, %v8004
      %v8053 = vsel %vm7605, %v7767, %v7927
      %v8054 = vsel %vm7606, %v7845, %v8005
      %v8055 = vsel %vm7607, %v7771, %v7931
      %v8056 = vsel %vm7608, %v7846, %v8006
      %v8057 = vsel %vm7609, %v7775, %v7935
      %v8058 = vsel %vm7610, %v7847, %v8007
      %v8059 = vsel %vm7611, %v7779, %v7939
      %v8060 = vsel %vm7612, %v7848, %v8008
      %v8061 = vsel %vm7613, %v7783, %v7943
      %v8062 = vsel %vm7614, %v7849, %v8009
      %v8063 = vsel %vm7615, %v7787, %v7947
      %v8064 = vsel %vm7616, %v7850, %v8010
      %v8065 = vsel %vm7617, %v7791, %v7951
      %v8066 = vsel %vm7618, %v7851, %v8011
      %v8067 = vsel %vm7619, %v7795, %v7955
      %v8068 = vsel %vm7620, %v7852, %v8012
      %v8069 = vsel %vm7621, %v7799, %v7959
      %v8070 = vsel %vm7622, %v7853, %v8013
      %v8071 = vsel %vm7623, %v7803, %v7963
      %v8072 = vsel %vm7624, %v7854, %v8014
      %v8073 = vsel %vm7625, %v7807, %v7967
      %v8074 = vsel %vm7626, %v7855, %v8015
      %v8075 = vsel %vm7627, %v7811, %v7971
      %v8076 = vsel %vm7628, %v7856, %v8016
      %v8077 = vsel %vm7629, %v7815, %v7975
      %v8078 = vsel %vm7630, %v7857, %v8017
      %v8079 = vsel %vm7631, %v7819, %v7979
      %v8080 = vsel %vm7632, %v7858, %v8018
      %v8081 = vsel %vm7633, %v7823, %v7983
      %v8082 = vsel %vm7634, %v7859, %v8019
      %v8083 = vsel %vm7635, %v7827, %v7987
      %v8148 = vrot.slane %v7636, 7
      %v8149 = vrot.slane %v8148, 2
      %v8150 = vrot.slane %v7637, 7
      %v8151 = vrot.slane %v8150, 2
      %v8152 = vrot.slane %v7638, 7
      %v8153 = vrot.slane %v8152, 2
      %v8154 = vrot.slane %v7639, 7
      %v8155 = vrot.slane %v8154, 2
      %v8156 = vrot.slane %v7640, 7
      %v8157 = vrot.slane %v8156, 2
      %v8158 = vrot.slane %v7641, 7
      %v8159 = vrot.slane %v8158, 2
      %v8160 = vrot.slane %v7642, 7
      %v8161 = vrot.slane %v8160, 2
      %v8162 = vrot.slane %v7643, 7
      %v8163 = vrot.slane %v8162, 2
      %v8164 = vrot.slane %v7644, 7
      %v8165 = vrot.slane %v8164, 2
      %v8166 = vrot.slane %v7645, 7
      %v8167 = vrot.slane %v8166, 2
      %v8168 = vrot.slane %v7646, 7
      %v8169 = vrot.slane %v8168, 2
      %v8170 = vrot.slane %v7647, 7
      %v8171 = vrot.slane %v8170, 2
      %v8172 = vrot.slane %v7648, 7
      %v8173 = vrot.slane %v8172, 2
      %v8174 = vrot.slane %v7649, 7
      %v8175 = vrot.slane %v8174, 2
      %v8176 = vrot.slane %v7650, 7
      %v8177 = vrot.slane %v8176, 2
      %v8178 = vrot.slane %v7651, 7
      %v8179 = vrot.slane %v8178, 2
      %v8180 = vrot.slane %v7652, 7
      %v8181 = vrot.slane %v8180, 2
      %v8182 = vrot.slane %v7653, 7
      %v8183 = vrot.slane %v8182, 2
      %v8184 = vrot.slane %v7654, 7
      %v8185 = vrot.slane %v8184, 2
      %v8186 = vrot.slane %v7655, 7
      %v8187 = vrot.slane %v8186, 2
      %v8188 = vrot.slane %v7656, 7
      %v8189 = vrot.slane %v8188, 2
      %v8190 = vrot.slane %v7657, 7
      %v8191 = vrot.slane %v8190, 2
      %v8192 = vrot.slane %v7658, 7
      %v8193 = vrot.slane %v8192, 2
      %v8194 = vrot.slane %v7659, 7
      %v8195 = vrot.slane %v8194, 2
      %v8196 = vrot.slane %v7660, 7
      %v8197 = vrot.slane %v8196, 2
      %v8198 = vrot.slane %v7661, 7
      %v8199 = vrot.slane %v8198, 2
      %v8200 = vrot.slane %v7662, 7
      %v8201 = vrot.slane %v8200, 2
      %v8202 = vrot.slane %v7663, 7
      %v8203 = vrot.slane %v8202, 2
      %v8204 = vrot.slane %v7664, 7
      %v8205 = vrot.slane %v8204, 2
      %v8206 = vrot.slane %v7665, 7
      %v8207 = vrot.slane %v8206, 2
      %v8208 = vrot.slane %v7666, 7
      %v8209 = vrot.slane %v8208, 2
      %v8210 = vrot.slane %v7667, 7
      %v8211 = vrot.slane %v8210, 2
      %v8212 = vrot.slane %v7668, 7
      %v8213 = vrot.slane %v8212, 2
      %v8214 = vrot.slane %v7669, 7
      %v8215 = vrot.slane %v8214, 2
      %v8216 = vrot.slane %v7670, 7
      %v8217 = vrot.slane %v8216, 2
      %v8218 = vrot.slane %v7671, 7
      %v8219 = vrot.slane %v8218, 2
      %v8220 = vrot.slane %v7672, 7
      %v8221 = vrot.slane %v8220, 2
      %v8222 = vrot.slane %v7673, 7
      %v8223 = vrot.slane %v8222, 2
      %v8224 = vrot.slane %v7674, 7
      %v8225 = vrot.slane %v8224, 2
      %v8226 = vrot.slane %v7675, 7
      %v8227 = vrot.slane %v8226, 2
      %v8228 = vrot.slane %v7676, 7
      %v8229 = vrot.slane %v8228, 2
      %v8230 = vrot.slane %v7677, 7
      %v8231 = vrot.slane %v8230, 2
      %v8232 = vrot.slane %v7678, 7
      %v8233 = vrot.slane %v8232, 2
      %v8234 = vrot.slane %v7679, 7
      %v8235 = vrot.slane %v8234, 2
      %v8236 = vrot.slane %v7680, 7
      %v8237 = vrot.slane %v8236, 2
      %v8238 = vrot.slane %v7681, 7
      %v8239 = vrot.slane %v8238, 2
      %v8240 = vrot.slane %v7682, 7
      %v8241 = vrot.slane %v8240, 2
      %v8242 = vrot.slane %v7683, 7
      %v8243 = vrot.slane %v8242, 2
      %v8244 = vrot.slane %v7684, 7
      %v8245 = vrot.slane %v8244, 2
      %v8246 = vrot.slane %v7685, 7
      %v8247 = vrot.slane %v8246, 2
      %v8248 = vrot.slane %v7686, 7
      %v8249 = vrot.slane %v8248, 2
      %v8250 = vrot.slane %v7687, 7
      %v8251 = vrot.slane %v8250, 2
      %v8252 = vrot.slane %v7688, 7
      %v8253 = vrot.slane %v8252, 2
      %v8254 = vrot.slane %v7689, 7
      %v8255 = vrot.slane %v8254, 2
      %v8256 = vrot.slane %v7690, 7
      %v8257 = vrot.slane %v8256, 2
      %v8258 = vrot.slane %v7691, 7
      %v8259 = vrot.slane %v8258, 2
      %v8260 = vrot.slane %v7692, 7
      %v8261 = vrot.slane %v8260, 2
      %v8262 = vrot.slane %v7693, 7
      %v8263 = vrot.slane %v8262, 2
      %v8264 = vrot.slane %v7694, 7
      %v8265 = vrot.slane %v8264, 2
      %v8266 = vrot.slane %v7695, 7
      %v8267 = vrot.slane %v8266, 2
      %v8268 = vrot.slane %v7696, 7
      %v8269 = vrot.slane %v8268, 2
      %v8270 = vrot.slane %v7697, 7
      %v8271 = vrot.slane %v8270, 2
      %v8272 = vrot.slane %v7698, 7
      %v8273 = vrot.slane %v8272, 2
      %v8274 = vrot.slane %v7699, 7
      %v8275 = vrot.slane %v8274, 2
      %vm8340 = vcmp.gt.f32.partialorder %v7156, %v8149
      %vm8341 = vcmp.gt.f32.partialorder %v7224, %v8151
      %vm8342 = vcmp.gt.f32.partialorder %v7225, %v8153
      %vm8343 = vcmp.gt.f32.partialorder %v7226, %v8155
      %vm8344 = vcmp.gt.f32.partialorder %v7157, %v8157
      %vm8345 = vcmp.gt.f32.partialorder %v7227, %v8159
      %vm8346 = vcmp.gt.f32.partialorder %v7228, %v8161
      %vm8347 = vcmp.gt.f32.partialorder %v7229, %v8163
      %vm8348 = vcmp.gt.f32.partialorder %v7160, %v8165
      %vm8349 = vcmp.gt.f32.partialorder %v7236, %v8167
      %vm8350 = vcmp.gt.f32.partialorder %v7237, %v8169
      %vm8351 = vcmp.gt.f32.partialorder %v7238, %v8171
      %vm8352 = vcmp.gt.f32.partialorder %v7161, %v8173
      %vm8353 = vcmp.gt.f32.partialorder %v7239, %v8175
      %vm8354 = vcmp.gt.f32.partialorder %v7240, %v8177
      %vm8355 = vcmp.gt.f32.partialorder %v7241, %v8179
      %vm8356 = vcmp.gt.f32.partialorder %v7164, %v8181
      %vm8357 = vcmp.gt.f32.partialorder %v7248, %v8183
      %vm8358 = vcmp.gt.f32.partialorder %v7249, %v8185
      %vm8359 = vcmp.gt.f32.partialorder %v7250, %v8187
      %vm8360 = vcmp.gt.f32.partialorder %v7165, %v8189
      %vm8361 = vcmp.gt.f32.partialorder %v7251, %v8191
      %vm8362 = vcmp.gt.f32.partialorder %v7252, %v8193
      %vm8363 = vcmp.gt.f32.partialorder %v7253, %v8195
      %vm8364 = vcmp.gt.f32.partialorder %v7168, %v8197
      %vm8365 = vcmp.gt.f32.partialorder %v7260, %v8199
      %vm8366 = vcmp.gt.f32.partialorder %v7261, %v8201
      %vm8367 = vcmp.gt.f32.partialorder %v7262, %v8203
      %vm8368 = vcmp.gt.f32.partialorder %v7169, %v8205
      %vm8369 = vcmp.gt.f32.partialorder %v7263, %v8207
      %vm8370 = vcmp.gt.f32.partialorder %v7264, %v8209
      %vm8371 = vcmp.gt.f32.partialorder %v7265, %v8211
      %vm8372 = vcmp.gt.f32.partialorder %v7172, %v8213
      %vm8373 = vcmp.gt.f32.partialorder %v7272, %v8215
      %vm8374 = vcmp.gt.f32.partialorder %v7273, %v8217
      %vm8375 = vcmp.gt.f32.partialorder %v7274, %v8219
      %vm8376 = vcmp.gt.f32.partialorder %v7173, %v8221
      %vm8377 = vcmp.gt.f32.partialorder %v7275, %v8223
      %vm8378 = vcmp.gt.f32.partialorder %v7276, %v8225
      %vm8379 = vcmp.gt.f32.partialorder %v7277, %v8227
      %vm8380 = vcmp.gt.f32.partialorder %v7176, %v8229
      %vm8381 = vcmp.gt.f32.partialorder %v7284, %v8231
      %vm8382 = vcmp.gt.f32.partialorder %v7285, %v8233
      %vm8383 = vcmp.gt.f32.partialorder %v7286, %v8235
      %vm8384 = vcmp.gt.f32.partialorder %v7177, %v8237
      %vm8385 = vcmp.gt.f32.partialorder %v7287, %v8239
      %vm8386 = vcmp.gt.f32.partialorder %v7288, %v8241
      %vm8387 = vcmp.gt.f32.partialorder %v7289, %v8243
      %vm8388 = vcmp.gt.f32.partialorder %v7180, %v8245
      %vm8389 = vcmp.gt.f32.partialorder %v7296, %v8247
      %vm8390 = vcmp.gt.f32.partialorder %v7297, %v8249
      %vm8391 = vcmp.gt.f32.partialorder %v7298, %v8251
      %vm8392 = vcmp.gt.f32.partialorder %v7181, %v8253
      %vm8393 = vcmp.gt.f32.partialorder %v7299, %v8255
      %vm8394 = vcmp.gt.f32.partialorder %v7300, %v8257
      %vm8395 = vcmp.gt.f32.partialorder %v7301, %v8259
      %vm8396 = vcmp.gt.f32.partialorder %v7184, %v8261
      %vm8397 = vcmp.gt.f32.partialorder %v7308, %v8263
      %vm8398 = vcmp.gt.f32.partialorder %v7309, %v8265
      %vm8399 = vcmp.gt.f32.partialorder %v7310, %v8267
      %vm8400 = vcmp.gt.f32.partialorder %v7185, %v8269
      %vm8401 = vcmp.gt.f32.partialorder %v7311, %v8271
      %vm8402 = vcmp.gt.f32.partialorder %v7312, %v8273
      %vm8403 = vcmp.gt.f32.partialorder %v7313, %v8275
      %v8404 = vsel %vm8340, %v7156, %v8149
      %v8405 = vsel %vm8341, %v7224, %v8151
      %v8406 = vsel %vm8342, %v7225, %v8153
      %v8407 = vsel %vm8343, %v7226, %v8155
      %v8408 = vsel %vm8344, %v7157, %v8157
      %v8409 = vsel %vm8345, %v7227, %v8159
      %v8410 = vsel %vm8346, %v7228, %v8161
      %v8411 = vsel %vm8347, %v7229, %v8163
      %v8412 = vsel %vm8348, %v7160, %v8165
      %v8413 = vsel %vm8349, %v7236, %v8167
      %v8414 = vsel %vm8350, %v7237, %v8169
      %v8415 = vsel %vm8351, %v7238, %v8171
      %v8416 = vsel %vm8352, %v7161, %v8173
      %v8417 = vsel %vm8353, %v7239, %v8175
      %v8418 = vsel %vm8354, %v7240, %v8177
      %v8419 = vsel %vm8355, %v7241, %v8179
      %v8420 = vsel %vm8356, %v7164, %v8181
      %v8421 = vsel %vm8357, %v7248, %v8183
      %v8422 = vsel %vm8358, %v7249, %v8185
      %v8423 = vsel %vm8359, %v7250, %v8187
      %v8424 = vsel %vm8360, %v7165, %v8189
      %v8425 = vsel %vm8361, %v7251, %v8191
      %v8426 = vsel %vm8362, %v7252, %v8193
      %v8427 = vsel %vm8363, %v7253, %v8195
      %v8428 = vsel %vm8364, %v7168, %v8197
      %v8429 = vsel %vm8365, %v7260, %v8199
      %v8430 = vsel %vm8366, %v7261, %v8201
      %v8431 = vsel %vm8367, %v7262, %v8203
      %v8432 = vsel %vm8368, %v7169, %v8205
      %v8433 = vsel %vm8369, %v7263, %v8207
      %v8434 = vsel %vm8370, %v7264, %v8209
      %v8435 = vsel %vm8371, %v7265, %v8211
      %v8436 = vsel %vm8372, %v7172, %v8213
      %v8437 = vsel %vm8373, %v7272, %v8215
      %v8438 = vsel %vm8374, %v7273, %v8217
      %v8439 = vsel %vm8375, %v7274, %v8219
      %v8440 = vsel %vm8376, %v7173, %v8221
      %v8441 = vsel %vm8377, %v7275, %v8223
      %v8442 = vsel %vm8378, %v7276, %v8225
      %v8443 = vsel %vm8379, %v7277, %v8227
      %v8444 = vsel %vm8380, %v7176, %v8229
      %v8445 = vsel %vm8381, %v7284, %v8231
      %v8446 = vsel %vm8382, %v7285, %v8233
      %v8447 = vsel %vm8383, %v7286, %v8235
      %v8448 = vsel %vm8384, %v7177, %v8237
      %v8449 = vsel %vm8385, %v7287, %v8239
      %v8450 = vsel %vm8386, %v7288, %v8241
      %v8451 = vsel %vm8387, %v7289, %v8243
      %v8452 = vsel %vm8388, %v7180, %v8245
      %v8453 = vsel %vm8389, %v7296, %v8247
      %v8454 = vsel %vm8390, %v7297, %v8249
      %v8455 = vsel %vm8391, %v7298, %v8251
      %v8456 = vsel %vm8392, %v7181, %v8253
      %v8457 = vsel %vm8393, %v7299, %v8255
      %v8458 = vsel %vm8394, %v7300, %v8257
      %v8459 = vsel %vm8395, %v7301, %v8259
      %v8460 = vsel %vm8396, %v7184, %v8261
      %v8461 = vsel %vm8397, %v7308, %v8263
      %v8462 = vsel %vm8398, %v7309, %v8265
      %v8463 = vsel %vm8399, %v7310, %v8267
      %v8464 = vsel %vm8400, %v7185, %v8269
      %v8465 = vsel %vm8401, %v7311, %v8271
      %v8466 = vsel %vm8402, %v7312, %v8273
      %v8467 = vsel %vm8403, %v7313, %v8275
      %v8469 = vunpack.c.l.s4 269488144
      %v8470 = vunpack.c.0.s8 %v8469
      %v8471 = vperm.slane %v7428, %v8470
      %v8473 = vunpack.c.l.s4 842150450
      %v8474 = vunpack.c.0.s8 %v8473
      %v8475 = vperm.slane %v7428, %v8474
      %v8477 = vunpack.c.l.s4 1414812756
      %v8478 = vunpack.c.0.s8 %v8477
      %v8479 = vperm.slane %v7428, %v8478
      %v8481 = vunpack.c.l.s4 1987475062
      %v8482 = vunpack.c.0.s8 %v8481
      %v8483 = vperm.slane %v7428, %v8482
      %v8485 = vunpack.c.l.s4 269488144
      %v8486 = vunpack.c.0.s8 %v8485
      %v8487 = vperm.slane %v7429, %v8486
      %v8489 = vunpack.c.l.s4 842150450
      %v8490 = vunpack.c.0.s8 %v8489
      %v8491 = vperm.slane %v7429, %v8490
      %v8493 = vunpack.c.l.s4 1414812756
      %v8494 = vunpack.c.0.s8 %v8493
      %v8495 = vperm.slane %v7429, %v8494
      %v8497 = vunpack.c.l.s4 1987475062
      %v8498 = vunpack.c.0.s8 %v8497
      %v8499 = vperm.slane %v7429, %v8498
      %v8501 = vunpack.c.l.s4 269488144
      %v8502 = vunpack.c.0.s8 %v8501
      %v8503 = vperm.slane %v7430, %v8502
      %v8505 = vunpack.c.l.s4 842150450
      %v8506 = vunpack.c.0.s8 %v8505
      %v8507 = vperm.slane %v7430, %v8506
      %v8509 = vunpack.c.l.s4 1414812756
      %v8510 = vunpack.c.0.s8 %v8509
      %v8511 = vperm.slane %v7430, %v8510
      %v8513 = vunpack.c.l.s4 1987475062
      %v8514 = vunpack.c.0.s8 %v8513
      %v8515 = vperm.slane %v7430, %v8514
      %v8517 = vunpack.c.l.s4 269488144
      %v8518 = vunpack.c.0.s8 %v8517
      %v8519 = vperm.slane %v7431, %v8518
      %v8521 = vunpack.c.l.s4 842150450
      %v8522 = vunpack.c.0.s8 %v8521
      %v8523 = vperm.slane %v7431, %v8522
      %v8525 = vunpack.c.l.s4 1414812756
      %v8526 = vunpack.c.0.s8 %v8525
      %v8527 = vperm.slane %v7431, %v8526
      %v8529 = vunpack.c.l.s4 1987475062
      %v8530 = vunpack.c.0.s8 %v8529
      %v8531 = vperm.slane %v7431, %v8530
      %v8533 = vunpack.c.l.s4 269488144
      %v8534 = vunpack.c.0.s8 %v8533
      %v8535 = vperm.slane %v7432, %v8534
      %v8537 = vunpack.c.l.s4 842150450
      %v8538 = vunpack.c.0.s8 %v8537
      %v8539 = vperm.slane %v7432, %v8538
      %v8541 = vunpack.c.l.s4 1414812756
      %v8542 = vunpack.c.0.s8 %v8541
      %v8543 = vperm.slane %v7432, %v8542
      %v8545 = vunpack.c.l.s4 1987475062
      %v8546 = vunpack.c.0.s8 %v8545
      %v8547 = vperm.slane %v7432, %v8546
      %v8549 = vunpack.c.l.s4 269488144
      %v8550 = vunpack.c.0.s8 %v8549
      %v8551 = vperm.slane %v7433, %v8550
      %v8553 = vunpack.c.l.s4 842150450
      %v8554 = vunpack.c.0.s8 %v8553
      %v8555 = vperm.slane %v7433, %v8554
      %v8557 = vunpack.c.l.s4 1414812756
      %v8558 = vunpack.c.0.s8 %v8557
      %v8559 = vperm.slane %v7433, %v8558
      %v8561 = vunpack.c.l.s4 1987475062
      %v8562 = vunpack.c.0.s8 %v8561
      %v8563 = vperm.slane %v7433, %v8562
      %v8565 = vunpack.c.l.s4 269488144
      %v8566 = vunpack.c.0.s8 %v8565
      %v8567 = vperm.slane %v7434, %v8566
      %v8569 = vunpack.c.l.s4 842150450
      %v8570 = vunpack.c.0.s8 %v8569
      %v8571 = vperm.slane %v7434, %v8570
      %v8573 = vunpack.c.l.s4 1414812756
      %v8574 = vunpack.c.0.s8 %v8573
      %v8575 = vperm.slane %v7434, %v8574
      %v8577 = vunpack.c.l.s4 1987475062
      %v8578 = vunpack.c.0.s8 %v8577
      %v8579 = vperm.slane %v7434, %v8578
      %v8581 = vunpack.c.l.s4 269488144
      %v8582 = vunpack.c.0.s8 %v8581
      %v8583 = vperm.slane %v7435, %v8582
      %v8585 = vunpack.c.l.s4 842150450
      %v8586 = vunpack.c.0.s8 %v8585
      %v8587 = vperm.slane %v7435, %v8586
      %v8589 = vunpack.c.l.s4 1414812756
      %v8590 = vunpack.c.0.s8 %v8589
      %v8591 = vperm.slane %v7435, %v8590
      %v8593 = vunpack.c.l.s4 1987475062
      %v8594 = vunpack.c.0.s8 %v8593
      %v8595 = vperm.slane %v7435, %v8594
      %v8596 = vrot.slane %v8471, 1
      %v8597 = vrot.slane %v8475, 1
      %v8598 = vrot.slane %v8479, 1
      %v8599 = vrot.slane %v8483, 1
      %v8600 = vrot.slane %v8487, 1
      %v8601 = vrot.slane %v8491, 1
      %v8602 = vrot.slane %v8495, 1
      %v8603 = vrot.slane %v8499, 1
      %v8604 = vrot.slane %v8503, 1
      %v8605 = vrot.slane %v8507, 1
      %v8606 = vrot.slane %v8511, 1
      %v8607 = vrot.slane %v8515, 1
      %v8608 = vrot.slane %v8519, 1
      %v8609 = vrot.slane %v8523, 1
      %v8610 = vrot.slane %v8527, 1
      %v8611 = vrot.slane %v8531, 1
      %v8612 = vrot.slane %v8535, 1
      %v8613 = vrot.slane %v8539, 1
      %v8614 = vrot.slane %v8543, 1
      %v8615 = vrot.slane %v8547, 1
      %v8616 = vrot.slane %v8551, 1
      %v8617 = vrot.slane %v8555, 1
      %v8618 = vrot.slane %v8559, 1
      %v8619 = vrot.slane %v8563, 1
      %v8620 = vrot.slane %v8567, 1
      %v8621 = vrot.slane %v8571, 1
      %v8622 = vrot.slane %v8575, 1
      %v8623 = vrot.slane %v8579, 1
      %v8624 = vrot.slane %v8583, 1
      %v8625 = vrot.slane %v8587, 1
      %v8626 = vrot.slane %v8591, 1
      %v8627 = vrot.slane %v8595, 1
      %v8628 = vrot.slane %v8020, 7
      %v8629 = vrot.slane %v8628, 2
      %v8630 = vrot.slane %v8021, 7
      %v8631 = vrot.slane %v8630, 2
      %v8632 = vrot.slane %v8022, 7
      %v8633 = vrot.slane %v8632, 2
      %v8634 = vrot.slane %v8023, 7
      %v8635 = vrot.slane %v8634, 2
      %v8636 = vrot.slane %v8024, 7
      %v8637 = vrot.slane %v8636, 2
      %v8638 = vrot.slane %v8025, 7
      %v8639 = vrot.slane %v8638, 2
      %v8640 = vrot.slane %v8026, 7
      %v8641 = vrot.slane %v8640, 2
      %v8642 = vrot.slane %v8027, 7
      %v8643 = vrot.slane %v8642, 2
      %v8644 = vrot.slane %v8028, 7
      %v8645 = vrot.slane %v8644, 2
      %v8646 = vrot.slane %v8029, 7
      %v8647 = vrot.slane %v8646, 2
      %v8648 = vrot.slane %v8030, 7
      %v8649 = vrot.slane %v8648, 2
      %v8650 = vrot.slane %v8031, 7
      %v8651 = vrot.slane %v8650, 2
      %v8652 = vrot.slane %v8032, 7
      %v8653 = vrot.slane %v8652, 2
      %v8654 = vrot.slane %v8033, 7
      %v8655 = vrot.slane %v8654, 2
      %v8656 = vrot.slane %v8034, 7
      %v8657 = vrot.slane %v8656, 2
      %v8658 = vrot.slane %v8035, 7
      %v8659 = vrot.slane %v8658, 2
      %v8660 = vrot.slane %v8036, 7
      %v8661 = vrot.slane %v8660, 2
      %v8662 = vrot.slane %v8037, 7
      %v8663 = vrot.slane %v8662, 2
      %v8664 = vrot.slane %v8038, 7
      %v8665 = vrot.slane %v8664, 2
      %v8666 = vrot.slane %v8039, 7
      %v8667 = vrot.slane %v8666, 2
      %v8668 = vrot.slane %v8040, 7
      %v8669 = vrot.slane %v8668, 2
      %v8670 = vrot.slane %v8041, 7
      %v8671 = vrot.slane %v8670, 2
      %v8672 = vrot.slane %v8042, 7
      %v8673 = vrot.slane %v8672, 2
      %v8674 = vrot.slane %v8043, 7
      %v8675 = vrot.slane %v8674, 2
      %v8676 = vrot.slane %v8044, 7
      %v8677 = vrot.slane %v8676, 2
      %v8678 = vrot.slane %v8045, 7
      %v8679 = vrot.slane %v8678, 2
      %v8680 = vrot.slane %v8046, 7
      %v8681 = vrot.slane %v8680, 2
      %v8682 = vrot.slane %v8047, 7
      %v8683 = vrot.slane %v8682, 2
      %v8684 = vrot.slane %v8048, 7
      %v8685 = vrot.slane %v8684, 2
      %v8686 = vrot.slane %v8049, 7
      %v8687 = vrot.slane %v8686, 2
      %v8688 = vrot.slane %v8050, 7
      %v8689 = vrot.slane %v8688, 2
      %v8690 = vrot.slane %v8051, 7
      %v8691 = vrot.slane %v8690, 2
      %v8692 = vrot.slane %v8052, 7
      %v8693 = vrot.slane %v8692, 2
      %v8694 = vrot.slane %v8053, 7
      %v8695 = vrot.slane %v8694, 2
      %v8696 = vrot.slane %v8054, 7
      %v8697 = vrot.slane %v8696, 2
      %v8698 = vrot.slane %v8055, 7
      %v8699 = vrot.slane %v8698, 2
      %v8700 = vrot.slane %v8056, 7
      %v8701 = vrot.slane %v8700, 2
      %v8702 = vrot.slane %v8057, 7
      %v8703 = vrot.slane %v8702, 2
      %v8704 = vrot.slane %v8058, 7
      %v8705 = vrot.slane %v8704, 2
      %v8706 = vrot.slane %v8059, 7
      %v8707 = vrot.slane %v8706, 2
      %v8708 = vrot.slane %v8060, 7
      %v8709 = vrot.slane %v8708, 2
      %v8710 = vrot.slane %v8061, 7
      %v8711 = vrot.slane %v8710, 2
      %v8712 = vrot.slane %v8062, 7
      %v8713 = vrot.slane %v8712, 2
      %v8714 = vrot.slane %v8063, 7
      %v8715 = vrot.slane %v8714, 2
      %v8716 = vrot.slane %v8064, 7
      %v8717 = vrot.slane %v8716, 2
      %v8718 = vrot.slane %v8065, 7
      %v8719 = vrot.slane %v8718, 2
      %v8720 = vrot.slane %v8066, 7
      %v8721 = vrot.slane %v8720, 2
      %v8722 = vrot.slane %v8067, 7
      %v8723 = vrot.slane %v8722, 2
      %v8724 = vrot.slane %v8068, 7
      %v8725 = vrot.slane %v8724, 2
      %v8726 = vrot.slane %v8069, 7
      %v8727 = vrot.slane %v8726, 2
      %v8728 = vrot.slane %v8070, 7
      %v8729 = vrot.slane %v8728, 2
      %v8730 = vrot.slane %v8071, 7
      %v8731 = vrot.slane %v8730, 2
      %v8732 = vrot.slane %v8072, 7
      %v8733 = vrot.slane %v8732, 2
      %v8734 = vrot.slane %v8073, 7
      %v8735 = vrot.slane %v8734, 2
      %v8736 = vrot.slane %v8074, 7
      %v8737 = vrot.slane %v8736, 2
      %v8738 = vrot.slane %v8075, 7
      %v8739 = vrot.slane %v8738, 2
      %v8740 = vrot.slane %v8076, 7
      %v8741 = vrot.slane %v8740, 2
      %v8742 = vrot.slane %v8077, 7
      %v8743 = vrot.slane %v8742, 2
      %v8744 = vrot.slane %v8078, 7
      %v8745 = vrot.slane %v8744, 2
      %v8746 = vrot.slane %v8079, 7
      %v8747 = vrot.slane %v8746, 2
      %v8748 = vrot.slane %v8080, 7
      %v8749 = vrot.slane %v8748, 2
      %v8750 = vrot.slane %v8081, 7
      %v8751 = vrot.slane %v8750, 2
      %v8752 = vrot.slane %v8082, 7
      %v8753 = vrot.slane %v8752, 2
      %v8754 = vrot.slane %v8083, 7
      %v8755 = vrot.slane %v8754, 2
      %v8756 = vsel %vm8340, %v8471, %v8629
      %v8757 = vsel %vm8341, %v8596, %v8631
      %v8758 = vsel %vm8342, %v8475, %v8633
      %v8759 = vsel %vm8343, %v8597, %v8635
      %v8760 = vsel %vm8344, %v8479, %v8637
      %v8761 = vsel %vm8345, %v8598, %v8639
      %v8762 = vsel %vm8346, %v8483, %v8641
      %v8763 = vsel %vm8347, %v8599, %v8643
      %v8764 = vsel %vm8348, %v8487, %v8645
      %v8765 = vsel %vm8349, %v8600, %v8647
      %v8766 = vsel %vm8350, %v8491, %v8649
      %v8767 = vsel %vm8351, %v8601, %v8651
      %v8768 = vsel %vm8352, %v8495, %v8653
      %v8769 = vsel %vm8353, %v8602, %v8655
      %v8770 = vsel %vm8354, %v8499, %v8657
      %v8771 = vsel %vm8355, %v8603, %v8659
      %v8772 = vsel %vm8356, %v8503, %v8661
      %v8773 = vsel %vm8357, %v8604, %v8663
      %v8774 = vsel %vm8358, %v8507, %v8665
      %v8775 = vsel %vm8359, %v8605, %v8667
      %v8776 = vsel %vm8360, %v8511, %v8669
      %v8777 = vsel %vm8361, %v8606, %v8671
      %v8778 = vsel %vm8362, %v8515, %v8673
      %v8779 = vsel %vm8363, %v8607, %v8675
      %v8780 = vsel %vm8364, %v8519, %v8677
      %v8781 = vsel %vm8365, %v8608, %v8679
      %v8782 = vsel %vm8366, %v8523, %v8681
      %v8783 = vsel %vm8367, %v8609, %v8683
      %v8784 = vsel %vm8368, %v8527, %v8685
      %v8785 = vsel %vm8369, %v8610, %v8687
      %v8786 = vsel %vm8370, %v8531, %v8689
      %v8787 = vsel %vm8371, %v8611, %v8691
      %v8788 = vsel %vm8372, %v8535, %v8693
      %v8789 = vsel %vm8373, %v8612, %v8695
      %v8790 = vsel %vm8374, %v8539, %v8697
      %v8791 = vsel %vm8375, %v8613, %v8699
      %v8792 = vsel %vm8376, %v8543, %v8701
      %v8793 = vsel %vm8377, %v8614, %v8703
      %v8794 = vsel %vm8378, %v8547, %v8705
      %v8795 = vsel %vm8379, %v8615, %v8707
      %v8796 = vsel %vm8380, %v8551, %v8709
      %v8797 = vsel %vm8381, %v8616, %v8711
      %v8798 = vsel %vm8382, %v8555, %v8713
      %v8799 = vsel %vm8383, %v8617, %v8715
      %v8800 = vsel %vm8384, %v8559, %v8717
      %v8801 = vsel %vm8385, %v8618, %v8719
      %v8802 = vsel %vm8386, %v8563, %v8721
      %v8803 = vsel %vm8387, %v8619, %v8723
      %v8804 = vsel %vm8388, %v8567, %v8725
      %v8805 = vsel %vm8389, %v8620, %v8727
      %v8806 = vsel %vm8390, %v8571, %v8729
      %v8807 = vsel %vm8391, %v8621, %v8731
      %v8808 = vsel %vm8392, %v8575, %v8733
      %v8809 = vsel %vm8393, %v8622, %v8735
      %v8810 = vsel %vm8394, %v8579, %v8737
      %v8811 = vsel %vm8395, %v8623, %v8739
      %v8812 = vsel %vm8396, %v8583, %v8741
      %v8813 = vsel %vm8397, %v8624, %v8743
      %v8814 = vsel %vm8398, %v8587, %v8745
      %v8815 = vsel %vm8399, %v8625, %v8747
      %v8816 = vsel %vm8400, %v8591, %v8749
      %v8817 = vsel %vm8401, %v8626, %v8751
      %v8818 = vsel %vm8402, %v8595, %v8753
      %v8819 = vsel %vm8403, %v8627, %v8755
      %v8884 = vrot.slane %v8404, 7
      %v8885 = vrot.slane %v8405, 7
      %v8886 = vrot.slane %v8406, 7
      %v8887 = vrot.slane %v8407, 7
      %v8888 = vrot.slane %v8408, 7
      %v8889 = vrot.slane %v8409, 7
      %v8890 = vrot.slane %v8410, 7
      %v8891 = vrot.slane %v8411, 7
      %v8892 = vrot.slane %v8412, 7
      %v8893 = vrot.slane %v8413, 7
      %v8894 = vrot.slane %v8414, 7
      %v8895 = vrot.slane %v8415, 7
      %v8896 = vrot.slane %v8416, 7
      %v8897 = vrot.slane %v8417, 7
      %v8898 = vrot.slane %v8418, 7
      %v8899 = vrot.slane %v8419, 7
      %v8900 = vrot.slane %v8420, 7
      %v8901 = vrot.slane %v8421, 7
      %v8902 = vrot.slane %v8422, 7
      %v8903 = vrot.slane %v8423, 7
      %v8904 = vrot.slane %v8424, 7
      %v8905 = vrot.slane %v8425, 7
      %v8906 = vrot.slane %v8426, 7
      %v8907 = vrot.slane %v8427, 7
      %v8908 = vrot.slane %v8428, 7
      %v8909 = vrot.slane %v8429, 7
      %v8910 = vrot.slane %v8430, 7
      %v8911 = vrot.slane %v8431, 7
      %v8912 = vrot.slane %v8432, 7
      %v8913 = vrot.slane %v8433, 7
      %v8914 = vrot.slane %v8434, 7
      %v8915 = vrot.slane %v8435, 7
      %v8916 = vrot.slane %v8436, 7
      %v8917 = vrot.slane %v8437, 7
      %v8918 = vrot.slane %v8438, 7
      %v8919 = vrot.slane %v8439, 7
      %v8920 = vrot.slane %v8440, 7
      %v8921 = vrot.slane %v8441, 7
      %v8922 = vrot.slane %v8442, 7
      %v8923 = vrot.slane %v8443, 7
      %v8924 = vrot.slane %v8444, 7
      %v8925 = vrot.slane %v8445, 7
      %v8926 = vrot.slane %v8446, 7
      %v8927 = vrot.slane %v8447, 7
      %v8928 = vrot.slane %v8448, 7
      %v8929 = vrot.slane %v8449, 7
      %v8930 = vrot.slane %v8450, 7
      %v8931 = vrot.slane %v8451, 7
      %v8932 = vrot.slane %v8452, 7
      %v8933 = vrot.slane %v8453, 7
      %v8934 = vrot.slane %v8454, 7
      %v8935 = vrot.slane %v8455, 7
      %v8936 = vrot.slane %v8456, 7
      %v8937 = vrot.slane %v8457, 7
      %v8938 = vrot.slane %v8458, 7
      %v8939 = vrot.slane %v8459, 7
      %v8940 = vrot.slane %v8460, 7
      %v8941 = vrot.slane %v8461, 7
      %v8942 = vrot.slane %v8462, 7
      %v8943 = vrot.slane %v8463, 7
      %v8944 = vrot.slane %v8464, 7
      %v8945 = vrot.slane %v8465, 7
      %v8946 = vrot.slane %v8466, 7
      %v8947 = vrot.slane %v8467, 7
      %vm9012 = vcmp.gt.f32.partialorder %v7156, %v8884
      %vm9013 = vcmp.gt.f32.partialorder %v7224, %v8885
      %vm9014 = vcmp.gt.f32.partialorder %v7225, %v8886
      %vm9015 = vcmp.gt.f32.partialorder %v7226, %v8887
      %vm9016 = vcmp.gt.f32.partialorder %v7157, %v8888
      %vm9017 = vcmp.gt.f32.partialorder %v7227, %v8889
      %vm9018 = vcmp.gt.f32.partialorder %v7228, %v8890
      %vm9019 = vcmp.gt.f32.partialorder %v7229, %v8891
      %vm9020 = vcmp.gt.f32.partialorder %v7160, %v8892
      %vm9021 = vcmp.gt.f32.partialorder %v7236, %v8893
      %vm9022 = vcmp.gt.f32.partialorder %v7237, %v8894
      %vm9023 = vcmp.gt.f32.partialorder %v7238, %v8895
      %vm9024 = vcmp.gt.f32.partialorder %v7161, %v8896
      %vm9025 = vcmp.gt.f32.partialorder %v7239, %v8897
      %vm9026 = vcmp.gt.f32.partialorder %v7240, %v8898
      %vm9027 = vcmp.gt.f32.partialorder %v7241, %v8899
      %vm9028 = vcmp.gt.f32.partialorder %v7164, %v8900
      %vm9029 = vcmp.gt.f32.partialorder %v7248, %v8901
      %vm9030 = vcmp.gt.f32.partialorder %v7249, %v8902
      %vm9031 = vcmp.gt.f32.partialorder %v7250, %v8903
      %vm9032 = vcmp.gt.f32.partialorder %v7165, %v8904
      %vm9033 = vcmp.gt.f32.partialorder %v7251, %v8905
      %vm9034 = vcmp.gt.f32.partialorder %v7252, %v8906
      %vm9035 = vcmp.gt.f32.partialorder %v7253, %v8907
      %vm9036 = vcmp.gt.f32.partialorder %v7168, %v8908
      %vm9037 = vcmp.gt.f32.partialorder %v7260, %v8909
      %vm9038 = vcmp.gt.f32.partialorder %v7261, %v8910
      %vm9039 = vcmp.gt.f32.partialorder %v7262, %v8911
      %vm9040 = vcmp.gt.f32.partialorder %v7169, %v8912
      %vm9041 = vcmp.gt.f32.partialorder %v7263, %v8913
      %vm9042 = vcmp.gt.f32.partialorder %v7264, %v8914
      %vm9043 = vcmp.gt.f32.partialorder %v7265, %v8915
      %vm9044 = vcmp.gt.f32.partialorder %v7172, %v8916
      %vm9045 = vcmp.gt.f32.partialorder %v7272, %v8917
      %vm9046 = vcmp.gt.f32.partialorder %v7273, %v8918
      %vm9047 = vcmp.gt.f32.partialorder %v7274, %v8919
      %vm9048 = vcmp.gt.f32.partialorder %v7173, %v8920
      %vm9049 = vcmp.gt.f32.partialorder %v7275, %v8921
      %vm9050 = vcmp.gt.f32.partialorder %v7276, %v8922
      %vm9051 = vcmp.gt.f32.partialorder %v7277, %v8923
      %vm9052 = vcmp.gt.f32.partialorder %v7176, %v8924
      %vm9053 = vcmp.gt.f32.partialorder %v7284, %v8925
      %vm9054 = vcmp.gt.f32.partialorder %v7285, %v8926
      %vm9055 = vcmp.gt.f32.partialorder %v7286, %v8927
      %vm9056 = vcmp.gt.f32.partialorder %v7177, %v8928
      %vm9057 = vcmp.gt.f32.partialorder %v7287, %v8929
      %vm9058 = vcmp.gt.f32.partialorder %v7288, %v8930
      %vm9059 = vcmp.gt.f32.partialorder %v7289, %v8931
      %vm9060 = vcmp.gt.f32.partialorder %v7180, %v8932
      %vm9061 = vcmp.gt.f32.partialorder %v7296, %v8933
      %vm9062 = vcmp.gt.f32.partialorder %v7297, %v8934
      %vm9063 = vcmp.gt.f32.partialorder %v7298, %v8935
      %vm9064 = vcmp.gt.f32.partialorder %v7181, %v8936
      %vm9065 = vcmp.gt.f32.partialorder %v7299, %v8937
      %vm9066 = vcmp.gt.f32.partialorder %v7300, %v8938
      %vm9067 = vcmp.gt.f32.partialorder %v7301, %v8939
      %vm9068 = vcmp.gt.f32.partialorder %v7184, %v8940
      %vm9069 = vcmp.gt.f32.partialorder %v7308, %v8941
      %vm9070 = vcmp.gt.f32.partialorder %v7309, %v8942
      %vm9071 = vcmp.gt.f32.partialorder %v7310, %v8943
      %vm9072 = vcmp.gt.f32.partialorder %v7185, %v8944
      %vm9073 = vcmp.gt.f32.partialorder %v7311, %v8945
      %vm9074 = vcmp.gt.f32.partialorder %v7312, %v8946
      %vm9075 = vcmp.gt.f32.partialorder %v7313, %v8947
      %v9076 = vsel %vm9012, %v7156, %v8884
      %v9077 = vsel %vm9013, %v7224, %v8885
      %v9078 = vsel %vm9014, %v7225, %v8886
      %v9079 = vsel %vm9015, %v7226, %v8887
      %v9080 = vsel %vm9016, %v7157, %v8888
      %v9081 = vsel %vm9017, %v7227, %v8889
      %v9082 = vsel %vm9018, %v7228, %v8890
      %v9083 = vsel %vm9019, %v7229, %v8891
      %v9084 = vsel %vm9020, %v7160, %v8892
      %v9085 = vsel %vm9021, %v7236, %v8893
      %v9086 = vsel %vm9022, %v7237, %v8894
      %v9087 = vsel %vm9023, %v7238, %v8895
      %v9088 = vsel %vm9024, %v7161, %v8896
      %v9089 = vsel %vm9025, %v7239, %v8897
      %v9090 = vsel %vm9026, %v7240, %v8898
      %v9091 = vsel %vm9027, %v7241, %v8899
      %v9092 = vsel %vm9028, %v7164, %v8900
      %v9093 = vsel %vm9029, %v7248, %v8901
      %v9094 = vsel %vm9030, %v7249, %v8902
      %v9095 = vsel %vm9031, %v7250, %v8903
      %v9096 = vsel %vm9032, %v7165, %v8904
      %v9097 = vsel %vm9033, %v7251, %v8905
      %v9098 = vsel %vm9034, %v7252, %v8906
      %v9099 = vsel %vm9035, %v7253, %v8907
      %v9100 = vsel %vm9036, %v7168, %v8908
      %v9101 = vsel %vm9037, %v7260, %v8909
      %v9102 = vsel %vm9038, %v7261, %v8910
      %v9103 = vsel %vm9039, %v7262, %v8911
      %v9104 = vsel %vm9040, %v7169, %v8912
      %v9105 = vsel %vm9041, %v7263, %v8913
      %v9106 = vsel %vm9042, %v7264, %v8914
      %v9107 = vsel %vm9043, %v7265, %v8915
      %v9108 = vsel %vm9044, %v7172, %v8916
      %v9109 = vsel %vm9045, %v7272, %v8917
      %v9110 = vsel %vm9046, %v7273, %v8918
      %v9111 = vsel %vm9047, %v7274, %v8919
      %v9112 = vsel %vm9048, %v7173, %v8920
      %v9113 = vsel %vm9049, %v7275, %v8921
      %v9114 = vsel %vm9050, %v7276, %v8922
      %v9115 = vsel %vm9051, %v7277, %v8923
      %v9116 = vsel %vm9052, %v7176, %v8924
      %v9117 = vsel %vm9053, %v7284, %v8925
      %v9118 = vsel %vm9054, %v7285, %v8926
      %v9119 = vsel %vm9055, %v7286, %v8927
      %v9120 = vsel %vm9056, %v7177, %v8928
      %v9121 = vsel %vm9057, %v7287, %v8929
      %v9122 = vsel %vm9058, %v7288, %v8930
      %v9123 = vsel %vm9059, %v7289, %v8931
      %v9124 = vsel %vm9060, %v7180, %v8932
      %v9125 = vsel %vm9061, %v7296, %v8933
      %v9126 = vsel %vm9062, %v7297, %v8934
      %v9127 = vsel %vm9063, %v7298, %v8935
      %v9128 = vsel %vm9064, %v7181, %v8936
      %v9129 = vsel %vm9065, %v7299, %v8937
      %v9130 = vsel %vm9066, %v7300, %v8938
      %v9131 = vsel %vm9067, %v7301, %v8939
      %v9132 = vsel %vm9068, %v7184, %v8940
      %v9133 = vsel %vm9069, %v7308, %v8941
      %v9134 = vsel %vm9070, %v7309, %v8942
      %v9135 = vsel %vm9071, %v7310, %v8943
      %v9136 = vsel %vm9072, %v7185, %v8944
      %v9137 = vsel %vm9073, %v7311, %v8945
      %v9138 = vsel %vm9074, %v7312, %v8946
      %v9139 = vsel %vm9075, %v7313, %v8947
      %v9141 = vunpack.c.l.s4 269488144
      %v9142 = vunpack.c.0.s8 %v9141
      %v9143 = vperm.slane %v7436, %v9142
      %v9145 = vunpack.c.l.s4 842150450
      %v9146 = vunpack.c.0.s8 %v9145
      %v9147 = vperm.slane %v7436, %v9146
      %v9149 = vunpack.c.l.s4 1414812756
      %v9150 = vunpack.c.0.s8 %v9149
      %v9151 = vperm.slane %v7436, %v9150
      %v9153 = vunpack.c.l.s4 1987475062
      %v9154 = vunpack.c.0.s8 %v9153
      %v9155 = vperm.slane %v7436, %v9154
      %v9157 = vunpack.c.l.s4 269488144
      %v9158 = vunpack.c.0.s8 %v9157
      %v9159 = vperm.slane %v7437, %v9158
      %v9161 = vunpack.c.l.s4 842150450
      %v9162 = vunpack.c.0.s8 %v9161
      %v9163 = vperm.slane %v7437, %v9162
      %v9165 = vunpack.c.l.s4 1414812756
      %v9166 = vunpack.c.0.s8 %v9165
      %v9167 = vperm.slane %v7437, %v9166
      %v9169 = vunpack.c.l.s4 1987475062
      %v9170 = vunpack.c.0.s8 %v9169
      %v9171 = vperm.slane %v7437, %v9170
      %v9173 = vunpack.c.l.s4 269488144
      %v9174 = vunpack.c.0.s8 %v9173
      %v9175 = vperm.slane %v7438, %v9174
      %v9177 = vunpack.c.l.s4 842150450
      %v9178 = vunpack.c.0.s8 %v9177
      %v9179 = vperm.slane %v7438, %v9178
      %v9181 = vunpack.c.l.s4 1414812756
      %v9182 = vunpack.c.0.s8 %v9181
      %v9183 = vperm.slane %v7438, %v9182
      %v9185 = vunpack.c.l.s4 1987475062
      %v9186 = vunpack.c.0.s8 %v9185
      %v9187 = vperm.slane %v7438, %v9186
      %v9189 = vunpack.c.l.s4 269488144
      %v9190 = vunpack.c.0.s8 %v9189
      %v9191 = vperm.slane %v7439, %v9190
      %v9193 = vunpack.c.l.s4 842150450
      %v9194 = vunpack.c.0.s8 %v9193
      %v9195 = vperm.slane %v7439, %v9194
      %v9197 = vunpack.c.l.s4 1414812756
      %v9198 = vunpack.c.0.s8 %v9197
      %v9199 = vperm.slane %v7439, %v9198
      %v9201 = vunpack.c.l.s4 1987475062
      %v9202 = vunpack.c.0.s8 %v9201
      %v9203 = vperm.slane %v7439, %v9202
      %v9205 = vunpack.c.l.s4 269488144
      %v9206 = vunpack.c.0.s8 %v9205
      %v9207 = vperm.slane %v7440, %v9206
      %v9209 = vunpack.c.l.s4 842150450
      %v9210 = vunpack.c.0.s8 %v9209
      %v9211 = vperm.slane %v7440, %v9210
      %v9213 = vunpack.c.l.s4 1414812756
      %v9214 = vunpack.c.0.s8 %v9213
      %v9215 = vperm.slane %v7440, %v9214
      %v9217 = vunpack.c.l.s4 1987475062
      %v9218 = vunpack.c.0.s8 %v9217
      %v9219 = vperm.slane %v7440, %v9218
      %v9221 = vunpack.c.l.s4 269488144
      %v9222 = vunpack.c.0.s8 %v9221
      %v9223 = vperm.slane %v7441, %v9222
      %v9225 = vunpack.c.l.s4 842150450
      %v9226 = vunpack.c.0.s8 %v9225
      %v9227 = vperm.slane %v7441, %v9226
      %v9229 = vunpack.c.l.s4 1414812756
      %v9230 = vunpack.c.0.s8 %v9229
      %v9231 = vperm.slane %v7441, %v9230
      %v9233 = vunpack.c.l.s4 1987475062
      %v9234 = vunpack.c.0.s8 %v9233
      %v9235 = vperm.slane %v7441, %v9234
      %v9237 = vunpack.c.l.s4 269488144
      %v9238 = vunpack.c.0.s8 %v9237
      %v9239 = vperm.slane %v7442, %v9238
      %v9241 = vunpack.c.l.s4 842150450
      %v9242 = vunpack.c.0.s8 %v9241
      %v9243 = vperm.slane %v7442, %v9242
      %v9245 = vunpack.c.l.s4 1414812756
      %v9246 = vunpack.c.0.s8 %v9245
      %v9247 = vperm.slane %v7442, %v9246
      %v9249 = vunpack.c.l.s4 1987475062
      %v9250 = vunpack.c.0.s8 %v9249
      %v9251 = vperm.slane %v7442, %v9250
      %v9253 = vunpack.c.l.s4 269488144
      %v9254 = vunpack.c.0.s8 %v9253
      %v9255 = vperm.slane %v7443, %v9254
      %v9257 = vunpack.c.l.s4 842150450
      %v9258 = vunpack.c.0.s8 %v9257
      %v9259 = vperm.slane %v7443, %v9258
      %v9261 = vunpack.c.l.s4 1414812756
      %v9262 = vunpack.c.0.s8 %v9261
      %v9263 = vperm.slane %v7443, %v9262
      %v9265 = vunpack.c.l.s4 1987475062
      %v9266 = vunpack.c.0.s8 %v9265
      %v9267 = vperm.slane %v7443, %v9266
      %v9268 = vrot.slane %v9143, 7
      %v9269 = vrot.slane %v9147, 7
      %v9270 = vrot.slane %v9151, 7
      %v9271 = vrot.slane %v9155, 7
      %v9272 = vrot.slane %v9159, 7
      %v9273 = vrot.slane %v9163, 7
      %v9274 = vrot.slane %v9167, 7
      %v9275 = vrot.slane %v9171, 7
      %v9276 = vrot.slane %v9175, 7
      %v9277 = vrot.slane %v9179, 7
      %v9278 = vrot.slane %v9183, 7
      %v9279 = vrot.slane %v9187, 7
      %v9280 = vrot.slane %v9191, 7
      %v9281 = vrot.slane %v9195, 7
      %v9282 = vrot.slane %v9199, 7
      %v9283 = vrot.slane %v9203, 7
      %v9284 = vrot.slane %v9207, 7
      %v9285 = vrot.slane %v9211, 7
      %v9286 = vrot.slane %v9215, 7
      %v9287 = vrot.slane %v9219, 7
      %v9288 = vrot.slane %v9223, 7
      %v9289 = vrot.slane %v9227, 7
      %v9290 = vrot.slane %v9231, 7
      %v9291 = vrot.slane %v9235, 7
      %v9292 = vrot.slane %v9239, 7
      %v9293 = vrot.slane %v9243, 7
      %v9294 = vrot.slane %v9247, 7
      %v9295 = vrot.slane %v9251, 7
      %v9296 = vrot.slane %v9255, 7
      %v9297 = vrot.slane %v9259, 7
      %v9298 = vrot.slane %v9263, 7
      %v9299 = vrot.slane %v9267, 7
      %v9300 = vrot.slane %v8756, 7
      %v9301 = vrot.slane %v8757, 7
      %v9302 = vrot.slane %v8758, 7
      %v9303 = vrot.slane %v8759, 7
      %v9304 = vrot.slane %v8760, 7
      %v9305 = vrot.slane %v8761, 7
      %v9306 = vrot.slane %v8762, 7
      %v9307 = vrot.slane %v8763, 7
      %v9308 = vrot.slane %v8764, 7
      %v9309 = vrot.slane %v8765, 7
      %v9310 = vrot.slane %v8766, 7
      %v9311 = vrot.slane %v8767, 7
      %v9312 = vrot.slane %v8768, 7
      %v9313 = vrot.slane %v8769, 7
      %v9314 = vrot.slane %v8770, 7
      %v9315 = vrot.slane %v8771, 7
      %v9316 = vrot.slane %v8772, 7
      %v9317 = vrot.slane %v8773, 7
      %v9318 = vrot.slane %v8774, 7
      %v9319 = vrot.slane %v8775, 7
      %v9320 = vrot.slane %v8776, 7
      %v9321 = vrot.slane %v8777, 7
      %v9322 = vrot.slane %v8778, 7
      %v9323 = vrot.slane %v8779, 7
      %v9324 = vrot.slane %v8780, 7
      %v9325 = vrot.slane %v8781, 7
      %v9326 = vrot.slane %v8782, 7
      %v9327 = vrot.slane %v8783, 7
      %v9328 = vrot.slane %v8784, 7
      %v9329 = vrot.slane %v8785, 7
      %v9330 = vrot.slane %v8786, 7
      %v9331 = vrot.slane %v8787, 7
      %v9332 = vrot.slane %v8788, 7
      %v9333 = vrot.slane %v8789, 7
      %v9334 = vrot.slane %v8790, 7
      %v9335 = vrot.slane %v8791, 7
      %v9336 = vrot.slane %v8792, 7
      %v9337 = vrot.slane %v8793, 7
      %v9338 = vrot.slane %v8794, 7
      %v9339 = vrot.slane %v8795, 7
      %v9340 = vrot.slane %v8796, 7
      %v9341 = vrot.slane %v8797, 7
      %v9342 = vrot.slane %v8798, 7
      %v9343 = vrot.slane %v8799, 7
      %v9344 = vrot.slane %v8800, 7
      %v9345 = vrot.slane %v8801, 7
      %v9346 = vrot.slane %v8802, 7
      %v9347 = vrot.slane %v8803, 7
      %v9348 = vrot.slane %v8804, 7
      %v9349 = vrot.slane %v8805, 7
      %v9350 = vrot.slane %v8806, 7
      %v9351 = vrot.slane %v8807, 7
      %v9352 = vrot.slane %v8808, 7
      %v9353 = vrot.slane %v8809, 7
      %v9354 = vrot.slane %v8810, 7
      %v9355 = vrot.slane %v8811, 7
      %v9356 = vrot.slane %v8812, 7
      %v9357 = vrot.slane %v8813, 7
      %v9358 = vrot.slane %v8814, 7
      %v9359 = vrot.slane %v8815, 7
      %v9360 = vrot.slane %v8816, 7
      %v9361 = vrot.slane %v8817, 7
      %v9362 = vrot.slane %v8818, 7
      %v9363 = vrot.slane %v8819, 7
      %v9364 = vsel %vm9012, %v9268, %v9300
      %v9365 = vsel %vm9013, %v9143, %v9301
      %v9366 = vsel %vm9014, %v9269, %v9302
      %v9367 = vsel %vm9015, %v9147, %v9303
      %v9368 = vsel %vm9016, %v9270, %v9304
      %v9369 = vsel %vm9017, %v9151, %v9305
      %v9370 = vsel %vm9018, %v9271, %v9306
      %v9371 = vsel %vm9019, %v9155, %v9307
      %v9372 = vsel %vm9020, %v9272, %v9308
      %v9373 = vsel %vm9021, %v9159, %v9309
      %v9374 = vsel %vm9022, %v9273, %v9310
      %v9375 = vsel %vm9023, %v9163, %v9311
      %v9376 = vsel %vm9024, %v9274, %v9312
      %v9377 = vsel %vm9025, %v9167, %v9313
      %v9378 = vsel %vm9026, %v9275, %v9314
      %v9379 = vsel %vm9027, %v9171, %v9315
      %v9380 = vsel %vm9028, %v9276, %v9316
      %v9381 = vsel %vm9029, %v9175, %v9317
      %v9382 = vsel %vm9030, %v9277, %v9318
      %v9383 = vsel %vm9031, %v9179, %v9319
      %v9384 = vsel %vm9032, %v9278, %v9320
      %v9385 = vsel %vm9033, %v9183, %v9321
      %v9386 = vsel %vm9034, %v9279, %v9322
      %v9387 = vsel %vm9035, %v9187, %v9323
      %v9388 = vsel %vm9036, %v9280, %v9324
      %v9389 = vsel %vm9037, %v9191, %v9325
      %v9390 = vsel %vm9038, %v9281, %v9326
      %v9391 = vsel %vm9039, %v9195, %v9327
      %v9392 = vsel %vm9040, %v9282, %v9328
      %v9393 = vsel %vm9041, %v9199, %v9329
      %v9394 = vsel %vm9042, %v9283, %v9330
      %v9395 = vsel %vm9043, %v9203, %v9331
      %v9396 = vsel %vm9044, %v9284, %v9332
      %v9397 = vsel %vm9045, %v9207, %v9333
      %v9398 = vsel %vm9046, %v9285, %v9334
      %v9399 = vsel %vm9047, %v9211, %v9335
      %v9400 = vsel %vm9048, %v9286, %v9336
      %v9401 = vsel %vm9049, %v9215, %v9337
      %v9402 = vsel %vm9050, %v9287, %v9338
      %v9403 = vsel %vm9051, %v9219, %v9339
      %v9404 = vsel %vm9052, %v9288, %v9340
      %v9405 = vsel %vm9053, %v9223, %v9341
      %v9406 = vsel %vm9054, %v9289, %v9342
      %v9407 = vsel %vm9055, %v9227, %v9343
      %v9408 = vsel %vm9056, %v9290, %v9344
      %v9409 = vsel %vm9057, %v9231, %v9345
      %v9410 = vsel %vm9058, %v9291, %v9346
      %v9411 = vsel %vm9059, %v9235, %v9347
      %v9412 = vsel %vm9060, %v9292, %v9348
      %v9413 = vsel %vm9061, %v9239, %v9349
      %v9414 = vsel %vm9062, %v9293, %v9350
      %v9415 = vsel %vm9063, %v9243, %v9351
      %v9416 = vsel %vm9064, %v9294, %v9352
      %v9417 = vsel %vm9065, %v9247, %v9353
      %v9418 = vsel %vm9066, %v9295, %v9354
      %v9419 = vsel %vm9067, %v9251, %v9355
      %v9420 = vsel %vm9068, %v9296, %v9356
      %v9421 = vsel %vm9069, %v9255, %v9357
      %v9422 = vsel %vm9070, %v9297, %v9358
      %v9423 = vsel %vm9071, %v9259, %v9359
      %v9424 = vsel %vm9072, %v9298, %v9360
      %v9425 = vsel %vm9073, %v9263, %v9361
      %v9426 = vsel %vm9074, %v9299, %v9362
      %v9427 = vsel %vm9075, %v9267, %v9363
      %v9492 = vperm.slane %v9076, 1
      %v9493 = vperm.slane %v9077, 1
      %v9494 = vperm.slane %v9078, 1
      %v9495 = vperm.slane %v9079, 1
      %v9496 = vperm.slane %v9080, 1
      %v9497 = vperm.slane %v9081, 1
      %v9498 = vperm.slane %v9082, 1
      %v9499 = vperm.slane %v9083, 1
      %v9500 = vperm.slane %v9084, 1
      %v9501 = vperm.slane %v9085, 1
      %v9502 = vperm.slane %v9086, 1
      %v9503 = vperm.slane %v9087, 1
      %v9504 = vperm.slane %v9088, 1
      %v9505 = vperm.slane %v9089, 1
      %v9506 = vperm.slane %v9090, 1
      %v9507 = vperm.slane %v9091, 1
      %v9508 = vperm.slane %v9092, 1
      %v9509 = vperm.slane %v9093, 1
      %v9510 = vperm.slane %v9094, 1
      %v9511 = vperm.slane %v9095, 1
      %v9512 = vperm.slane %v9096, 1
      %v9513 = vperm.slane %v9097, 1
      %v9514 = vperm.slane %v9098, 1
      %v9515 = vperm.slane %v9099, 1
      %v9516 = vperm.slane %v9100, 1
      %v9517 = vperm.slane %v9101, 1
      %v9518 = vperm.slane %v9102, 1
      %v9519 = vperm.slane %v9103, 1
      %v9520 = vperm.slane %v9104, 1
      %v9521 = vperm.slane %v9105, 1
      %v9522 = vperm.slane %v9106, 1
      %v9523 = vperm.slane %v9107, 1
      %v9524 = vperm.slane %v9108, 1
      %v9525 = vperm.slane %v9109, 1
      %v9526 = vperm.slane %v9110, 1
      %v9527 = vperm.slane %v9111, 1
      %v9528 = vperm.slane %v9112, 1
      %v9529 = vperm.slane %v9113, 1
      %v9530 = vperm.slane %v9114, 1
      %v9531 = vperm.slane %v9115, 1
      %v9532 = vperm.slane %v9116, 1
      %v9533 = vperm.slane %v9117, 1
      %v9534 = vperm.slane %v9118, 1
      %v9535 = vperm.slane %v9119, 1
      %v9536 = vperm.slane %v9120, 1
      %v9537 = vperm.slane %v9121, 1
      %v9538 = vperm.slane %v9122, 1
      %v9539 = vperm.slane %v9123, 1
      %v9540 = vperm.slane %v9124, 1
      %v9541 = vperm.slane %v9125, 1
      %v9542 = vperm.slane %v9126, 1
      %v9543 = vperm.slane %v9127, 1
      %v9544 = vperm.slane %v9128, 1
      %v9545 = vperm.slane %v9129, 1
      %v9546 = vperm.slane %v9130, 1
      %v9547 = vperm.slane %v9131, 1
      %v9548 = vperm.slane %v9132, 1
      %v9549 = vperm.slane %v9133, 1
      %v9550 = vperm.slane %v9134, 1
      %v9551 = vperm.slane %v9135, 1
      %v9552 = vperm.slane %v9136, 1
      %v9553 = vperm.slane %v9137, 1
      %v9554 = vperm.slane %v9138, 1
      %v9555 = vperm.slane %v9139, 1
      %vm9556 = vcmask 1042434
      %v9557 = vsel %vm9556, %v9493, %v9492
      %vm9558 = vcmask 1043459
      %v9559 = vsel %vm9558, %v9494, %v9557
      %vm9560 = vcmask 1044484
      %v9561 = vsel %vm9560, %v9495, %v9559
      %vm9562 = vcmask 1045509
      %v9563 = vsel %vm9562, %v9496, %v9561
      %vm9564 = vcmask 1046534
      %v9565 = vsel %vm9564, %v9497, %v9563
      %vm9566 = vcmask 1047559
      %v9567 = vsel %vm9566, %v9498, %v9565
      %vm9568 = vcmask 1041409
      %v9569 = vsel %vm9568, %v9500, %v9499
      %v9570 = vsel %vm9556, %v9501, %v9569
      %v9571 = vsel %vm9558, %v9502, %v9570
      %v9572 = vsel %vm9560, %v9503, %v9571
      %v9573 = vsel %vm9562, %v9504, %v9572
      %v9574 = vsel %vm9564, %v9505, %v9573
      %v9575 = vsel %vm9566, %v9506, %v9574
      %v9576 = vsel %vm9568, %v9508, %v9507
      %v9577 = vsel %vm9556, %v9509, %v9576
      %v9578 = vsel %vm9558, %v9510, %v9577
      %v9579 = vsel %vm9560, %v9511, %v9578
      %v9580 = vsel %vm9562, %v9512, %v9579
      %v9581 = vsel %vm9564, %v9513, %v9580
      %v9582 = vsel %vm9566, %v9514, %v9581
      %v9583 = vsel %vm9568, %v9516, %v9515
      %v9584 = vsel %vm9556, %v9517, %v9583
      %v9585 = vsel %vm9558, %v9518, %v9584
      %v9586 = vsel %vm9560, %v9519, %v9585
      %v9587 = vsel %vm9562, %v9520, %v9586
      %v9588 = vsel %vm9564, %v9521, %v9587
      %v9589 = vsel %vm9566, %v9522, %v9588
      %v9590 = vsel %vm9568, %v9524, %v9523
      %v9591 = vsel %vm9556, %v9525, %v9590
      %v9592 = vsel %vm9558, %v9526, %v9591
      %v9593 = vsel %vm9560, %v9527, %v9592
      %v9594 = vsel %vm9562, %v9528, %v9593
      %v9595 = vsel %vm9564, %v9529, %v9594
      %v9596 = vsel %vm9566, %v9530, %v9595
      %v9597 = vsel %vm9568, %v9532, %v9531
      %v9598 = vsel %vm9556, %v9533, %v9597
      %v9599 = vsel %vm9558, %v9534, %v9598
      %v9600 = vsel %vm9560, %v9535, %v9599
      %v9601 = vsel %vm9562, %v9536, %v9600
      %v9602 = vsel %vm9564, %v9537, %v9601
      %v9603 = vsel %vm9566, %v9538, %v9602
      %v9604 = vsel %vm9568, %v9540, %v9539
      %v9605 = vsel %vm9556, %v9541, %v9604
      %v9606 = vsel %vm9558, %v9542, %v9605
      %v9607 = vsel %vm9560, %v9543, %v9606
      %v9608 = vsel %vm9562, %v9544, %v9607
      %v9609 = vsel %vm9564, %v9545, %v9608
      %v9610 = vsel %vm9566, %v9546, %v9609
      %v9611 = vsel %vm9568, %v9548, %v9547
      %v9612 = vsel %vm9556, %v9549, %v9611
      %v9613 = vsel %vm9558, %v9550, %v9612
      %v9614 = vsel %vm9560, %v9551, %v9613
      %v9615 = vsel %vm9562, %v9552, %v9614
      %v9616 = vsel %vm9564, %v9553, %v9615
      %v9617 = vsel %vm9566, %v9554, %v9616
      %vm9627 = vcmask 64513
      %9628 = vst.msk [vmem:[%s313 - $0x1] sm:$0xfe] %vm9627, %v9567
      %9629 = vst.msk [vmem:[%s313 + $0x7] sm:$0xff] %vm366, %v9575
      %9630 = vst.msk [vmem:[%s313 + $0xf] sm:$0xff] %vm366, %v9582
      %9631 = vst.msk [vmem:[%s313 + $0x17] sm:$0xff] %vm366, %v9589
      %9632 = vst.msk [vmem:[%s313 + $0x1f] sm:$0xff] %vm366, %v9596
      %9633 = vst.msk [vmem:[%s313 + $0x27] sm:$0xff] %vm366, %v9603
      %9634 = vst.msk [vmem:[%s313 + $0x2f] sm:$0xff] %vm366, %v9610
      %9635 = vst.msk [vmem:[%s313 + $0x37] sm:$0xff] %vm366, %v9617
      %9636 = vst.msk [vmem:[%s313 + $0x3f] sm:$0x1] %vm375, %v9555
      %v9637 = vperm.slane %v9364, 1
      %v9638 = vperm.slane %v9365, 1
      %v9639 = vperm.slane %v9366, 1
      %v9640 = vperm.slane %v9367, 1
      %v9641 = vperm.slane %v9368, 1
      %v9642 = vperm.slane %v9369, 1
      %v9643 = vperm.slane %v9370, 1
      %v9644 = vperm.slane %v9371, 1
      %v9645 = vperm.slane %v9372, 1
      %v9646 = vperm.slane %v9373, 1
      %v9647 = vperm.slane %v9374, 1
      %v9648 = vperm.slane %v9375, 1
      %v9649 = vperm.slane %v9376, 1
      %v9650 = vperm.slane %v9377, 1
      %v9651 = vperm.slane %v9378, 1
      %v9652 = vperm.slane %v9379, 1
      %v9653 = vperm.slane %v9380, 1
      %v9654 = vperm.slane %v9381, 1
      %v9655 = vperm.slane %v9382, 1
      %v9656 = vperm.slane %v9383, 1
      %v9657 = vperm.slane %v9384, 1
      %v9658 = vperm.slane %v9385, 1
      %v9659 = vperm.slane %v9386, 1
      %v9660 = vperm.slane %v9387, 1
      %v9661 = vperm.slane %v9388, 1
      %v9662 = vperm.slane %v9389, 1
      %v9663 = vperm.slane %v9390, 1
      %v9664 = vperm.slane %v9391, 1
      %v9665 = vperm.slane %v9392, 1
      %v9666 = vperm.slane %v9393, 1
      %v9667 = vperm.slane %v9394, 1
      %v9668 = vperm.slane %v9395, 1
      %v9669 = vperm.slane %v9396, 1
      %v9670 = vperm.slane %v9397, 1
      %v9671 = vperm.slane %v9398, 1
      %v9672 = vperm.slane %v9399, 1
      %v9673 = vperm.slane %v9400, 1
      %v9674 = vperm.slane %v9401, 1
      %v9675 = vperm.slane %v9402, 1
      %v9676 = vperm.slane %v9403, 1
      %v9677 = vperm.slane %v9404, 1
      %v9678 = vperm.slane %v9405, 1
      %v9679 = vperm.slane %v9406, 1
      %v9680 = vperm.slane %v9407, 1
      %v9681 = vperm.slane %v9408, 1
      %v9682 = vperm.slane %v9409, 1
      %v9683 = vperm.slane %v9410, 1
      %v9684 = vperm.slane %v9411, 1
      %v9685 = vperm.slane %v9412, 1
      %v9686 = vperm.slane %v9413, 1
      %v9687 = vperm.slane %v9414, 1
      %v9688 = vperm.slane %v9415, 1
      %v9689 = vperm.slane %v9416, 1
      %v9690 = vperm.slane %v9417, 1
      %v9691 = vperm.slane %v9418, 1
      %v9692 = vperm.slane %v9419, 1
      %v9693 = vperm.slane %v9420, 1
      %v9694 = vperm.slane %v9421, 1
      %v9695 = vperm.slane %v9422, 1
      %v9696 = vperm.slane %v9423, 1
      %v9697 = vperm.slane %v9424, 1
      %v9698 = vperm.slane %v9425, 1
      %v9699 = vperm.slane %v9426, 1
      %v9700 = vperm.slane %v9427, 1
      %v9701 = vsel %vm9556, %v9638, %v9637
      %v9702 = vsel %vm9558, %v9639, %v9701
      %v9703 = vsel %vm9560, %v9640, %v9702
      %v9704 = vsel %vm9562, %v9641, %v9703
      %v9705 = vsel %vm9564, %v9642, %v9704
      %v9706 = vsel %vm9566, %v9643, %v9705
      %v9707 = vsel %vm9568, %v9645, %v9644
      %v9708 = vsel %vm9556, %v9646, %v9707
      %v9709 = vsel %vm9558, %v9647, %v9708
      %v9710 = vsel %vm9560, %v9648, %v9709
      %v9711 = vsel %vm9562, %v9649, %v9710
      %v9712 = vsel %vm9564, %v9650, %v9711
      %v9713 = vsel %vm9566, %v9651, %v9712
      %v9714 = vsel %vm9568, %v9653, %v9652
      %v9715 = vsel %vm9556, %v9654, %v9714
      %v9716 = vsel %vm9558, %v9655, %v9715
      %v9717 = vsel %vm9560, %v9656, %v9716
      %v9718 = vsel %vm9562, %v9657, %v9717
      %v9719 = vsel %vm9564, %v9658, %v9718
      %v9720 = vsel %vm9566, %v9659, %v9719
      %v9721 = vsel %vm9568, %v9661, %v9660
      %v9722 = vsel %vm9556, %v9662, %v9721
      %v9723 = vsel %vm9558, %v9663, %v9722
      %v9724 = vsel %vm9560, %v9664, %v9723
      %v9725 = vsel %vm9562, %v9665, %v9724
      %v9726 = vsel %vm9564, %v9666, %v9725
      %v9727 = vsel %vm9566, %v9667, %v9726
      %v9728 = vsel %vm9568, %v9669, %v9668
      %v9729 = vsel %vm9556, %v9670, %v9728
      %v9730 = vsel %vm9558, %v9671, %v9729
      %v9731 = vsel %vm9560, %v9672, %v9730
      %v9732 = vsel %vm9562, %v9673, %v9731
      %v9733 = vsel %vm9564, %v9674, %v9732
      %v9734 = vsel %vm9566, %v9675, %v9733
      %v9735 = vsel %vm9568, %v9677, %v9676
      %v9736 = vsel %vm9556, %v9678, %v9735
      %v9737 = vsel %vm9558, %v9679, %v9736
      %v9738 = vsel %vm9560, %v9680, %v9737
      %v9739 = vsel %vm9562, %v9681, %v9738
      %v9740 = vsel %vm9564, %v9682, %v9739
      %v9741 = vsel %vm9566, %v9683, %v9740
      %v9742 = vsel %vm9568, %v9685, %v9684
      %v9743 = vsel %vm9556, %v9686, %v9742
      %v9744 = vsel %vm9558, %v9687, %v9743
      %v9745 = vsel %vm9560, %v9688, %v9744
      %v9746 = vsel %vm9562, %v9689, %v9745
      %v9747 = vsel %vm9564, %v9690, %v9746
      %v9748 = vsel %vm9566, %v9691, %v9747
      %v9749 = vsel %vm9568, %v9693, %v9692
      %v9750 = vsel %vm9556, %v9694, %v9749
      %v9751 = vsel %vm9558, %v9695, %v9750
      %v9752 = vsel %vm9560, %v9696, %v9751
      %v9753 = vsel %vm9562, %v9697, %v9752
      %v9754 = vsel %vm9564, %v9698, %v9753
      %v9755 = vsel %vm9566, %v9699, %v9754
      %9756 = vst.msk [vmem:[%s318 - $0x1] sm:$0xfe] %vm9627, %v9706
      %9757 = vst.msk [vmem:[%s318 + $0x7] sm:$0xff] %vm366, %v9713
      %9758 = vst.msk [vmem:[%s318 + $0xf] sm:$0xff] %vm366, %v9720
      %9759 = vst.msk [vmem:[%s318 + $0x17] sm:$0xff] %vm366, %v9727
      %9760 = vst.msk [vmem:[%s318 + $0x1f] sm:$0xff] %vm366, %v9734
      %9761 = vst.msk [vmem:[%s318 + $0x27] sm:$0xff] %vm366, %v9741
      %9762 = vst.msk [vmem:[%s318 + $0x2f] sm:$0xff] %vm366, %v9748
      %9763 = vst.msk [vmem:[%s318 + $0x37] sm:$0xff] %vm366, %v9755
      %9764 = vst.msk [vmem:[%s318 + $0x3f] sm:$0x1] %vm375, %v9700
      %p9765 = scmp.lt.s32.totalorder %s20, 1
      %s9766 = scalar_select %p9765, %s20, 1
      %s9767 = smul.addr %s9766, 8
      %s9768 = smul.addr %s9767, 8
      %s9769 = scalar_lea.vmem %s7, %s9768
      %p9770 = scmp.lt.s32.totalorder %s20, 1
      %s9771 = scalar_select %p9770, %s20, 1
      %s9772 = smul.addr %s9771, 8
      %s9773 = smul.addr %s9772, 8
      %s9774 = scalar_lea.vmem %s8, %s9773
      // Predicated region
      $region49: #{segnet3_encoder_block.1} parent=47 // pred_check
        %p9775 = pneg %p190
      $region50: #{segnet3_encoder_block.1} parent=47 // pred_check_branch
        %9777 = sbr.rel (%p9775) target = $region52
      $region51: #{segnet3_encoder_block.1} parent=47 // pred_region
        _
      $region52: #{segnet3_encoder_block.1} parent=47 // pred_fallthru
        _
      // Predicated region
      $region53: #{segnet3_encoder_block.1} parent=47 // pred_check
        %p9778 = pneg %p216
      $region54: #{segnet3_encoder_block.1} parent=47 // pred_check_branch
        %9780 = sbr.rel (%p9778) target = $region56
      $region55: #{segnet3_encoder_block.1} parent=47 // pred_region
        _
      $region56: #{segnet3_encoder_block.1} parent=47 // pred_fallthru
        _
    $region48: #{segnet3_encoder_block.1} parent=5 // pred_fallthru
      _
    %p9781 = scmp.le.s32.totalorder 2, %s15
    // Predicated region
    $region57: #{segnet3_encoder_block.1} parent=5 // pred_check
      %p9782 = pneg %p9781
    $region58: #{segnet3_encoder_block.1} parent=5 // pred_check_branch
      %9784 = sbr.rel (%p9782) target = $region60
    $region59: #{segnet3_encoder_block.1} parent=5 // pred_region
      %s9785 = ssub.s32 %s15, 2
      // Predicated region
      $region61: #{segnet3_encoder_block.1} parent=59 // pred_check
        %p9786 = pneg %p196
      $region62: #{segnet3_encoder_block.1} parent=59 // pred_check_branch
        %9788 = sbr.rel (%p9786) target = $region64
      $region63: #{segnet3_encoder_block.1} parent=59 // pred_region
        %p9789 = scmp.lt.s32.totalorder %s21, 1
        %s9790 = scalar_select %p9789, %s21, 1
        %s9791 = smul.addr %s9790, 8
        %s9792 = smul.addr %s9791, 8
        %s9793 = scalar_lea.vmem %s7, %s9792
      $region64: #{segnet3_encoder_block.1} parent=59 // pred_fallthru
        _
      // Predicated region
      $region65: #{segnet3_encoder_block.1} parent=59 // pred_check
        %p9794 = pneg %p222
      $region66: #{segnet3_encoder_block.1} parent=59 // pred_check_branch
        %9796 = sbr.rel (%p9794) target = $region68
      $region67: #{segnet3_encoder_block.1} parent=59 // pred_region
        %p9797 = scmp.lt.s32.totalorder %s21, 1
        %s9798 = scalar_select %p9797, %s21, 1
        %s9799 = smul.addr %s9798, 8
        %s9800 = smul.addr %s9799, 8
        %s9801 = scalar_lea.vmem %s8, %s9800
      $region68: #{segnet3_encoder_block.1} parent=59 // pred_fallthru
        _
    $region60: #{segnet3_encoder_block.1} parent=5 // pred_fallthru
      _
  $region6: #{segnet3_encoder_block.1} parent=0 // loop_footer
    %s19 = sadd.s32 1, %s15
  $region7: #{segnet3_encoder_block.1} parent=0 // loop_footer_branch
    %14 = sbr.rel target = $region3
  $region8: #{segnet3_encoder_block.1} parent=0 // loop_exit
    _

</llo_original>
